<compile_context>
chip_gen: v7x
topology: tpu7x:2x2x1
jax: 0.10.0
libtpu: 0.0.40
codegen_flags: <defaults>
</compile_context>

<pallas_src>
import jax
import jax.numpy as jnp
from jax.experimental import pallas as pl
from jax.experimental.pallas import tpu as pltpu  # noqa: F401  (TPU backend)

# ----------------------------- configuration --------------------------------
IMG_SIZE    = 16
PATCH_SIZE  = 4
CHANNELS    = 4
EMBED_DIM   = 32
NUM_HEADS   = 4
MLP_DIM     = 64
DROP_RATE   = 0.0          # dropout is identity in eval mode
DEPTH       = 2
NUM_CLASSES = 10

NUM_PATCHES = (IMG_SIZE // PATCH_SIZE) ** 2          # 16
SEQ         = NUM_PATCHES + 1                        # 17 (cls + patches)
SEQ_PAD     = 24                                     # padded to multiple of 8
HEAD_DIM    = EMBED_DIM // NUM_HEADS                 # 8
PATCH_DIM   = CHANNELS * PATCH_SIZE * PATCH_SIZE     # 64
LN_EPS      = 1e-5
HEAD_PAD    = 128                                    # lane-padded logits width
NEG_MASK    = -1e9                                   # additive mask for pad keys
_SQRT1_2    = 0.7071067811865476


# ------------------------------ math helpers ---------------------------------
def _layernorm(v, w, b):
    mu = jnp.mean(v, axis=-1, keepdims=True)
    var = jnp.mean(jnp.square(v - mu), axis=-1, keepdims=True)
    return (v - mu) * jax.lax.rsqrt(var + LN_EPS) * w + b


def _erf_approx(x):
    # Abramowitz & Stegun 7.1.26, |error| <= 1.5e-7; uses only exp/mul/add/where.
    ax = jnp.abs(x)
    t = 1.0 / (1.0 + 0.3275911 * ax)
    poly = t * (0.254829592 + t * (-0.284496736 + t * (1.421413741
               + t * (-1.453152027 + t * 1.061405429))))
    y = 1.0 - poly * jnp.exp(-ax * ax)
    return jnp.where(x < 0, -y, y)


def _gelu(x):
    # erf-based (exact) GELU, matching PyTorch F.gelu's default.
    return 0.5 * x * (1.0 + _erf_approx(x * _SQRT1_2))


# ------------------------------- kernel --------------------------------------
def vit_fused_kernel(patches_ref,     # (B*SEQ_PAD, PATCH_DIM) zero rows at cls/pad slots
                     patch_w_ref,     # (PATCH_DIM, E)   flattened conv weight, transposed
                     embed_bias_ref,  # (B*SEQ_PAD, E)   cls+pos0 / conv_b+pos / zeros
                     attn_mask_ref,   # (1, SEQ_PAD)     0 at real keys, NEG_MASK at pads
                     lnp_ref,         # (DEPTH, 4, E)    [ln1_w, ln1_b, ln2_w, ln2_b]
                     attn_w_ref,      # (DEPTH, E, 4E)   [Wq | Wv | Wk | Wo]
                     attn_b_ref,      # (DEPTH, 1, 4E)   [bq | bv | bk | bo]
                     fc1_w_ref,       # (DEPTH, E, MLP_DIM)
                     fc1_b_ref,       # (DEPTH, 1, MLP_DIM)
                     fc2_w_ref,       # (DEPTH, MLP_DIM, E)
                     fc2_b_ref,       # (DEPTH, 1, E)
                     head_ln_ref,     # (2, E)           [norm_w, norm_b]
                     head_w_ref,      # (E, HEAD_PAD)    zero-padded past NUM_CLASSES
                     head_b_ref,      # (1, HEAD_PAD)
                     out_ref):        # (B, HEAD_PAD)
    B = out_ref.shape[0]
    E = EMBED_DIM
    S = SEQ_PAD
    HD = HEAD_DIM
    scale = 1.0 / float(HD) ** 0.5

    # ---- patch embedding: one MXU matmul + one vectorized add (no concats) ----
    h = jnp.dot(patches_ref[...], patch_w_ref[...],
                preferred_element_type=jnp.float32) + embed_bias_ref[...]   # (B*S, E)

    mask = attn_mask_ref[...]                                               # (1, S)

    # ---- encoder layers: weights resident in VMEM, statically unrolled ----
    for l in range(DEPTH):
        lnp = lnp_ref[l]                                   # (4, E)
        ln1_w, ln1_b = lnp[0:1, :], lnp[1:2, :]
        ln2_w, ln2_b = lnp[2:3, :], lnp[3:4, :]
        aw = attn_w_ref[l]                                 # (E, 4E)
        ab = attn_b_ref[l]                                 # (1, 4E)

        x1 = _layernorm(h, ln1_w, ln1_b)   # query / value source (norm1)
        x2 = _layernorm(h, ln2_w, ln2_b)   # key source (norm2)

        # merged Q|V projection (single N=2E matmul) + K projection
        qv = jnp.dot(x1, aw[:, 0:2 * E],
                     preferred_element_type=jnp.float32) + ab[:, 0:2 * E]   # (B*S, 2E)
        k = jnp.dot(x2, aw[:, 2 * E:3 * E],
                    preferred_element_type=jnp.float32) + ab[:, 2 * E:3 * E]

        # per-head attention, batched over images (no per-image Python loop)
        heads = []
        for hh in range(NUM_HEADS):
            lo = hh * HD
            qh = qv[:, lo:lo + HD].reshape(B, S, HD)
            vh = qv[:, E + lo:E + lo + HD].reshape(B, S, HD)
            kh = k[:, lo:lo + HD].reshape(B, S, HD)
            s = jnp.einsum('bqd,bkd->bqk', qh, kh,
                           preferred_element_type=jnp.float32) * scale
            s = s + mask                                   # mask pad key columns
            s = s - jnp.max(s, axis=-1, keepdims=True)
            p = jnp.exp(s)
            p = p * pl.reciprocal(jnp.sum(p, axis=-1, keepdims=True), approx=True)
            heads.append(jnp.einsum('bqk,bkd->bqd', p, vh,
                                    preferred_element_type=jnp.float32))    # (B, S, HD)
        ctx = jnp.concatenate(heads, axis=2).reshape(B * S, E)

        # single out-projection matmul over the whole batch
        attn = jnp.dot(ctx, aw[:, 3 * E:4 * E],
                       preferred_element_type=jnp.float32) + ab[:, 3 * E:4 * E]
        h = h + attn                       # attention / proj dropout: identity (eval)

        # MLP on norm2 of the updated residual stream, flat over batch*seq
        x2b = _layernorm(h, ln2_w, ln2_b)
        h1 = jnp.dot(x2b, fc1_w_ref[l], preferred_element_type=jnp.float32) + fc1_b_ref[l]
        h1 = _gelu(h1)
        h2 = jnp.dot(h1, fc2_w_ref[l], preferred_element_type=jnp.float32) + fc2_b_ref[l]
        h = h + h2                         # MLP dropout: identity (eval)

    # ---- final LayerNorm + classification head on cls tokens only ----
    head_ln = head_ln_ref[...]
    cls_rows = h.reshape(B, S, E)[:, 0, :]                 # aligned strided read (B, E)
    normed = _layernorm(cls_rows, head_ln[0:1, :], head_ln[1:2, :])
    out_ref[...] = jnp.dot(normed, head_w_ref[...],
                           preferred_element_type=jnp.float32) + head_b_ref[...]


# ------------------------------ wrappers --------------------------------------
def _full_spec(a):
    zeros = (0,) * a.ndim
    return pl.BlockSpec(a.shape, lambda z=zeros: z)


def pack_params(params, batch_size):
    """One-time weight packing: transposes, layer-stacking, fusion into slabs,
    the patch-embedding additive slab and the attention pad-mask are all built
    here, outside the per-forward path."""
    E = EMBED_DIM
    pos = params['pos'].reshape(SEQ, E)

    # additive slab for the padded (B*SEQ_PAD, E) activation layout
    cls_row = params['cls'].reshape(1, E) + pos[0:1, :]                    # (1, E)
    patch_rows = params['conv_b'].reshape(1, E) + pos[1:, :]               # (NP, E)
    pad_rows = jnp.zeros((SEQ_PAD - SEQ, E), jnp.float32)
    bias_img = jnp.concatenate([cls_row, patch_rows, pad_rows], axis=0)    # (SEQ_PAD, E)
    embed_bias = jnp.tile(bias_img, (batch_size, 1))                       # (B*SEQ_PAD, E)

    attn_mask = jnp.where(jnp.arange(SEQ_PAD) < SEQ, 0.0, NEG_MASK)
    attn_mask = attn_mask.astype(jnp.float32).reshape(1, SEQ_PAD)

    packed = {
        'patch_w':    params['conv_w'].reshape(E, PATCH_DIM).T,            # (PD, E)
        'embed_bias': embed_bias,
        'attn_mask':  attn_mask,
        'head_ln':    jnp.stack([params['norm_w'], params['norm_b']]),     # (2, E)
        'head_w':     jnp.pad(params['head_w'].T,
                              ((0, 0), (0, HEAD_PAD - NUM_CLASSES))),      # (E, 128)
        'head_b':     jnp.pad(params['head_b'].reshape(1, NUM_CLASSES),
                              ((0, 0), (0, HEAD_PAD - NUM_CLASSES))),      # (1, 128)
    }
    lnp, attn_w, attn_b = [], [], []
    fc1_w, fc1_b, fc2_w, fc2_b = [], [], [], []
    for lp in params['layers']:
        lnp.append(jnp.stack([lp['ln1_w'], lp['ln1_b'], lp['ln2_w'], lp['ln2_b']]))
        wq = lp['in_proj_w'][:E].T
        wk = lp['in_proj_w'][E:2 * E].T
        wv = lp['in_proj_w'][2 * E:].T
        wo = lp['out_proj_w'].T
        # [Wq | Wv | Wk | Wo]: the two x1-sourced projections are contiguous.
        attn_w.append(jnp.concatenate([wq, wv, wk, wo], axis=1))           # (E, 4E)
        bq = lp['in_proj_b'][:E]
        bk = lp['in_proj_b'][E:2 * E]
        bv = lp['in_proj_b'][2 * E:]
        attn_b.append(jnp.concatenate([bq, bv, bk,
                                       lp['out_proj_b']]).reshape(1, 4 * E))
        fc1_w.append(lp['fc1_w'].T)
        fc1_b.append(lp['fc1_b'].reshape(1, MLP_DIM))
        fc2_w.append(lp['fc2_w'].T)
        fc2_b.append(lp['fc2_b'].reshape(1, E))
    packed.update(
        lnp=jnp.stack(lnp),          # (DEPTH, 4, E)
        attn_w=jnp.stack(attn_w),    # (DEPTH, E, 4E)
        attn_b=jnp.stack(attn_b),    # (DEPTH, 1, 4E)
        fc1_w=jnp.stack(fc1_w),      # (DEPTH, E, MLP_DIM)
        fc1_b=jnp.stack(fc1_b),      # (DEPTH, 1, MLP_DIM)
        fc2_w=jnp.stack(fc2_w),      # (DEPTH, MLP_DIM, E)
        fc2_b=jnp.stack(fc2_b),      # (DEPTH, 1, E)
    )
    return packed


def vit_forward(x, packed):
    B = x.shape[0]
    assert packed['embed_bias'].shape[0] == B * SEQ_PAD, \
        "pack_params(batch_size) must match the forward batch size"
    ps = PATCH_SIZE
    g = IMG_SIZE // ps
    # patch extraction: pure reshape/transpose glue, no arithmetic
    patches = x.reshape(B, CHANNELS, g, ps, g, ps).transpose(0, 2, 4, 1, 3, 5)
    patches = patches.reshape(B, NUM_PATCHES, PATCH_DIM)
    # zero row for the cls slot + zero rows up to SEQ_PAD, per image
    patches = jnp.pad(patches, ((0, 0), (1, SEQ_PAD - SEQ), (0, 0)))
    patches = patches.reshape(B * SEQ_PAD, PATCH_DIM)

    args = (patches, packed['patch_w'], packed['embed_bias'], packed['attn_mask'],
            packed['lnp'], packed['attn_w'], packed['attn_b'],
            packed['fc1_w'], packed['fc1_b'], packed['fc2_w'], packed['fc2_b'],
            packed['head_ln'], packed['head_w'], packed['head_b'])

    logits_pad = pl.pallas_call(
        vit_fused_kernel,
        out_shape=jax.ShapeDtypeStruct((B, HEAD_PAD), jnp.float32),
        in_specs=[_full_spec(a) for a in args],
        out_specs=pl.BlockSpec((B, HEAD_PAD), lambda: (0, 0)),
    )(*args)
    return logits_pad[:, :NUM_CLASSES]


# -------------------------- pure-JAX reference --------------------------------
def _ln_ref(v, w, b):
    mu = v.mean(-1, keepdims=True)
    var = ((v - mu) ** 2).mean(-1, keepdims=True)
    return (v - mu) / jnp.sqrt(var + LN_EPS) * w + b


def _gelu_ref(x):
    return 0.5 * x * (1.0 + jax.scipy.special.erf(x * _SQRT1_2))


def vit_ref(x, params):
    B = x.shape[0]
    ps = PATCH_SIZE
    E = EMBED_DIM
    patches = x.reshape(B, CHANNELS, IMG_SIZE // ps, ps, IMG_SIZE // ps, ps)
    patches = patches.transpose(0, 2, 4, 1, 3, 5).reshape(B, NUM_PATCHES, PATCH_DIM)
    proj = patches @ params['conv_w'].reshape(E, PATCH_DIM).T + params['conv_b']
    cls = jnp.broadcast_to(params['cls'].reshape(1, 1, E), (B, 1, E))
    h = jnp.concatenate([cls, proj], axis=1) + params['pos'].reshape(1, SEQ, E)
    for lp in params['layers']:
        x1 = _ln_ref(h, lp['ln1_w'], lp['ln1_b'])
        x2 = _ln_ref(h, lp['ln2_w'], lp['ln2_b'])
        q = x1 @ lp['in_proj_w'][:E].T + lp['in_proj_b'][:E]
        k = x2 @ lp['in_proj_w'][E:2 * E].T + lp['in_proj_b'][E:2 * E]
        v = x1 @ lp['in_proj_w'][2 * E:].T + lp['in_proj_b'][2 * E:]
        qh = q.reshape(B, SEQ, NUM_HEADS, HEAD_DIM).transpose(0, 2, 1, 3)
        kh = k.reshape(B, SEQ, NUM_HEADS, HEAD_DIM).transpose(0, 2, 1, 3)
        vh = v.reshape(B, SEQ, NUM_HEADS, HEAD_DIM).transpose(0, 2, 1, 3)
        s = (qh @ kh.transpose(0, 1, 3, 2)) / float(HEAD_DIM) ** 0.5
        p = jax.nn.softmax(s, axis=-1)
        o = (p @ vh).transpose(0, 2, 1, 3).reshape(B, SEQ, E)
        h = h + (o @ lp['out_proj_w'].T + lp['out_proj_b'])
        x2b = _ln_ref(h, lp['ln2_w'], lp['ln2_b'])
        m = _gelu_ref(x2b @ lp['fc1_w'].T + lp['fc1_b']) @ lp['fc2_w'].T + lp['fc2_b']
        h = h + m
    cls_tok = _ln_ref(h[:, 0], params['norm_w'], params['norm_b'])
    return cls_tok @ params['head_w'].T + params['head_b']


# ------------------------------ parameters ------------------------------------
def init_params(key):
    keys = iter(jax.random.split(key, 64))

    def nrm(shape, scale=0.02):
        return scale * jax.random.normal(next(keys), shape, jnp.float32)

    params = {
        'conv_w': nrm((EMBED_DIM, CHANNELS, PATCH_SIZE, PATCH_SIZE)),
        'conv_b': nrm((EMBED_DIM,)),
        'cls':    jax.random.normal(next(keys), (1, 1, EMBED_DIM), jnp.float32),
        'pos':    jax.random.normal(next(keys), (1, SEQ, EMBED_DIM), jnp.float32),
        'norm_w': jnp.ones((EMBED_DIM,), jnp.float32),
        'norm_b': jnp.zeros((EMBED_DIM,), jnp.float32),
        'head_w': nrm((NUM_CLASSES, EMBED_DIM)),
        'head_b': jnp.zeros((NUM_CLASSES,), jnp.float32),
        'layers': [],
    }
    for _ in range(DEPTH):
        params['layers'].append({
            'ln1_w': jnp.ones((EMBED_DIM,), jnp.float32),
            'ln1_b': jnp.zeros((EMBED_DIM,), jnp.float32),
            'ln2_w': jnp.ones((EMBED_DIM,), jnp.float32),
            'ln2_b': jnp.zeros((EMBED_DIM,), jnp.float32),
            'in_proj_w':  nrm((3 * EMBED_DIM, EMBED_DIM)),
            'in_proj_b':  nrm((3 * EMBED_DIM,)),
            'out_proj_w': nrm((EMBED_DIM, EMBED_DIM)),
            'out_proj_b': nrm((EMBED_DIM,)),
            'fc1_w': nrm((MLP_DIM, EMBED_DIM)),
            'fc1_b': nrm((MLP_DIM,)),
            'fc2_w': nrm((EMBED_DIM, MLP_DIM)),
            'fc2_b': nrm((EMBED_DIM,)),
        })
    return params


# --------------------------------- main ----------------------------------------
if __name__ == "__main__":
    key = jax.random.PRNGKey(0)
    pkey, xkey = jax.random.split(key)
    params = init_params(pkey)
    B = 2
    packed = pack_params(params, batch_size=B)    # one-time weight packing (outside jit)
    x = jax.random.normal(xkey, (B, CHANNELS, IMG_SIZE, IMG_SIZE), jnp.float32)

    fwd = jax.jit(vit_forward)
    out = jax.block_until_ready(fwd(x, packed))
    assert out.shape == (B, NUM_CLASSES)

    # Reference at highest matmul precision (kernel matmuls are f32 on the MXU);
    # remaining diff comes from the EUP approximate reciprocal in the softmax.
    with jax.default_matmul_precision("highest"):
        ref = jax.block_until_ready(vit_ref(x, params))
    max_err = float(jnp.max(jnp.abs(out - ref)))
    if max_err > 1e-3:
        raise AssertionError(f"Pallas output mismatch vs reference: max_err={max_err}")

    print("KERNEL_OK")
</pallas_src>

<mosaic_0001>
module attributes {stable_mosaic.version = 11 : i64} {
  func.func @vit_fused_kernel(%arg0: memref<48x64xf32, #tpu.memory_space<vmem>>, %arg1: memref<64x32xf32, #tpu.memory_space<vmem>>, %arg2: memref<48x32xf32, #tpu.memory_space<vmem>>, %arg3: memref<1x24xf32, #tpu.memory_space<vmem>>, %arg4: memref<2x4x32xf32, #tpu.memory_space<vmem>>, %arg5: memref<2x32x128xf32, #tpu.memory_space<vmem>>, %arg6: memref<2x1x128xf32, #tpu.memory_space<vmem>>, %arg7: memref<2x32x64xf32, #tpu.memory_space<vmem>>, %arg8: memref<2x1x64xf32, #tpu.memory_space<vmem>>, %arg9: memref<2x64x32xf32, #tpu.memory_space<vmem>>, %arg10: memref<2x1x32xf32, #tpu.memory_space<vmem>>, %arg11: memref<2x32xf32, #tpu.memory_space<vmem>>, %arg12: memref<32x128xf32, #tpu.memory_space<vmem>>, %arg13: memref<1x128xf32, #tpu.memory_space<vmem>>, %arg14: memref<2x128xf32, #tpu.memory_space<vmem>>) attributes {dimension_semantics = [], scalar_prefetch = 0 : i64, scratch_operands = 0 : i64, tpu.core_type = #tpu.core_type<tc>} {
    %c0 = arith.constant 0 : index
    %c0_0 = arith.constant 0 : index
    %0 = vector.load %arg0[%c0, %c0_0] : memref<48x64xf32, #tpu.memory_space<vmem>>, vector<48x64xf32>
    %c0_1 = arith.constant 0 : index
    %c0_2 = arith.constant 0 : index
    %1 = vector.load %arg1[%c0_1, %c0_2] : memref<64x32xf32, #tpu.memory_space<vmem>>, vector<64x32xf32>
    %cst = arith.constant dense<0.000000e+00> : vector<48x32xf32>
    %2 = tpu.matmul %0, %1, %cst {dimension_numbers = #tpu.dot_dimension_numbers<[1], [0], [0], [1], [0, 0, 1, 1], [], []>} : vector<48x64xf32>, vector<64x32xf32>, vector<48x32xf32> -> vector<48x32xf32>
    %c0_3 = arith.constant 0 : index
    %c0_4 = arith.constant 0 : index
    %3 = vector.load %arg2[%c0_3, %c0_4] : memref<48x32xf32, #tpu.memory_space<vmem>>, vector<48x32xf32>
    %4 = arith.addf %2, %3 : vector<48x32xf32>
    %c0_5 = arith.constant 0 : index
    %c0_6 = arith.constant 0 : index
    %5 = vector.load %arg3[%c0_5, %c0_6] : memref<1x24xf32, #tpu.memory_space<vmem>>, vector<1x24xf32>
    %c0_7 = arith.constant 0 : index
    %c0_8 = arith.constant 0 : index
    %c0_9 = arith.constant 0 : index
    %6 = vector.load %arg4[%c0_7, %c0_8, %c0_9] : memref<2x4x32xf32, #tpu.memory_space<vmem>>, vector<1x4x32xf32>
    %7 = vector.shape_cast %6 : vector<1x4x32xf32> to vector<4x32xf32>
    %8 = vector.extract_strided_slice %7 {offsets = [0, 0], sizes = [1, 32], strides = [1, 1]} : vector<4x32xf32> to vector<1x32xf32>
    %9 = vector.extract_strided_slice %7 {offsets = [1, 0], sizes = [1, 32], strides = [1, 1]} : vector<4x32xf32> to vector<1x32xf32>
    %10 = vector.extract_strided_slice %7 {offsets = [2, 0], sizes = [1, 32], strides = [1, 1]} : vector<4x32xf32> to vector<1x32xf32>
    %11 = vector.extract_strided_slice %7 {offsets = [3, 0], sizes = [1, 32], strides = [1, 1]} : vector<4x32xf32> to vector<1x32xf32>
    %c0_10 = arith.constant 0 : index
    %c0_11 = arith.constant 0 : index
    %c0_12 = arith.constant 0 : index
    %12 = vector.load %arg5[%c0_10, %c0_11, %c0_12] : memref<2x32x128xf32, #tpu.memory_space<vmem>>, vector<1x32x128xf32>
    %13 = vector.shape_cast %12 : vector<1x32x128xf32> to vector<32x128xf32>
    %c0_13 = arith.constant 0 : index
    %c0_14 = arith.constant 0 : index
    %c0_15 = arith.constant 0 : index
    %14 = vector.load %arg6[%c0_13, %c0_14, %c0_15] : memref<2x1x128xf32, #tpu.memory_space<vmem>>, vector<1x1x128xf32>
    %15 = vector.shape_cast %14 : vector<1x1x128xf32> to vector<1x128xf32>
    %cst_16 = arith.constant dense<0.000000e+00> : vector<48xf32>
    %16 = vector.multi_reduction <add>, %4, %cst_16 [1] : vector<48x32xf32> to vector<48xf32>
    %17 = vector.shape_cast %16 : vector<48xf32> to vector<48x1xf32>
    %cst_17 = arith.constant 3.200000e+01 : f32
    %18 = vector.broadcast %cst_17 : f32 to vector<48x1xf32>
    %19 = arith.divf %17, %18 : vector<48x1xf32>
    %20 = vector.broadcast %19 : vector<48x1xf32> to vector<48x32xf32>
    %21 = arith.subf %4, %20 : vector<48x32xf32>
    %22 = arith.mulf %21, %21 : vector<48x32xf32>
    %cst_18 = arith.constant dense<0.000000e+00> : vector<48xf32>
    %23 = vector.multi_reduction <add>, %22, %cst_18 [1] : vector<48x32xf32> to vector<48xf32>
    %24 = vector.shape_cast %23 : vector<48xf32> to vector<48x1xf32>
    %cst_19 = arith.constant 3.200000e+01 : f32
    %25 = vector.broadcast %cst_19 : f32 to vector<48x1xf32>
    %26 = arith.divf %24, %25 : vector<48x1xf32>
    %27 = vector.broadcast %19 : vector<48x1xf32> to vector<48x32xf32>
    %28 = arith.subf %4, %27 : vector<48x32xf32>
    %cst_20 = arith.constant 9.99999974E-6 : f32
    %29 = vector.broadcast %cst_20 : f32 to vector<48x1xf32>
    %30 = arith.addf %26, %29 : vector<48x1xf32>
    %31 = math.rsqrt %30 : vector<48x1xf32>
    %32 = vector.broadcast %31 : vector<48x1xf32> to vector<48x32xf32>
    %33 = arith.mulf %28, %32 : vector<48x32xf32>
    %34 = vector.broadcast %8 : vector<1x32xf32> to vector<48x32xf32>
    %35 = arith.mulf %33, %34 : vector<48x32xf32>
    %36 = vector.broadcast %9 : vector<1x32xf32> to vector<48x32xf32>
    %37 = arith.addf %35, %36 : vector<48x32xf32>
    %cst_21 = arith.constant dense<0.000000e+00> : vector<48xf32>
    %38 = vector.multi_reduction <add>, %4, %cst_21 [1] : vector<48x32xf32> to vector<48xf32>
    %39 = vector.shape_cast %38 : vector<48xf32> to vector<48x1xf32>
    %cst_22 = arith.constant 3.200000e+01 : f32
    %40 = vector.broadcast %cst_22 : f32 to vector<48x1xf32>
    %41 = arith.divf %39, %40 : vector<48x1xf32>
    %42 = vector.broadcast %41 : vector<48x1xf32> to vector<48x32xf32>
    %43 = arith.subf %4, %42 : vector<48x32xf32>
    %44 = arith.mulf %43, %43 : vector<48x32xf32>
    %cst_23 = arith.constant dense<0.000000e+00> : vector<48xf32>
    %45 = vector.multi_reduction <add>, %44, %cst_23 [1] : vector<48x32xf32> to vector<48xf32>
    %46 = vector.shape_cast %45 : vector<48xf32> to vector<48x1xf32>
    %cst_24 = arith.constant 3.200000e+01 : f32
    %47 = vector.broadcast %cst_24 : f32 to vector<48x1xf32>
    %48 = arith.divf %46, %47 : vector<48x1xf32>
    %49 = vector.broadcast %41 : vector<48x1xf32> to vector<48x32xf32>
    %50 = arith.subf %4, %49 : vector<48x32xf32>
    %cst_25 = arith.constant 9.99999974E-6 : f32
    %51 = vector.broadcast %cst_25 : f32 to vector<48x1xf32>
    %52 = arith.addf %48, %51 : vector<48x1xf32>
    %53 = math.rsqrt %52 : vector<48x1xf32>
    %54 = vector.broadcast %53 : vector<48x1xf32> to vector<48x32xf32>
    %55 = arith.mulf %50, %54 : vector<48x32xf32>
    %56 = vector.broadcast %10 : vector<1x32xf32> to vector<48x32xf32>
    %57 = arith.mulf %55, %56 : vector<48x32xf32>
    %58 = vector.broadcast %11 : vector<1x32xf32> to vector<48x32xf32>
    %59 = arith.addf %57, %58 : vector<48x32xf32>
    %60 = vector.extract_strided_slice %13 {offsets = [0, 0], sizes = [32, 64], strides = [1, 1]} : vector<32x128xf32> to vector<32x64xf32>
    %cst_26 = arith.constant dense<0.000000e+00> : vector<48x64xf32>
    %61 = tpu.matmul %37, %60, %cst_26 {dimension_numbers = #tpu.dot_dimension_numbers<[1], [0], [0], [1], [0, 0, 1, 1], [], []>} : vector<48x32xf32>, vector<32x64xf32>, vector<48x64xf32> -> vector<48x64xf32>
    %62 = vector.extract_strided_slice %15 {offsets = [0, 0], sizes = [1, 64], strides = [1, 1]} : vector<1x128xf32> to vector<1x64xf32>
    %63 = vector.broadcast %62 : vector<1x64xf32> to vector<48x64xf32>
    %64 = arith.addf %61, %63 : vector<48x64xf32>
    %65 = vector.extract_strided_slice %13 {offsets = [0, 64], sizes = [32, 32], strides = [1, 1]} : vector<32x128xf32> to vector<32x32xf32>
    %cst_27 = arith.constant dense<0.000000e+00> : vector<48x32xf32>
    %66 = tpu.matmul %59, %65, %cst_27 {dimension_numbers = #tpu.dot_dimension_numbers<[1], [0], [0], [1], [0, 0, 1, 1], [], []>} : vector<48x32xf32>, vector<32x32xf32>, vector<48x32xf32> -> vector<48x32xf32>
    %67 = vector.extract_strided_slice %15 {offsets = [0, 64], sizes = [1, 32], strides = [1, 1]} : vector<1x128xf32> to vector<1x32xf32>
    %68 = vector.broadcast %67 : vector<1x32xf32> to vector<48x32xf32>
    %69 = arith.addf %66, %68 : vector<48x32xf32>
    %70 = vector.extract_strided_slice %64 {offsets = [0, 0], sizes = [48, 8], strides = [1, 1]} : vector<48x64xf32> to vector<48x8xf32>
    %71 = vector.shape_cast %70 : vector<48x8xf32> to vector<2x24x8xf32>
    %72 = vector.extract_strided_slice %64 {offsets = [0, 32], sizes = [48, 8], strides = [1, 1]} : vector<48x64xf32> to vector<48x8xf32>
    %73 = vector.shape_cast %72 : vector<48x8xf32> to vector<2x24x8xf32>
    %74 = vector.extract_strided_slice %69 {offsets = [0, 0], sizes = [48, 8], strides = [1, 1]} : vector<48x32xf32> to vector<48x8xf32>
    %75 = vector.shape_cast %74 : vector<48x8xf32> to vector<2x24x8xf32>
    "tpu.trace_start"() <{level = 10 : i32, message = "bqd,bkd->bqk"}> : () -> ()
    %cst_28 = arith.constant dense<0.000000e+00> : vector<2x24x24xf32>
    %76 = tpu.matmul %71, %75, %cst_28 {dimension_numbers = #tpu.dot_dimension_numbers<[2], [2], [1], [1], [0, 0, 0, 1, 1, 1], [0], [0]>} : vector<2x24x8xf32>, vector<2x24x8xf32>, vector<2x24x24xf32> -> vector<2x24x24xf32>
    "tpu.trace_stop"() : () -> ()
    %cst_29 = arith.constant 0.353553385 : f32
    %77 = vector.broadcast %cst_29 : f32 to vector<2x24x24xf32>
    %78 = arith.mulf %76, %77 : vector<2x24x24xf32>
    %79 = vector.shape_cast %5 : vector<1x24xf32> to vector<1x1x24xf32>
    %80 = vector.broadcast %79 : vector<1x1x24xf32> to vector<2x24x24xf32>
    %81 = arith.addf %78, %80 : vector<2x24x24xf32>
    %cst_30 = arith.constant dense<0xFF800000> : vector<2x24xf32>
    %82 = vector.multi_reduction <maximumf>, %81, %cst_30 [2] : vector<2x24x24xf32> to vector<2x24xf32>
    %83 = vector.shape_cast %82 : vector<2x24xf32> to vector<2x24x1xf32>
    %84 = vector.broadcast %83 : vector<2x24x1xf32> to vector<2x24x24xf32>
    %85 = arith.subf %81, %84 : vector<2x24x24xf32>
    %86 = math.exp %85 : vector<2x24x24xf32>
    %cst_31 = arith.constant dense<0.000000e+00> : vector<2x24xf32>
    %87 = vector.multi_reduction <add>, %86, %cst_31 [2] : vector<2x24x24xf32> to vector<2x24xf32>
    %88 = vector.shape_cast %87 : vector<2x24xf32> to vector<2x24x1xf32>
    %89 = tpu.reciprocal %88 {approx = true} : vector<2x24x1xf32> -> vector<2x24x1xf32>
    %90 = vector.broadcast %89 : vector<2x24x1xf32> to vector<2x24x24xf32>
    %91 = arith.mulf %86, %90 : vector<2x24x24xf32>
    "tpu.trace_start"() <{level = 10 : i32, message = "bqk,bkd->bqd"}> : () -> ()
    %cst_32 = arith.constant dense<0.000000e+00> : vector<2x24x8xf32>
    %92 = tpu.matmul %91, %73, %cst_32 {dimension_numbers = #tpu.dot_dimension_numbers<[2], [1], [1], [2], [0, 0, 0, 1, 1, 2], [0], [0]>} : vector<2x24x24xf32>, vector<2x24x8xf32>, vector<2x24x8xf32> -> vector<2x24x8xf32>
    "tpu.trace_stop"() : () -> ()
    %93 = vector.extract_strided_slice %64 {offsets = [0, 8], sizes = [48, 8], strides = [1, 1]} : vector<48x64xf32> to vector<48x8xf32>
    %94 = vector.shape_cast %93 : vector<48x8xf32> to vector<2x24x8xf32>
    %95 = vector.extract_strided_slice %64 {offsets = [0, 40], sizes = [48, 8], strides = [1, 1]} : vector<48x64xf32> to vector<48x8xf32>
    %96 = vector.shape_cast %95 : vector<48x8xf32> to vector<2x24x8xf32>
    %97 = vector.extract_strided_slice %69 {offsets = [0, 8], sizes = [48, 8], strides = [1, 1]} : vector<48x32xf32> to vector<48x8xf32>
    %98 = vector.shape_cast %97 : vector<48x8xf32> to vector<2x24x8xf32>
    "tpu.trace_start"() <{level = 10 : i32, message = "bqd,bkd->bqk"}> : () -> ()
    %cst_33 = arith.constant dense<0.000000e+00> : vector<2x24x24xf32>
    %99 = tpu.matmul %94, %98, %cst_33 {dimension_numbers = #tpu.dot_dimension_numbers<[2], [2], [1], [1], [0, 0, 0, 1, 1, 1], [0], [0]>} : vector<2x24x8xf32>, vector<2x24x8xf32>, vector<2x24x24xf32> -> vector<2x24x24xf32>
    "tpu.trace_stop"() : () -> ()
    %cst_34 = arith.constant 0.353553385 : f32
    %100 = vector.broadcast %cst_34 : f32 to vector<2x24x24xf32>
    %101 = arith.mulf %99, %100 : vector<2x24x24xf32>
    %102 = vector.shape_cast %5 : vector<1x24xf32> to vector<1x1x24xf32>
    %103 = vector.broadcast %102 : vector<1x1x24xf32> to vector<2x24x24xf32>
    %104 = arith.addf %101, %103 : vector<2x24x24xf32>
    %cst_35 = arith.constant dense<0xFF800000> : vector<2x24xf32>
    %105 = vector.multi_reduction <maximumf>, %104, %cst_35 [2] : vector<2x24x24xf32> to vector<2x24xf32>
    %106 = vector.shape_cast %105 : vector<2x24xf32> to vector<2x24x1xf32>
    %107 = vector.broadcast %106 : vector<2x24x1xf32> to vector<2x24x24xf32>
    %108 = arith.subf %104, %107 : vector<2x24x24xf32>
    %109 = math.exp %108 : vector<2x24x24xf32>
    %cst_36 = arith.constant dense<0.000000e+00> : vector<2x24xf32>
    %110 = vector.multi_reduction <add>, %109, %cst_36 [2] : vector<2x24x24xf32> to vector<2x24xf32>
    %111 = vector.shape_cast %110 : vector<2x24xf32> to vector<2x24x1xf32>
    %112 = tpu.reciprocal %111 {approx = true} : vector<2x24x1xf32> -> vector<2x24x1xf32>
    %113 = vector.broadcast %112 : vector<2x24x1xf32> to vector<2x24x24xf32>
    %114 = arith.mulf %109, %113 : vector<2x24x24xf32>
    "tpu.trace_start"() <{level = 10 : i32, message = "bqk,bkd->bqd"}> : () -> ()
    %cst_37 = arith.constant dense<0.000000e+00> : vector<2x24x8xf32>
    %115 = tpu.matmul %114, %96, %cst_37 {dimension_numbers = #tpu.dot_dimension_numbers<[2], [1], [1], [2], [0, 0, 0, 1, 1, 2], [0], [0]>} : vector<2x24x24xf32>, vector<2x24x8xf32>, vector<2x24x8xf32> -> vector<2x24x8xf32>
    "tpu.trace_stop"() : () -> ()
    %116 = vector.extract_strided_slice %64 {offsets = [0, 16], sizes = [48, 8], strides = [1, 1]} : vector<48x64xf32> to vector<48x8xf32>
    %117 = vector.shape_cast %116 : vector<48x8xf32> to vector<2x24x8xf32>
    %118 = vector.extract_strided_slice %64 {offsets = [0, 48], sizes = [48, 8], strides = [1, 1]} : vector<48x64xf32> to vector<48x8xf32>
    %119 = vector.shape_cast %118 : vector<48x8xf32> to vector<2x24x8xf32>
    %120 = vector.extract_strided_slice %69 {offsets = [0, 16], sizes = [48, 8], strides = [1, 1]} : vector<48x32xf32> to vector<48x8xf32>
    %121 = vector.shape_cast %120 : vector<48x8xf32> to vector<2x24x8xf32>
    "tpu.trace_start"() <{level = 10 : i32, message = "bqd,bkd->bqk"}> : () -> ()
    %cst_38 = arith.constant dense<0.000000e+00> : vector<2x24x24xf32>
    %122 = tpu.matmul %117, %121, %cst_38 {dimension_numbers = #tpu.dot_dimension_numbers<[2], [2], [1], [1], [0, 0, 0, 1, 1, 1], [0], [0]>} : vector<2x24x8xf32>, vector<2x24x8xf32>, vector<2x24x24xf32> -> vector<2x24x24xf32>
    "tpu.trace_stop"() : () -> ()
    %cst_39 = arith.constant 0.353553385 : f32
    %123 = vector.broadcast %cst_39 : f32 to vector<2x24x24xf32>
    %124 = arith.mulf %122, %123 : vector<2x24x24xf32>
    %125 = vector.shape_cast %5 : vector<1x24xf32> to vector<1x1x24xf32>
    %126 = vector.broadcast %125 : vector<1x1x24xf32> to vector<2x24x24xf32>
    %127 = arith.addf %124, %126 : vector<2x24x24xf32>
    %cst_40 = arith.constant dense<0xFF800000> : vector<2x24xf32>
    %128 = vector.multi_reduction <maximumf>, %127, %cst_40 [2] : vector<2x24x24xf32> to vector<2x24xf32>
    %129 = vector.shape_cast %128 : vector<2x24xf32> to vector<2x24x1xf32>
    %130 = vector.broadcast %129 : vector<2x24x1xf32> to vector<2x24x24xf32>
    %131 = arith.subf %127, %130 : vector<2x24x24xf32>
    %132 = math.exp %131 : vector<2x24x24xf32>
    %cst_41 = arith.constant dense<0.000000e+00> : vector<2x24xf32>
    %133 = vector.multi_reduction <add>, %132, %cst_41 [2] : vector<2x24x24xf32> to vector<2x24xf32>
    %134 = vector.shape_cast %133 : vector<2x24xf32> to vector<2x24x1xf32>
    %135 = tpu.reciprocal %134 {approx = true} : vector<2x24x1xf32> -> vector<2x24x1xf32>
    %136 = vector.broadcast %135 : vector<2x24x1xf32> to vector<2x24x24xf32>
    %137 = arith.mulf %132, %136 : vector<2x24x24xf32>
    "tpu.trace_start"() <{level = 10 : i32, message = "bqk,bkd->bqd"}> : () -> ()
    %cst_42 = arith.constant dense<0.000000e+00> : vector<2x24x8xf32>
    %138 = tpu.matmul %137, %119, %cst_42 {dimension_numbers = #tpu.dot_dimension_numbers<[2], [1], [1], [2], [0, 0, 0, 1, 1, 2], [0], [0]>} : vector<2x24x24xf32>, vector<2x24x8xf32>, vector<2x24x8xf32> -> vector<2x24x8xf32>
    "tpu.trace_stop"() : () -> ()
    %139 = vector.extract_strided_slice %64 {offsets = [0, 24], sizes = [48, 8], strides = [1, 1]} : vector<48x64xf32> to vector<48x8xf32>
    %140 = vector.shape_cast %139 : vector<48x8xf32> to vector<2x24x8xf32>
    %141 = vector.extract_strided_slice %64 {offsets = [0, 56], sizes = [48, 8], strides = [1, 1]} : vector<48x64xf32> to vector<48x8xf32>
    %142 = vector.shape_cast %141 : vector<48x8xf32> to vector<2x24x8xf32>
    %143 = vector.extract_strided_slice %69 {offsets = [0, 24], sizes = [48, 8], strides = [1, 1]} : vector<48x32xf32> to vector<48x8xf32>
    %144 = vector.shape_cast %143 : vector<48x8xf32> to vector<2x24x8xf32>
    "tpu.trace_start"() <{level = 10 : i32, message = "bqd,bkd->bqk"}> : () -> ()
    %cst_43 = arith.constant dense<0.000000e+00> : vector<2x24x24xf32>
    %145 = tpu.matmul %140, %144, %cst_43 {dimension_numbers = #tpu.dot_dimension_numbers<[2], [2], [1], [1], [0, 0, 0, 1, 1, 1], [0], [0]>} : vector<2x24x8xf32>, vector<2x24x8xf32>, vector<2x24x24xf32> -> vector<2x24x24xf32>
    "tpu.trace_stop"() : () -> ()
    %cst_44 = arith.constant 0.353553385 : f32
    %146 = vector.broadcast %cst_44 : f32 to vector<2x24x24xf32>
    %147 = arith.mulf %145, %146 : vector<2x24x24xf32>
    %148 = vector.shape_cast %5 : vector<1x24xf32> to vector<1x1x24xf32>
    %149 = vector.broadcast %148 : vector<1x1x24xf32> to vector<2x24x24xf32>
    %150 = arith.addf %147, %149 : vector<2x24x24xf32>
    %cst_45 = arith.constant dense<0xFF800000> : vector<2x24xf32>
    %151 = vector.multi_reduction <maximumf>, %150, %cst_45 [2] : vector<2x24x24xf32> to vector<2x24xf32>
    %152 = vector.shape_cast %151 : vector<2x24xf32> to vector<2x24x1xf32>
    %153 = vector.broadcast %152 : vector<2x24x1xf32> to vector<2x24x24xf32>
    %154 = arith.subf %150, %153 : vector<2x24x24xf32>
    %155 = math.exp %154 : vector<2x24x24xf32>
    %cst_46 = arith.constant dense<0.000000e+00> : vector<2x24xf32>
    %156 = vector.multi_reduction <add>, %155, %cst_46 [2] : vector<2x24x24xf32> to vector<2x24xf32>
    %157 = vector.shape_cast %156 : vector<2x24xf32> to vector<2x24x1xf32>
    %158 = tpu.reciprocal %157 {approx = true} : vector<2x24x1xf32> -> vector<2x24x1xf32>
    %159 = vector.broadcast %158 : vector<2x24x1xf32> to vector<2x24x24xf32>
    %160 = arith.mulf %155, %159 : vector<2x24x24xf32>
    "tpu.trace_start"() <{level = 10 : i32, message = "bqk,bkd->bqd"}> : () -> ()
    %cst_47 = arith.constant dense<0.000000e+00> : vector<2x24x8xf32>
    %161 = tpu.matmul %160, %142, %cst_47 {dimension_numbers = #tpu.dot_dimension_numbers<[2], [1], [1], [2], [0, 0, 0, 1, 1, 2], [0], [0]>} : vector<2x24x24xf32>, vector<2x24x8xf32>, vector<2x24x8xf32> -> vector<2x24x8xf32>
    "tpu.trace_stop"() : () -> ()
    %162 = tpu.concatenate %92, %115, %138, %161 in 2 : vector<2x24x8xf32>, vector<2x24x8xf32>, vector<2x24x8xf32>, vector<2x24x8xf32> -> vector<2x24x32xf32>
    %163 = vector.shape_cast %162 : vector<2x24x32xf32> to vector<48x32xf32>
    %164 = vector.extract_strided_slice %13 {offsets = [0, 96], sizes = [32, 32], strides = [1, 1]} : vector<32x128xf32> to vector<32x32xf32>
    %cst_48 = arith.constant dense<0.000000e+00> : vector<48x32xf32>
    %165 = tpu.matmul %163, %164, %cst_48 {dimension_numbers = #tpu.dot_dimension_numbers<[1], [0], [0], [1], [0, 0, 1, 1], [], []>} : vector<48x32xf32>, vector<32x32xf32>, vector<48x32xf32> -> vector<48x32xf32>
    %166 = vector.extract_strided_slice %15 {offsets = [0, 96], sizes = [1, 32], strides = [1, 1]} : vector<1x128xf32> to vector<1x32xf32>
    %167 = vector.broadcast %166 : vector<1x32xf32> to vector<48x32xf32>
    %168 = arith.addf %165, %167 : vector<48x32xf32>
    %169 = arith.addf %4, %168 : vector<48x32xf32>
    %cst_49 = arith.constant dense<0.000000e+00> : vector<48xf32>
    %170 = vector.multi_reduction <add>, %169, %cst_49 [1] : vector<48x32xf32> to vector<48xf32>
    %171 = vector.shape_cast %170 : vector<48xf32> to vector<48x1xf32>
    %cst_50 = arith.constant 3.200000e+01 : f32
    %172 = vector.broadcast %cst_50 : f32 to vector<48x1xf32>
    %173 = arith.divf %171, %172 : vector<48x1xf32>
    %174 = vector.broadcast %173 : vector<48x1xf32> to vector<48x32xf32>
    %175 = arith.subf %169, %174 : vector<48x32xf32>
    %176 = arith.mulf %175, %175 : vector<48x32xf32>
    %cst_51 = arith.constant dense<0.000000e+00> : vector<48xf32>
    %177 = vector.multi_reduction <add>, %176, %cst_51 [1] : vector<48x32xf32> to vector<48xf32>
    %178 = vector.shape_cast %177 : vector<48xf32> to vector<48x1xf32>
    %cst_52 = arith.constant 3.200000e+01 : f32
    %179 = vector.broadcast %cst_52 : f32 to vector<48x1xf32>
    %180 = arith.divf %178, %179 : vector<48x1xf32>
    %181 = vector.broadcast %173 : vector<48x1xf32> to vector<48x32xf32>
    %182 = arith.subf %169, %181 : vector<48x32xf32>
    %cst_53 = arith.constant 9.99999974E-6 : f32
    %183 = vector.broadcast %cst_53 : f32 to vector<48x1xf32>
    %184 = arith.addf %180, %183 : vector<48x1xf32>
    %185 = math.rsqrt %184 : vector<48x1xf32>
    %186 = vector.broadcast %185 : vector<48x1xf32> to vector<48x32xf32>
    %187 = arith.mulf %182, %186 : vector<48x32xf32>
    %188 = vector.broadcast %10 : vector<1x32xf32> to vector<48x32xf32>
    %189 = arith.mulf %187, %188 : vector<48x32xf32>
    %190 = vector.broadcast %11 : vector<1x32xf32> to vector<48x32xf32>
    %191 = arith.addf %189, %190 : vector<48x32xf32>
    %c0_54 = arith.constant 0 : index
    %c0_55 = arith.constant 0 : index
    %c0_56 = arith.constant 0 : index
    %192 = vector.load %arg7[%c0_54, %c0_55, %c0_56] : memref<2x32x64xf32, #tpu.memory_space<vmem>>, vector<1x32x64xf32>
    %193 = vector.shape_cast %192 : vector<1x32x64xf32> to vector<32x64xf32>
    %cst_57 = arith.constant dense<0.000000e+00> : vector<48x64xf32>
    %194 = tpu.matmul %191, %193, %cst_57 {dimension_numbers = #tpu.dot_dimension_numbers<[1], [0], [0], [1], [0, 0, 1, 1], [], []>} : vector<48x32xf32>, vector<32x64xf32>, vector<48x64xf32> -> vector<48x64xf32>
    %c0_58 = arith.constant 0 : index
    %c0_59 = arith.constant 0 : index
    %c0_60 = arith.constant 0 : index
    %195 = vector.load %arg8[%c0_58, %c0_59, %c0_60] : memref<2x1x64xf32, #tpu.memory_space<vmem>>, vector<1x1x64xf32>
    %196 = vector.shape_cast %195 : vector<1x1x64xf32> to vector<1x64xf32>
    %197 = vector.broadcast %196 : vector<1x64xf32> to vector<48x64xf32>
    %198 = arith.addf %194, %197 : vector<48x64xf32>
    %cst_61 = arith.constant 5.000000e-01 : f32
    %199 = vector.broadcast %cst_61 : f32 to vector<48x64xf32>
    %200 = arith.mulf %199, %198 : vector<48x64xf32>
    %cst_62 = arith.constant 0.707106769 : f32
    %201 = vector.broadcast %cst_62 : f32 to vector<48x64xf32>
    %202 = arith.mulf %198, %201 : vector<48x64xf32>
    %203 = math.absf %202 : vector<48x64xf32>
    %cst_63 = arith.constant 0.327591091 : f32
    %204 = vector.broadcast %cst_63 : f32 to vector<48x64xf32>
    %205 = arith.mulf %204, %203 : vector<48x64xf32>
    %cst_64 = arith.constant 1.000000e+00 : f32
    %206 = vector.broadcast %cst_64 : f32 to vector<48x64xf32>
    %207 = arith.addf %206, %205 : vector<48x64xf32>
    %cst_65 = arith.constant 1.000000e+00 : f32
    %208 = vector.broadcast %cst_65 : f32 to vector<48x64xf32>
    %209 = arith.divf %208, %207 : vector<48x64xf32>
    %cst_66 = arith.constant 1.06140542 : f32
    %210 = vector.broadcast %cst_66 : f32 to vector<48x64xf32>
    %211 = arith.mulf %209, %210 : vector<48x64xf32>
    %cst_67 = arith.constant -1.45315206 : f32
    %212 = vector.broadcast %cst_67 : f32 to vector<48x64xf32>
    %213 = arith.addf %212, %211 : vector<48x64xf32>
    %214 = arith.mulf %209, %213 : vector<48x64xf32>
    %cst_68 = arith.constant 1.42141378 : f32
    %215 = vector.broadcast %cst_68 : f32 to vector<48x64xf32>
    %216 = arith.addf %215, %214 : vector<48x64xf32>
    %217 = arith.mulf %209, %216 : vector<48x64xf32>
    %cst_69 = arith.constant -0.284496725 : f32
    %218 = vector.broadcast %cst_69 : f32 to vector<48x64xf32>
    %219 = arith.addf %218, %217 : vector<48x64xf32>
    %220 = arith.mulf %209, %219 : vector<48x64xf32>
    %cst_70 = arith.constant 0.254829586 : f32
    %221 = vector.broadcast %cst_70 : f32 to vector<48x64xf32>
    %222 = arith.addf %221, %220 : vector<48x64xf32>
    %223 = arith.mulf %209, %222 : vector<48x64xf32>
    %cst_71 = arith.constant 0.000000e+00 : f32
    %224 = vector.broadcast %cst_71 : f32 to vector<48x64xf32>
    %225 = arith.subf %224, %203 : vector<48x64xf32>
    %226 = arith.mulf %225, %203 : vector<48x64xf32>
    %227 = math.exp %226 : vector<48x64xf32>
    %228 = arith.mulf %223, %227 : vector<48x64xf32>
    %cst_72 = arith.constant 1.000000e+00 : f32
    %229 = vector.broadcast %cst_72 : f32 to vector<48x64xf32>
    %230 = arith.subf %229, %228 : vector<48x64xf32>
    %cst_73 = arith.constant 0.000000e+00 : f32
    %231 = vector.broadcast %cst_73 : f32 to vector<48x64xf32>
    %232 = arith.cmpf olt, %202, %231 : vector<48x64xf32>
    %cst_74 = arith.constant 0.000000e+00 : f32
    %233 = vector.broadcast %cst_74 : f32 to vector<48x64xf32>
    %234 = arith.subf %233, %230 : vector<48x64xf32>
    %235 = arith.select %232, %234, %230 : vector<48x64xi1>, vector<48x64xf32>
    %cst_75 = arith.constant 1.000000e+00 : f32
    %236 = vector.broadcast %cst_75 : f32 to vector<48x64xf32>
    %237 = arith.addf %236, %235 : vector<48x64xf32>
    %238 = arith.mulf %200, %237 : vector<48x64xf32>
    %c0_76 = arith.constant 0 : index
    %c0_77 = arith.constant 0 : index
    %c0_78 = arith.constant 0 : index
    %239 = vector.load %arg9[%c0_76, %c0_77, %c0_78] : memref<2x64x32xf32, #tpu.memory_space<vmem>>, vector<1x64x32xf32>
    %240 = vector.shape_cast %239 : vector<1x64x32xf32> to vector<64x32xf32>
    %cst_79 = arith.constant dense<0.000000e+00> : vector<48x32xf32>
    %241 = tpu.matmul %238, %240, %cst_79 {dimension_numbers = #tpu.dot_dimension_numbers<[1], [0], [0], [1], [0, 0, 1, 1], [], []>} : vector<48x64xf32>, vector<64x32xf32>, vector<48x32xf32> -> vector<48x32xf32>
    %c0_80 = arith.constant 0 : index
    %c0_81 = arith.constant 0 : index
    %c0_82 = arith.constant 0 : index
    %242 = vector.load %arg10[%c0_80, %c0_81, %c0_82] : memref<2x1x32xf32, #tpu.memory_space<vmem>>, vector<1x1x32xf32>
    %243 = vector.shape_cast %242 : vector<1x1x32xf32> to vector<1x32xf32>
    %244 = vector.broadcast %243 : vector<1x32xf32> to vector<48x32xf32>
    %245 = arith.addf %241, %244 : vector<48x32xf32>
    %246 = arith.addf %169, %245 : vector<48x32xf32>
    %c1 = arith.constant 1 : index
    %c0_83 = arith.constant 0 : index
    %c0_84 = arith.constant 0 : index
    %247 = vector.load %arg4[%c1, %c0_83, %c0_84] : memref<2x4x32xf32, #tpu.memory_space<vmem>>, vector<1x4x32xf32>
    %248 = vector.shape_cast %247 : vector<1x4x32xf32> to vector<4x32xf32>
    %249 = vector.extract_strided_slice %248 {offsets = [0, 0], sizes = [1, 32], strides = [1, 1]} : vector<4x32xf32> to vector<1x32xf32>
    %250 = vector.extract_strided_slice %248 {offsets = [1, 0], sizes = [1, 32], strides = [1, 1]} : vector<4x32xf32> to vector<1x32xf32>
    %251 = vector.extract_strided_slice %248 {offsets = [2, 0], sizes = [1, 32], strides = [1, 1]} : vector<4x32xf32> to vector<1x32xf32>
    %252 = vector.extract_strided_slice %248 {offsets = [3, 0], sizes = [1, 32], strides = [1, 1]} : vector<4x32xf32> to vector<1x32xf32>
    %c1_85 = arith.constant 1 : index
    %c0_86 = arith.constant 0 : index
    %c0_87 = arith.constant 0 : index
    %253 = vector.load %arg5[%c1_85, %c0_86, %c0_87] : memref<2x32x128xf32, #tpu.memory_space<vmem>>, vector<1x32x128xf32>
    %254 = vector.shape_cast %253 : vector<1x32x128xf32> to vector<32x128xf32>
    %c1_88 = arith.constant 1 : index
    %c0_89 = arith.constant 0 : index
    %c0_90 = arith.constant 0 : index
    %255 = vector.load %arg6[%c1_88, %c0_89, %c0_90] : memref<2x1x128xf32, #tpu.memory_space<vmem>>, vector<1x1x128xf32>
    %256 = vector.shape_cast %255 : vector<1x1x128xf32> to vector<1x128xf32>
    %cst_91 = arith.constant dense<0.000000e+00> : vector<48xf32>
    %257 = vector.multi_reduction <add>, %246, %cst_91 [1] : vector<48x32xf32> to vector<48xf32>
    %258 = vector.shape_cast %257 : vector<48xf32> to vector<48x1xf32>
    %cst_92 = arith.constant 3.200000e+01 : f32
    %259 = vector.broadcast %cst_92 : f32 to vector<48x1xf32>
    %260 = arith.divf %258, %259 : vector<48x1xf32>
    %261 = vector.broadcast %260 : vector<48x1xf32> to vector<48x32xf32>
    %262 = arith.subf %246, %261 : vector<48x32xf32>
    %263 = arith.mulf %262, %262 : vector<48x32xf32>
    %cst_93 = arith.constant dense<0.000000e+00> : vector<48xf32>
    %264 = vector.multi_reduction <add>, %263, %cst_93 [1] : vector<48x32xf32> to vector<48xf32>
    %265 = vector.shape_cast %264 : vector<48xf32> to vector<48x1xf32>
    %cst_94 = arith.constant 3.200000e+01 : f32
    %266 = vector.broadcast %cst_94 : f32 to vector<48x1xf32>
    %267 = arith.divf %265, %266 : vector<48x1xf32>
    %268 = vector.broadcast %260 : vector<48x1xf32> to vector<48x32xf32>
    %269 = arith.subf %246, %268 : vector<48x32xf32>
    %cst_95 = arith.constant 9.99999974E-6 : f32
    %270 = vector.broadcast %cst_95 : f32 to vector<48x1xf32>
    %271 = arith.addf %267, %270 : vector<48x1xf32>
    %272 = math.rsqrt %271 : vector<48x1xf32>
    %273 = vector.broadcast %272 : vector<48x1xf32> to vector<48x32xf32>
    %274 = arith.mulf %269, %273 : vector<48x32xf32>
    %275 = vector.broadcast %249 : vector<1x32xf32> to vector<48x32xf32>
    %276 = arith.mulf %274, %275 : vector<48x32xf32>
    %277 = vector.broadcast %250 : vector<1x32xf32> to vector<48x32xf32>
    %278 = arith.addf %276, %277 : vector<48x32xf32>
    %cst_96 = arith.constant dense<0.000000e+00> : vector<48xf32>
    %279 = vector.multi_reduction <add>, %246, %cst_96 [1] : vector<48x32xf32> to vector<48xf32>
    %280 = vector.shape_cast %279 : vector<48xf32> to vector<48x1xf32>
    %cst_97 = arith.constant 3.200000e+01 : f32
    %281 = vector.broadcast %cst_97 : f32 to vector<48x1xf32>
    %282 = arith.divf %280, %281 : vector<48x1xf32>
    %283 = vector.broadcast %282 : vector<48x1xf32> to vector<48x32xf32>
    %284 = arith.subf %246, %283 : vector<48x32xf32>
    %285 = arith.mulf %284, %284 : vector<48x32xf32>
    %cst_98 = arith.constant dense<0.000000e+00> : vector<48xf32>
    %286 = vector.multi_reduction <add>, %285, %cst_98 [1] : vector<48x32xf32> to vector<48xf32>
    %287 = vector.shape_cast %286 : vector<48xf32> to vector<48x1xf32>
    %cst_99 = arith.constant 3.200000e+01 : f32
    %288 = vector.broadcast %cst_99 : f32 to vector<48x1xf32>
    %289 = arith.divf %287, %288 : vector<48x1xf32>
    %290 = vector.broadcast %282 : vector<48x1xf32> to vector<48x32xf32>
    %291 = arith.subf %246, %290 : vector<48x32xf32>
    %cst_100 = arith.constant 9.99999974E-6 : f32
    %292 = vector.broadcast %cst_100 : f32 to vector<48x1xf32>
    %293 = arith.addf %289, %292 : vector<48x1xf32>
    %294 = math.rsqrt %293 : vector<48x1xf32>
    %295 = vector.broadcast %294 : vector<48x1xf32> to vector<48x32xf32>
    %296 = arith.mulf %291, %295 : vector<48x32xf32>
    %297 = vector.broadcast %251 : vector<1x32xf32> to vector<48x32xf32>
    %298 = arith.mulf %296, %297 : vector<48x32xf32>
    %299 = vector.broadcast %252 : vector<1x32xf32> to vector<48x32xf32>
    %300 = arith.addf %298, %299 : vector<48x32xf32>
    %301 = vector.extract_strided_slice %254 {offsets = [0, 0], sizes = [32, 64], strides = [1, 1]} : vector<32x128xf32> to vector<32x64xf32>
    %cst_101 = arith.constant dense<0.000000e+00> : vector<48x64xf32>
    %302 = tpu.matmul %278, %301, %cst_101 {dimension_numbers = #tpu.dot_dimension_numbers<[1], [0], [0], [1], [0, 0, 1, 1], [], []>} : vector<48x32xf32>, vector<32x64xf32>, vector<48x64xf32> -> vector<48x64xf32>
    %303 = vector.extract_strided_slice %256 {offsets = [0, 0], sizes = [1, 64], strides = [1, 1]} : vector<1x128xf32> to vector<1x64xf32>
    %304 = vector.broadcast %303 : vector<1x64xf32> to vector<48x64xf32>
    %305 = arith.addf %302, %304 : vector<48x64xf32>
    %306 = vector.extract_strided_slice %254 {offsets = [0, 64], sizes = [32, 32], strides = [1, 1]} : vector<32x128xf32> to vector<32x32xf32>
    %cst_102 = arith.constant dense<0.000000e+00> : vector<48x32xf32>
    %307 = tpu.matmul %300, %306, %cst_102 {dimension_numbers = #tpu.dot_dimension_numbers<[1], [0], [0], [1], [0, 0, 1, 1], [], []>} : vector<48x32xf32>, vector<32x32xf32>, vector<48x32xf32> -> vector<48x32xf32>
    %308 = vector.extract_strided_slice %256 {offsets = [0, 64], sizes = [1, 32], strides = [1, 1]} : vector<1x128xf32> to vector<1x32xf32>
    %309 = vector.broadcast %308 : vector<1x32xf32> to vector<48x32xf32>
    %310 = arith.addf %307, %309 : vector<48x32xf32>
    %311 = vector.extract_strided_slice %305 {offsets = [0, 0], sizes = [48, 8], strides = [1, 1]} : vector<48x64xf32> to vector<48x8xf32>
    %312 = vector.shape_cast %311 : vector<48x8xf32> to vector<2x24x8xf32>
    %313 = vector.extract_strided_slice %305 {offsets = [0, 32], sizes = [48, 8], strides = [1, 1]} : vector<48x64xf32> to vector<48x8xf32>
    %314 = vector.shape_cast %313 : vector<48x8xf32> to vector<2x24x8xf32>
    %315 = vector.extract_strided_slice %310 {offsets = [0, 0], sizes = [48, 8], strides = [1, 1]} : vector<48x32xf32> to vector<48x8xf32>
    %316 = vector.shape_cast %315 : vector<48x8xf32> to vector<2x24x8xf32>
    "tpu.trace_start"() <{level = 10 : i32, message = "bqd,bkd->bqk"}> : () -> ()
    %cst_103 = arith.constant dense<0.000000e+00> : vector<2x24x24xf32>
    %317 = tpu.matmul %312, %316, %cst_103 {dimension_numbers = #tpu.dot_dimension_numbers<[2], [2], [1], [1], [0, 0, 0, 1, 1, 1], [0], [0]>} : vector<2x24x8xf32>, vector<2x24x8xf32>, vector<2x24x24xf32> -> vector<2x24x24xf32>
    "tpu.trace_stop"() : () -> ()
    %cst_104 = arith.constant 0.353553385 : f32
    %318 = vector.broadcast %cst_104 : f32 to vector<2x24x24xf32>
    %319 = arith.mulf %317, %318 : vector<2x24x24xf32>
    %320 = vector.shape_cast %5 : vector<1x24xf32> to vector<1x1x24xf32>
    %321 = vector.broadcast %320 : vector<1x1x24xf32> to vector<2x24x24xf32>
    %322 = arith.addf %319, %321 : vector<2x24x24xf32>
    %cst_105 = arith.constant dense<0xFF800000> : vector<2x24xf32>
    %323 = vector.multi_reduction <maximumf>, %322, %cst_105 [2] : vector<2x24x24xf32> to vector<2x24xf32>
    %324 = vector.shape_cast %323 : vector<2x24xf32> to vector<2x24x1xf32>
    %325 = vector.broadcast %324 : vector<2x24x1xf32> to vector<2x24x24xf32>
    %326 = arith.subf %322, %325 : vector<2x24x24xf32>
    %327 = math.exp %326 : vector<2x24x24xf32>
    %cst_106 = arith.constant dense<0.000000e+00> : vector<2x24xf32>
    %328 = vector.multi_reduction <add>, %327, %cst_106 [2] : vector<2x24x24xf32> to vector<2x24xf32>
    %329 = vector.shape_cast %328 : vector<2x24xf32> to vector<2x24x1xf32>
    %330 = tpu.reciprocal %329 {approx = true} : vector<2x24x1xf32> -> vector<2x24x1xf32>
    %331 = vector.broadcast %330 : vector<2x24x1xf32> to vector<2x24x24xf32>
    %332 = arith.mulf %327, %331 : vector<2x24x24xf32>
    "tpu.trace_start"() <{level = 10 : i32, message = "bqk,bkd->bqd"}> : () -> ()
    %cst_107 = arith.constant dense<0.000000e+00> : vector<2x24x8xf32>
    %333 = tpu.matmul %332, %314, %cst_107 {dimension_numbers = #tpu.dot_dimension_numbers<[2], [1], [1], [2], [0, 0, 0, 1, 1, 2], [0], [0]>} : vector<2x24x24xf32>, vector<2x24x8xf32>, vector<2x24x8xf32> -> vector<2x24x8xf32>
    "tpu.trace_stop"() : () -> ()
    %334 = vector.extract_strided_slice %305 {offsets = [0, 8], sizes = [48, 8], strides = [1, 1]} : vector<48x64xf32> to vector<48x8xf32>
    %335 = vector.shape_cast %334 : vector<48x8xf32> to vector<2x24x8xf32>
    %336 = vector.extract_strided_slice %305 {offsets = [0, 40], sizes = [48, 8], strides = [1, 1]} : vector<48x64xf32> to vector<48x8xf32>
    %337 = vector.shape_cast %336 : vector<48x8xf32> to vector<2x24x8xf32>
    %338 = vector.extract_strided_slice %310 {offsets = [0, 8], sizes = [48, 8], strides = [1, 1]} : vector<48x32xf32> to vector<48x8xf32>
    %339 = vector.shape_cast %338 : vector<48x8xf32> to vector<2x24x8xf32>
    "tpu.trace_start"() <{level = 10 : i32, message = "bqd,bkd->bqk"}> : () -> ()
    %cst_108 = arith.constant dense<0.000000e+00> : vector<2x24x24xf32>
    %340 = tpu.matmul %335, %339, %cst_108 {dimension_numbers = #tpu.dot_dimension_numbers<[2], [2], [1], [1], [0, 0, 0, 1, 1, 1], [0], [0]>} : vector<2x24x8xf32>, vector<2x24x8xf32>, vector<2x24x24xf32> -> vector<2x24x24xf32>
    "tpu.trace_stop"() : () -> ()
    %cst_109 = arith.constant 0.353553385 : f32
    %341 = vector.broadcast %cst_109 : f32 to vector<2x24x24xf32>
    %342 = arith.mulf %340, %341 : vector<2x24x24xf32>
    %343 = vector.shape_cast %5 : vector<1x24xf32> to vector<1x1x24xf32>
    %344 = vector.broadcast %343 : vector<1x1x24xf32> to vector<2x24x24xf32>
    %345 = arith.addf %342, %344 : vector<2x24x24xf32>
    %cst_110 = arith.constant dense<0xFF800000> : vector<2x24xf32>
    %346 = vector.multi_reduction <maximumf>, %345, %cst_110 [2] : vector<2x24x24xf32> to vector<2x24xf32>
    %347 = vector.shape_cast %346 : vector<2x24xf32> to vector<2x24x1xf32>
    %348 = vector.broadcast %347 : vector<2x24x1xf32> to vector<2x24x24xf32>
    %349 = arith.subf %345, %348 : vector<2x24x24xf32>
    %350 = math.exp %349 : vector<2x24x24xf32>
    %cst_111 = arith.constant dense<0.000000e+00> : vector<2x24xf32>
    %351 = vector.multi_reduction <add>, %350, %cst_111 [2] : vector<2x24x24xf32> to vector<2x24xf32>
    %352 = vector.shape_cast %351 : vector<2x24xf32> to vector<2x24x1xf32>
    %353 = tpu.reciprocal %352 {approx = true} : vector<2x24x1xf32> -> vector<2x24x1xf32>
    %354 = vector.broadcast %353 : vector<2x24x1xf32> to vector<2x24x24xf32>
    %355 = arith.mulf %350, %354 : vector<2x24x24xf32>
    "tpu.trace_start"() <{level = 10 : i32, message = "bqk,bkd->bqd"}> : () -> ()
    %cst_112 = arith.constant dense<0.000000e+00> : vector<2x24x8xf32>
    %356 = tpu.matmul %355, %337, %cst_112 {dimension_numbers = #tpu.dot_dimension_numbers<[2], [1], [1], [2], [0, 0, 0, 1, 1, 2], [0], [0]>} : vector<2x24x24xf32>, vector<2x24x8xf32>, vector<2x24x8xf32> -> vector<2x24x8xf32>
    "tpu.trace_stop"() : () -> ()
    %357 = vector.extract_strided_slice %305 {offsets = [0, 16], sizes = [48, 8], strides = [1, 1]} : vector<48x64xf32> to vector<48x8xf32>
    %358 = vector.shape_cast %357 : vector<48x8xf32> to vector<2x24x8xf32>
    %359 = vector.extract_strided_slice %305 {offsets = [0, 48], sizes = [48, 8], strides = [1, 1]} : vector<48x64xf32> to vector<48x8xf32>
    %360 = vector.shape_cast %359 : vector<48x8xf32> to vector<2x24x8xf32>
    %361 = vector.extract_strided_slice %310 {offsets = [0, 16], sizes = [48, 8], strides = [1, 1]} : vector<48x32xf32> to vector<48x8xf32>
    %362 = vector.shape_cast %361 : vector<48x8xf32> to vector<2x24x8xf32>
    "tpu.trace_start"() <{level = 10 : i32, message = "bqd,bkd->bqk"}> : () -> ()
    %cst_113 = arith.constant dense<0.000000e+00> : vector<2x24x24xf32>
    %363 = tpu.matmul %358, %362, %cst_113 {dimension_numbers = #tpu.dot_dimension_numbers<[2], [2], [1], [1], [0, 0, 0, 1, 1, 1], [0], [0]>} : vector<2x24x8xf32>, vector<2x24x8xf32>, vector<2x24x24xf32> -> vector<2x24x24xf32>
    "tpu.trace_stop"() : () -> ()
    %cst_114 = arith.constant 0.353553385 : f32
    %364 = vector.broadcast %cst_114 : f32 to vector<2x24x24xf32>
    %365 = arith.mulf %363, %364 : vector<2x24x24xf32>
    %366 = vector.shape_cast %5 : vector<1x24xf32> to vector<1x1x24xf32>
    %367 = vector.broadcast %366 : vector<1x1x24xf32> to vector<2x24x24xf32>
    %368 = arith.addf %365, %367 : vector<2x24x24xf32>
    %cst_115 = arith.constant dense<0xFF800000> : vector<2x24xf32>
    %369 = vector.multi_reduction <maximumf>, %368, %cst_115 [2] : vector<2x24x24xf32> to vector<2x24xf32>
    %370 = vector.shape_cast %369 : vector<2x24xf32> to vector<2x24x1xf32>
    %371 = vector.broadcast %370 : vector<2x24x1xf32> to vector<2x24x24xf32>
    %372 = arith.subf %368, %371 : vector<2x24x24xf32>
    %373 = math.exp %372 : vector<2x24x24xf32>
    %cst_116 = arith.constant dense<0.000000e+00> : vector<2x24xf32>
    %374 = vector.multi_reduction <add>, %373, %cst_116 [2] : vector<2x24x24xf32> to vector<2x24xf32>
    %375 = vector.shape_cast %374 : vector<2x24xf32> to vector<2x24x1xf32>
    %376 = tpu.reciprocal %375 {approx = true} : vector<2x24x1xf32> -> vector<2x24x1xf32>
    %377 = vector.broadcast %376 : vector<2x24x1xf32> to vector<2x24x24xf32>
    %378 = arith.mulf %373, %377 : vector<2x24x24xf32>
    "tpu.trace_start"() <{level = 10 : i32, message = "bqk,bkd->bqd"}> : () -> ()
    %cst_117 = arith.constant dense<0.000000e+00> : vector<2x24x8xf32>
    %379 = tpu.matmul %378, %360, %cst_117 {dimension_numbers = #tpu.dot_dimension_numbers<[2], [1], [1], [2], [0, 0, 0, 1, 1, 2], [0], [0]>} : vector<2x24x24xf32>, vector<2x24x8xf32>, vector<2x24x8xf32> -> vector<2x24x8xf32>
    "tpu.trace_stop"() : () -> ()
    %380 = vector.extract_strided_slice %305 {offsets = [0, 24], sizes = [48, 8], strides = [1, 1]} : vector<48x64xf32> to vector<48x8xf32>
    %381 = vector.shape_cast %380 : vector<48x8xf32> to vector<2x24x8xf32>
    %382 = vector.extract_strided_slice %305 {offsets = [0, 56], sizes = [48, 8], strides = [1, 1]} : vector<48x64xf32> to vector<48x8xf32>
    %383 = vector.shape_cast %382 : vector<48x8xf32> to vector<2x24x8xf32>
    %384 = vector.extract_strided_slice %310 {offsets = [0, 24], sizes = [48, 8], strides = [1, 1]} : vector<48x32xf32> to vector<48x8xf32>
    %385 = vector.shape_cast %384 : vector<48x8xf32> to vector<2x24x8xf32>
    "tpu.trace_start"() <{level = 10 : i32, message = "bqd,bkd->bqk"}> : () -> ()
    %cst_118 = arith.constant dense<0.000000e+00> : vector<2x24x24xf32>
    %386 = tpu.matmul %381, %385, %cst_118 {dimension_numbers = #tpu.dot_dimension_numbers<[2], [2], [1], [1], [0, 0, 0, 1, 1, 1], [0], [0]>} : vector<2x24x8xf32>, vector<2x24x8xf32>, vector<2x24x24xf32> -> vector<2x24x24xf32>
    "tpu.trace_stop"() : () -> ()
    %cst_119 = arith.constant 0.353553385 : f32
    %387 = vector.broadcast %cst_119 : f32 to vector<2x24x24xf32>
    %388 = arith.mulf %386, %387 : vector<2x24x24xf32>
    %389 = vector.shape_cast %5 : vector<1x24xf32> to vector<1x1x24xf32>
    %390 = vector.broadcast %389 : vector<1x1x24xf32> to vector<2x24x24xf32>
    %391 = arith.addf %388, %390 : vector<2x24x24xf32>
    %cst_120 = arith.constant dense<0xFF800000> : vector<2x24xf32>
    %392 = vector.multi_reduction <maximumf>, %391, %cst_120 [2] : vector<2x24x24xf32> to vector<2x24xf32>
    %393 = vector.shape_cast %392 : vector<2x24xf32> to vector<2x24x1xf32>
    %394 = vector.broadcast %393 : vector<2x24x1xf32> to vector<2x24x24xf32>
    %395 = arith.subf %391, %394 : vector<2x24x24xf32>
    %396 = math.exp %395 : vector<2x24x24xf32>
    %cst_121 = arith.constant dense<0.000000e+00> : vector<2x24xf32>
    %397 = vector.multi_reduction <add>, %396, %cst_121 [2] : vector<2x24x24xf32> to vector<2x24xf32>
    %398 = vector.shape_cast %397 : vector<2x24xf32> to vector<2x24x1xf32>
    %399 = tpu.reciprocal %398 {approx = true} : vector<2x24x1xf32> -> vector<2x24x1xf32>
    %400 = vector.broadcast %399 : vector<2x24x1xf32> to vector<2x24x24xf32>
    %401 = arith.mulf %396, %400 : vector<2x24x24xf32>
    "tpu.trace_start"() <{level = 10 : i32, message = "bqk,bkd->bqd"}> : () -> ()
    %cst_122 = arith.constant dense<0.000000e+00> : vector<2x24x8xf32>
    %402 = tpu.matmul %401, %383, %cst_122 {dimension_numbers = #tpu.dot_dimension_numbers<[2], [1], [1], [2], [0, 0, 0, 1, 1, 2], [0], [0]>} : vector<2x24x24xf32>, vector<2x24x8xf32>, vector<2x24x8xf32> -> vector<2x24x8xf32>
    "tpu.trace_stop"() : () -> ()
    %403 = tpu.concatenate %333, %356, %379, %402 in 2 : vector<2x24x8xf32>, vector<2x24x8xf32>, vector<2x24x8xf32>, vector<2x24x8xf32> -> vector<2x24x32xf32>
    %404 = vector.shape_cast %403 : vector<2x24x32xf32> to vector<48x32xf32>
    %405 = vector.extract_strided_slice %254 {offsets = [0, 96], sizes = [32, 32], strides = [1, 1]} : vector<32x128xf32> to vector<32x32xf32>
    %cst_123 = arith.constant dense<0.000000e+00> : vector<48x32xf32>
    %406 = tpu.matmul %404, %405, %cst_123 {dimension_numbers = #tpu.dot_dimension_numbers<[1], [0], [0], [1], [0, 0, 1, 1], [], []>} : vector<48x32xf32>, vector<32x32xf32>, vector<48x32xf32> -> vector<48x32xf32>
    %407 = vector.extract_strided_slice %256 {offsets = [0, 96], sizes = [1, 32], strides = [1, 1]} : vector<1x128xf32> to vector<1x32xf32>
    %408 = vector.broadcast %407 : vector<1x32xf32> to vector<48x32xf32>
    %409 = arith.addf %406, %408 : vector<48x32xf32>
    %410 = arith.addf %246, %409 : vector<48x32xf32>
    %cst_124 = arith.constant dense<0.000000e+00> : vector<48xf32>
    %411 = vector.multi_reduction <add>, %410, %cst_124 [1] : vector<48x32xf32> to vector<48xf32>
    %412 = vector.shape_cast %411 : vector<48xf32> to vector<48x1xf32>
    %cst_125 = arith.constant 3.200000e+01 : f32
    %413 = vector.broadcast %cst_125 : f32 to vector<48x1xf32>
    %414 = arith.divf %412, %413 : vector<48x1xf32>
    %415 = vector.broadcast %414 : vector<48x1xf32> to vector<48x32xf32>
    %416 = arith.subf %410, %415 : vector<48x32xf32>
    %417 = arith.mulf %416, %416 : vector<48x32xf32>
    %cst_126 = arith.constant dense<0.000000e+00> : vector<48xf32>
    %418 = vector.multi_reduction <add>, %417, %cst_126 [1] : vector<48x32xf32> to vector<48xf32>
    %419 = vector.shape_cast %418 : vector<48xf32> to vector<48x1xf32>
    %cst_127 = arith.constant 3.200000e+01 : f32
    %420 = vector.broadcast %cst_127 : f32 to vector<48x1xf32>
    %421 = arith.divf %419, %420 : vector<48x1xf32>
    %422 = vector.broadcast %414 : vector<48x1xf32> to vector<48x32xf32>
    %423 = arith.subf %410, %422 : vector<48x32xf32>
    %cst_128 = arith.constant 9.99999974E-6 : f32
    %424 = vector.broadcast %cst_128 : f32 to vector<48x1xf32>
    %425 = arith.addf %421, %424 : vector<48x1xf32>
    %426 = math.rsqrt %425 : vector<48x1xf32>
    %427 = vector.broadcast %426 : vector<48x1xf32> to vector<48x32xf32>
    %428 = arith.mulf %423, %427 : vector<48x32xf32>
    %429 = vector.broadcast %251 : vector<1x32xf32> to vector<48x32xf32>
    %430 = arith.mulf %428, %429 : vector<48x32xf32>
    %431 = vector.broadcast %252 : vector<1x32xf32> to vector<48x32xf32>
    %432 = arith.addf %430, %431 : vector<48x32xf32>
    %c1_129 = arith.constant 1 : index
    %c0_130 = arith.constant 0 : index
    %c0_131 = arith.constant 0 : index
    %433 = vector.load %arg7[%c1_129, %c0_130, %c0_131] : memref<2x32x64xf32, #tpu.memory_space<vmem>>, vector<1x32x64xf32>
    %434 = vector.shape_cast %433 : vector<1x32x64xf32> to vector<32x64xf32>
    %cst_132 = arith.constant dense<0.000000e+00> : vector<48x64xf32>
    %435 = tpu.matmul %432, %434, %cst_132 {dimension_numbers = #tpu.dot_dimension_numbers<[1], [0], [0], [1], [0, 0, 1, 1], [], []>} : vector<48x32xf32>, vector<32x64xf32>, vector<48x64xf32> -> vector<48x64xf32>
    %c1_133 = arith.constant 1 : index
    %c0_134 = arith.constant 0 : index
    %c0_135 = arith.constant 0 : index
    %436 = vector.load %arg8[%c1_133, %c0_134, %c0_135] : memref<2x1x64xf32, #tpu.memory_space<vmem>>, vector<1x1x64xf32>
    %437 = vector.shape_cast %436 : vector<1x1x64xf32> to vector<1x64xf32>
    %438 = vector.broadcast %437 : vector<1x64xf32> to vector<48x64xf32>
    %439 = arith.addf %435, %438 : vector<48x64xf32>
    %cst_136 = arith.constant 5.000000e-01 : f32
    %440 = vector.broadcast %cst_136 : f32 to vector<48x64xf32>
    %441 = arith.mulf %440, %439 : vector<48x64xf32>
    %cst_137 = arith.constant 0.707106769 : f32
    %442 = vector.broadcast %cst_137 : f32 to vector<48x64xf32>
    %443 = arith.mulf %439, %442 : vector<48x64xf32>
    %444 = math.absf %443 : vector<48x64xf32>
    %cst_138 = arith.constant 0.327591091 : f32
    %445 = vector.broadcast %cst_138 : f32 to vector<48x64xf32>
    %446 = arith.mulf %445, %444 : vector<48x64xf32>
    %cst_139 = arith.constant 1.000000e+00 : f32
    %447 = vector.broadcast %cst_139 : f32 to vector<48x64xf32>
    %448 = arith.addf %447, %446 : vector<48x64xf32>
    %cst_140 = arith.constant 1.000000e+00 : f32
    %449 = vector.broadcast %cst_140 : f32 to vector<48x64xf32>
    %450 = arith.divf %449, %448 : vector<48x64xf32>
    %cst_141 = arith.constant 1.06140542 : f32
    %451 = vector.broadcast %cst_141 : f32 to vector<48x64xf32>
    %452 = arith.mulf %450, %451 : vector<48x64xf32>
    %cst_142 = arith.constant -1.45315206 : f32
    %453 = vector.broadcast %cst_142 : f32 to vector<48x64xf32>
    %454 = arith.addf %453, %452 : vector<48x64xf32>
    %455 = arith.mulf %450, %454 : vector<48x64xf32>
    %cst_143 = arith.constant 1.42141378 : f32
    %456 = vector.broadcast %cst_143 : f32 to vector<48x64xf32>
    %457 = arith.addf %456, %455 : vector<48x64xf32>
    %458 = arith.mulf %450, %457 : vector<48x64xf32>
    %cst_144 = arith.constant -0.284496725 : f32
    %459 = vector.broadcast %cst_144 : f32 to vector<48x64xf32>
    %460 = arith.addf %459, %458 : vector<48x64xf32>
    %461 = arith.mulf %450, %460 : vector<48x64xf32>
    %cst_145 = arith.constant 0.254829586 : f32
    %462 = vector.broadcast %cst_145 : f32 to vector<48x64xf32>
    %463 = arith.addf %462, %461 : vector<48x64xf32>
    %464 = arith.mulf %450, %463 : vector<48x64xf32>
    %cst_146 = arith.constant 0.000000e+00 : f32
    %465 = vector.broadcast %cst_146 : f32 to vector<48x64xf32>
    %466 = arith.subf %465, %444 : vector<48x64xf32>
    %467 = arith.mulf %466, %444 : vector<48x64xf32>
    %468 = math.exp %467 : vector<48x64xf32>
    %469 = arith.mulf %464, %468 : vector<48x64xf32>
    %cst_147 = arith.constant 1.000000e+00 : f32
    %470 = vector.broadcast %cst_147 : f32 to vector<48x64xf32>
    %471 = arith.subf %470, %469 : vector<48x64xf32>
    %cst_148 = arith.constant 0.000000e+00 : f32
    %472 = vector.broadcast %cst_148 : f32 to vector<48x64xf32>
    %473 = arith.cmpf olt, %443, %472 : vector<48x64xf32>
    %cst_149 = arith.constant 0.000000e+00 : f32
    %474 = vector.broadcast %cst_149 : f32 to vector<48x64xf32>
    %475 = arith.subf %474, %471 : vector<48x64xf32>
    %476 = arith.select %473, %475, %471 : vector<48x64xi1>, vector<48x64xf32>
    %cst_150 = arith.constant 1.000000e+00 : f32
    %477 = vector.broadcast %cst_150 : f32 to vector<48x64xf32>
    %478 = arith.addf %477, %476 : vector<48x64xf32>
    %479 = arith.mulf %441, %478 : vector<48x64xf32>
    %c1_151 = arith.constant 1 : index
    %c0_152 = arith.constant 0 : index
    %c0_153 = arith.constant 0 : index
    %480 = vector.load %arg9[%c1_151, %c0_152, %c0_153] : memref<2x64x32xf32, #tpu.memory_space<vmem>>, vector<1x64x32xf32>
    %481 = vector.shape_cast %480 : vector<1x64x32xf32> to vector<64x32xf32>
    %cst_154 = arith.constant dense<0.000000e+00> : vector<48x32xf32>
    %482 = tpu.matmul %479, %481, %cst_154 {dimension_numbers = #tpu.dot_dimension_numbers<[1], [0], [0], [1], [0, 0, 1, 1], [], []>} : vector<48x64xf32>, vector<64x32xf32>, vector<48x32xf32> -> vector<48x32xf32>
    %c1_155 = arith.constant 1 : index
    %c0_156 = arith.constant 0 : index
    %c0_157 = arith.constant 0 : index
    %483 = vector.load %arg10[%c1_155, %c0_156, %c0_157] : memref<2x1x32xf32, #tpu.memory_space<vmem>>, vector<1x1x32xf32>
    %484 = vector.shape_cast %483 : vector<1x1x32xf32> to vector<1x32xf32>
    %485 = vector.broadcast %484 : vector<1x32xf32> to vector<48x32xf32>
    %486 = arith.addf %482, %485 : vector<48x32xf32>
    %487 = arith.addf %410, %486 : vector<48x32xf32>
    %c0_158 = arith.constant 0 : index
    %c0_159 = arith.constant 0 : index
    %488 = vector.load %arg11[%c0_158, %c0_159] : memref<2x32xf32, #tpu.memory_space<vmem>>, vector<2x32xf32>
    %489 = vector.shape_cast %487 : vector<48x32xf32> to vector<2x24x32xf32>
    %490 = vector.extract_strided_slice %489 {offsets = [0, 0, 0], sizes = [2, 1, 32], strides = [1, 1, 1]} : vector<2x24x32xf32> to vector<2x1x32xf32>
    %491 = vector.shape_cast %490 : vector<2x1x32xf32> to vector<2x32xf32>
    %492 = vector.extract_strided_slice %488 {offsets = [0, 0], sizes = [1, 32], strides = [1, 1]} : vector<2x32xf32> to vector<1x32xf32>
    %493 = vector.extract_strided_slice %488 {offsets = [1, 0], sizes = [1, 32], strides = [1, 1]} : vector<2x32xf32> to vector<1x32xf32>
    %cst_160 = arith.constant dense<0.000000e+00> : vector<2xf32>
    %494 = vector.multi_reduction <add>, %491, %cst_160 [1] : vector<2x32xf32> to vector<2xf32>
    %495 = vector.shape_cast %494 : vector<2xf32> to vector<2x1xf32>
    %cst_161 = arith.constant 3.200000e+01 : f32
    %496 = vector.broadcast %cst_161 : f32 to vector<2x1xf32>
    %497 = arith.divf %495, %496 : vector<2x1xf32>
    %498 = vector.broadcast %497 : vector<2x1xf32> to vector<2x32xf32>
    %499 = arith.subf %491, %498 : vector<2x32xf32>
    %500 = arith.mulf %499, %499 : vector<2x32xf32>
    %cst_162 = arith.constant dense<0.000000e+00> : vector<2xf32>
    %501 = vector.multi_reduction <add>, %500, %cst_162 [1] : vector<2x32xf32> to vector<2xf32>
    %502 = vector.shape_cast %501 : vector<2xf32> to vector<2x1xf32>
    %cst_163 = arith.constant 3.200000e+01 : f32
    %503 = vector.broadcast %cst_163 : f32 to vector<2x1xf32>
    %504 = arith.divf %502, %503 : vector<2x1xf32>
    %505 = vector.broadcast %497 : vector<2x1xf32> to vector<2x32xf32>
    %506 = arith.subf %491, %505 : vector<2x32xf32>
    %cst_164 = arith.constant 9.99999974E-6 : f32
    %507 = vector.broadcast %cst_164 : f32 to vector<2x1xf32>
    %508 = arith.addf %504, %507 : vector<2x1xf32>
    %509 = math.rsqrt %508 : vector<2x1xf32>
    %510 = vector.broadcast %509 : vector<2x1xf32> to vector<2x32xf32>
    %511 = arith.mulf %506, %510 : vector<2x32xf32>
    %512 = vector.broadcast %492 : vector<1x32xf32> to vector<2x32xf32>
    %513 = arith.mulf %511, %512 : vector<2x32xf32>
    %514 = vector.broadcast %493 : vector<1x32xf32> to vector<2x32xf32>
    %515 = arith.addf %513, %514 : vector<2x32xf32>
    %c0_165 = arith.constant 0 : index
    %c0_166 = arith.constant 0 : index
    %516 = vector.load %arg12[%c0_165, %c0_166] : memref<32x128xf32, #tpu.memory_space<vmem>>, vector<32x128xf32>
    %cst_167 = arith.constant dense<0.000000e+00> : vector<2x128xf32>
    %517 = tpu.matmul %515, %516, %cst_167 {dimension_numbers = #tpu.dot_dimension_numbers<[1], [0], [0], [1], [0, 0, 1, 1], [], []>} : vector<2x32xf32>, vector<32x128xf32>, vector<2x128xf32> -> vector<2x128xf32>
    %c0_168 = arith.constant 0 : index
    %c0_169 = arith.constant 0 : index
    %518 = vector.load %arg13[%c0_168, %c0_169] : memref<1x128xf32, #tpu.memory_space<vmem>>, vector<1x128xf32>
    %519 = vector.broadcast %518 : vector<1x128xf32> to vector<2x128xf32>
    %520 = arith.addf %517, %519 : vector<2x128xf32>
    %c0_170 = arith.constant 0 : index
    %c0_171 = arith.constant 0 : index
    %521 = vector.load %arg14[%c0_170, %c0_171] : memref<2x128xf32, #tpu.memory_space<vmem>>, vector<2x128xf32>
    tpu.vector_store %arg14[%c0_170, %c0_171], %520 {strides = array<i32>} : memref<2x128xf32, #tpu.memory_space<vmem>>, vector<2x128xf32>,
    return
  }
}

</mosaic_0001>

<llo_original>
// kernel: vit_forward.1
$region0: #{vit_forward.1}
  #allocation0 [shape = 'u32[]', space=smem, size = 0x4, offset = 0x4, fixed_abs, tag = 'smem constant byte address 0x4 - core index']
  #allocation1 [shape = 'u32[144,128]{1,0:T(1,128)}', space=vmem, size = 0x12000, scoped, tag = 'internal scratch']
  %s0 = inlined_call_operand.vmem [shape: f32[48,64], index: 0, kind: input, shape index: {}]
  %s1 = inlined_call_operand.vmem [shape: f32[64,32], index: 1, kind: input, shape index: {}]
  %s2 = inlined_call_operand.vmem [shape: f32[48,32], index: 2, kind: input, shape index: {}]
  %s3 = inlined_call_operand.vmem [shape: f32[1,24], index: 3, kind: input, shape index: {}]
  %s4 = inlined_call_operand.vmem [shape: f32[2,4,32], index: 4, kind: input, shape index: {}]
  %s5 = inlined_call_operand.vmem [shape: f32[2,32,128], index: 5, kind: input, shape index: {}]
  %s6 = inlined_call_operand.vmem [shape: f32[2,1,128], index: 6, kind: input, shape index: {}]
  %s7 = inlined_call_operand.vmem [shape: f32[2,32,64], index: 7, kind: input, shape index: {}]
  %s8 = inlined_call_operand.vmem [shape: f32[2,1,64], index: 8, kind: input, shape index: {}]
  %s9 = inlined_call_operand.vmem [shape: f32[2,64,32], index: 9, kind: input, shape index: {}]
  %s10 = inlined_call_operand.vmem [shape: f32[2,1,32], index: 10, kind: input, shape index: {}]
  %s11 = inlined_call_operand.vmem [shape: f32[2,32], index: 11, kind: input, shape index: {}]
  %s12 = inlined_call_operand.vmem [shape: f32[32,128], index: 12, kind: input, shape index: {}]
  %s13 = inlined_call_operand.vmem [shape: f32[1,128], index: 13, kind: input, shape index: {}]
  %s14 = inlined_call_operand.hbm [shape: f32[2,128], index: 14, kind: output, shape index: {}]
  %s15 = sld [smem:[#allocation0]]
  $region66: #{vit_forward.1} parent=0
    _
  %s17 = ssub.s32 1, %s15
  %s18 = scalar_select 0, %s17, %s15
  $region1: #{vit_forward.1} parent=0
    #allocation2 [shape = 'u8[1024]{0}', space=vmem, size = 0x400, scoped, tag = 'output window, operand 0, single buffered']
    #allocation3 [shape = 's32[1]{0}', space=sflag, size = 0x4, scoped, tag = 'scoped memory for vit_forward.1']
    %19 = vsyncpa [#allocation3], 0
    // Predicated region
    $region2: #{vit_forward.1} parent=1 // pred_check
      _
    $region3: #{vit_forward.1} parent=1 // pred_check_branch
      %21 = sbr.rel (0) target = $region5
    $region4: #{vit_forward.1} parent=1 // pred_region
      _
    $region5: #{vit_forward.1} parent=1 // pred_fallthru
      _
    // Predicated region
    $region6: #{vit_forward.1} parent=1 // pred_check
      _
    $region7: #{vit_forward.1} parent=1 // pred_check_branch
      %23 = sbr.rel (0) target = $region9
    $region8: #{vit_forward.1} parent=1 // pred_region
      _
    $region9: #{vit_forward.1} parent=1 // pred_fallthru
      _
    // Predicated region
    $region10: #{vit_forward.1} parent=1 // pred_check
      _
    $region11: #{vit_forward.1} parent=1 // pred_check_branch
      %25 = sbr.rel (0) target = $region13
    $region12: #{vit_forward.1} parent=1 // pred_region
      _
    $region13: #{vit_forward.1} parent=1 // pred_fallthru
      _
    // Predicated region
    $region14: #{vit_forward.1} parent=1 // pred_check
      _
    $region15: #{vit_forward.1} parent=1 // pred_check_branch
      %27 = sbr.rel (0) target = $region17
    $region16: #{vit_forward.1} parent=1 // pred_region
      _
    $region17: #{vit_forward.1} parent=1 // pred_fallthru
      _
    // Predicated region
    $region18: #{vit_forward.1} parent=1 // pred_check
      _
    $region19: #{vit_forward.1} parent=1 // pred_check_branch
      %29 = sbr.rel (0) target = $region21
    $region20: #{vit_forward.1} parent=1 // pred_region
      _
    $region21: #{vit_forward.1} parent=1 // pred_fallthru
      _
    // Predicated region
    $region22: #{vit_forward.1} parent=1 // pred_check
      _
    $region23: #{vit_forward.1} parent=1 // pred_check_branch
      %31 = sbr.rel (0) target = $region25
    $region24: #{vit_forward.1} parent=1 // pred_region
      _
    $region25: #{vit_forward.1} parent=1 // pred_fallthru
      _
    // Predicated region
    $region26: #{vit_forward.1} parent=1 // pred_check
      _
    $region27: #{vit_forward.1} parent=1 // pred_check_branch
      %33 = sbr.rel (0) target = $region29
    $region28: #{vit_forward.1} parent=1 // pred_region
      _
    $region29: #{vit_forward.1} parent=1 // pred_fallthru
      _
    // Predicated region
    $region30: #{vit_forward.1} parent=1 // pred_check
      _
    $region31: #{vit_forward.1} parent=1 // pred_check_branch
      %35 = sbr.rel (0) target = $region33
    $region32: #{vit_forward.1} parent=1 // pred_region
      _
    $region33: #{vit_forward.1} parent=1 // pred_fallthru
      _
    // Predicated region
    $region34: #{vit_forward.1} parent=1 // pred_check
      _
    $region35: #{vit_forward.1} parent=1 // pred_check_branch
      %37 = sbr.rel (0) target = $region37
    $region36: #{vit_forward.1} parent=1 // pred_region
      _
    $region37: #{vit_forward.1} parent=1 // pred_fallthru
      _
    // Predicated region
    $region38: #{vit_forward.1} parent=1 // pred_check
      _
    $region39: #{vit_forward.1} parent=1 // pred_check_branch
      %39 = sbr.rel (0) target = $region41
    $region40: #{vit_forward.1} parent=1 // pred_region
      _
    $region41: #{vit_forward.1} parent=1 // pred_fallthru
      _
    // Predicated region
    $region42: #{vit_forward.1} parent=1 // pred_check
      _
    $region43: #{vit_forward.1} parent=1 // pred_check_branch
      %41 = sbr.rel (0) target = $region45
    $region44: #{vit_forward.1} parent=1 // pred_region
      _
    $region45: #{vit_forward.1} parent=1 // pred_fallthru
      _
    // Predicated region
    $region46: #{vit_forward.1} parent=1 // pred_check
      _
    $region47: #{vit_forward.1} parent=1 // pred_check_branch
      %43 = sbr.rel (0) target = $region49
    $region48: #{vit_forward.1} parent=1 // pred_region
      _
    $region49: #{vit_forward.1} parent=1 // pred_fallthru
      _
    // Predicated region
    $region50: #{vit_forward.1} parent=1 // pred_check
      _
    $region51: #{vit_forward.1} parent=1 // pred_check_branch
      %45 = sbr.rel (0) target = $region53
    $region52: #{vit_forward.1} parent=1 // pred_region
      _
    $region53: #{vit_forward.1} parent=1 // pred_fallthru
      _
    // Predicated region
    $region54: #{vit_forward.1} parent=1 // pred_check
      _
    $region55: #{vit_forward.1} parent=1 // pred_check_branch
      %47 = sbr.rel (0) target = $region57
    $region56: #{vit_forward.1} parent=1 // pred_region
      _
    $region57: #{vit_forward.1} parent=1 // pred_fallthru
      _
    %v48 = vld [vmem:[%s0] sm:$0xff]
    %v49 = vld [vmem:[%s0 + $0x8] sm:$0xff]
    %v50 = vld [vmem:[%s0 + $0x10] sm:$0xff]
    %v51 = vld [vmem:[%s0 + $0x18] sm:$0xff]
    %v52 = vld [vmem:[%s0 + $0x20] sm:$0xff]
    %v53 = vld [vmem:[%s0 + $0x28] sm:$0xff]
    %v54 = vld [vmem:[%s1] sm:$0xff]
    %v55 = vld [vmem:[%s1 + $0x8] sm:$0xff]
    %v56 = vld [vmem:[%s1 + $0x10] sm:$0xff]
    %v57 = vld [vmem:[%s1 + $0x18] sm:$0xff]
    %v58 = vld [vmem:[%s1 + $0x20] sm:$0xff]
    %v59 = vld [vmem:[%s1 + $0x28] sm:$0xff]
    %v60 = vld [vmem:[%s1 + $0x30] sm:$0xff]
    %v61 = vld [vmem:[%s1 + $0x38] sm:$0xff]
    %v62 = vld [vmem:[%s2] sm:$0xff]
    %v63 = vld [vmem:[%s2 + $0x8] sm:$0xff]
    %v64 = vld [vmem:[%s2 + $0x10] sm:$0xff]
    %v65 = vld [vmem:[%s2 + $0x18] sm:$0xff]
    %v66 = vld [vmem:[%s2 + $0x20] sm:$0xff]
    %v67 = vld [vmem:[%s2 + $0x28] sm:$0xff]
    %vm68 = vcmask 523264
    %v70 = vsel %vm68, %v48, 0
    %v73 = vsel %vm68, %v49, 0
    %v76 = vsel %vm68, %v50, 0
    %v79 = vsel %vm68, %v51, 0
    %v82 = vsel %vm68, %v52, 0
    %v85 = vsel %vm68, %v53, 0
    %87 = vmatprep.subr.mxu0 0.0
    %88 = vmatpush1.msra.mxu0 %v54
    %89 = vmatprep.subr.mxu0 0.0
    %90 = vmatpush1.msra.mxu0 %v55
    %91 = vmatprep.subr.mxu0 0.0
    %92 = vmatpush1.msra.mxu0 %v56
    %93 = vmatprep.subr.mxu0 0.0
    %94 = vmatpush1.msra.mxu0 %v57
    %95 = vmatprep.subr.mxu0 0.0
    %96 = vmatpush1.msra.mxu0 %v58
    %97 = vmatprep.subr.mxu0 0.0
    %98 = vmatpush1.msra.mxu0 %v59
    %99 = vmatprep.subr.mxu0 0.0
    %100 = vmatpush1.msra.mxu0 %v60
    %101 = vmatprep.subr.mxu0 0.0
    %102 = vmatpush1.msra.mxu0 %v61
    %103 = vmatprep.subr.mxu0 0.0
    %104 = vmatpush1.msra.mxu0 0.0
    %105 = vmatprep.subr.mxu0 0.0
    %106 = vmatpush1.msra.mxu0 0.0
    %107 = vmatprep.subr.mxu0 0.0
    %108 = vmatpush1.msra.mxu0 0.0
    %109 = vmatprep.subr.mxu0 0.0
    %110 = vmatpush1.msra.mxu0 0.0
    %111 = vmatprep.subr.mxu0 0.0
    %112 = vmatpush1.msra.mxu0 0.0
    %113 = vmatprep.subr.mxu0 0.0
    %114 = vmatpush1.msra.mxu0 0.0
    %115 = vmatprep.subr.mxu0 0.0
    %116 = vmatpush1.msra.mxu0 0.0
    %117 = vmatprep.subr.mxu0 0.0
    %118 = vmatpush1.msra.mxu0 0.0
    %119 = vmatprep.subr.mxu0 0.0
    %120 = vmatpush1.msra.mxu0 0.0
    %121 = vmatprep.subr.mxu0 0.0
    %122 = vmatpush1.msra.mxu0 0.0
    %123 = vmatprep.subr.mxu0 0.0
    %124 = vmatpush1.msra.mxu0 0.0
    %125 = vmatprep.subr.mxu0 0.0
    %126 = vmatpush1.msra.mxu0 0.0
    %127 = vmatprep.subr.mxu0 0.0
    %128 = vmatpush1.msra.mxu0 0.0
    %129 = vmatprep.subr.mxu0 0.0
    %130 = vmatpush1.msra.mxu0 0.0
    %131 = vmatprep.subr.mxu0 0.0
    %132 = vmatpush1.msra.mxu0 0.0
    %133 = vmatprep.subr.mxu0 0.0
    %134 = vmatpush1.msra.mxu0 0.0
    %135 = vmatprep.subr.mxu0 0.0
    %136 = vmatpush1.msra.mxu0 0.0
    %137 = vmatprep.subr.mxu0 0.0
    %138 = vmatpush1.msra.mxu0 0.0
    %139 = vmatprep.subr.mxu0 0.0
    %140 = vmatpush1.msra.mxu0 0.0
    %141 = vmatprep.subr.mxu0 0.0
    %142 = vmatpush1.msra.mxu0 0.0
    %143 = vmatprep.subr.mxu0 0.0
    %144 = vmatpush1.msra.mxu0 0.0
    %145 = vmatprep.subr.mxu0 0.0
    %146 = vmatpush1.msra.mxu0 0.0
    %147 = vmatprep.subr.mxu0 0.0
    %148 = vmatpush1.msra.mxu0 0.0
    %149 = vmatprep.subr.mxu0 0.0
    %150 = vmatpush1.msra.mxu0 0.0
    %151 = vmatprep.mubr.f32.mxu0 0.0
    %152 = vmatmul.mubr.f32.gmra.mrb[0].mxu0 %v70
    %v153 = vpop.f32.mrb[0].mxu0
    %v154 = vadd.f32 %v62, %v153
    %v155 = vpop.f32.mrb[0].mxu0
    %156 = vmatprep.mubr.f32.mxu0 0.0
    %157 = vmatmul.mubr.f32.gmra.mrb[0].mxu0 %v73
    %v158 = vpop.f32.mrb[0].mxu0
    %v159 = vadd.f32 %v63, %v158
    %v160 = vpop.f32.mrb[0].mxu0
    %161 = vmatprep.mubr.f32.mxu0 0.0
    %162 = vmatmul.mubr.f32.gmra.mrb[0].mxu0 %v76
    %v163 = vpop.f32.mrb[0].mxu0
    %v164 = vadd.f32 %v64, %v163
    %v165 = vpop.f32.mrb[0].mxu0
    %166 = vmatprep.mubr.f32.mxu0 0.0
    %167 = vmatmul.mubr.f32.gmra.mrb[0].mxu0 %v79
    %v168 = vpop.f32.mrb[0].mxu0
    %v169 = vadd.f32 %v65, %v168
    %v170 = vpop.f32.mrb[0].mxu0
    %171 = vmatprep.mubr.f32.mxu0 0.0
    %172 = vmatmul.mubr.f32.gmra.mrb[0].mxu0 %v82
    %v173 = vpop.f32.mrb[0].mxu0
    %v174 = vadd.f32 %v66, %v173
    %v175 = vpop.f32.mrb[0].mxu0
    %176 = vmatprep.mubr.f32.mxu0 0.0
    %177 = vmatmul.mubr.f32.gmra.mrb[0].mxu0 %v85
    %v178 = vpop.f32.mrb[0].mxu0
    %v179 = vadd.f32 %v67, %v178
    %v180 = vpop.f32.mrb[0].mxu0
    %181 = vdwg.mxu0
    %v182 = vld [vmem:[%s3] sm:$0x1]
    %v183 = vld [vmem:[%s4] sm:$0xf]
    %v184 = vld [vmem:[%s5] sm:$0xff]
    %v185 = vld [vmem:[%s5 + $0x8] sm:$0xff]
    %v186 = vld [vmem:[%s5 + $0x10] sm:$0xff]
    %v187 = vld [vmem:[%s5 + $0x18] sm:$0xff]
    %v188 = vld [vmem:[%s6] sm:$0x1]
    %vm189 = vcmask 261120
    %v190 = vsel %vm189, %v154, 0.0
    %191 = vadd.xlane.f32.xlu0 %v190
    %v192 = vpop.xlane.xlu0 %191
    %v193 = vsel %vm189, %v159, 0.0
    %194 = vadd.xlane.f32.xlu0 %v193
    %v195 = vpop.xlane.xlu0 %194
    %v196 = vsel %vm189, %v164, 0.0
    %197 = vadd.xlane.f32.xlu0 %v196
    %v198 = vpop.xlane.xlu0 %197
    %v199 = vsel %vm189, %v169, 0.0
    %200 = vadd.xlane.f32.xlu0 %v199
    %v201 = vpop.xlane.xlu0 %200
    %v202 = vsel %vm189, %v174, 0.0
    %203 = vadd.xlane.f32.xlu0 %v202
    %v204 = vpop.xlane.xlu0 %203
    %v205 = vsel %vm189, %v179, 0.0
    %206 = vadd.xlane.f32.xlu0 %v205
    %v207 = vpop.xlane.xlu0 %206
    %v208 = vrcp.pop 32.0
    %v209 = vmul.f32 %v192, %v208
    %v210 = vmul.f32 %v195, %v208
    %v211 = vmul.f32 %v198, %v208
    %v212 = vmul.f32 %v201, %v208
    %v213 = vmul.f32 %v204, %v208
    %v214 = vmul.f32 %v207, %v208
    %v215 = vsub.f32 %v154, %v209
    %v216 = vsub.f32 %v159, %v210
    %v217 = vsub.f32 %v164, %v211
    %v218 = vsub.f32 %v169, %v212
    %v219 = vsub.f32 %v174, %v213
    %v220 = vsub.f32 %v179, %v214
    %v221 = vmul.f32 %v215, %v215
    %v222 = vmul.f32 %v216, %v216
    %v223 = vmul.f32 %v217, %v217
    %v224 = vmul.f32 %v218, %v218
    %v225 = vmul.f32 %v219, %v219
    %v226 = vmul.f32 %v220, %v220
    %v227 = vsel %vm189, %v221, 0.0
    %228 = vadd.xlane.f32.xlu0 %v227
    %v229 = vpop.xlane.xlu0 %228
    %v230 = vsel %vm189, %v222, 0.0
    %231 = vadd.xlane.f32.xlu0 %v230
    %v232 = vpop.xlane.xlu0 %231
    %v233 = vsel %vm189, %v223, 0.0
    %234 = vadd.xlane.f32.xlu0 %v233
    %v235 = vpop.xlane.xlu0 %234
    %v236 = vsel %vm189, %v224, 0.0
    %237 = vadd.xlane.f32.xlu0 %v236
    %v238 = vpop.xlane.xlu0 %237
    %v239 = vsel %vm189, %v225, 0.0
    %240 = vadd.xlane.f32.xlu0 %v239
    %v241 = vpop.xlane.xlu0 %240
    %v242 = vsel %vm189, %v226, 0.0
    %243 = vadd.xlane.f32.xlu0 %v242
    %v244 = vpop.xlane.xlu0 %243
    %v245 = vmul.f32 %v229, %v208
    %v246 = vmul.f32 %v232, %v208
    %v247 = vmul.f32 %v235, %v208
    %v248 = vmul.f32 %v238, %v208
    %v249 = vmul.f32 %v241, %v208
    %v250 = vmul.f32 %v244, %v208
    %v251 = vadd.f32 %v245, 1e-05
    %v252 = vadd.f32 %v246, 1e-05
    %v253 = vadd.f32 %v247, 1e-05
    %v254 = vadd.f32 %v248, 1e-05
    %v255 = vadd.f32 %v249, 1e-05
    %v256 = vadd.f32 %v250, 1e-05
    %v257 = vrsqrt.pop %v251
    %v258 = vrsqrt.pop %v252
    %v259 = vrsqrt.pop %v253
    %v260 = vrsqrt.pop %v254
    %v261 = vrsqrt.pop %v255
    %v262 = vrsqrt.pop %v256
    %v263 = vmul.f32 %v215, %v257
    %v264 = vmul.f32 %v216, %v258
    %v265 = vmul.f32 %v217, %v259
    %v266 = vmul.f32 %v218, %v260
    %v267 = vmul.f32 %v219, %v261
    %v268 = vmul.f32 %v220, %v262
    %v269 = vlaneseq
    %v270 = vshrl.u32 %v269, 7
    %v271 = vsub.s32 0, %v270
    %v272 = vrot.slane %v183, %v271
    %v273 = vmul.f32 %v263, %v272
    %v274 = vmul.f32 %v264, %v272
    %v275 = vmul.f32 %v265, %v272
    %v276 = vmul.f32 %v266, %v272
    %v277 = vmul.f32 %v267, %v272
    %v278 = vmul.f32 %v268, %v272
    %v279 = vlaneseq
    %v280 = vshrl.u32 %v279, 7
    %v281 = vsub.s32 1, %v280
    %v282 = vrot.slane %v183, %v281
    %v283 = vadd.f32 %v273, %v282
    %v284 = vadd.f32 %v274, %v282
    %v285 = vadd.f32 %v275, %v282
    %v286 = vadd.f32 %v276, %v282
    %v287 = vadd.f32 %v277, %v282
    %v288 = vadd.f32 %v278, %v282
    %v289 = vlaneseq
    %v290 = vshrl.u32 %v289, 7
    %v291 = vsub.s32 2, %v290
    %v292 = vrot.slane %v183, %v291
    %v293 = vmul.f32 %v263, %v292
    %v294 = vmul.f32 %v264, %v292
    %v295 = vmul.f32 %v265, %v292
    %v296 = vmul.f32 %v266, %v292
    %v297 = vmul.f32 %v267, %v292
    %v298 = vmul.f32 %v268, %v292
    %v299 = vlaneseq
    %v300 = vshrl.u32 %v299, 7
    %v301 = vsub.s32 3, %v300
    %v302 = vrot.slane %v183, %v301
    %v303 = vadd.f32 %v293, %v302
    %v304 = vadd.f32 %v294, %v302
    %v305 = vadd.f32 %v295, %v302
    %v306 = vadd.f32 %v296, %v302
    %v307 = vadd.f32 %v297, %v302
    %v308 = vadd.f32 %v298, %v302
    %v310 = vlaneseq
    %v311 = vshrl.u32 %v310, 7
    %v312 = vsub.s32 0, %v311
    %v313 = vrot.slane %v188, %v312
    %v316 = vsel %vm189, %v283, 0
    %v319 = vsel %vm189, %v284, 0
    %v322 = vsel %vm189, %v285, 0
    %v325 = vsel %vm189, %v286, 0
    %v328 = vsel %vm189, %v287, 0
    %v331 = vsel %vm189, %v288, 0
    %333 = vmatprep.subr.mxu0 0.0
    %334 = vmatpush1.msra.mxu0 %v184
    %335 = vmatprep.subr.mxu0 0.0
    %336 = vmatpush1.msra.mxu0 %v185
    %337 = vmatprep.subr.mxu0 0.0
    %338 = vmatpush1.msra.mxu0 %v186
    %339 = vmatprep.subr.mxu0 0.0
    %340 = vmatpush1.msra.mxu0 %v187
    %341 = vmatprep.subr.mxu0 0.0
    %342 = vmatpush1.msra.mxu0 0.0
    %343 = vmatprep.subr.mxu0 0.0
    %344 = vmatpush1.msra.mxu0 0.0
    %345 = vmatprep.subr.mxu0 0.0
    %346 = vmatpush1.msra.mxu0 0.0
    %347 = vmatprep.subr.mxu0 0.0
    %348 = vmatpush1.msra.mxu0 0.0
    %349 = vmatprep.subr.mxu0 0.0
    %350 = vmatpush1.msra.mxu0 0.0
    %351 = vmatprep.subr.mxu0 0.0
    %352 = vmatpush1.msra.mxu0 0.0
    %353 = vmatprep.subr.mxu0 0.0
    %354 = vmatpush1.msra.mxu0 0.0
    %355 = vmatprep.subr.mxu0 0.0
    %356 = vmatpush1.msra.mxu0 0.0
    %357 = vmatprep.subr.mxu0 0.0
    %358 = vmatpush1.msra.mxu0 0.0
    %359 = vmatprep.subr.mxu0 0.0
    %360 = vmatpush1.msra.mxu0 0.0
    %361 = vmatprep.subr.mxu0 0.0
    %362 = vmatpush1.msra.mxu0 0.0
    %363 = vmatprep.subr.mxu0 0.0
    %364 = vmatpush1.msra.mxu0 0.0
    %365 = vmatprep.subr.mxu0 0.0
    %366 = vmatpush1.msra.mxu0 0.0
    %367 = vmatprep.subr.mxu0 0.0
    %368 = vmatpush1.msra.mxu0 0.0
    %369 = vmatprep.subr.mxu0 0.0
    %370 = vmatpush1.msra.mxu0 0.0
    %371 = vmatprep.subr.mxu0 0.0
    %372 = vmatpush1.msra.mxu0 0.0
    %373 = vmatprep.subr.mxu0 0.0
    %374 = vmatpush1.msra.mxu0 0.0
    %375 = vmatprep.subr.mxu0 0.0
    %376 = vmatpush1.msra.mxu0 0.0
    %377 = vmatprep.subr.mxu0 0.0
    %378 = vmatpush1.msra.mxu0 0.0
    %379 = vmatprep.subr.mxu0 0.0
    %380 = vmatpush1.msra.mxu0 0.0
    %381 = vmatprep.subr.mxu0 0.0
    %382 = vmatpush1.msra.mxu0 0.0
    %383 = vmatprep.subr.mxu0 0.0
    %384 = vmatpush1.msra.mxu0 0.0
    %385 = vmatprep.subr.mxu0 0.0
    %386 = vmatpush1.msra.mxu0 0.0
    %387 = vmatprep.subr.mxu0 0.0
    %388 = vmatpush1.msra.mxu0 0.0
    %389 = vmatprep.subr.mxu0 0.0
    %390 = vmatpush1.msra.mxu0 0.0
    %391 = vmatprep.subr.mxu0 0.0
    %392 = vmatpush1.msra.mxu0 0.0
    %393 = vmatprep.subr.mxu0 0.0
    %394 = vmatpush1.msra.mxu0 0.0
    %395 = vmatprep.subr.mxu0 0.0
    %396 = vmatpush1.msra.mxu0 0.0
    %397 = vmatprep.mubr.f32.mxu0 0.0
    %398 = vmatmul.mubr.f32.gmra.mrb[0].mxu0 %v316
    %v399 = vpop.f32.mrb[0].mxu0
    %v400 = vadd.f32 %v313, %v399
    %v401 = vpop.f32.mrb[0].mxu0
    %402 = vmatprep.mubr.f32.mxu0 0.0
    %403 = vmatmul.mubr.f32.gmra.mrb[0].mxu0 %v319
    %v404 = vpop.f32.mrb[0].mxu0
    %v405 = vadd.f32 %v313, %v404
    %v406 = vpop.f32.mrb[0].mxu0
    %407 = vmatprep.mubr.f32.mxu0 0.0
    %408 = vmatmul.mubr.f32.gmra.mrb[0].mxu0 %v322
    %v409 = vpop.f32.mrb[0].mxu0
    %v410 = vadd.f32 %v313, %v409
    %v411 = vpop.f32.mrb[0].mxu0
    %412 = vmatprep.mubr.f32.mxu0 0.0
    %413 = vmatmul.mubr.f32.gmra.mrb[0].mxu0 %v325
    %v414 = vpop.f32.mrb[0].mxu0
    %v415 = vadd.f32 %v313, %v414
    %v416 = vpop.f32.mrb[0].mxu0
    %417 = vmatprep.mubr.f32.mxu0 0.0
    %418 = vmatmul.mubr.f32.gmra.mrb[0].mxu0 %v328
    %v419 = vpop.f32.mrb[0].mxu0
    %v420 = vadd.f32 %v313, %v419
    %v421 = vpop.f32.mrb[0].mxu0
    %422 = vmatprep.mubr.f32.mxu0 0.0
    %423 = vmatmul.mubr.f32.gmra.mrb[0].mxu0 %v331
    %v424 = vpop.f32.mrb[0].mxu0
    %v425 = vadd.f32 %v313, %v424
    %v426 = vpop.f32.mrb[0].mxu0
    %427 = vdwg.mxu0
    %432 = vrot.lane.b32.xlu0 %v184, 64
    %v433 = vpop.permute.xlu0 %432
    %434 = vrot.lane.b32.xlu0 %v185, 64
    %v435 = vpop.permute.xlu0 %434
    %436 = vrot.lane.b32.xlu0 %v186, 64
    %v437 = vpop.permute.xlu0 %436
    %438 = vrot.lane.b32.xlu0 %v187, 64
    %v439 = vpop.permute.xlu0 %438
    %444 = vrot.lane.b32.xlu0 %v313, 64
    %v445 = vpop.permute.xlu0 %444
    %v448 = vsel %vm189, %v303, 0
    %v451 = vsel %vm189, %v304, 0
    %v454 = vsel %vm189, %v305, 0
    %v457 = vsel %vm189, %v306, 0
    %v460 = vsel %vm189, %v307, 0
    %v463 = vsel %vm189, %v308, 0
    %465 = vmatprep.subr.mxu0 0.0
    %466 = vmatpush1.msra.mxu0 %v433
    %467 = vmatprep.subr.mxu0 0.0
    %468 = vmatpush1.msra.mxu0 %v435
    %469 = vmatprep.subr.mxu0 0.0
    %470 = vmatpush1.msra.mxu0 %v437
    %471 = vmatprep.subr.mxu0 0.0
    %472 = vmatpush1.msra.mxu0 %v439
    %473 = vmatprep.subr.mxu0 0.0
    %474 = vmatpush1.msra.mxu0 0.0
    %475 = vmatprep.subr.mxu0 0.0
    %476 = vmatpush1.msra.mxu0 0.0
    %477 = vmatprep.subr.mxu0 0.0
    %478 = vmatpush1.msra.mxu0 0.0
    %479 = vmatprep.subr.mxu0 0.0
    %480 = vmatpush1.msra.mxu0 0.0
    %481 = vmatprep.subr.mxu0 0.0
    %482 = vmatpush1.msra.mxu0 0.0
    %483 = vmatprep.subr.mxu0 0.0
    %484 = vmatpush1.msra.mxu0 0.0
    %485 = vmatprep.subr.mxu0 0.0
    %486 = vmatpush1.msra.mxu0 0.0
    %487 = vmatprep.subr.mxu0 0.0
    %488 = vmatpush1.msra.mxu0 0.0
    %489 = vmatprep.subr.mxu0 0.0
    %490 = vmatpush1.msra.mxu0 0.0
    %491 = vmatprep.subr.mxu0 0.0
    %492 = vmatpush1.msra.mxu0 0.0
    %493 = vmatprep.subr.mxu0 0.0
    %494 = vmatpush1.msra.mxu0 0.0
    %495 = vmatprep.subr.mxu0 0.0
    %496 = vmatpush1.msra.mxu0 0.0
    %497 = vmatprep.subr.mxu0 0.0
    %498 = vmatpush1.msra.mxu0 0.0
    %499 = vmatprep.subr.mxu0 0.0
    %500 = vmatpush1.msra.mxu0 0.0
    %501 = vmatprep.subr.mxu0 0.0
    %502 = vmatpush1.msra.mxu0 0.0
    %503 = vmatprep.subr.mxu0 0.0
    %504 = vmatpush1.msra.mxu0 0.0
    %505 = vmatprep.subr.mxu0 0.0
    %506 = vmatpush1.msra.mxu0 0.0
    %507 = vmatprep.subr.mxu0 0.0
    %508 = vmatpush1.msra.mxu0 0.0
    %509 = vmatprep.subr.mxu0 0.0
    %510 = vmatpush1.msra.mxu0 0.0
    %511 = vmatprep.subr.mxu0 0.0
    %512 = vmatpush1.msra.mxu0 0.0
    %513 = vmatprep.subr.mxu0 0.0
    %514 = vmatpush1.msra.mxu0 0.0
    %515 = vmatprep.subr.mxu0 0.0
    %516 = vmatpush1.msra.mxu0 0.0
    %517 = vmatprep.subr.mxu0 0.0
    %518 = vmatpush1.msra.mxu0 0.0
    %519 = vmatprep.subr.mxu0 0.0
    %520 = vmatpush1.msra.mxu0 0.0
    %521 = vmatprep.subr.mxu0 0.0
    %522 = vmatpush1.msra.mxu0 0.0
    %523 = vmatprep.subr.mxu0 0.0
    %524 = vmatpush1.msra.mxu0 0.0
    %525 = vmatprep.subr.mxu0 0.0
    %526 = vmatpush1.msra.mxu0 0.0
    %527 = vmatprep.subr.mxu0 0.0
    %528 = vmatpush1.msra.mxu0 0.0
    %529 = vmatprep.mubr.f32.mxu0 0.0
    %530 = vmatmul.mubr.f32.gmra.mrb[0].mxu0 %v448
    %v531 = vpop.f32.mrb[0].mxu0
    %v532 = vadd.f32 %v445, %v531
    %v533 = vpop.f32.mrb[0].mxu0
    %534 = vmatprep.mubr.f32.mxu0 0.0
    %535 = vmatmul.mubr.f32.gmra.mrb[0].mxu0 %v451
    %v536 = vpop.f32.mrb[0].mxu0
    %v537 = vadd.f32 %v445, %v536
    %v538 = vpop.f32.mrb[0].mxu0
    %539 = vmatprep.mubr.f32.mxu0 0.0
    %540 = vmatmul.mubr.f32.gmra.mrb[0].mxu0 %v454
    %v541 = vpop.f32.mrb[0].mxu0
    %v542 = vadd.f32 %v445, %v541
    %v543 = vpop.f32.mrb[0].mxu0
    %544 = vmatprep.mubr.f32.mxu0 0.0
    %545 = vmatmul.mubr.f32.gmra.mrb[0].mxu0 %v457
    %v546 = vpop.f32.mrb[0].mxu0
    %v547 = vadd.f32 %v445, %v546
    %v548 = vpop.f32.mrb[0].mxu0
    %549 = vmatprep.mubr.f32.mxu0 0.0
    %550 = vmatmul.mubr.f32.gmra.mrb[0].mxu0 %v460
    %v551 = vpop.f32.mrb[0].mxu0
    %v552 = vadd.f32 %v445, %v551
    %v553 = vpop.f32.mrb[0].mxu0
    %554 = vmatprep.mubr.f32.mxu0 0.0
    %555 = vmatmul.mubr.f32.gmra.mrb[0].mxu0 %v463
    %v556 = vpop.f32.mrb[0].mxu0
    %v557 = vadd.f32 %v445, %v556
    %v558 = vpop.f32.mrb[0].mxu0
    %559 = vdwg.mxu0
    %vm560 = vcmask 64512
    %v562 = vsel %vm560, %v400, 0
    %v565 = vsel %vm560, %v405, 0
    %v568 = vsel %vm560, %v410, 0
    %v571 = vsel %vm560, %v532, 0
    %v574 = vsel %vm560, %v537, 0
    %v577 = vsel %vm560, %v542, 0
    %579 = vmatprep.subr.mxu0 0.0
    %580 = vmatpush1.xpose.msra.mxu0 %v571
    %581 = vmatprep.subr.mxu0 0.0
    %582 = vmatpush1.xpose.msra.mxu0 %v574
    %583 = vmatprep.subr.mxu0 0.0
    %584 = vmatpush1.xpose.msra.mxu0 %v577
    %585 = vmatprep.subr.mxu0 0.0
    %586 = vmatpush1.xpose.msra.mxu0 0.0
    %587 = vmatprep.subr.mxu0 0.0
    %588 = vmatpush1.xpose.msra.mxu0 0.0
    %589 = vmatprep.subr.mxu0 0.0
    %590 = vmatpush1.xpose.msra.mxu0 0.0
    %591 = vmatprep.subr.mxu0 0.0
    %592 = vmatpush1.xpose.msra.mxu0 0.0
    %593 = vmatprep.subr.mxu0 0.0
    %594 = vmatpush1.xpose.msra.mxu0 0.0
    %595 = vmatprep.subr.mxu0 0.0
    %596 = vmatpush1.xpose.msra.mxu0 0.0
    %597 = vmatprep.subr.mxu0 0.0
    %598 = vmatpush1.xpose.msra.mxu0 0.0
    %599 = vmatprep.subr.mxu0 0.0
    %600 = vmatpush1.xpose.msra.mxu0 0.0
    %601 = vmatprep.subr.mxu0 0.0
    %602 = vmatpush1.xpose.msra.mxu0 0.0
    %603 = vmatprep.subr.mxu0 0.0
    %604 = vmatpush1.xpose.msra.mxu0 0.0
    %605 = vmatprep.subr.mxu0 0.0
    %606 = vmatpush1.xpose.msra.mxu0 0.0
    %607 = vmatprep.subr.mxu0 0.0
    %608 = vmatpush1.xpose.msra.mxu0 0.0
    %609 = vmatprep.subr.mxu0 0.0
    %610 = vmatpush1.xpose.msra.mxu0 0.0
    %611 = vmatprep.subr.mxu0 0.0
    %612 = vmatpush1.xpose.msra.mxu0 0.0
    %613 = vmatprep.subr.mxu0 0.0
    %614 = vmatpush1.xpose.msra.mxu0 0.0
    %615 = vmatprep.subr.mxu0 0.0
    %616 = vmatpush1.xpose.msra.mxu0 0.0
    %617 = vmatprep.subr.mxu0 0.0
    %618 = vmatpush1.xpose.msra.mxu0 0.0
    %619 = vmatprep.subr.mxu0 0.0
    %620 = vmatpush1.xpose.msra.mxu0 0.0
    %621 = vmatprep.subr.mxu0 0.0
    %622 = vmatpush1.xpose.msra.mxu0 0.0
    %623 = vmatprep.subr.mxu0 0.0
    %624 = vmatpush1.xpose.msra.mxu0 0.0
    %625 = vmatprep.subr.mxu0 0.0
    %626 = vmatpush1.xpose.msra.mxu0 0.0
    %627 = vmatprep.subr.mxu0 0.0
    %628 = vmatpush1.xpose.msra.mxu0 0.0
    %629 = vmatprep.subr.mxu0 0.0
    %630 = vmatpush1.xpose.msra.mxu0 0.0
    %631 = vmatprep.subr.mxu0 0.0
    %632 = vmatpush1.xpose.msra.mxu0 0.0
    %633 = vmatprep.subr.mxu0 0.0
    %634 = vmatpush1.xpose.msra.mxu0 0.0
    %635 = vmatprep.subr.mxu0 0.0
    %636 = vmatpush1.xpose.msra.mxu0 0.0
    %637 = vmatprep.subr.mxu0 0.0
    %638 = vmatpush1.xpose.msra.mxu0 0.0
    %639 = vmatprep.subr.mxu0 0.0
    %640 = vmatpush1.xpose.msra.mxu0 0.0
    %641 = vmatprep.subr.mxu0 0.0
    %642 = vmatpush1.xpose.msra.mxu0 0.0
    %643 = vmatprep.mubr.f32.mxu0 0.0
    %644 = vmatmul.mubr.f32.gmra.mrb[0].mxu0 %v562
    %v645 = vpop.f32.mrb[0].mxu0
    %v646 = vadd.f32 0.0, %v645
    %v647 = vpop.f32.mrb[0].mxu0
    %648 = vmatprep.mubr.f32.mxu0 0.0
    %649 = vmatmul.mubr.f32.gmra.mrb[0].mxu0 %v565
    %v650 = vpop.f32.mrb[0].mxu0
    %v651 = vadd.f32 0.0, %v650
    %v652 = vpop.f32.mrb[0].mxu0
    %653 = vmatprep.mubr.f32.mxu0 0.0
    %654 = vmatmul.mubr.f32.gmra.mrb[0].mxu0 %v568
    %v655 = vpop.f32.mrb[0].mxu0
    %v656 = vadd.f32 0.0, %v655
    %v657 = vpop.f32.mrb[0].mxu0
    %658 = vdwg.mxu0
    %v660 = vsel %vm560, %v415, 0
    %v663 = vsel %vm560, %v420, 0
    %v666 = vsel %vm560, %v425, 0
    %v669 = vsel %vm560, %v547, 0
    %v672 = vsel %vm560, %v552, 0
    %v675 = vsel %vm560, %v557, 0
    %677 = vmatprep.subr.mxu0 0.0
    %678 = vmatpush1.xpose.msra.mxu0 %v669
    %679 = vmatprep.subr.mxu0 0.0
    %680 = vmatpush1.xpose.msra.mxu0 %v672
    %681 = vmatprep.subr.mxu0 0.0
    %682 = vmatpush1.xpose.msra.mxu0 %v675
    %683 = vmatprep.subr.mxu0 0.0
    %684 = vmatpush1.xpose.msra.mxu0 0.0
    %685 = vmatprep.subr.mxu0 0.0
    %686 = vmatpush1.xpose.msra.mxu0 0.0
    %687 = vmatprep.subr.mxu0 0.0
    %688 = vmatpush1.xpose.msra.mxu0 0.0
    %689 = vmatprep.subr.mxu0 0.0
    %690 = vmatpush1.xpose.msra.mxu0 0.0
    %691 = vmatprep.subr.mxu0 0.0
    %692 = vmatpush1.xpose.msra.mxu0 0.0
    %693 = vmatprep.subr.mxu0 0.0
    %694 = vmatpush1.xpose.msra.mxu0 0.0
    %695 = vmatprep.subr.mxu0 0.0
    %696 = vmatpush1.xpose.msra.mxu0 0.0
    %697 = vmatprep.subr.mxu0 0.0
    %698 = vmatpush1.xpose.msra.mxu0 0.0
    %699 = vmatprep.subr.mxu0 0.0
    %700 = vmatpush1.xpose.msra.mxu0 0.0
    %701 = vmatprep.subr.mxu0 0.0
    %702 = vmatpush1.xpose.msra.mxu0 0.0
    %703 = vmatprep.subr.mxu0 0.0
    %704 = vmatpush1.xpose.msra.mxu0 0.0
    %705 = vmatprep.subr.mxu0 0.0
    %706 = vmatpush1.xpose.msra.mxu0 0.0
    %707 = vmatprep.subr.mxu0 0.0
    %708 = vmatpush1.xpose.msra.mxu0 0.0
    %709 = vmatprep.subr.mxu0 0.0
    %710 = vmatpush1.xpose.msra.mxu0 0.0
    %711 = vmatprep.subr.mxu0 0.0
    %712 = vmatpush1.xpose.msra.mxu0 0.0
    %713 = vmatprep.subr.mxu0 0.0
    %714 = vmatpush1.xpose.msra.mxu0 0.0
    %715 = vmatprep.subr.mxu0 0.0
    %716 = vmatpush1.xpose.msra.mxu0 0.0
    %717 = vmatprep.subr.mxu0 0.0
    %718 = vmatpush1.xpose.msra.mxu0 0.0
    %719 = vmatprep.subr.mxu0 0.0
    %720 = vmatpush1.xpose.msra.mxu0 0.0
    %721 = vmatprep.subr.mxu0 0.0
    %722 = vmatpush1.xpose.msra.mxu0 0.0
    %723 = vmatprep.subr.mxu0 0.0
    %724 = vmatpush1.xpose.msra.mxu0 0.0
    %725 = vmatprep.subr.mxu0 0.0
    %726 = vmatpush1.xpose.msra.mxu0 0.0
    %727 = vmatprep.subr.mxu0 0.0
    %728 = vmatpush1.xpose.msra.mxu0 0.0
    %729 = vmatprep.subr.mxu0 0.0
    %730 = vmatpush1.xpose.msra.mxu0 0.0
    %731 = vmatprep.subr.mxu0 0.0
    %732 = vmatpush1.xpose.msra.mxu0 0.0
    %733 = vmatprep.subr.mxu0 0.0
    %734 = vmatpush1.xpose.msra.mxu0 0.0
    %735 = vmatprep.subr.mxu0 0.0
    %736 = vmatpush1.xpose.msra.mxu0 0.0
    %737 = vmatprep.subr.mxu0 0.0
    %738 = vmatpush1.xpose.msra.mxu0 0.0
    %739 = vmatprep.subr.mxu0 0.0
    %740 = vmatpush1.xpose.msra.mxu0 0.0
    %741 = vmatprep.mubr.f32.mxu0 0.0
    %742 = vmatmul.mubr.f32.gmra.mrb[0].mxu0 %v660
    %v743 = vpop.f32.mrb[0].mxu0
    %v744 = vadd.f32 0.0, %v743
    %v745 = vpop.f32.mrb[0].mxu0
    %746 = vmatprep.mubr.f32.mxu0 0.0
    %747 = vmatmul.mubr.f32.gmra.mrb[0].mxu0 %v663
    %v748 = vpop.f32.mrb[0].mxu0
    %v749 = vadd.f32 0.0, %v748
    %v750 = vpop.f32.mrb[0].mxu0
    %751 = vmatprep.mubr.f32.mxu0 0.0
    %752 = vmatmul.mubr.f32.gmra.mrb[0].mxu0 %v666
    %v753 = vpop.f32.mrb[0].mxu0
    %v754 = vadd.f32 0.0, %v753
    %v755 = vpop.f32.mrb[0].mxu0
    %756 = vdwg.mxu0
    %v757 = vmul.f32 %v646, 0.35355338
    %v758 = vmul.f32 %v651, 0.35355338
    %v759 = vmul.f32 %v656, 0.35355338
    %v760 = vmul.f32 %v744, 0.35355338
    %v761 = vmul.f32 %v749, 0.35355338
    %v762 = vmul.f32 %v754, 0.35355338
    %v764 = vlaneseq
    %v765 = vshrl.u32 %v764, 7
    %v766 = vsub.s32 0, %v765
    %v767 = vrot.slane %v182, %v766
    %v769 = vadd.f32 %v757, %v767
    %v770 = vadd.f32 %v758, %v767
    %v771 = vadd.f32 %v759, %v767
    %v772 = vadd.f32 %v760, %v767
    %v773 = vadd.f32 %v761, %v767
    %v774 = vadd.f32 %v762, %v767
    %vm775 = vcmask 195584
    %v776 = vsel %vm775, %v769, -inf
    %777 = vmax.xlane.f32.xlu0 %v776
    %v778 = vpop.xlane.xlu0 %777
    %v779 = vsel %vm775, %v770, -inf
    %780 = vmax.xlane.f32.xlu0 %v779
    %v781 = vpop.xlane.xlu0 %780
    %v782 = vsel %vm775, %v771, -inf
    %783 = vmax.xlane.f32.xlu0 %v782
    %v784 = vpop.xlane.xlu0 %783
    %v785 = vsel %vm775, %v772, -inf
    %786 = vmax.xlane.f32.xlu0 %v785
    %v787 = vpop.xlane.xlu0 %786
    %v788 = vsel %vm775, %v773, -inf
    %789 = vmax.xlane.f32.xlu0 %v788
    %v790 = vpop.xlane.xlu0 %789
    %v791 = vsel %vm775, %v774, -inf
    %792 = vmax.xlane.f32.xlu0 %v791
    %v793 = vpop.xlane.xlu0 %792
    %v794 = vsub.f32 %v769, %v778
    %v795 = vsub.f32 %v770, %v781
    %v796 = vsub.f32 %v771, %v784
    %v797 = vsub.f32 %v772, %v787
    %v798 = vsub.f32 %v773, %v790
    %v799 = vsub.f32 %v774, %v793
    %v800 = vmul.f32 %v794, 1.442695
    %v801 = vpow.pop %v800
    %v802 = vmul.f32 %v795, 1.442695
    %v803 = vpow.pop %v802
    %v804 = vmul.f32 %v796, 1.442695
    %v805 = vpow.pop %v804
    %v806 = vmul.f32 %v797, 1.442695
    %v807 = vpow.pop %v806
    %v808 = vmul.f32 %v798, 1.442695
    %v809 = vpow.pop %v808
    %v810 = vmul.f32 %v799, 1.442695
    %v811 = vpow.pop %v810
    %v812 = vsel %vm775, %v801, 0.0
    %813 = vadd.xlane.f32.xlu0 %v812
    %v814 = vpop.xlane.xlu0 %813
    %v815 = vsel %vm775, %v803, 0.0
    %816 = vadd.xlane.f32.xlu0 %v815
    %v817 = vpop.xlane.xlu0 %816
    %v818 = vsel %vm775, %v805, 0.0
    %819 = vadd.xlane.f32.xlu0 %v818
    %v820 = vpop.xlane.xlu0 %819
    %v821 = vsel %vm775, %v807, 0.0
    %822 = vadd.xlane.f32.xlu0 %v821
    %v823 = vpop.xlane.xlu0 %822
    %v824 = vsel %vm775, %v809, 0.0
    %825 = vadd.xlane.f32.xlu0 %v824
    %v826 = vpop.xlane.xlu0 %825
    %v827 = vsel %vm775, %v811, 0.0
    %828 = vadd.xlane.f32.xlu0 %v827
    %v829 = vpop.xlane.xlu0 %828
    %v830 = vrcp.pop %v814
    %v831 = vrcp.pop %v817
    %v832 = vrcp.pop %v820
    %v833 = vrcp.pop %v823
    %v834 = vrcp.pop %v826
    %v835 = vrcp.pop %v829
    %v836 = vmul.f32 %v801, %v830
    %v837 = vmul.f32 %v803, %v831
    %v838 = vmul.f32 %v805, %v832
    %v839 = vmul.f32 %v807, %v833
    %v840 = vmul.f32 %v809, %v834
    %v841 = vmul.f32 %v811, %v835
    %842 = vrot.lane.b32.xlu0 %v400, 96
    %v843 = vpop.permute.xlu0 %842
    %844 = vrot.lane.b32.xlu0 %v405, 96
    %v845 = vpop.permute.xlu0 %844
    %846 = vrot.lane.b32.xlu0 %v410, 96
    %v847 = vpop.permute.xlu0 %846
    %v852 = vsel %vm775, %v836, 0
    %v855 = vsel %vm775, %v837, 0
    %v858 = vsel %vm775, %v838, 0
    %860 = vmatprep.subr.mxu0 0.0
    %861 = vmatpush1.msra.mxu0 %v843
    %862 = vmatprep.subr.mxu0 0.0
    %863 = vmatpush1.msra.mxu0 %v845
    %864 = vmatprep.subr.mxu0 0.0
    %865 = vmatpush1.msra.mxu0 %v847
    %866 = vmatprep.subr.mxu0 0.0
    %867 = vmatpush1.msra.mxu0 0.0
    %868 = vmatprep.subr.mxu0 0.0
    %869 = vmatpush1.msra.mxu0 0.0
    %870 = vmatprep.subr.mxu0 0.0
    %871 = vmatpush1.msra.mxu0 0.0
    %872 = vmatprep.subr.mxu0 0.0
    %873 = vmatpush1.msra.mxu0 0.0
    %874 = vmatprep.subr.mxu0 0.0
    %875 = vmatpush1.msra.mxu0 0.0
    %876 = vmatprep.subr.mxu0 0.0
    %877 = vmatpush1.msra.mxu0 0.0
    %878 = vmatprep.subr.mxu0 0.0
    %879 = vmatpush1.msra.mxu0 0.0
    %880 = vmatprep.subr.mxu0 0.0
    %881 = vmatpush1.msra.mxu0 0.0
    %882 = vmatprep.subr.mxu0 0.0
    %883 = vmatpush1.msra.mxu0 0.0
    %884 = vmatprep.subr.mxu0 0.0
    %885 = vmatpush1.msra.mxu0 0.0
    %886 = vmatprep.subr.mxu0 0.0
    %887 = vmatpush1.msra.mxu0 0.0
    %888 = vmatprep.subr.mxu0 0.0
    %889 = vmatpush1.msra.mxu0 0.0
    %890 = vmatprep.subr.mxu0 0.0
    %891 = vmatpush1.msra.mxu0 0.0
    %892 = vmatprep.subr.mxu0 0.0
    %893 = vmatpush1.msra.mxu0 0.0
    %894 = vmatprep.subr.mxu0 0.0
    %895 = vmatpush1.msra.mxu0 0.0
    %896 = vmatprep.subr.mxu0 0.0
    %897 = vmatpush1.msra.mxu0 0.0
    %898 = vmatprep.subr.mxu0 0.0
    %899 = vmatpush1.msra.mxu0 0.0
    %900 = vmatprep.subr.mxu0 0.0
    %901 = vmatpush1.msra.mxu0 0.0
    %902 = vmatprep.subr.mxu0 0.0
    %903 = vmatpush1.msra.mxu0 0.0
    %904 = vmatprep.subr.mxu0 0.0
    %905 = vmatpush1.msra.mxu0 0.0
    %906 = vmatprep.subr.mxu0 0.0
    %907 = vmatpush1.msra.mxu0 0.0
    %908 = vmatprep.subr.mxu0 0.0
    %909 = vmatpush1.msra.mxu0 0.0
    %910 = vmatprep.subr.mxu0 0.0
    %911 = vmatpush1.msra.mxu0 0.0
    %912 = vmatprep.subr.mxu0 0.0
    %913 = vmatpush1.msra.mxu0 0.0
    %914 = vmatprep.subr.mxu0 0.0
    %915 = vmatpush1.msra.mxu0 0.0
    %916 = vmatprep.subr.mxu0 0.0
    %917 = vmatpush1.msra.mxu0 0.0
    %918 = vmatprep.subr.mxu0 0.0
    %919 = vmatpush1.msra.mxu0 0.0
    %920 = vmatprep.subr.mxu0 0.0
    %921 = vmatpush1.msra.mxu0 0.0
    %922 = vmatprep.subr.mxu0 0.0
    %923 = vmatpush1.msra.mxu0 0.0
    %924 = vmatprep.mubr.f32.mxu0 0.0
    %925 = vmatmul.mubr.f32.gmra.mrb[0].mxu0 %v852
    %v926 = vpop.f32.mrb[0].mxu0
    %v927 = vadd.f32 0.0, %v926
    %v928 = vpop.f32.mrb[0].mxu0
    %929 = vmatprep.mubr.f32.mxu0 0.0
    %930 = vmatmul.mubr.f32.gmra.mrb[0].mxu0 %v855
    %v931 = vpop.f32.mrb[0].mxu0
    %v932 = vadd.f32 0.0, %v931
    %v933 = vpop.f32.mrb[0].mxu0
    %934 = vmatprep.mubr.f32.mxu0 0.0
    %935 = vmatmul.mubr.f32.gmra.mrb[0].mxu0 %v858
    %v936 = vpop.f32.mrb[0].mxu0
    %v937 = vadd.f32 0.0, %v936
    %v938 = vpop.f32.mrb[0].mxu0
    %939 = vdwg.mxu0
    %940 = vrot.lane.b32.xlu0 %v415, 96
    %v941 = vpop.permute.xlu0 %940
    %942 = vrot.lane.b32.xlu0 %v420, 96
    %v943 = vpop.permute.xlu0 %942
    %944 = vrot.lane.b32.xlu0 %v425, 96
    %v945 = vpop.permute.xlu0 %944
    %v950 = vsel %vm775, %v839, 0
    %v953 = vsel %vm775, %v840, 0
    %v956 = vsel %vm775, %v841, 0
    %958 = vmatprep.subr.mxu0 0.0
    %959 = vmatpush1.msra.mxu0 %v941
    %960 = vmatprep.subr.mxu0 0.0
    %961 = vmatpush1.msra.mxu0 %v943
    %962 = vmatprep.subr.mxu0 0.0
    %963 = vmatpush1.msra.mxu0 %v945
    %964 = vmatprep.subr.mxu0 0.0
    %965 = vmatpush1.msra.mxu0 0.0
    %966 = vmatprep.subr.mxu0 0.0
    %967 = vmatpush1.msra.mxu0 0.0
    %968 = vmatprep.subr.mxu0 0.0
    %969 = vmatpush1.msra.mxu0 0.0
    %970 = vmatprep.subr.mxu0 0.0
    %971 = vmatpush1.msra.mxu0 0.0
    %972 = vmatprep.subr.mxu0 0.0
    %973 = vmatpush1.msra.mxu0 0.0
    %974 = vmatprep.subr.mxu0 0.0
    %975 = vmatpush1.msra.mxu0 0.0
    %976 = vmatprep.subr.mxu0 0.0
    %977 = vmatpush1.msra.mxu0 0.0
    %978 = vmatprep.subr.mxu0 0.0
    %979 = vmatpush1.msra.mxu0 0.0
    %980 = vmatprep.subr.mxu0 0.0
    %981 = vmatpush1.msra.mxu0 0.0
    %982 = vmatprep.subr.mxu0 0.0
    %983 = vmatpush1.msra.mxu0 0.0
    %984 = vmatprep.subr.mxu0 0.0
    %985 = vmatpush1.msra.mxu0 0.0
    %986 = vmatprep.subr.mxu0 0.0
    %987 = vmatpush1.msra.mxu0 0.0
    %988 = vmatprep.subr.mxu0 0.0
    %989 = vmatpush1.msra.mxu0 0.0
    %990 = vmatprep.subr.mxu0 0.0
    %991 = vmatpush1.msra.mxu0 0.0
    %992 = vmatprep.subr.mxu0 0.0
    %993 = vmatpush1.msra.mxu0 0.0
    %994 = vmatprep.subr.mxu0 0.0
    %995 = vmatpush1.msra.mxu0 0.0
    %996 = vmatprep.subr.mxu0 0.0
    %997 = vmatpush1.msra.mxu0 0.0
    %998 = vmatprep.subr.mxu0 0.0
    %999 = vmatpush1.msra.mxu0 0.0
    %1000 = vmatprep.subr.mxu0 0.0
    %1001 = vmatpush1.msra.mxu0 0.0
    %1002 = vmatprep.subr.mxu0 0.0
    %1003 = vmatpush1.msra.mxu0 0.0
    %1004 = vmatprep.subr.mxu0 0.0
    %1005 = vmatpush1.msra.mxu0 0.0
    %1006 = vmatprep.subr.mxu0 0.0
    %1007 = vmatpush1.msra.mxu0 0.0
    %1008 = vmatprep.subr.mxu0 0.0
    %1009 = vmatpush1.msra.mxu0 0.0
    %1010 = vmatprep.subr.mxu0 0.0
    %1011 = vmatpush1.msra.mxu0 0.0
    %1012 = vmatprep.subr.mxu0 0.0
    %1013 = vmatpush1.msra.mxu0 0.0
    %1014 = vmatprep.subr.mxu0 0.0
    %1015 = vmatpush1.msra.mxu0 0.0
    %1016 = vmatprep.subr.mxu0 0.0
    %1017 = vmatpush1.msra.mxu0 0.0
    %1018 = vmatprep.subr.mxu0 0.0
    %1019 = vmatpush1.msra.mxu0 0.0
    %1020 = vmatprep.subr.mxu0 0.0
    %1021 = vmatpush1.msra.mxu0 0.0
    %1022 = vmatprep.mubr.f32.mxu0 0.0
    %1023 = vmatmul.mubr.f32.gmra.mrb[0].mxu0 %v950
    %v1024 = vpop.f32.mrb[0].mxu0
    %v1025 = vadd.f32 0.0, %v1024
    %v1026 = vpop.f32.mrb[0].mxu0
    %1027 = vmatprep.mubr.f32.mxu0 0.0
    %1028 = vmatmul.mubr.f32.gmra.mrb[0].mxu0 %v953
    %v1029 = vpop.f32.mrb[0].mxu0
    %v1030 = vadd.f32 0.0, %v1029
    %v1031 = vpop.f32.mrb[0].mxu0
    %1032 = vmatprep.mubr.f32.mxu0 0.0
    %1033 = vmatmul.mubr.f32.gmra.mrb[0].mxu0 %v956
    %v1034 = vpop.f32.mrb[0].mxu0
    %v1035 = vadd.f32 0.0, %v1034
    %v1036 = vpop.f32.mrb[0].mxu0
    %1037 = vdwg.mxu0
    %1038 = vrot.lane.b32.xlu0 %v400, 120
    %v1039 = vpop.permute.xlu0 %1038
    %1040 = vrot.lane.b32.xlu0 %v405, 120
    %v1041 = vpop.permute.xlu0 %1040
    %1042 = vrot.lane.b32.xlu0 %v410, 120
    %v1043 = vpop.permute.xlu0 %1042
    %1044 = vrot.lane.b32.xlu0 %v532, 120
    %v1045 = vpop.permute.xlu0 %1044
    %1046 = vrot.lane.b32.xlu0 %v537, 120
    %v1047 = vpop.permute.xlu0 %1046
    %1048 = vrot.lane.b32.xlu0 %v542, 120
    %v1049 = vpop.permute.xlu0 %1048
    %v1050 = vsel %vm560, %v1039, 0
    %v1052 = vsel %vm560, %v1041, 0
    %v1054 = vsel %vm560, %v1043, 0
    %v1056 = vsel %vm560, %v1045, 0
    %v1058 = vsel %vm560, %v1047, 0
    %v1060 = vsel %vm560, %v1049, 0
    %1062 = vmatprep.subr.mxu0 0.0
    %1063 = vmatpush1.xpose.msra.mxu0 %v1056
    %1064 = vmatprep.subr.mxu0 0.0
    %1065 = vmatpush1.xpose.msra.mxu0 %v1058
    %1066 = vmatprep.subr.mxu0 0.0
    %1067 = vmatpush1.xpose.msra.mxu0 %v1060
    %1068 = vmatprep.subr.mxu0 0.0
    %1069 = vmatpush1.xpose.msra.mxu0 0.0
    %1070 = vmatprep.subr.mxu0 0.0
    %1071 = vmatpush1.xpose.msra.mxu0 0.0
    %1072 = vmatprep.subr.mxu0 0.0
    %1073 = vmatpush1.xpose.msra.mxu0 0.0
    %1074 = vmatprep.subr.mxu0 0.0
    %1075 = vmatpush1.xpose.msra.mxu0 0.0
    %1076 = vmatprep.subr.mxu0 0.0
    %1077 = vmatpush1.xpose.msra.mxu0 0.0
    %1078 = vmatprep.subr.mxu0 0.0
    %1079 = vmatpush1.xpose.msra.mxu0 0.0
    %1080 = vmatprep.subr.mxu0 0.0
    %1081 = vmatpush1.xpose.msra.mxu0 0.0
    %1082 = vmatprep.subr.mxu0 0.0
    %1083 = vmatpush1.xpose.msra.mxu0 0.0
    %1084 = vmatprep.subr.mxu0 0.0
    %1085 = vmatpush1.xpose.msra.mxu0 0.0
    %1086 = vmatprep.subr.mxu0 0.0
    %1087 = vmatpush1.xpose.msra.mxu0 0.0
    %1088 = vmatprep.subr.mxu0 0.0
    %1089 = vmatpush1.xpose.msra.mxu0 0.0
    %1090 = vmatprep.subr.mxu0 0.0
    %1091 = vmatpush1.xpose.msra.mxu0 0.0
    %1092 = vmatprep.subr.mxu0 0.0
    %1093 = vmatpush1.xpose.msra.mxu0 0.0
    %1094 = vmatprep.subr.mxu0 0.0
    %1095 = vmatpush1.xpose.msra.mxu0 0.0
    %1096 = vmatprep.subr.mxu0 0.0
    %1097 = vmatpush1.xpose.msra.mxu0 0.0
    %1098 = vmatprep.subr.mxu0 0.0
    %1099 = vmatpush1.xpose.msra.mxu0 0.0
    %1100 = vmatprep.subr.mxu0 0.0
    %1101 = vmatpush1.xpose.msra.mxu0 0.0
    %1102 = vmatprep.subr.mxu0 0.0
    %1103 = vmatpush1.xpose.msra.mxu0 0.0
    %1104 = vmatprep.subr.mxu0 0.0
    %1105 = vmatpush1.xpose.msra.mxu0 0.0
    %1106 = vmatprep.subr.mxu0 0.0
    %1107 = vmatpush1.xpose.msra.mxu0 0.0
    %1108 = vmatprep.subr.mxu0 0.0
    %1109 = vmatpush1.xpose.msra.mxu0 0.0
    %1110 = vmatprep.subr.mxu0 0.0
    %1111 = vmatpush1.xpose.msra.mxu0 0.0
    %1112 = vmatprep.subr.mxu0 0.0
    %1113 = vmatpush1.xpose.msra.mxu0 0.0
    %1114 = vmatprep.subr.mxu0 0.0
    %1115 = vmatpush1.xpose.msra.mxu0 0.0
    %1116 = vmatprep.subr.mxu0 0.0
    %1117 = vmatpush1.xpose.msra.mxu0 0.0
    %1118 = vmatprep.subr.mxu0 0.0
    %1119 = vmatpush1.xpose.msra.mxu0 0.0
    %1120 = vmatprep.subr.mxu0 0.0
    %1121 = vmatpush1.xpose.msra.mxu0 0.0
    %1122 = vmatprep.subr.mxu0 0.0
    %1123 = vmatpush1.xpose.msra.mxu0 0.0
    %1124 = vmatprep.subr.mxu0 0.0
    %1125 = vmatpush1.xpose.msra.mxu0 0.0
    %1126 = vmatprep.mubr.f32.mxu0 0.0
    %1127 = vmatmul.mubr.f32.gmra.mrb[0].mxu0 %v1050
    %v1128 = vpop.f32.mrb[0].mxu0
    %v1129 = vadd.f32 0.0, %v1128
    %v1130 = vpop.f32.mrb[0].mxu0
    %1131 = vmatprep.mubr.f32.mxu0 0.0
    %1132 = vmatmul.mubr.f32.gmra.mrb[0].mxu0 %v1052
    %v1133 = vpop.f32.mrb[0].mxu0
    %v1134 = vadd.f32 0.0, %v1133
    %v1135 = vpop.f32.mrb[0].mxu0
    %1136 = vmatprep.mubr.f32.mxu0 0.0
    %1137 = vmatmul.mubr.f32.gmra.mrb[0].mxu0 %v1054
    %v1138 = vpop.f32.mrb[0].mxu0
    %v1139 = vadd.f32 0.0, %v1138
    %v1140 = vpop.f32.mrb[0].mxu0
    %1141 = vdwg.mxu0
    %1142 = vrot.lane.b32.xlu0 %v415, 120
    %v1143 = vpop.permute.xlu0 %1142
    %1144 = vrot.lane.b32.xlu0 %v420, 120
    %v1145 = vpop.permute.xlu0 %1144
    %1146 = vrot.lane.b32.xlu0 %v425, 120
    %v1147 = vpop.permute.xlu0 %1146
    %1148 = vrot.lane.b32.xlu0 %v547, 120
    %v1149 = vpop.permute.xlu0 %1148
    %1150 = vrot.lane.b32.xlu0 %v552, 120
    %v1151 = vpop.permute.xlu0 %1150
    %1152 = vrot.lane.b32.xlu0 %v557, 120
    %v1153 = vpop.permute.xlu0 %1152
    %v1154 = vsel %vm560, %v1143, 0
    %v1156 = vsel %vm560, %v1145, 0
    %v1158 = vsel %vm560, %v1147, 0
    %v1160 = vsel %vm560, %v1149, 0
    %v1162 = vsel %vm560, %v1151, 0
    %v1164 = vsel %vm560, %v1153, 0
    %1166 = vmatprep.subr.mxu0 0.0
    %1167 = vmatpush1.xpose.msra.mxu0 %v1160
    %1168 = vmatprep.subr.mxu0 0.0
    %1169 = vmatpush1.xpose.msra.mxu0 %v1162
    %1170 = vmatprep.subr.mxu0 0.0
    %1171 = vmatpush1.xpose.msra.mxu0 %v1164
    %1172 = vmatprep.subr.mxu0 0.0
    %1173 = vmatpush1.xpose.msra.mxu0 0.0
    %1174 = vmatprep.subr.mxu0 0.0
    %1175 = vmatpush1.xpose.msra.mxu0 0.0
    %1176 = vmatprep.subr.mxu0 0.0
    %1177 = vmatpush1.xpose.msra.mxu0 0.0
    %1178 = vmatprep.subr.mxu0 0.0
    %1179 = vmatpush1.xpose.msra.mxu0 0.0
    %1180 = vmatprep.subr.mxu0 0.0
    %1181 = vmatpush1.xpose.msra.mxu0 0.0
    %1182 = vmatprep.subr.mxu0 0.0
    %1183 = vmatpush1.xpose.msra.mxu0 0.0
    %1184 = vmatprep.subr.mxu0 0.0
    %1185 = vmatpush1.xpose.msra.mxu0 0.0
    %1186 = vmatprep.subr.mxu0 0.0
    %1187 = vmatpush1.xpose.msra.mxu0 0.0
    %1188 = vmatprep.subr.mxu0 0.0
    %1189 = vmatpush1.xpose.msra.mxu0 0.0
    %1190 = vmatprep.subr.mxu0 0.0
    %1191 = vmatpush1.xpose.msra.mxu0 0.0
    %1192 = vmatprep.subr.mxu0 0.0
    %1193 = vmatpush1.xpose.msra.mxu0 0.0
    %1194 = vmatprep.subr.mxu0 0.0
    %1195 = vmatpush1.xpose.msra.mxu0 0.0
    %1196 = vmatprep.subr.mxu0 0.0
    %1197 = vmatpush1.xpose.msra.mxu0 0.0
    %1198 = vmatprep.subr.mxu0 0.0
    %1199 = vmatpush1.xpose.msra.mxu0 0.0
    %1200 = vmatprep.subr.mxu0 0.0
    %1201 = vmatpush1.xpose.msra.mxu0 0.0
    %1202 = vmatprep.subr.mxu0 0.0
    %1203 = vmatpush1.xpose.msra.mxu0 0.0
    %1204 = vmatprep.subr.mxu0 0.0
    %1205 = vmatpush1.xpose.msra.mxu0 0.0
    %1206 = vmatprep.subr.mxu0 0.0
    %1207 = vmatpush1.xpose.msra.mxu0 0.0
    %1208 = vmatprep.subr.mxu0 0.0
    %1209 = vmatpush1.xpose.msra.mxu0 0.0
    %1210 = vmatprep.subr.mxu0 0.0
    %1211 = vmatpush1.xpose.msra.mxu0 0.0
    %1212 = vmatprep.subr.mxu0 0.0
    %1213 = vmatpush1.xpose.msra.mxu0 0.0
    %1214 = vmatprep.subr.mxu0 0.0
    %1215 = vmatpush1.xpose.msra.mxu0 0.0
    %1216 = vmatprep.subr.mxu0 0.0
    %1217 = vmatpush1.xpose.msra.mxu0 0.0
    %1218 = vmatprep.subr.mxu0 0.0
    %1219 = vmatpush1.xpose.msra.mxu0 0.0
    %1220 = vmatprep.subr.mxu0 0.0
    %1221 = vmatpush1.xpose.msra.mxu0 0.0
    %1222 = vmatprep.subr.mxu0 0.0
    %1223 = vmatpush1.xpose.msra.mxu0 0.0
    %1224 = vmatprep.subr.mxu0 0.0
    %1225 = vmatpush1.xpose.msra.mxu0 0.0
    %1226 = vmatprep.subr.mxu0 0.0
    %1227 = vmatpush1.xpose.msra.mxu0 0.0
    %1228 = vmatprep.subr.mxu0 0.0
    %1229 = vmatpush1.xpose.msra.mxu0 0.0
    %1230 = vmatprep.mubr.f32.mxu0 0.0
    %1231 = vmatmul.mubr.f32.gmra.mrb[0].mxu0 %v1154
    %v1232 = vpop.f32.mrb[0].mxu0
    %v1233 = vadd.f32 0.0, %v1232
    %v1234 = vpop.f32.mrb[0].mxu0
    %1235 = vmatprep.mubr.f32.mxu0 0.0
    %1236 = vmatmul.mubr.f32.gmra.mrb[0].mxu0 %v1156
    %v1237 = vpop.f32.mrb[0].mxu0
    %v1238 = vadd.f32 0.0, %v1237
    %v1239 = vpop.f32.mrb[0].mxu0
    %1240 = vmatprep.mubr.f32.mxu0 0.0
    %1241 = vmatmul.mubr.f32.gmra.mrb[0].mxu0 %v1158
    %v1242 = vpop.f32.mrb[0].mxu0
    %v1243 = vadd.f32 0.0, %v1242
    %v1244 = vpop.f32.mrb[0].mxu0
    %1245 = vdwg.mxu0
    %v1246 = vmul.f32 %v1129, 0.35355338
    %v1247 = vmul.f32 %v1134, 0.35355338
    %v1248 = vmul.f32 %v1139, 0.35355338
    %v1249 = vmul.f32 %v1233, 0.35355338
    %v1250 = vmul.f32 %v1238, 0.35355338
    %v1251 = vmul.f32 %v1243, 0.35355338
    %v1252 = vadd.f32 %v1246, %v767
    %v1253 = vadd.f32 %v1247, %v767
    %v1254 = vadd.f32 %v1248, %v767
    %v1255 = vadd.f32 %v1249, %v767
    %v1256 = vadd.f32 %v1250, %v767
    %v1257 = vadd.f32 %v1251, %v767
    %v1258 = vsel %vm775, %v1252, -inf
    %1259 = vmax.xlane.f32.xlu0 %v1258
    %v1260 = vpop.xlane.xlu0 %1259
    %v1261 = vsel %vm775, %v1253, -inf
    %1262 = vmax.xlane.f32.xlu0 %v1261
    %v1263 = vpop.xlane.xlu0 %1262
    %v1264 = vsel %vm775, %v1254, -inf
    %1265 = vmax.xlane.f32.xlu0 %v1264
    %v1266 = vpop.xlane.xlu0 %1265
    %v1267 = vsel %vm775, %v1255, -inf
    %1268 = vmax.xlane.f32.xlu0 %v1267
    %v1269 = vpop.xlane.xlu0 %1268
    %v1270 = vsel %vm775, %v1256, -inf
    %1271 = vmax.xlane.f32.xlu0 %v1270
    %v1272 = vpop.xlane.xlu0 %1271
    %v1273 = vsel %vm775, %v1257, -inf
    %1274 = vmax.xlane.f32.xlu0 %v1273
    %v1275 = vpop.xlane.xlu0 %1274
    %v1276 = vsub.f32 %v1252, %v1260
    %v1277 = vsub.f32 %v1253, %v1263
    %v1278 = vsub.f32 %v1254, %v1266
    %v1279 = vsub.f32 %v1255, %v1269
    %v1280 = vsub.f32 %v1256, %v1272
    %v1281 = vsub.f32 %v1257, %v1275
    %v1282 = vmul.f32 %v1276, 1.442695
    %v1283 = vpow.pop %v1282
    %v1284 = vmul.f32 %v1277, 1.442695
    %v1285 = vpow.pop %v1284
    %v1286 = vmul.f32 %v1278, 1.442695
    %v1287 = vpow.pop %v1286
    %v1288 = vmul.f32 %v1279, 1.442695
    %v1289 = vpow.pop %v1288
    %v1290 = vmul.f32 %v1280, 1.442695
    %v1291 = vpow.pop %v1290
    %v1292 = vmul.f32 %v1281, 1.442695
    %v1293 = vpow.pop %v1292
    %v1294 = vsel %vm775, %v1283, 0.0
    %1295 = vadd.xlane.f32.xlu0 %v1294
    %v1296 = vpop.xlane.xlu0 %1295
    %v1297 = vsel %vm775, %v1285, 0.0
    %1298 = vadd.xlane.f32.xlu0 %v1297
    %v1299 = vpop.xlane.xlu0 %1298
    %v1300 = vsel %vm775, %v1287, 0.0
    %1301 = vadd.xlane.f32.xlu0 %v1300
    %v1302 = vpop.xlane.xlu0 %1301
    %v1303 = vsel %vm775, %v1289, 0.0
    %1304 = vadd.xlane.f32.xlu0 %v1303
    %v1305 = vpop.xlane.xlu0 %1304
    %v1306 = vsel %vm775, %v1291, 0.0
    %1307 = vadd.xlane.f32.xlu0 %v1306
    %v1308 = vpop.xlane.xlu0 %1307
    %v1309 = vsel %vm775, %v1293, 0.0
    %1310 = vadd.xlane.f32.xlu0 %v1309
    %v1311 = vpop.xlane.xlu0 %1310
    %v1312 = vrcp.pop %v1296
    %v1313 = vrcp.pop %v1299
    %v1314 = vrcp.pop %v1302
    %v1315 = vrcp.pop %v1305
    %v1316 = vrcp.pop %v1308
    %v1317 = vrcp.pop %v1311
    %v1318 = vmul.f32 %v1283, %v1312
    %v1319 = vmul.f32 %v1285, %v1313
    %v1320 = vmul.f32 %v1287, %v1314
    %v1321 = vmul.f32 %v1289, %v1315
    %v1322 = vmul.f32 %v1291, %v1316
    %v1323 = vmul.f32 %v1293, %v1317
    %1324 = vrot.lane.b32.xlu0 %v400, 88
    %v1325 = vpop.permute.xlu0 %1324
    %1326 = vrot.lane.b32.xlu0 %v405, 88
    %v1327 = vpop.permute.xlu0 %1326
    %1328 = vrot.lane.b32.xlu0 %v410, 88
    %v1329 = vpop.permute.xlu0 %1328
    %v1334 = vsel %vm775, %v1318, 0
    %v1337 = vsel %vm775, %v1319, 0
    %v1340 = vsel %vm775, %v1320, 0
    %1342 = vmatprep.subr.mxu0 0.0
    %1343 = vmatpush1.msra.mxu0 %v1325
    %1344 = vmatprep.subr.mxu0 0.0
    %1345 = vmatpush1.msra.mxu0 %v1327
    %1346 = vmatprep.subr.mxu0 0.0
    %1347 = vmatpush1.msra.mxu0 %v1329
    %1348 = vmatprep.subr.mxu0 0.0
    %1349 = vmatpush1.msra.mxu0 0.0
    %1350 = vmatprep.subr.mxu0 0.0
    %1351 = vmatpush1.msra.mxu0 0.0
    %1352 = vmatprep.subr.mxu0 0.0
    %1353 = vmatpush1.msra.mxu0 0.0
    %1354 = vmatprep.subr.mxu0 0.0
    %1355 = vmatpush1.msra.mxu0 0.0
    %1356 = vmatprep.subr.mxu0 0.0
    %1357 = vmatpush1.msra.mxu0 0.0
    %1358 = vmatprep.subr.mxu0 0.0
    %1359 = vmatpush1.msra.mxu0 0.0
    %1360 = vmatprep.subr.mxu0 0.0
    %1361 = vmatpush1.msra.mxu0 0.0
    %1362 = vmatprep.subr.mxu0 0.0
    %1363 = vmatpush1.msra.mxu0 0.0
    %1364 = vmatprep.subr.mxu0 0.0
    %1365 = vmatpush1.msra.mxu0 0.0
    %1366 = vmatprep.subr.mxu0 0.0
    %1367 = vmatpush1.msra.mxu0 0.0
    %1368 = vmatprep.subr.mxu0 0.0
    %1369 = vmatpush1.msra.mxu0 0.0
    %1370 = vmatprep.subr.mxu0 0.0
    %1371 = vmatpush1.msra.mxu0 0.0
    %1372 = vmatprep.subr.mxu0 0.0
    %1373 = vmatpush1.msra.mxu0 0.0
    %1374 = vmatprep.subr.mxu0 0.0
    %1375 = vmatpush1.msra.mxu0 0.0
    %1376 = vmatprep.subr.mxu0 0.0
    %1377 = vmatpush1.msra.mxu0 0.0
    %1378 = vmatprep.subr.mxu0 0.0
    %1379 = vmatpush1.msra.mxu0 0.0
    %1380 = vmatprep.subr.mxu0 0.0
    %1381 = vmatpush1.msra.mxu0 0.0
    %1382 = vmatprep.subr.mxu0 0.0
    %1383 = vmatpush1.msra.mxu0 0.0
    %1384 = vmatprep.subr.mxu0 0.0
    %1385 = vmatpush1.msra.mxu0 0.0
    %1386 = vmatprep.subr.mxu0 0.0
    %1387 = vmatpush1.msra.mxu0 0.0
    %1388 = vmatprep.subr.mxu0 0.0
    %1389 = vmatpush1.msra.mxu0 0.0
    %1390 = vmatprep.subr.mxu0 0.0
    %1391 = vmatpush1.msra.mxu0 0.0
    %1392 = vmatprep.subr.mxu0 0.0
    %1393 = vmatpush1.msra.mxu0 0.0
    %1394 = vmatprep.subr.mxu0 0.0
    %1395 = vmatpush1.msra.mxu0 0.0
    %1396 = vmatprep.subr.mxu0 0.0
    %1397 = vmatpush1.msra.mxu0 0.0
    %1398 = vmatprep.subr.mxu0 0.0
    %1399 = vmatpush1.msra.mxu0 0.0
    %1400 = vmatprep.subr.mxu0 0.0
    %1401 = vmatpush1.msra.mxu0 0.0
    %1402 = vmatprep.subr.mxu0 0.0
    %1403 = vmatpush1.msra.mxu0 0.0
    %1404 = vmatprep.subr.mxu0 0.0
    %1405 = vmatpush1.msra.mxu0 0.0
    %1406 = vmatprep.mubr.f32.mxu0 0.0
    %1407 = vmatmul.mubr.f32.gmra.mrb[0].mxu0 %v1334
    %v1408 = vpop.f32.mrb[0].mxu0
    %v1409 = vadd.f32 0.0, %v1408
    %v1410 = vpop.f32.mrb[0].mxu0
    %1411 = vmatprep.mubr.f32.mxu0 0.0
    %1412 = vmatmul.mubr.f32.gmra.mrb[0].mxu0 %v1337
    %v1413 = vpop.f32.mrb[0].mxu0
    %v1414 = vadd.f32 0.0, %v1413
    %v1415 = vpop.f32.mrb[0].mxu0
    %1416 = vmatprep.mubr.f32.mxu0 0.0
    %1417 = vmatmul.mubr.f32.gmra.mrb[0].mxu0 %v1340
    %v1418 = vpop.f32.mrb[0].mxu0
    %v1419 = vadd.f32 0.0, %v1418
    %v1420 = vpop.f32.mrb[0].mxu0
    %1421 = vdwg.mxu0
    %1422 = vrot.lane.b32.xlu0 %v415, 88
    %v1423 = vpop.permute.xlu0 %1422
    %1424 = vrot.lane.b32.xlu0 %v420, 88
    %v1425 = vpop.permute.xlu0 %1424
    %1426 = vrot.lane.b32.xlu0 %v425, 88
    %v1427 = vpop.permute.xlu0 %1426
    %v1432 = vsel %vm775, %v1321, 0
    %v1435 = vsel %vm775, %v1322, 0
    %v1438 = vsel %vm775, %v1323, 0
    %1440 = vmatprep.subr.mxu0 0.0
    %1441 = vmatpush1.msra.mxu0 %v1423
    %1442 = vmatprep.subr.mxu0 0.0
    %1443 = vmatpush1.msra.mxu0 %v1425
    %1444 = vmatprep.subr.mxu0 0.0
    %1445 = vmatpush1.msra.mxu0 %v1427
    %1446 = vmatprep.subr.mxu0 0.0
    %1447 = vmatpush1.msra.mxu0 0.0
    %1448 = vmatprep.subr.mxu0 0.0
    %1449 = vmatpush1.msra.mxu0 0.0
    %1450 = vmatprep.subr.mxu0 0.0
    %1451 = vmatpush1.msra.mxu0 0.0
    %1452 = vmatprep.subr.mxu0 0.0
    %1453 = vmatpush1.msra.mxu0 0.0
    %1454 = vmatprep.subr.mxu0 0.0
    %1455 = vmatpush1.msra.mxu0 0.0
    %1456 = vmatprep.subr.mxu0 0.0
    %1457 = vmatpush1.msra.mxu0 0.0
    %1458 = vmatprep.subr.mxu0 0.0
    %1459 = vmatpush1.msra.mxu0 0.0
    %1460 = vmatprep.subr.mxu0 0.0
    %1461 = vmatpush1.msra.mxu0 0.0
    %1462 = vmatprep.subr.mxu0 0.0
    %1463 = vmatpush1.msra.mxu0 0.0
    %1464 = vmatprep.subr.mxu0 0.0
    %1465 = vmatpush1.msra.mxu0 0.0
    %1466 = vmatprep.subr.mxu0 0.0
    %1467 = vmatpush1.msra.mxu0 0.0
    %1468 = vmatprep.subr.mxu0 0.0
    %1469 = vmatpush1.msra.mxu0 0.0
    %1470 = vmatprep.subr.mxu0 0.0
    %1471 = vmatpush1.msra.mxu0 0.0
    %1472 = vmatprep.subr.mxu0 0.0
    %1473 = vmatpush1.msra.mxu0 0.0
    %1474 = vmatprep.subr.mxu0 0.0
    %1475 = vmatpush1.msra.mxu0 0.0
    %1476 = vmatprep.subr.mxu0 0.0
    %1477 = vmatpush1.msra.mxu0 0.0
    %1478 = vmatprep.subr.mxu0 0.0
    %1479 = vmatpush1.msra.mxu0 0.0
    %1480 = vmatprep.subr.mxu0 0.0
    %1481 = vmatpush1.msra.mxu0 0.0
    %1482 = vmatprep.subr.mxu0 0.0
    %1483 = vmatpush1.msra.mxu0 0.0
    %1484 = vmatprep.subr.mxu0 0.0
    %1485 = vmatpush1.msra.mxu0 0.0
    %1486 = vmatprep.subr.mxu0 0.0
    %1487 = vmatpush1.msra.mxu0 0.0
    %1488 = vmatprep.subr.mxu0 0.0
    %1489 = vmatpush1.msra.mxu0 0.0
    %1490 = vmatprep.subr.mxu0 0.0
    %1491 = vmatpush1.msra.mxu0 0.0
    %1492 = vmatprep.subr.mxu0 0.0
    %1493 = vmatpush1.msra.mxu0 0.0
    %1494 = vmatprep.subr.mxu0 0.0
    %1495 = vmatpush1.msra.mxu0 0.0
    %1496 = vmatprep.subr.mxu0 0.0
    %1497 = vmatpush1.msra.mxu0 0.0
    %1498 = vmatprep.subr.mxu0 0.0
    %1499 = vmatpush1.msra.mxu0 0.0
    %1500 = vmatprep.subr.mxu0 0.0
    %1501 = vmatpush1.msra.mxu0 0.0
    %1502 = vmatprep.subr.mxu0 0.0
    %1503 = vmatpush1.msra.mxu0 0.0
    %1504 = vmatprep.mubr.f32.mxu0 0.0
    %1505 = vmatmul.mubr.f32.gmra.mrb[0].mxu0 %v1432
    %v1506 = vpop.f32.mrb[0].mxu0
    %v1507 = vadd.f32 0.0, %v1506
    %v1508 = vpop.f32.mrb[0].mxu0
    %1509 = vmatprep.mubr.f32.mxu0 0.0
    %1510 = vmatmul.mubr.f32.gmra.mrb[0].mxu0 %v1435
    %v1511 = vpop.f32.mrb[0].mxu0
    %v1512 = vadd.f32 0.0, %v1511
    %v1513 = vpop.f32.mrb[0].mxu0
    %1514 = vmatprep.mubr.f32.mxu0 0.0
    %1515 = vmatmul.mubr.f32.gmra.mrb[0].mxu0 %v1438
    %v1516 = vpop.f32.mrb[0].mxu0
    %v1517 = vadd.f32 0.0, %v1516
    %v1518 = vpop.f32.mrb[0].mxu0
    %1519 = vdwg.mxu0
    %1520 = vrot.lane.b32.xlu0 %v400, 112
    %v1521 = vpop.permute.xlu0 %1520
    %1522 = vrot.lane.b32.xlu0 %v405, 112
    %v1523 = vpop.permute.xlu0 %1522
    %1524 = vrot.lane.b32.xlu0 %v410, 112
    %v1525 = vpop.permute.xlu0 %1524
    %1526 = vrot.lane.b32.xlu0 %v532, 112
    %v1527 = vpop.permute.xlu0 %1526
    %1528 = vrot.lane.b32.xlu0 %v537, 112
    %v1529 = vpop.permute.xlu0 %1528
    %1530 = vrot.lane.b32.xlu0 %v542, 112
    %v1531 = vpop.permute.xlu0 %1530
    %v1532 = vsel %vm560, %v1521, 0
    %v1534 = vsel %vm560, %v1523, 0
    %v1536 = vsel %vm560, %v1525, 0
    %v1538 = vsel %vm560, %v1527, 0
    %v1540 = vsel %vm560, %v1529, 0
    %v1542 = vsel %vm560, %v1531, 0
    %1544 = vmatprep.subr.mxu0 0.0
    %1545 = vmatpush1.xpose.msra.mxu0 %v1538
    %1546 = vmatprep.subr.mxu0 0.0
    %1547 = vmatpush1.xpose.msra.mxu0 %v1540
    %1548 = vmatprep.subr.mxu0 0.0
    %1549 = vmatpush1.xpose.msra.mxu0 %v1542
    %1550 = vmatprep.subr.mxu0 0.0
    %1551 = vmatpush1.xpose.msra.mxu0 0.0
    %1552 = vmatprep.subr.mxu0 0.0
    %1553 = vmatpush1.xpose.msra.mxu0 0.0
    %1554 = vmatprep.subr.mxu0 0.0
    %1555 = vmatpush1.xpose.msra.mxu0 0.0
    %1556 = vmatprep.subr.mxu0 0.0
    %1557 = vmatpush1.xpose.msra.mxu0 0.0
    %1558 = vmatprep.subr.mxu0 0.0
    %1559 = vmatpush1.xpose.msra.mxu0 0.0
    %1560 = vmatprep.subr.mxu0 0.0
    %1561 = vmatpush1.xpose.msra.mxu0 0.0
    %1562 = vmatprep.subr.mxu0 0.0
    %1563 = vmatpush1.xpose.msra.mxu0 0.0
    %1564 = vmatprep.subr.mxu0 0.0
    %1565 = vmatpush1.xpose.msra.mxu0 0.0
    %1566 = vmatprep.subr.mxu0 0.0
    %1567 = vmatpush1.xpose.msra.mxu0 0.0
    %1568 = vmatprep.subr.mxu0 0.0
    %1569 = vmatpush1.xpose.msra.mxu0 0.0
    %1570 = vmatprep.subr.mxu0 0.0
    %1571 = vmatpush1.xpose.msra.mxu0 0.0
    %1572 = vmatprep.subr.mxu0 0.0
    %1573 = vmatpush1.xpose.msra.mxu0 0.0
    %1574 = vmatprep.subr.mxu0 0.0
    %1575 = vmatpush1.xpose.msra.mxu0 0.0
    %1576 = vmatprep.subr.mxu0 0.0
    %1577 = vmatpush1.xpose.msra.mxu0 0.0
    %1578 = vmatprep.subr.mxu0 0.0
    %1579 = vmatpush1.xpose.msra.mxu0 0.0
    %1580 = vmatprep.subr.mxu0 0.0
    %1581 = vmatpush1.xpose.msra.mxu0 0.0
    %1582 = vmatprep.subr.mxu0 0.0
    %1583 = vmatpush1.xpose.msra.mxu0 0.0
    %1584 = vmatprep.subr.mxu0 0.0
    %1585 = vmatpush1.xpose.msra.mxu0 0.0
    %1586 = vmatprep.subr.mxu0 0.0
    %1587 = vmatpush1.xpose.msra.mxu0 0.0
    %1588 = vmatprep.subr.mxu0 0.0
    %1589 = vmatpush1.xpose.msra.mxu0 0.0
    %1590 = vmatprep.subr.mxu0 0.0
    %1591 = vmatpush1.xpose.msra.mxu0 0.0
    %1592 = vmatprep.subr.mxu0 0.0
    %1593 = vmatpush1.xpose.msra.mxu0 0.0
    %1594 = vmatprep.subr.mxu0 0.0
    %1595 = vmatpush1.xpose.msra.mxu0 0.0
    %1596 = vmatprep.subr.mxu0 0.0
    %1597 = vmatpush1.xpose.msra.mxu0 0.0
    %1598 = vmatprep.subr.mxu0 0.0
    %1599 = vmatpush1.xpose.msra.mxu0 0.0
    %1600 = vmatprep.subr.mxu0 0.0
    %1601 = vmatpush1.xpose.msra.mxu0 0.0
    %1602 = vmatprep.subr.mxu0 0.0
    %1603 = vmatpush1.xpose.msra.mxu0 0.0
    %1604 = vmatprep.subr.mxu0 0.0
    %1605 = vmatpush1.xpose.msra.mxu0 0.0
    %1606 = vmatprep.subr.mxu0 0.0
    %1607 = vmatpush1.xpose.msra.mxu0 0.0
    %1608 = vmatprep.mubr.f32.mxu0 0.0
    %1609 = vmatmul.mubr.f32.gmra.mrb[0].mxu0 %v1532
    %v1610 = vpop.f32.mrb[0].mxu0
    %v1611 = vadd.f32 0.0, %v1610
    %v1612 = vpop.f32.mrb[0].mxu0
    %1613 = vmatprep.mubr.f32.mxu0 0.0
    %1614 = vmatmul.mubr.f32.gmra.mrb[0].mxu0 %v1534
    %v1615 = vpop.f32.mrb[0].mxu0
    %v1616 = vadd.f32 0.0, %v1615
    %v1617 = vpop.f32.mrb[0].mxu0
    %1618 = vmatprep.mubr.f32.mxu0 0.0
    %1619 = vmatmul.mubr.f32.gmra.mrb[0].mxu0 %v1536
    %v1620 = vpop.f32.mrb[0].mxu0
    %v1621 = vadd.f32 0.0, %v1620
    %v1622 = vpop.f32.mrb[0].mxu0
    %1623 = vdwg.mxu0
    %1624 = vrot.lane.b32.xlu0 %v415, 112
    %v1625 = vpop.permute.xlu0 %1624
    %1626 = vrot.lane.b32.xlu0 %v420, 112
    %v1627 = vpop.permute.xlu0 %1626
    %1628 = vrot.lane.b32.xlu0 %v425, 112
    %v1629 = vpop.permute.xlu0 %1628
    %1630 = vrot.lane.b32.xlu0 %v547, 112
    %v1631 = vpop.permute.xlu0 %1630
    %1632 = vrot.lane.b32.xlu0 %v552, 112
    %v1633 = vpop.permute.xlu0 %1632
    %1634 = vrot.lane.b32.xlu0 %v557, 112
    %v1635 = vpop.permute.xlu0 %1634
    %v1636 = vsel %vm560, %v1625, 0
    %v1638 = vsel %vm560, %v1627, 0
    %v1640 = vsel %vm560, %v1629, 0
    %v1642 = vsel %vm560, %v1631, 0
    %v1644 = vsel %vm560, %v1633, 0
    %v1646 = vsel %vm560, %v1635, 0
    %1648 = vmatprep.subr.mxu0 0.0
    %1649 = vmatpush1.xpose.msra.mxu0 %v1642
    %1650 = vmatprep.subr.mxu0 0.0
    %1651 = vmatpush1.xpose.msra.mxu0 %v1644
    %1652 = vmatprep.subr.mxu0 0.0
    %1653 = vmatpush1.xpose.msra.mxu0 %v1646
    %1654 = vmatprep.subr.mxu0 0.0
    %1655 = vmatpush1.xpose.msra.mxu0 0.0
    %1656 = vmatprep.subr.mxu0 0.0
    %1657 = vmatpush1.xpose.msra.mxu0 0.0
    %1658 = vmatprep.subr.mxu0 0.0
    %1659 = vmatpush1.xpose.msra.mxu0 0.0
    %1660 = vmatprep.subr.mxu0 0.0
    %1661 = vmatpush1.xpose.msra.mxu0 0.0
    %1662 = vmatprep.subr.mxu0 0.0
    %1663 = vmatpush1.xpose.msra.mxu0 0.0
    %1664 = vmatprep.subr.mxu0 0.0
    %1665 = vmatpush1.xpose.msra.mxu0 0.0
    %1666 = vmatprep.subr.mxu0 0.0
    %1667 = vmatpush1.xpose.msra.mxu0 0.0
    %1668 = vmatprep.subr.mxu0 0.0
    %1669 = vmatpush1.xpose.msra.mxu0 0.0
    %1670 = vmatprep.subr.mxu0 0.0
    %1671 = vmatpush1.xpose.msra.mxu0 0.0
    %1672 = vmatprep.subr.mxu0 0.0
    %1673 = vmatpush1.xpose.msra.mxu0 0.0
    %1674 = vmatprep.subr.mxu0 0.0
    %1675 = vmatpush1.xpose.msra.mxu0 0.0
    %1676 = vmatprep.subr.mxu0 0.0
    %1677 = vmatpush1.xpose.msra.mxu0 0.0
    %1678 = vmatprep.subr.mxu0 0.0
    %1679 = vmatpush1.xpose.msra.mxu0 0.0
    %1680 = vmatprep.subr.mxu0 0.0
    %1681 = vmatpush1.xpose.msra.mxu0 0.0
    %1682 = vmatprep.subr.mxu0 0.0
    %1683 = vmatpush1.xpose.msra.mxu0 0.0
    %1684 = vmatprep.subr.mxu0 0.0
    %1685 = vmatpush1.xpose.msra.mxu0 0.0
    %1686 = vmatprep.subr.mxu0 0.0
    %1687 = vmatpush1.xpose.msra.mxu0 0.0
    %1688 = vmatprep.subr.mxu0 0.0
    %1689 = vmatpush1.xpose.msra.mxu0 0.0
    %1690 = vmatprep.subr.mxu0 0.0
    %1691 = vmatpush1.xpose.msra.mxu0 0.0
    %1692 = vmatprep.subr.mxu0 0.0
    %1693 = vmatpush1.xpose.msra.mxu0 0.0
    %1694 = vmatprep.subr.mxu0 0.0
    %1695 = vmatpush1.xpose.msra.mxu0 0.0
    %1696 = vmatprep.subr.mxu0 0.0
    %1697 = vmatpush1.xpose.msra.mxu0 0.0
    %1698 = vmatprep.subr.mxu0 0.0
    %1699 = vmatpush1.xpose.msra.mxu0 0.0
    %1700 = vmatprep.subr.mxu0 0.0
    %1701 = vmatpush1.xpose.msra.mxu0 0.0
    %1702 = vmatprep.subr.mxu0 0.0
    %1703 = vmatpush1.xpose.msra.mxu0 0.0
    %1704 = vmatprep.subr.mxu0 0.0
    %1705 = vmatpush1.xpose.msra.mxu0 0.0
    %1706 = vmatprep.subr.mxu0 0.0
    %1707 = vmatpush1.xpose.msra.mxu0 0.0
    %1708 = vmatprep.subr.mxu0 0.0
    %1709 = vmatpush1.xpose.msra.mxu0 0.0
    %1710 = vmatprep.subr.mxu0 0.0
    %1711 = vmatpush1.xpose.msra.mxu0 0.0
    %1712 = vmatprep.mubr.f32.mxu0 0.0
    %1713 = vmatmul.mubr.f32.gmra.mrb[0].mxu0 %v1636
    %v1714 = vpop.f32.mrb[0].mxu0
    %v1715 = vadd.f32 0.0, %v1714
    %v1716 = vpop.f32.mrb[0].mxu0
    %1717 = vmatprep.mubr.f32.mxu0 0.0
    %1718 = vmatmul.mubr.f32.gmra.mrb[0].mxu0 %v1638
    %v1719 = vpop.f32.mrb[0].mxu0
    %v1720 = vadd.f32 0.0, %v1719
    %v1721 = vpop.f32.mrb[0].mxu0
    %1722 = vmatprep.mubr.f32.mxu0 0.0
    %1723 = vmatmul.mubr.f32.gmra.mrb[0].mxu0 %v1640
    %v1724 = vpop.f32.mrb[0].mxu0
    %v1725 = vadd.f32 0.0, %v1724
    %v1726 = vpop.f32.mrb[0].mxu0
    %1727 = vdwg.mxu0
    %v1728 = vmul.f32 %v1611, 0.35355338
    %v1729 = vmul.f32 %v1616, 0.35355338
    %v1730 = vmul.f32 %v1621, 0.35355338
    %v1731 = vmul.f32 %v1715, 0.35355338
    %v1732 = vmul.f32 %v1720, 0.35355338
    %v1733 = vmul.f32 %v1725, 0.35355338
    %v1734 = vadd.f32 %v1728, %v767
    %v1735 = vadd.f32 %v1729, %v767
    %v1736 = vadd.f32 %v1730, %v767
    %v1737 = vadd.f32 %v1731, %v767
    %v1738 = vadd.f32 %v1732, %v767
    %v1739 = vadd.f32 %v1733, %v767
    %v1740 = vsel %vm775, %v1734, -inf
    %1741 = vmax.xlane.f32.xlu0 %v1740
    %v1742 = vpop.xlane.xlu0 %1741
    %v1743 = vsel %vm775, %v1735, -inf
    %1744 = vmax.xlane.f32.xlu0 %v1743
    %v1745 = vpop.xlane.xlu0 %1744
    %v1746 = vsel %vm775, %v1736, -inf
    %1747 = vmax.xlane.f32.xlu0 %v1746
    %v1748 = vpop.xlane.xlu0 %1747
    %v1749 = vsel %vm775, %v1737, -inf
    %1750 = vmax.xlane.f32.xlu0 %v1749
    %v1751 = vpop.xlane.xlu0 %1750
    %v1752 = vsel %vm775, %v1738, -inf
    %1753 = vmax.xlane.f32.xlu0 %v1752
    %v1754 = vpop.xlane.xlu0 %1753
    %v1755 = vsel %vm775, %v1739, -inf
    %1756 = vmax.xlane.f32.xlu0 %v1755
    %v1757 = vpop.xlane.xlu0 %1756
    %v1758 = vsub.f32 %v1734, %v1742
    %v1759 = vsub.f32 %v1735, %v1745
    %v1760 = vsub.f32 %v1736, %v1748
    %v1761 = vsub.f32 %v1737, %v1751
    %v1762 = vsub.f32 %v1738, %v1754
    %v1763 = vsub.f32 %v1739, %v1757
    %v1764 = vmul.f32 %v1758, 1.442695
    %v1765 = vpow.pop %v1764
    %v1766 = vmul.f32 %v1759, 1.442695
    %v1767 = vpow.pop %v1766
    %v1768 = vmul.f32 %v1760, 1.442695
    %v1769 = vpow.pop %v1768
    %v1770 = vmul.f32 %v1761, 1.442695
    %v1771 = vpow.pop %v1770
    %v1772 = vmul.f32 %v1762, 1.442695
    %v1773 = vpow.pop %v1772
    %v1774 = vmul.f32 %v1763, 1.442695
    %v1775 = vpow.pop %v1774
    %v1776 = vsel %vm775, %v1765, 0.0
    %1777 = vadd.xlane.f32.xlu0 %v1776
    %v1778 = vpop.xlane.xlu0 %1777
    %v1779 = vsel %vm775, %v1767, 0.0
    %1780 = vadd.xlane.f32.xlu0 %v1779
    %v1781 = vpop.xlane.xlu0 %1780
    %v1782 = vsel %vm775, %v1769, 0.0
    %1783 = vadd.xlane.f32.xlu0 %v1782
    %v1784 = vpop.xlane.xlu0 %1783
    %v1785 = vsel %vm775, %v1771, 0.0
    %1786 = vadd.xlane.f32.xlu0 %v1785
    %v1787 = vpop.xlane.xlu0 %1786
    %v1788 = vsel %vm775, %v1773, 0.0
    %1789 = vadd.xlane.f32.xlu0 %v1788
    %v1790 = vpop.xlane.xlu0 %1789
    %v1791 = vsel %vm775, %v1775, 0.0
    %1792 = vadd.xlane.f32.xlu0 %v1791
    %v1793 = vpop.xlane.xlu0 %1792
    %v1794 = vrcp.pop %v1778
    %v1795 = vrcp.pop %v1781
    %v1796 = vrcp.pop %v1784
    %v1797 = vrcp.pop %v1787
    %v1798 = vrcp.pop %v1790
    %v1799 = vrcp.pop %v1793
    %v1800 = vmul.f32 %v1765, %v1794
    %v1801 = vmul.f32 %v1767, %v1795
    %v1802 = vmul.f32 %v1769, %v1796
    %v1803 = vmul.f32 %v1771, %v1797
    %v1804 = vmul.f32 %v1773, %v1798
    %v1805 = vmul.f32 %v1775, %v1799
    %1806 = vrot.lane.b32.xlu0 %v400, 80
    %v1807 = vpop.permute.xlu0 %1806
    %1808 = vrot.lane.b32.xlu0 %v405, 80
    %v1809 = vpop.permute.xlu0 %1808
    %1810 = vrot.lane.b32.xlu0 %v410, 80
    %v1811 = vpop.permute.xlu0 %1810
    %v1816 = vsel %vm775, %v1800, 0
    %v1819 = vsel %vm775, %v1801, 0
    %v1822 = vsel %vm775, %v1802, 0
    %1824 = vmatprep.subr.mxu0 0.0
    %1825 = vmatpush1.msra.mxu0 %v1807
    %1826 = vmatprep.subr.mxu0 0.0
    %1827 = vmatpush1.msra.mxu0 %v1809
    %1828 = vmatprep.subr.mxu0 0.0
    %1829 = vmatpush1.msra.mxu0 %v1811
    %1830 = vmatprep.subr.mxu0 0.0
    %1831 = vmatpush1.msra.mxu0 0.0
    %1832 = vmatprep.subr.mxu0 0.0
    %1833 = vmatpush1.msra.mxu0 0.0
    %1834 = vmatprep.subr.mxu0 0.0
    %1835 = vmatpush1.msra.mxu0 0.0
    %1836 = vmatprep.subr.mxu0 0.0
    %1837 = vmatpush1.msra.mxu0 0.0
    %1838 = vmatprep.subr.mxu0 0.0
    %1839 = vmatpush1.msra.mxu0 0.0
    %1840 = vmatprep.subr.mxu0 0.0
    %1841 = vmatpush1.msra.mxu0 0.0
    %1842 = vmatprep.subr.mxu0 0.0
    %1843 = vmatpush1.msra.mxu0 0.0
    %1844 = vmatprep.subr.mxu0 0.0
    %1845 = vmatpush1.msra.mxu0 0.0
    %1846 = vmatprep.subr.mxu0 0.0
    %1847 = vmatpush1.msra.mxu0 0.0
    %1848 = vmatprep.subr.mxu0 0.0
    %1849 = vmatpush1.msra.mxu0 0.0
    %1850 = vmatprep.subr.mxu0 0.0
    %1851 = vmatpush1.msra.mxu0 0.0
    %1852 = vmatprep.subr.mxu0 0.0
    %1853 = vmatpush1.msra.mxu0 0.0
    %1854 = vmatprep.subr.mxu0 0.0
    %1855 = vmatpush1.msra.mxu0 0.0
    %1856 = vmatprep.subr.mxu0 0.0
    %1857 = vmatpush1.msra.mxu0 0.0
    %1858 = vmatprep.subr.mxu0 0.0
    %1859 = vmatpush1.msra.mxu0 0.0
    %1860 = vmatprep.subr.mxu0 0.0
    %1861 = vmatpush1.msra.mxu0 0.0
    %1862 = vmatprep.subr.mxu0 0.0
    %1863 = vmatpush1.msra.mxu0 0.0
    %1864 = vmatprep.subr.mxu0 0.0
    %1865 = vmatpush1.msra.mxu0 0.0
    %1866 = vmatprep.subr.mxu0 0.0
    %1867 = vmatpush1.msra.mxu0 0.0
    %1868 = vmatprep.subr.mxu0 0.0
    %1869 = vmatpush1.msra.mxu0 0.0
    %1870 = vmatprep.subr.mxu0 0.0
    %1871 = vmatpush1.msra.mxu0 0.0
    %1872 = vmatprep.subr.mxu0 0.0
    %1873 = vmatpush1.msra.mxu0 0.0
    %1874 = vmatprep.subr.mxu0 0.0
    %1875 = vmatpush1.msra.mxu0 0.0
    %1876 = vmatprep.subr.mxu0 0.0
    %1877 = vmatpush1.msra.mxu0 0.0
    %1878 = vmatprep.subr.mxu0 0.0
    %1879 = vmatpush1.msra.mxu0 0.0
    %1880 = vmatprep.subr.mxu0 0.0
    %1881 = vmatpush1.msra.mxu0 0.0
    %1882 = vmatprep.subr.mxu0 0.0
    %1883 = vmatpush1.msra.mxu0 0.0
    %1884 = vmatprep.subr.mxu0 0.0
    %1885 = vmatpush1.msra.mxu0 0.0
    %1886 = vmatprep.subr.mxu0 0.0
    %1887 = vmatpush1.msra.mxu0 0.0
    %1888 = vmatprep.mubr.f32.mxu0 0.0
    %1889 = vmatmul.mubr.f32.gmra.mrb[0].mxu0 %v1816
    %v1890 = vpop.f32.mrb[0].mxu0
    %v1891 = vadd.f32 0.0, %v1890
    %v1892 = vpop.f32.mrb[0].mxu0
    %1893 = vmatprep.mubr.f32.mxu0 0.0
    %1894 = vmatmul.mubr.f32.gmra.mrb[0].mxu0 %v1819
    %v1895 = vpop.f32.mrb[0].mxu0
    %v1896 = vadd.f32 0.0, %v1895
    %v1897 = vpop.f32.mrb[0].mxu0
    %1898 = vmatprep.mubr.f32.mxu0 0.0
    %1899 = vmatmul.mubr.f32.gmra.mrb[0].mxu0 %v1822
    %v1900 = vpop.f32.mrb[0].mxu0
    %v1901 = vadd.f32 0.0, %v1900
    %v1902 = vpop.f32.mrb[0].mxu0
    %1903 = vdwg.mxu0
    %1904 = vrot.lane.b32.xlu0 %v415, 80
    %v1905 = vpop.permute.xlu0 %1904
    %1906 = vrot.lane.b32.xlu0 %v420, 80
    %v1907 = vpop.permute.xlu0 %1906
    %1908 = vrot.lane.b32.xlu0 %v425, 80
    %v1909 = vpop.permute.xlu0 %1908
    %v1914 = vsel %vm775, %v1803, 0
    %v1917 = vsel %vm775, %v1804, 0
    %v1920 = vsel %vm775, %v1805, 0
    %1922 = vmatprep.subr.mxu0 0.0
    %1923 = vmatpush1.msra.mxu0 %v1905
    %1924 = vmatprep.subr.mxu0 0.0
    %1925 = vmatpush1.msra.mxu0 %v1907
    %1926 = vmatprep.subr.mxu0 0.0
    %1927 = vmatpush1.msra.mxu0 %v1909
    %1928 = vmatprep.subr.mxu0 0.0
    %1929 = vmatpush1.msra.mxu0 0.0
    %1930 = vmatprep.subr.mxu0 0.0
    %1931 = vmatpush1.msra.mxu0 0.0
    %1932 = vmatprep.subr.mxu0 0.0
    %1933 = vmatpush1.msra.mxu0 0.0
    %1934 = vmatprep.subr.mxu0 0.0
    %1935 = vmatpush1.msra.mxu0 0.0
    %1936 = vmatprep.subr.mxu0 0.0
    %1937 = vmatpush1.msra.mxu0 0.0
    %1938 = vmatprep.subr.mxu0 0.0
    %1939 = vmatpush1.msra.mxu0 0.0
    %1940 = vmatprep.subr.mxu0 0.0
    %1941 = vmatpush1.msra.mxu0 0.0
    %1942 = vmatprep.subr.mxu0 0.0
    %1943 = vmatpush1.msra.mxu0 0.0
    %1944 = vmatprep.subr.mxu0 0.0
    %1945 = vmatpush1.msra.mxu0 0.0
    %1946 = vmatprep.subr.mxu0 0.0
    %1947 = vmatpush1.msra.mxu0 0.0
    %1948 = vmatprep.subr.mxu0 0.0
    %1949 = vmatpush1.msra.mxu0 0.0
    %1950 = vmatprep.subr.mxu0 0.0
    %1951 = vmatpush1.msra.mxu0 0.0
    %1952 = vmatprep.subr.mxu0 0.0
    %1953 = vmatpush1.msra.mxu0 0.0
    %1954 = vmatprep.subr.mxu0 0.0
    %1955 = vmatpush1.msra.mxu0 0.0
    %1956 = vmatprep.subr.mxu0 0.0
    %1957 = vmatpush1.msra.mxu0 0.0
    %1958 = vmatprep.subr.mxu0 0.0
    %1959 = vmatpush1.msra.mxu0 0.0
    %1960 = vmatprep.subr.mxu0 0.0
    %1961 = vmatpush1.msra.mxu0 0.0
    %1962 = vmatprep.subr.mxu0 0.0
    %1963 = vmatpush1.msra.mxu0 0.0
    %1964 = vmatprep.subr.mxu0 0.0
    %1965 = vmatpush1.msra.mxu0 0.0
    %1966 = vmatprep.subr.mxu0 0.0
    %1967 = vmatpush1.msra.mxu0 0.0
    %1968 = vmatprep.subr.mxu0 0.0
    %1969 = vmatpush1.msra.mxu0 0.0
    %1970 = vmatprep.subr.mxu0 0.0
    %1971 = vmatpush1.msra.mxu0 0.0
    %1972 = vmatprep.subr.mxu0 0.0
    %1973 = vmatpush1.msra.mxu0 0.0
    %1974 = vmatprep.subr.mxu0 0.0
    %1975 = vmatpush1.msra.mxu0 0.0
    %1976 = vmatprep.subr.mxu0 0.0
    %1977 = vmatpush1.msra.mxu0 0.0
    %1978 = vmatprep.subr.mxu0 0.0
    %1979 = vmatpush1.msra.mxu0 0.0
    %1980 = vmatprep.subr.mxu0 0.0
    %1981 = vmatpush1.msra.mxu0 0.0
    %1982 = vmatprep.subr.mxu0 0.0
    %1983 = vmatpush1.msra.mxu0 0.0
    %1984 = vmatprep.subr.mxu0 0.0
    %1985 = vmatpush1.msra.mxu0 0.0
    %1986 = vmatprep.mubr.f32.mxu0 0.0
    %1987 = vmatmul.mubr.f32.gmra.mrb[0].mxu0 %v1914
    %v1988 = vpop.f32.mrb[0].mxu0
    %v1989 = vadd.f32 0.0, %v1988
    %v1990 = vpop.f32.mrb[0].mxu0
    %1991 = vmatprep.mubr.f32.mxu0 0.0
    %1992 = vmatmul.mubr.f32.gmra.mrb[0].mxu0 %v1917
    %v1993 = vpop.f32.mrb[0].mxu0
    %v1994 = vadd.f32 0.0, %v1993
    %v1995 = vpop.f32.mrb[0].mxu0
    %1996 = vmatprep.mubr.f32.mxu0 0.0
    %1997 = vmatmul.mubr.f32.gmra.mrb[0].mxu0 %v1920
    %v1998 = vpop.f32.mrb[0].mxu0
    %v1999 = vadd.f32 0.0, %v1998
    %v2000 = vpop.f32.mrb[0].mxu0
    %2001 = vdwg.mxu0
    %2002 = vrot.lane.b32.xlu0 %v400, 104
    %v2003 = vpop.permute.xlu0 %2002
    %2004 = vrot.lane.b32.xlu0 %v405, 104
    %v2005 = vpop.permute.xlu0 %2004
    %2006 = vrot.lane.b32.xlu0 %v410, 104
    %v2007 = vpop.permute.xlu0 %2006
    %2008 = vrot.lane.b32.xlu0 %v532, 104
    %v2009 = vpop.permute.xlu0 %2008
    %2010 = vrot.lane.b32.xlu0 %v537, 104
    %v2011 = vpop.permute.xlu0 %2010
    %2012 = vrot.lane.b32.xlu0 %v542, 104
    %v2013 = vpop.permute.xlu0 %2012
    %v2014 = vsel %vm560, %v2003, 0
    %v2016 = vsel %vm560, %v2005, 0
    %v2018 = vsel %vm560, %v2007, 0
    %v2020 = vsel %vm560, %v2009, 0
    %v2022 = vsel %vm560, %v2011, 0
    %v2024 = vsel %vm560, %v2013, 0
    %2026 = vmatprep.subr.mxu0 0.0
    %2027 = vmatpush1.xpose.msra.mxu0 %v2020
    %2028 = vmatprep.subr.mxu0 0.0
    %2029 = vmatpush1.xpose.msra.mxu0 %v2022
    %2030 = vmatprep.subr.mxu0 0.0
    %2031 = vmatpush1.xpose.msra.mxu0 %v2024
    %2032 = vmatprep.subr.mxu0 0.0
    %2033 = vmatpush1.xpose.msra.mxu0 0.0
    %2034 = vmatprep.subr.mxu0 0.0
    %2035 = vmatpush1.xpose.msra.mxu0 0.0
    %2036 = vmatprep.subr.mxu0 0.0
    %2037 = vmatpush1.xpose.msra.mxu0 0.0
    %2038 = vmatprep.subr.mxu0 0.0
    %2039 = vmatpush1.xpose.msra.mxu0 0.0
    %2040 = vmatprep.subr.mxu0 0.0
    %2041 = vmatpush1.xpose.msra.mxu0 0.0
    %2042 = vmatprep.subr.mxu0 0.0
    %2043 = vmatpush1.xpose.msra.mxu0 0.0
    %2044 = vmatprep.subr.mxu0 0.0
    %2045 = vmatpush1.xpose.msra.mxu0 0.0
    %2046 = vmatprep.subr.mxu0 0.0
    %2047 = vmatpush1.xpose.msra.mxu0 0.0
    %2048 = vmatprep.subr.mxu0 0.0
    %2049 = vmatpush1.xpose.msra.mxu0 0.0
    %2050 = vmatprep.subr.mxu0 0.0
    %2051 = vmatpush1.xpose.msra.mxu0 0.0
    %2052 = vmatprep.subr.mxu0 0.0
    %2053 = vmatpush1.xpose.msra.mxu0 0.0
    %2054 = vmatprep.subr.mxu0 0.0
    %2055 = vmatpush1.xpose.msra.mxu0 0.0
    %2056 = vmatprep.subr.mxu0 0.0
    %2057 = vmatpush1.xpose.msra.mxu0 0.0
    %2058 = vmatprep.subr.mxu0 0.0
    %2059 = vmatpush1.xpose.msra.mxu0 0.0
    %2060 = vmatprep.subr.mxu0 0.0
    %2061 = vmatpush1.xpose.msra.mxu0 0.0
    %2062 = vmatprep.subr.mxu0 0.0
    %2063 = vmatpush1.xpose.msra.mxu0 0.0
    %2064 = vmatprep.subr.mxu0 0.0
    %2065 = vmatpush1.xpose.msra.mxu0 0.0
    %2066 = vmatprep.subr.mxu0 0.0
    %2067 = vmatpush1.xpose.msra.mxu0 0.0
    %2068 = vmatprep.subr.mxu0 0.0
    %2069 = vmatpush1.xpose.msra.mxu0 0.0
    %2070 = vmatprep.subr.mxu0 0.0
    %2071 = vmatpush1.xpose.msra.mxu0 0.0
    %2072 = vmatprep.subr.mxu0 0.0
    %2073 = vmatpush1.xpose.msra.mxu0 0.0
    %2074 = vmatprep.subr.mxu0 0.0
    %2075 = vmatpush1.xpose.msra.mxu0 0.0
    %2076 = vmatprep.subr.mxu0 0.0
    %2077 = vmatpush1.xpose.msra.mxu0 0.0
    %2078 = vmatprep.subr.mxu0 0.0
    %2079 = vmatpush1.xpose.msra.mxu0 0.0
    %2080 = vmatprep.subr.mxu0 0.0
    %2081 = vmatpush1.xpose.msra.mxu0 0.0
    %2082 = vmatprep.subr.mxu0 0.0
    %2083 = vmatpush1.xpose.msra.mxu0 0.0
    %2084 = vmatprep.subr.mxu0 0.0
    %2085 = vmatpush1.xpose.msra.mxu0 0.0
    %2086 = vmatprep.subr.mxu0 0.0
    %2087 = vmatpush1.xpose.msra.mxu0 0.0
    %2088 = vmatprep.subr.mxu0 0.0
    %2089 = vmatpush1.xpose.msra.mxu0 0.0
    %2090 = vmatprep.mubr.f32.mxu0 0.0
    %2091 = vmatmul.mubr.f32.gmra.mrb[0].mxu0 %v2014
    %v2092 = vpop.f32.mrb[0].mxu0
    %v2093 = vadd.f32 0.0, %v2092
    %v2094 = vpop.f32.mrb[0].mxu0
    %2095 = vmatprep.mubr.f32.mxu0 0.0
    %2096 = vmatmul.mubr.f32.gmra.mrb[0].mxu0 %v2016
    %v2097 = vpop.f32.mrb[0].mxu0
    %v2098 = vadd.f32 0.0, %v2097
    %v2099 = vpop.f32.mrb[0].mxu0
    %2100 = vmatprep.mubr.f32.mxu0 0.0
    %2101 = vmatmul.mubr.f32.gmra.mrb[0].mxu0 %v2018
    %v2102 = vpop.f32.mrb[0].mxu0
    %v2103 = vadd.f32 0.0, %v2102
    %v2104 = vpop.f32.mrb[0].mxu0
    %2105 = vdwg.mxu0
    %2106 = vrot.lane.b32.xlu0 %v415, 104
    %v2107 = vpop.permute.xlu0 %2106
    %2108 = vrot.lane.b32.xlu0 %v420, 104
    %v2109 = vpop.permute.xlu0 %2108
    %2110 = vrot.lane.b32.xlu0 %v425, 104
    %v2111 = vpop.permute.xlu0 %2110
    %2112 = vrot.lane.b32.xlu0 %v547, 104
    %v2113 = vpop.permute.xlu0 %2112
    %2114 = vrot.lane.b32.xlu0 %v552, 104
    %v2115 = vpop.permute.xlu0 %2114
    %2116 = vrot.lane.b32.xlu0 %v557, 104
    %v2117 = vpop.permute.xlu0 %2116
    %v2118 = vsel %vm560, %v2107, 0
    %v2120 = vsel %vm560, %v2109, 0
    %v2122 = vsel %vm560, %v2111, 0
    %v2124 = vsel %vm560, %v2113, 0
    %v2126 = vsel %vm560, %v2115, 0
    %v2128 = vsel %vm560, %v2117, 0
    %2130 = vmatprep.subr.mxu0 0.0
    %2131 = vmatpush1.xpose.msra.mxu0 %v2124
    %2132 = vmatprep.subr.mxu0 0.0
    %2133 = vmatpush1.xpose.msra.mxu0 %v2126
    %2134 = vmatprep.subr.mxu0 0.0
    %2135 = vmatpush1.xpose.msra.mxu0 %v2128
    %2136 = vmatprep.subr.mxu0 0.0
    %2137 = vmatpush1.xpose.msra.mxu0 0.0
    %2138 = vmatprep.subr.mxu0 0.0
    %2139 = vmatpush1.xpose.msra.mxu0 0.0
    %2140 = vmatprep.subr.mxu0 0.0
    %2141 = vmatpush1.xpose.msra.mxu0 0.0
    %2142 = vmatprep.subr.mxu0 0.0
    %2143 = vmatpush1.xpose.msra.mxu0 0.0
    %2144 = vmatprep.subr.mxu0 0.0
    %2145 = vmatpush1.xpose.msra.mxu0 0.0
    %2146 = vmatprep.subr.mxu0 0.0
    %2147 = vmatpush1.xpose.msra.mxu0 0.0
    %2148 = vmatprep.subr.mxu0 0.0
    %2149 = vmatpush1.xpose.msra.mxu0 0.0
    %2150 = vmatprep.subr.mxu0 0.0
    %2151 = vmatpush1.xpose.msra.mxu0 0.0
    %2152 = vmatprep.subr.mxu0 0.0
    %2153 = vmatpush1.xpose.msra.mxu0 0.0
    %2154 = vmatprep.subr.mxu0 0.0
    %2155 = vmatpush1.xpose.msra.mxu0 0.0
    %2156 = vmatprep.subr.mxu0 0.0
    %2157 = vmatpush1.xpose.msra.mxu0 0.0
    %2158 = vmatprep.subr.mxu0 0.0
    %2159 = vmatpush1.xpose.msra.mxu0 0.0
    %2160 = vmatprep.subr.mxu0 0.0
    %2161 = vmatpush1.xpose.msra.mxu0 0.0
    %2162 = vmatprep.subr.mxu0 0.0
    %2163 = vmatpush1.xpose.msra.mxu0 0.0
    %2164 = vmatprep.subr.mxu0 0.0
    %2165 = vmatpush1.xpose.msra.mxu0 0.0
    %2166 = vmatprep.subr.mxu0 0.0
    %2167 = vmatpush1.xpose.msra.mxu0 0.0
    %2168 = vmatprep.subr.mxu0 0.0
    %2169 = vmatpush1.xpose.msra.mxu0 0.0
    %2170 = vmatprep.subr.mxu0 0.0
    %2171 = vmatpush1.xpose.msra.mxu0 0.0
    %2172 = vmatprep.subr.mxu0 0.0
    %2173 = vmatpush1.xpose.msra.mxu0 0.0
    %2174 = vmatprep.subr.mxu0 0.0
    %2175 = vmatpush1.xpose.msra.mxu0 0.0
    %2176 = vmatprep.subr.mxu0 0.0
    %2177 = vmatpush1.xpose.msra.mxu0 0.0
    %2178 = vmatprep.subr.mxu0 0.0
    %2179 = vmatpush1.xpose.msra.mxu0 0.0
    %2180 = vmatprep.subr.mxu0 0.0
    %2181 = vmatpush1.xpose.msra.mxu0 0.0
    %2182 = vmatprep.subr.mxu0 0.0
    %2183 = vmatpush1.xpose.msra.mxu0 0.0
    %2184 = vmatprep.subr.mxu0 0.0
    %2185 = vmatpush1.xpose.msra.mxu0 0.0
    %2186 = vmatprep.subr.mxu0 0.0
    %2187 = vmatpush1.xpose.msra.mxu0 0.0
    %2188 = vmatprep.subr.mxu0 0.0
    %2189 = vmatpush1.xpose.msra.mxu0 0.0
    %2190 = vmatprep.subr.mxu0 0.0
    %2191 = vmatpush1.xpose.msra.mxu0 0.0
    %2192 = vmatprep.subr.mxu0 0.0
    %2193 = vmatpush1.xpose.msra.mxu0 0.0
    %2194 = vmatprep.mubr.f32.mxu0 0.0
    %2195 = vmatmul.mubr.f32.gmra.mrb[0].mxu0 %v2118
    %v2196 = vpop.f32.mrb[0].mxu0
    %v2197 = vadd.f32 0.0, %v2196
    %v2198 = vpop.f32.mrb[0].mxu0
    %2199 = vmatprep.mubr.f32.mxu0 0.0
    %2200 = vmatmul.mubr.f32.gmra.mrb[0].mxu0 %v2120
    %v2201 = vpop.f32.mrb[0].mxu0
    %v2202 = vadd.f32 0.0, %v2201
    %v2203 = vpop.f32.mrb[0].mxu0
    %2204 = vmatprep.mubr.f32.mxu0 0.0
    %2205 = vmatmul.mubr.f32.gmra.mrb[0].mxu0 %v2122
    %v2206 = vpop.f32.mrb[0].mxu0
    %v2207 = vadd.f32 0.0, %v2206
    %v2208 = vpop.f32.mrb[0].mxu0
    %2209 = vdwg.mxu0
    %v2210 = vmul.f32 %v2093, 0.35355338
    %v2211 = vmul.f32 %v2098, 0.35355338
    %v2212 = vmul.f32 %v2103, 0.35355338
    %v2213 = vmul.f32 %v2197, 0.35355338
    %v2214 = vmul.f32 %v2202, 0.35355338
    %v2215 = vmul.f32 %v2207, 0.35355338
    %v2216 = vadd.f32 %v2210, %v767
    %v2217 = vadd.f32 %v2211, %v767
    %v2218 = vadd.f32 %v2212, %v767
    %v2219 = vadd.f32 %v2213, %v767
    %v2220 = vadd.f32 %v2214, %v767
    %v2221 = vadd.f32 %v2215, %v767
    %v2222 = vsel %vm775, %v2216, -inf
    %2223 = vmax.xlane.f32.xlu0 %v2222
    %v2224 = vpop.xlane.xlu0 %2223
    %v2225 = vsel %vm775, %v2217, -inf
    %2226 = vmax.xlane.f32.xlu0 %v2225
    %v2227 = vpop.xlane.xlu0 %2226
    %v2228 = vsel %vm775, %v2218, -inf
    %2229 = vmax.xlane.f32.xlu0 %v2228
    %v2230 = vpop.xlane.xlu0 %2229
    %v2231 = vsel %vm775, %v2219, -inf
    %2232 = vmax.xlane.f32.xlu0 %v2231
    %v2233 = vpop.xlane.xlu0 %2232
    %v2234 = vsel %vm775, %v2220, -inf
    %2235 = vmax.xlane.f32.xlu0 %v2234
    %v2236 = vpop.xlane.xlu0 %2235
    %v2237 = vsel %vm775, %v2221, -inf
    %2238 = vmax.xlane.f32.xlu0 %v2237
    %v2239 = vpop.xlane.xlu0 %2238
    %v2240 = vsub.f32 %v2216, %v2224
    %v2241 = vsub.f32 %v2217, %v2227
    %v2242 = vsub.f32 %v2218, %v2230
    %v2243 = vsub.f32 %v2219, %v2233
    %v2244 = vsub.f32 %v2220, %v2236
    %v2245 = vsub.f32 %v2221, %v2239
    %v2246 = vmul.f32 %v2240, 1.442695
    %v2247 = vpow.pop %v2246
    %v2248 = vmul.f32 %v2241, 1.442695
    %v2249 = vpow.pop %v2248
    %v2250 = vmul.f32 %v2242, 1.442695
    %v2251 = vpow.pop %v2250
    %v2252 = vmul.f32 %v2243, 1.442695
    %v2253 = vpow.pop %v2252
    %v2254 = vmul.f32 %v2244, 1.442695
    %v2255 = vpow.pop %v2254
    %v2256 = vmul.f32 %v2245, 1.442695
    %v2257 = vpow.pop %v2256
    %v2258 = vsel %vm775, %v2247, 0.0
    %2259 = vadd.xlane.f32.xlu0 %v2258
    %v2260 = vpop.xlane.xlu0 %2259
    %v2261 = vsel %vm775, %v2249, 0.0
    %2262 = vadd.xlane.f32.xlu0 %v2261
    %v2263 = vpop.xlane.xlu0 %2262
    %v2264 = vsel %vm775, %v2251, 0.0
    %2265 = vadd.xlane.f32.xlu0 %v2264
    %v2266 = vpop.xlane.xlu0 %2265
    %v2267 = vsel %vm775, %v2253, 0.0
    %2268 = vadd.xlane.f32.xlu0 %v2267
    %v2269 = vpop.xlane.xlu0 %2268
    %v2270 = vsel %vm775, %v2255, 0.0
    %2271 = vadd.xlane.f32.xlu0 %v2270
    %v2272 = vpop.xlane.xlu0 %2271
    %v2273 = vsel %vm775, %v2257, 0.0
    %2274 = vadd.xlane.f32.xlu0 %v2273
    %v2275 = vpop.xlane.xlu0 %2274
    %v2276 = vrcp.pop %v2260
    %v2277 = vrcp.pop %v2263
    %v2278 = vrcp.pop %v2266
    %v2279 = vrcp.pop %v2269
    %v2280 = vrcp.pop %v2272
    %v2281 = vrcp.pop %v2275
    %v2282 = vmul.f32 %v2247, %v2276
    %v2283 = vmul.f32 %v2249, %v2277
    %v2284 = vmul.f32 %v2251, %v2278
    %v2285 = vmul.f32 %v2253, %v2279
    %v2286 = vmul.f32 %v2255, %v2280
    %v2287 = vmul.f32 %v2257, %v2281
    %2288 = vrot.lane.b32.xlu0 %v400, 72
    %v2289 = vpop.permute.xlu0 %2288
    %2290 = vrot.lane.b32.xlu0 %v405, 72
    %v2291 = vpop.permute.xlu0 %2290
    %2292 = vrot.lane.b32.xlu0 %v410, 72
    %v2293 = vpop.permute.xlu0 %2292
    %v2298 = vsel %vm775, %v2282, 0
    %v2301 = vsel %vm775, %v2283, 0
    %v2304 = vsel %vm775, %v2284, 0
    %2306 = vmatprep.subr.mxu0 0.0
    %2307 = vmatpush1.msra.mxu0 %v2289
    %2308 = vmatprep.subr.mxu0 0.0
    %2309 = vmatpush1.msra.mxu0 %v2291
    %2310 = vmatprep.subr.mxu0 0.0
    %2311 = vmatpush1.msra.mxu0 %v2293
    %2312 = vmatprep.subr.mxu0 0.0
    %2313 = vmatpush1.msra.mxu0 0.0
    %2314 = vmatprep.subr.mxu0 0.0
    %2315 = vmatpush1.msra.mxu0 0.0
    %2316 = vmatprep.subr.mxu0 0.0
    %2317 = vmatpush1.msra.mxu0 0.0
    %2318 = vmatprep.subr.mxu0 0.0
    %2319 = vmatpush1.msra.mxu0 0.0
    %2320 = vmatprep.subr.mxu0 0.0
    %2321 = vmatpush1.msra.mxu0 0.0
    %2322 = vmatprep.subr.mxu0 0.0
    %2323 = vmatpush1.msra.mxu0 0.0
    %2324 = vmatprep.subr.mxu0 0.0
    %2325 = vmatpush1.msra.mxu0 0.0
    %2326 = vmatprep.subr.mxu0 0.0
    %2327 = vmatpush1.msra.mxu0 0.0
    %2328 = vmatprep.subr.mxu0 0.0
    %2329 = vmatpush1.msra.mxu0 0.0
    %2330 = vmatprep.subr.mxu0 0.0
    %2331 = vmatpush1.msra.mxu0 0.0
    %2332 = vmatprep.subr.mxu0 0.0
    %2333 = vmatpush1.msra.mxu0 0.0
    %2334 = vmatprep.subr.mxu0 0.0
    %2335 = vmatpush1.msra.mxu0 0.0
    %2336 = vmatprep.subr.mxu0 0.0
    %2337 = vmatpush1.msra.mxu0 0.0
    %2338 = vmatprep.subr.mxu0 0.0
    %2339 = vmatpush1.msra.mxu0 0.0
    %2340 = vmatprep.subr.mxu0 0.0
    %2341 = vmatpush1.msra.mxu0 0.0
    %2342 = vmatprep.subr.mxu0 0.0
    %2343 = vmatpush1.msra.mxu0 0.0
    %2344 = vmatprep.subr.mxu0 0.0
    %2345 = vmatpush1.msra.mxu0 0.0
    %2346 = vmatprep.subr.mxu0 0.0
    %2347 = vmatpush1.msra.mxu0 0.0
    %2348 = vmatprep.subr.mxu0 0.0
    %2349 = vmatpush1.msra.mxu0 0.0
    %2350 = vmatprep.subr.mxu0 0.0
    %2351 = vmatpush1.msra.mxu0 0.0
    %2352 = vmatprep.subr.mxu0 0.0
    %2353 = vmatpush1.msra.mxu0 0.0
    %2354 = vmatprep.subr.mxu0 0.0
    %2355 = vmatpush1.msra.mxu0 0.0
    %2356 = vmatprep.subr.mxu0 0.0
    %2357 = vmatpush1.msra.mxu0 0.0
    %2358 = vmatprep.subr.mxu0 0.0
    %2359 = vmatpush1.msra.mxu0 0.0
    %2360 = vmatprep.subr.mxu0 0.0
    %2361 = vmatpush1.msra.mxu0 0.0
    %2362 = vmatprep.subr.mxu0 0.0
    %2363 = vmatpush1.msra.mxu0 0.0
    %2364 = vmatprep.subr.mxu0 0.0
    %2365 = vmatpush1.msra.mxu0 0.0
    %2366 = vmatprep.subr.mxu0 0.0
    %2367 = vmatpush1.msra.mxu0 0.0
    %2368 = vmatprep.subr.mxu0 0.0
    %2369 = vmatpush1.msra.mxu0 0.0
    %2370 = vmatprep.mubr.f32.mxu0 0.0
    %2371 = vmatmul.mubr.f32.gmra.mrb[0].mxu0 %v2298
    %v2372 = vpop.f32.mrb[0].mxu0
    %v2373 = vadd.f32 0.0, %v2372
    %v2374 = vpop.f32.mrb[0].mxu0
    %2375 = vmatprep.mubr.f32.mxu0 0.0
    %2376 = vmatmul.mubr.f32.gmra.mrb[0].mxu0 %v2301
    %v2377 = vpop.f32.mrb[0].mxu0
    %v2378 = vadd.f32 0.0, %v2377
    %v2379 = vpop.f32.mrb[0].mxu0
    %2380 = vmatprep.mubr.f32.mxu0 0.0
    %2381 = vmatmul.mubr.f32.gmra.mrb[0].mxu0 %v2304
    %v2382 = vpop.f32.mrb[0].mxu0
    %v2383 = vadd.f32 0.0, %v2382
    %v2384 = vpop.f32.mrb[0].mxu0
    %2385 = vdwg.mxu0
    %2386 = vrot.lane.b32.xlu0 %v415, 72
    %v2387 = vpop.permute.xlu0 %2386
    %2388 = vrot.lane.b32.xlu0 %v420, 72
    %v2389 = vpop.permute.xlu0 %2388
    %2390 = vrot.lane.b32.xlu0 %v425, 72
    %v2391 = vpop.permute.xlu0 %2390
    %v2396 = vsel %vm775, %v2285, 0
    %v2399 = vsel %vm775, %v2286, 0
    %v2402 = vsel %vm775, %v2287, 0
    %2404 = vmatprep.subr.mxu0 0.0
    %2405 = vmatpush1.msra.mxu0 %v2387
    %2406 = vmatprep.subr.mxu0 0.0
    %2407 = vmatpush1.msra.mxu0 %v2389
    %2408 = vmatprep.subr.mxu0 0.0
    %2409 = vmatpush1.msra.mxu0 %v2391
    %2410 = vmatprep.subr.mxu0 0.0
    %2411 = vmatpush1.msra.mxu0 0.0
    %2412 = vmatprep.subr.mxu0 0.0
    %2413 = vmatpush1.msra.mxu0 0.0
    %2414 = vmatprep.subr.mxu0 0.0
    %2415 = vmatpush1.msra.mxu0 0.0
    %2416 = vmatprep.subr.mxu0 0.0
    %2417 = vmatpush1.msra.mxu0 0.0
    %2418 = vmatprep.subr.mxu0 0.0
    %2419 = vmatpush1.msra.mxu0 0.0
    %2420 = vmatprep.subr.mxu0 0.0
    %2421 = vmatpush1.msra.mxu0 0.0
    %2422 = vmatprep.subr.mxu0 0.0
    %2423 = vmatpush1.msra.mxu0 0.0
    %2424 = vmatprep.subr.mxu0 0.0
    %2425 = vmatpush1.msra.mxu0 0.0
    %2426 = vmatprep.subr.mxu0 0.0
    %2427 = vmatpush1.msra.mxu0 0.0
    %2428 = vmatprep.subr.mxu0 0.0
    %2429 = vmatpush1.msra.mxu0 0.0
    %2430 = vmatprep.subr.mxu0 0.0
    %2431 = vmatpush1.msra.mxu0 0.0
    %2432 = vmatprep.subr.mxu0 0.0
    %2433 = vmatpush1.msra.mxu0 0.0
    %2434 = vmatprep.subr.mxu0 0.0
    %2435 = vmatpush1.msra.mxu0 0.0
    %2436 = vmatprep.subr.mxu0 0.0
    %2437 = vmatpush1.msra.mxu0 0.0
    %2438 = vmatprep.subr.mxu0 0.0
    %2439 = vmatpush1.msra.mxu0 0.0
    %2440 = vmatprep.subr.mxu0 0.0
    %2441 = vmatpush1.msra.mxu0 0.0
    %2442 = vmatprep.subr.mxu0 0.0
    %2443 = vmatpush1.msra.mxu0 0.0
    %2444 = vmatprep.subr.mxu0 0.0
    %2445 = vmatpush1.msra.mxu0 0.0
    %2446 = vmatprep.subr.mxu0 0.0
    %2447 = vmatpush1.msra.mxu0 0.0
    %2448 = vmatprep.subr.mxu0 0.0
    %2449 = vmatpush1.msra.mxu0 0.0
    %2450 = vmatprep.subr.mxu0 0.0
    %2451 = vmatpush1.msra.mxu0 0.0
    %2452 = vmatprep.subr.mxu0 0.0
    %2453 = vmatpush1.msra.mxu0 0.0
    %2454 = vmatprep.subr.mxu0 0.0
    %2455 = vmatpush1.msra.mxu0 0.0
    %2456 = vmatprep.subr.mxu0 0.0
    %2457 = vmatpush1.msra.mxu0 0.0
    %2458 = vmatprep.subr.mxu0 0.0
    %2459 = vmatpush1.msra.mxu0 0.0
    %2460 = vmatprep.subr.mxu0 0.0
    %2461 = vmatpush1.msra.mxu0 0.0
    %2462 = vmatprep.subr.mxu0 0.0
    %2463 = vmatpush1.msra.mxu0 0.0
    %2464 = vmatprep.subr.mxu0 0.0
    %2465 = vmatpush1.msra.mxu0 0.0
    %2466 = vmatprep.subr.mxu0 0.0
    %2467 = vmatpush1.msra.mxu0 0.0
    %2468 = vmatprep.mubr.f32.mxu0 0.0
    %2469 = vmatmul.mubr.f32.gmra.mrb[0].mxu0 %v2396
    %v2470 = vpop.f32.mrb[0].mxu0
    %v2471 = vadd.f32 0.0, %v2470
    %v2472 = vpop.f32.mrb[0].mxu0
    %2473 = vmatprep.mubr.f32.mxu0 0.0
    %2474 = vmatmul.mubr.f32.gmra.mrb[0].mxu0 %v2399
    %v2475 = vpop.f32.mrb[0].mxu0
    %v2476 = vadd.f32 0.0, %v2475
    %v2477 = vpop.f32.mrb[0].mxu0
    %2478 = vmatprep.mubr.f32.mxu0 0.0
    %2479 = vmatmul.mubr.f32.gmra.mrb[0].mxu0 %v2402
    %v2480 = vpop.f32.mrb[0].mxu0
    %v2481 = vadd.f32 0.0, %v2480
    %v2482 = vpop.f32.mrb[0].mxu0
    %2483 = vdwg.mxu0
    %2490 = vrot.lane.b32.xlu0 %v1409, 8
    %v2491 = vpop.permute.xlu0 %2490
    %2492 = vrot.lane.b32.xlu0 %v1414, 8
    %v2493 = vpop.permute.xlu0 %2492
    %2494 = vrot.lane.b32.xlu0 %v1419, 8
    %v2495 = vpop.permute.xlu0 %2494
    %2496 = vrot.lane.b32.xlu0 %v1507, 8
    %v2497 = vpop.permute.xlu0 %2496
    %2498 = vrot.lane.b32.xlu0 %v1512, 8
    %v2499 = vpop.permute.xlu0 %2498
    %2500 = vrot.lane.b32.xlu0 %v1517, 8
    %v2501 = vpop.permute.xlu0 %2500
    %2514 = vrot.lane.b32.xlu0 %v1891, 16
    %v2515 = vpop.permute.xlu0 %2514
    %2516 = vrot.lane.b32.xlu0 %v1896, 16
    %v2517 = vpop.permute.xlu0 %2516
    %2518 = vrot.lane.b32.xlu0 %v1901, 16
    %v2519 = vpop.permute.xlu0 %2518
    %2520 = vrot.lane.b32.xlu0 %v1989, 16
    %v2521 = vpop.permute.xlu0 %2520
    %2522 = vrot.lane.b32.xlu0 %v1994, 16
    %v2523 = vpop.permute.xlu0 %2522
    %2524 = vrot.lane.b32.xlu0 %v1999, 16
    %v2525 = vpop.permute.xlu0 %2524
    %2538 = vrot.lane.b32.xlu0 %v2373, 24
    %v2539 = vpop.permute.xlu0 %2538
    %2540 = vrot.lane.b32.xlu0 %v2378, 24
    %v2541 = vpop.permute.xlu0 %2540
    %2542 = vrot.lane.b32.xlu0 %v2383, 24
    %v2543 = vpop.permute.xlu0 %2542
    %2544 = vrot.lane.b32.xlu0 %v2471, 24
    %v2545 = vpop.permute.xlu0 %2544
    %2546 = vrot.lane.b32.xlu0 %v2476, 24
    %v2547 = vpop.permute.xlu0 %2546
    %2548 = vrot.lane.b32.xlu0 %v2481, 24
    %v2549 = vpop.permute.xlu0 %2548
    %v2556 = vsel %vm560, %v927, %v2491
    %v2557 = vsel %vm560, %v932, %v2493
    %v2558 = vsel %vm560, %v937, %v2495
    %v2559 = vsel %vm560, %v1025, %v2497
    %v2560 = vsel %vm560, %v1030, %v2499
    %v2561 = vsel %vm560, %v1035, %v2501
    %vm2562 = vcmask 130048
    %v2563 = vsel %vm2562, %v2556, %v2515
    %v2564 = vsel %vm2562, %v2557, %v2517
    %v2565 = vsel %vm2562, %v2558, %v2519
    %v2566 = vsel %vm2562, %v2559, %v2521
    %v2567 = vsel %vm2562, %v2560, %v2523
    %v2568 = vsel %vm2562, %v2561, %v2525
    %v2569 = vsel %vm775, %v2563, %v2539
    %v2570 = vsel %vm775, %v2564, %v2541
    %v2571 = vsel %vm775, %v2565, %v2543
    %v2572 = vsel %vm775, %v2566, %v2545
    %v2573 = vsel %vm775, %v2567, %v2547
    %v2574 = vsel %vm775, %v2568, %v2549
    %2575 = vrot.lane.b32.xlu0 %v184, 32
    %v2576 = vpop.permute.xlu0 %2575
    %2577 = vrot.lane.b32.xlu0 %v185, 32
    %v2578 = vpop.permute.xlu0 %2577
    %2579 = vrot.lane.b32.xlu0 %v186, 32
    %v2580 = vpop.permute.xlu0 %2579
    %2581 = vrot.lane.b32.xlu0 %v187, 32
    %v2582 = vpop.permute.xlu0 %2581
    %2587 = vrot.lane.b32.xlu0 %v313, 32
    %v2588 = vpop.permute.xlu0 %2587
    %v2591 = vsel %vm189, %v2569, 0
    %v2594 = vsel %vm189, %v2570, 0
    %v2597 = vsel %vm189, %v2571, 0
    %v2600 = vsel %vm189, %v2572, 0
    %v2603 = vsel %vm189, %v2573, 0
    %v2606 = vsel %vm189, %v2574, 0
    %2608 = vmatprep.subr.mxu0 0.0
    %2609 = vmatpush1.msra.mxu0 %v2576
    %2610 = vmatprep.subr.mxu0 0.0
    %2611 = vmatpush1.msra.mxu0 %v2578
    %2612 = vmatprep.subr.mxu0 0.0
    %2613 = vmatpush1.msra.mxu0 %v2580
    %2614 = vmatprep.subr.mxu0 0.0
    %2615 = vmatpush1.msra.mxu0 %v2582
    %2616 = vmatprep.subr.mxu0 0.0
    %2617 = vmatpush1.msra.mxu0 0.0
    %2618 = vmatprep.subr.mxu0 0.0
    %2619 = vmatpush1.msra.mxu0 0.0
    %2620 = vmatprep.subr.mxu0 0.0
    %2621 = vmatpush1.msra.mxu0 0.0
    %2622 = vmatprep.subr.mxu0 0.0
    %2623 = vmatpush1.msra.mxu0 0.0
    %2624 = vmatprep.subr.mxu0 0.0
    %2625 = vmatpush1.msra.mxu0 0.0
    %2626 = vmatprep.subr.mxu0 0.0
    %2627 = vmatpush1.msra.mxu0 0.0
    %2628 = vmatprep.subr.mxu0 0.0
    %2629 = vmatpush1.msra.mxu0 0.0
    %2630 = vmatprep.subr.mxu0 0.0
    %2631 = vmatpush1.msra.mxu0 0.0
    %2632 = vmatprep.subr.mxu0 0.0
    %2633 = vmatpush1.msra.mxu0 0.0
    %2634 = vmatprep.subr.mxu0 0.0
    %2635 = vmatpush1.msra.mxu0 0.0
    %2636 = vmatprep.subr.mxu0 0.0
    %2637 = vmatpush1.msra.mxu0 0.0
    %2638 = vmatprep.subr.mxu0 0.0
    %2639 = vmatpush1.msra.mxu0 0.0
    %2640 = vmatprep.subr.mxu0 0.0
    %2641 = vmatpush1.msra.mxu0 0.0
    %2642 = vmatprep.subr.mxu0 0.0
    %2643 = vmatpush1.msra.mxu0 0.0
    %2644 = vmatprep.subr.mxu0 0.0
    %2645 = vmatpush1.msra.mxu0 0.0
    %2646 = vmatprep.subr.mxu0 0.0
    %2647 = vmatpush1.msra.mxu0 0.0
    %2648 = vmatprep.subr.mxu0 0.0
    %2649 = vmatpush1.msra.mxu0 0.0
    %2650 = vmatprep.subr.mxu0 0.0
    %2651 = vmatpush1.msra.mxu0 0.0
    %2652 = vmatprep.subr.mxu0 0.0
    %2653 = vmatpush1.msra.mxu0 0.0
    %2654 = vmatprep.subr.mxu0 0.0
    %2655 = vmatpush1.msra.mxu0 0.0
    %2656 = vmatprep.subr.mxu0 0.0
    %2657 = vmatpush1.msra.mxu0 0.0
    %2658 = vmatprep.subr.mxu0 0.0
    %2659 = vmatpush1.msra.mxu0 0.0
    %2660 = vmatprep.subr.mxu0 0.0
    %2661 = vmatpush1.msra.mxu0 0.0
    %2662 = vmatprep.subr.mxu0 0.0
    %2663 = vmatpush1.msra.mxu0 0.0
    %2664 = vmatprep.subr.mxu0 0.0
    %2665 = vmatpush1.msra.mxu0 0.0
    %2666 = vmatprep.subr.mxu0 0.0
    %2667 = vmatpush1.msra.mxu0 0.0
    %2668 = vmatprep.subr.mxu0 0.0
    %2669 = vmatpush1.msra.mxu0 0.0
    %2670 = vmatprep.subr.mxu0 0.0
    %2671 = vmatpush1.msra.mxu0 0.0
    %2672 = vmatprep.mubr.f32.mxu0 0.0
    %2673 = vmatmul.mubr.f32.gmra.mrb[0].mxu0 %v2591
    %v2674 = vpop.f32.mrb[0].mxu0
    %v2675 = vadd.f32 %v2588, %v2674
    %v2676 = vpop.f32.mrb[0].mxu0
    %2677 = vmatprep.mubr.f32.mxu0 0.0
    %2678 = vmatmul.mubr.f32.gmra.mrb[0].mxu0 %v2594
    %v2679 = vpop.f32.mrb[0].mxu0
    %v2680 = vadd.f32 %v2588, %v2679
    %v2681 = vpop.f32.mrb[0].mxu0
    %2682 = vmatprep.mubr.f32.mxu0 0.0
    %2683 = vmatmul.mubr.f32.gmra.mrb[0].mxu0 %v2597
    %v2684 = vpop.f32.mrb[0].mxu0
    %v2685 = vadd.f32 %v2588, %v2684
    %v2686 = vpop.f32.mrb[0].mxu0
    %2687 = vmatprep.mubr.f32.mxu0 0.0
    %2688 = vmatmul.mubr.f32.gmra.mrb[0].mxu0 %v2600
    %v2689 = vpop.f32.mrb[0].mxu0
    %v2690 = vadd.f32 %v2588, %v2689
    %v2691 = vpop.f32.mrb[0].mxu0
    %2692 = vmatprep.mubr.f32.mxu0 0.0
    %2693 = vmatmul.mubr.f32.gmra.mrb[0].mxu0 %v2603
    %v2694 = vpop.f32.mrb[0].mxu0
    %v2695 = vadd.f32 %v2588, %v2694
    %v2696 = vpop.f32.mrb[0].mxu0
    %2697 = vmatprep.mubr.f32.mxu0 0.0
    %2698 = vmatmul.mubr.f32.gmra.mrb[0].mxu0 %v2606
    %v2699 = vpop.f32.mrb[0].mxu0
    %v2700 = vadd.f32 %v2588, %v2699
    %v2701 = vpop.f32.mrb[0].mxu0
    %2702 = vdwg.mxu0
    %v2703 = vadd.f32 %v154, %v2675
    %v2704 = vadd.f32 %v159, %v2680
    %v2705 = vadd.f32 %v164, %v2685
    %v2706 = vadd.f32 %v169, %v2690
    %v2707 = vadd.f32 %v174, %v2695
    %v2708 = vadd.f32 %v179, %v2700
    %v2709 = vsel %vm189, %v2703, 0.0
    %2710 = vadd.xlane.f32.xlu0 %v2709
    %v2711 = vpop.xlane.xlu0 %2710
    %v2712 = vsel %vm189, %v2704, 0.0
    %2713 = vadd.xlane.f32.xlu0 %v2712
    %v2714 = vpop.xlane.xlu0 %2713
    %v2715 = vsel %vm189, %v2705, 0.0
    %2716 = vadd.xlane.f32.xlu0 %v2715
    %v2717 = vpop.xlane.xlu0 %2716
    %v2718 = vsel %vm189, %v2706, 0.0
    %2719 = vadd.xlane.f32.xlu0 %v2718
    %v2720 = vpop.xlane.xlu0 %2719
    %v2721 = vsel %vm189, %v2707, 0.0
    %2722 = vadd.xlane.f32.xlu0 %v2721
    %v2723 = vpop.xlane.xlu0 %2722
    %v2724 = vsel %vm189, %v2708, 0.0
    %2725 = vadd.xlane.f32.xlu0 %v2724
    %v2726 = vpop.xlane.xlu0 %2725
    %v2727 = vmul.f32 %v2711, %v208
    %v2728 = vmul.f32 %v2714, %v208
    %v2729 = vmul.f32 %v2717, %v208
    %v2730 = vmul.f32 %v2720, %v208
    %v2731 = vmul.f32 %v2723, %v208
    %v2732 = vmul.f32 %v2726, %v208
    %v2733 = vsub.f32 %v2703, %v2727
    %v2734 = vsub.f32 %v2704, %v2728
    %v2735 = vsub.f32 %v2705, %v2729
    %v2736 = vsub.f32 %v2706, %v2730
    %v2737 = vsub.f32 %v2707, %v2731
    %v2738 = vsub.f32 %v2708, %v2732
    %v2739 = vmul.f32 %v2733, %v2733
    %v2740 = vmul.f32 %v2734, %v2734
    %v2741 = vmul.f32 %v2735, %v2735
    %v2742 = vmul.f32 %v2736, %v2736
    %v2743 = vmul.f32 %v2737, %v2737
    %v2744 = vmul.f32 %v2738, %v2738
    %v2745 = vsel %vm189, %v2739, 0.0
    %2746 = vadd.xlane.f32.xlu0 %v2745
    %v2747 = vpop.xlane.xlu0 %2746
    %v2748 = vsel %vm189, %v2740, 0.0
    %2749 = vadd.xlane.f32.xlu0 %v2748
    %v2750 = vpop.xlane.xlu0 %2749
    %v2751 = vsel %vm189, %v2741, 0.0
    %2752 = vadd.xlane.f32.xlu0 %v2751
    %v2753 = vpop.xlane.xlu0 %2752
    %v2754 = vsel %vm189, %v2742, 0.0
    %2755 = vadd.xlane.f32.xlu0 %v2754
    %v2756 = vpop.xlane.xlu0 %2755
    %v2757 = vsel %vm189, %v2743, 0.0
    %2758 = vadd.xlane.f32.xlu0 %v2757
    %v2759 = vpop.xlane.xlu0 %2758
    %v2760 = vsel %vm189, %v2744, 0.0
    %2761 = vadd.xlane.f32.xlu0 %v2760
    %v2762 = vpop.xlane.xlu0 %2761
    %v2763 = vmul.f32 %v2747, %v208
    %v2764 = vmul.f32 %v2750, %v208
    %v2765 = vmul.f32 %v2753, %v208
    %v2766 = vmul.f32 %v2756, %v208
    %v2767 = vmul.f32 %v2759, %v208
    %v2768 = vmul.f32 %v2762, %v208
    %v2769 = vadd.f32 %v2763, 1e-05
    %v2770 = vadd.f32 %v2764, 1e-05
    %v2771 = vadd.f32 %v2765, 1e-05
    %v2772 = vadd.f32 %v2766, 1e-05
    %v2773 = vadd.f32 %v2767, 1e-05
    %v2774 = vadd.f32 %v2768, 1e-05
    %v2775 = vrsqrt.pop %v2769
    %v2776 = vrsqrt.pop %v2770
    %v2777 = vrsqrt.pop %v2771
    %v2778 = vrsqrt.pop %v2772
    %v2779 = vrsqrt.pop %v2773
    %v2780 = vrsqrt.pop %v2774
    %v2781 = vmul.f32 %v2733, %v2775
    %v2782 = vmul.f32 %v2734, %v2776
    %v2783 = vmul.f32 %v2735, %v2777
    %v2784 = vmul.f32 %v2736, %v2778
    %v2785 = vmul.f32 %v2737, %v2779
    %v2786 = vmul.f32 %v2738, %v2780
    %v2787 = vmul.f32 %v2781, %v292
    %v2788 = vmul.f32 %v2782, %v292
    %v2789 = vmul.f32 %v2783, %v292
    %v2790 = vmul.f32 %v2784, %v292
    %v2791 = vmul.f32 %v2785, %v292
    %v2792 = vmul.f32 %v2786, %v292
    %v2793 = vadd.f32 %v2787, %v302
    %v2794 = vadd.f32 %v2788, %v302
    %v2795 = vadd.f32 %v2789, %v302
    %v2796 = vadd.f32 %v2790, %v302
    %v2797 = vadd.f32 %v2791, %v302
    %v2798 = vadd.f32 %v2792, %v302
    %v2799 = vld [vmem:[%s7] sm:$0xff]
    %v2800 = vld [vmem:[%s7 + $0x8] sm:$0xff]
    %v2801 = vld [vmem:[%s7 + $0x10] sm:$0xff]
    %v2802 = vld [vmem:[%s7 + $0x18] sm:$0xff]
    %v2803 = vld [vmem:[%s8] sm:$0x1]
    %v2805 = vlaneseq
    %v2806 = vshrl.u32 %v2805, 7
    %v2807 = vsub.s32 0, %v2806
    %v2808 = vrot.slane %v2803, %v2807
    %v2811 = vsel %vm189, %v2793, 0
    %v2814 = vsel %vm189, %v2794, 0
    %v2817 = vsel %vm189, %v2795, 0
    %v2820 = vsel %vm189, %v2796, 0
    %v2823 = vsel %vm189, %v2797, 0
    %v2826 = vsel %vm189, %v2798, 0
    %2828 = vmatprep.subr.mxu0 0.0
    %2829 = vmatpush1.msra.mxu0 %v2799
    %2830 = vmatprep.subr.mxu0 0.0
    %2831 = vmatpush1.msra.mxu0 %v2800
    %2832 = vmatprep.subr.mxu0 0.0
    %2833 = vmatpush1.msra.mxu0 %v2801
    %2834 = vmatprep.subr.mxu0 0.0
    %2835 = vmatpush1.msra.mxu0 %v2802
    %2836 = vmatprep.subr.mxu0 0.0
    %2837 = vmatpush1.msra.mxu0 0.0
    %2838 = vmatprep.subr.mxu0 0.0
    %2839 = vmatpush1.msra.mxu0 0.0
    %2840 = vmatprep.subr.mxu0 0.0
    %2841 = vmatpush1.msra.mxu0 0.0
    %2842 = vmatprep.subr.mxu0 0.0
    %2843 = vmatpush1.msra.mxu0 0.0
    %2844 = vmatprep.subr.mxu0 0.0
    %2845 = vmatpush1.msra.mxu0 0.0
    %2846 = vmatprep.subr.mxu0 0.0
    %2847 = vmatpush1.msra.mxu0 0.0
    %2848 = vmatprep.subr.mxu0 0.0
    %2849 = vmatpush1.msra.mxu0 0.0
    %2850 = vmatprep.subr.mxu0 0.0
    %2851 = vmatpush1.msra.mxu0 0.0
    %2852 = vmatprep.subr.mxu0 0.0
    %2853 = vmatpush1.msra.mxu0 0.0
    %2854 = vmatprep.subr.mxu0 0.0
    %2855 = vmatpush1.msra.mxu0 0.0
    %2856 = vmatprep.subr.mxu0 0.0
    %2857 = vmatpush1.msra.mxu0 0.0
    %2858 = vmatprep.subr.mxu0 0.0
    %2859 = vmatpush1.msra.mxu0 0.0
    %2860 = vmatprep.subr.mxu0 0.0
    %2861 = vmatpush1.msra.mxu0 0.0
    %2862 = vmatprep.subr.mxu0 0.0
    %2863 = vmatpush1.msra.mxu0 0.0
    %2864 = vmatprep.subr.mxu0 0.0
    %2865 = vmatpush1.msra.mxu0 0.0
    %2866 = vmatprep.subr.mxu0 0.0
    %2867 = vmatpush1.msra.mxu0 0.0
    %2868 = vmatprep.subr.mxu0 0.0
    %2869 = vmatpush1.msra.mxu0 0.0
    %2870 = vmatprep.subr.mxu0 0.0
    %2871 = vmatpush1.msra.mxu0 0.0
    %2872 = vmatprep.subr.mxu0 0.0
    %2873 = vmatpush1.msra.mxu0 0.0
    %2874 = vmatprep.subr.mxu0 0.0
    %2875 = vmatpush1.msra.mxu0 0.0
    %2876 = vmatprep.subr.mxu0 0.0
    %2877 = vmatpush1.msra.mxu0 0.0
    %2878 = vmatprep.subr.mxu0 0.0
    %2879 = vmatpush1.msra.mxu0 0.0
    %2880 = vmatprep.subr.mxu0 0.0
    %2881 = vmatpush1.msra.mxu0 0.0
    %2882 = vmatprep.subr.mxu0 0.0
    %2883 = vmatpush1.msra.mxu0 0.0
    %2884 = vmatprep.subr.mxu0 0.0
    %2885 = vmatpush1.msra.mxu0 0.0
    %2886 = vmatprep.subr.mxu0 0.0
    %2887 = vmatpush1.msra.mxu0 0.0
    %2888 = vmatprep.subr.mxu0 0.0
    %2889 = vmatpush1.msra.mxu0 0.0
    %2890 = vmatprep.subr.mxu0 0.0
    %2891 = vmatpush1.msra.mxu0 0.0
    %2892 = vmatprep.mubr.f32.mxu0 0.0
    %2893 = vmatmul.mubr.f32.gmra.mrb[0].mxu0 %v2811
    %v2894 = vpop.f32.mrb[0].mxu0
    %v2895 = vadd.f32 %v2808, %v2894
    %v2896 = vpop.f32.mrb[0].mxu0
    %2897 = vmatprep.mubr.f32.mxu0 0.0
    %2898 = vmatmul.mubr.f32.gmra.mrb[0].mxu0 %v2814
    %v2899 = vpop.f32.mrb[0].mxu0
    %v2900 = vadd.f32 %v2808, %v2899
    %v2901 = vpop.f32.mrb[0].mxu0
    %2902 = vmatprep.mubr.f32.mxu0 0.0
    %2903 = vmatmul.mubr.f32.gmra.mrb[0].mxu0 %v2817
    %v2904 = vpop.f32.mrb[0].mxu0
    %v2905 = vadd.f32 %v2808, %v2904
    %v2906 = vpop.f32.mrb[0].mxu0
    %2907 = vmatprep.mubr.f32.mxu0 0.0
    %2908 = vmatmul.mubr.f32.gmra.mrb[0].mxu0 %v2820
    %v2909 = vpop.f32.mrb[0].mxu0
    %v2910 = vadd.f32 %v2808, %v2909
    %v2911 = vpop.f32.mrb[0].mxu0
    %2912 = vmatprep.mubr.f32.mxu0 0.0
    %2913 = vmatmul.mubr.f32.gmra.mrb[0].mxu0 %v2823
    %v2914 = vpop.f32.mrb[0].mxu0
    %v2915 = vadd.f32 %v2808, %v2914
    %v2916 = vpop.f32.mrb[0].mxu0
    %2917 = vmatprep.mubr.f32.mxu0 0.0
    %2918 = vmatmul.mubr.f32.gmra.mrb[0].mxu0 %v2826
    %v2919 = vpop.f32.mrb[0].mxu0
    %v2920 = vadd.f32 %v2808, %v2919
    %v2921 = vpop.f32.mrb[0].mxu0
    %2922 = vdwg.mxu0
    %v2923 = vmul.f32 %v2895, 0.5
    %v2924 = vmul.f32 %v2900, 0.5
    %v2925 = vmul.f32 %v2905, 0.5
    %v2926 = vmul.f32 %v2910, 0.5
    %v2927 = vmul.f32 %v2915, 0.5
    %v2928 = vmul.f32 %v2920, 0.5
    %v2929 = vmul.f32 %v2895, 0.70710677
    %v2930 = vmul.f32 %v2900, 0.70710677
    %v2931 = vmul.f32 %v2905, 0.70710677
    %v2932 = vmul.f32 %v2910, 0.70710677
    %v2933 = vmul.f32 %v2915, 0.70710677
    %v2934 = vmul.f32 %v2920, 0.70710677
    %v2935 = vand.u32 2147483647, %v2929
    %v2936 = vand.u32 2147483647, %v2930
    %v2937 = vand.u32 2147483647, %v2931
    %v2938 = vand.u32 2147483647, %v2932
    %v2939 = vand.u32 2147483647, %v2933
    %v2940 = vand.u32 2147483647, %v2934
    %v2941 = vmul.f32 %v2935, 0.3275911
    %v2942 = vmul.f32 %v2936, 0.3275911
    %v2943 = vmul.f32 %v2937, 0.3275911
    %v2944 = vmul.f32 %v2938, 0.3275911
    %v2945 = vmul.f32 %v2939, 0.3275911
    %v2946 = vmul.f32 %v2940, 0.3275911
    %v2947 = vadd.f32 %v2941, 1.0
    %v2948 = vadd.f32 %v2942, 1.0
    %v2949 = vadd.f32 %v2943, 1.0
    %v2950 = vadd.f32 %v2944, 1.0
    %v2951 = vadd.f32 %v2945, 1.0
    %v2952 = vadd.f32 %v2946, 1.0
    %v2953 = vrcp.pop %v2947
    %v2954 = vmul.f32 1.0, %v2953
    %v2955 = vrcp.pop %v2948
    %v2956 = vmul.f32 1.0, %v2955
    %v2957 = vrcp.pop %v2949
    %v2958 = vmul.f32 1.0, %v2957
    %v2959 = vrcp.pop %v2950
    %v2960 = vmul.f32 1.0, %v2959
    %v2961 = vrcp.pop %v2951
    %v2962 = vmul.f32 1.0, %v2961
    %v2963 = vrcp.pop %v2952
    %v2964 = vmul.f32 1.0, %v2963
    %v2965 = vmul.f32 %v2954, 1.0614054
    %v2966 = vmul.f32 %v2956, 1.0614054
    %v2967 = vmul.f32 %v2958, 1.0614054
    %v2968 = vmul.f32 %v2960, 1.0614054
    %v2969 = vmul.f32 %v2962, 1.0614054
    %v2970 = vmul.f32 %v2964, 1.0614054
    %v2971 = vadd.f32 %v2965, -1.4531521
    %v2972 = vadd.f32 %v2966, -1.4531521
    %v2973 = vadd.f32 %v2967, -1.4531521
    %v2974 = vadd.f32 %v2968, -1.4531521
    %v2975 = vadd.f32 %v2969, -1.4531521
    %v2976 = vadd.f32 %v2970, -1.4531521
    %v2977 = vmul.f32 %v2954, %v2971
    %v2978 = vmul.f32 %v2956, %v2972
    %v2979 = vmul.f32 %v2958, %v2973
    %v2980 = vmul.f32 %v2960, %v2974
    %v2981 = vmul.f32 %v2962, %v2975
    %v2982 = vmul.f32 %v2964, %v2976
    %v2983 = vadd.f32 %v2977, 1.4214138
    %v2984 = vadd.f32 %v2978, 1.4214138
    %v2985 = vadd.f32 %v2979, 1.4214138
    %v2986 = vadd.f32 %v2980, 1.4214138
    %v2987 = vadd.f32 %v2981, 1.4214138
    %v2988 = vadd.f32 %v2982, 1.4214138
    %v2989 = vmul.f32 %v2954, %v2983
    %v2990 = vmul.f32 %v2956, %v2984
    %v2991 = vmul.f32 %v2958, %v2985
    %v2992 = vmul.f32 %v2960, %v2986
    %v2993 = vmul.f32 %v2962, %v2987
    %v2994 = vmul.f32 %v2964, %v2988
    %v2995 = vadd.f32 %v2989, -0.28449672
    %v2996 = vadd.f32 %v2990, -0.28449672
    %v2997 = vadd.f32 %v2991, -0.28449672
    %v2998 = vadd.f32 %v2992, -0.28449672
    %v2999 = vadd.f32 %v2993, -0.28449672
    %v3000 = vadd.f32 %v2994, -0.28449672
    %v3001 = vmul.f32 %v2954, %v2995
    %v3002 = vmul.f32 %v2956, %v2996
    %v3003 = vmul.f32 %v2958, %v2997
    %v3004 = vmul.f32 %v2960, %v2998
    %v3005 = vmul.f32 %v2962, %v2999
    %v3006 = vmul.f32 %v2964, %v3000
    %v3007 = vadd.f32 %v3001, 0.2548296
    %v3008 = vadd.f32 %v3002, 0.2548296
    %v3009 = vadd.f32 %v3003, 0.2548296
    %v3010 = vadd.f32 %v3004, 0.2548296
    %v3011 = vadd.f32 %v3005, 0.2548296
    %v3012 = vadd.f32 %v3006, 0.2548296
    %v3013 = vmul.f32 %v2954, %v3007
    %v3014 = vmul.f32 %v2956, %v3008
    %v3015 = vmul.f32 %v2958, %v3009
    %v3016 = vmul.f32 %v2960, %v3010
    %v3017 = vmul.f32 %v2962, %v3011
    %v3018 = vmul.f32 %v2964, %v3012
    %v3019 = vsub.f32 0.0, %v2935
    %v3020 = vsub.f32 0.0, %v2936
    %v3021 = vsub.f32 0.0, %v2937
    %v3022 = vsub.f32 0.0, %v2938
    %v3023 = vsub.f32 0.0, %v2939
    %v3024 = vsub.f32 0.0, %v2940
    %v3025 = vmul.f32 %v3019, %v2935
    %v3026 = vmul.f32 %v3020, %v2936
    %v3027 = vmul.f32 %v3021, %v2937
    %v3028 = vmul.f32 %v3022, %v2938
    %v3029 = vmul.f32 %v3023, %v2939
    %v3030 = vmul.f32 %v3024, %v2940
    %v3031 = vmul.f32 %v3025, 1.442695
    %v3032 = vpow.pop %v3031
    %v3033 = vmul.f32 %v3026, 1.442695
    %v3034 = vpow.pop %v3033
    %v3035 = vmul.f32 %v3027, 1.442695
    %v3036 = vpow.pop %v3035
    %v3037 = vmul.f32 %v3028, 1.442695
    %v3038 = vpow.pop %v3037
    %v3039 = vmul.f32 %v3029, 1.442695
    %v3040 = vpow.pop %v3039
    %v3041 = vmul.f32 %v3030, 1.442695
    %v3042 = vpow.pop %v3041
    %v3043 = vmul.f32 %v3013, %v3032
    %v3044 = vmul.f32 %v3014, %v3034
    %v3045 = vmul.f32 %v3015, %v3036
    %v3046 = vmul.f32 %v3016, %v3038
    %v3047 = vmul.f32 %v3017, %v3040
    %v3048 = vmul.f32 %v3018, %v3042
    %v3049 = vsub.f32 1.0, %v3043
    %v3050 = vsub.f32 1.0, %v3044
    %v3051 = vsub.f32 1.0, %v3045
    %v3052 = vsub.f32 1.0, %v3046
    %v3053 = vsub.f32 1.0, %v3047
    %v3054 = vsub.f32 1.0, %v3048
    %vm3055 = vcmp.lt.f32.partialorder %v2929, 0.0
    %vm3056 = vcmp.lt.f32.partialorder %v2930, 0.0
    %vm3057 = vcmp.lt.f32.partialorder %v2931, 0.0
    %vm3058 = vcmp.lt.f32.partialorder %v2932, 0.0
    %vm3059 = vcmp.lt.f32.partialorder %v2933, 0.0
    %vm3060 = vcmp.lt.f32.partialorder %v2934, 0.0
    %v3061 = vsub.f32 0.0, %v3049
    %v3062 = vsub.f32 0.0, %v3050
    %v3063 = vsub.f32 0.0, %v3051
    %v3064 = vsub.f32 0.0, %v3052
    %v3065 = vsub.f32 0.0, %v3053
    %v3066 = vsub.f32 0.0, %v3054
    %v3067 = vsel %vm3055, %v3061, %v3049
    %v3068 = vsel %vm3056, %v3062, %v3050
    %v3069 = vsel %vm3057, %v3063, %v3051
    %v3070 = vsel %vm3058, %v3064, %v3052
    %v3071 = vsel %vm3059, %v3065, %v3053
    %v3072 = vsel %vm3060, %v3066, %v3054
    %v3073 = vadd.f32 %v3067, 1.0
    %v3074 = vadd.f32 %v3068, 1.0
    %v3075 = vadd.f32 %v3069, 1.0
    %v3076 = vadd.f32 %v3070, 1.0
    %v3077 = vadd.f32 %v3071, 1.0
    %v3078 = vadd.f32 %v3072, 1.0
    %v3079 = vmul.f32 %v2923, %v3073
    %v3080 = vmul.f32 %v2924, %v3074
    %v3081 = vmul.f32 %v2925, %v3075
    %v3082 = vmul.f32 %v2926, %v3076
    %v3083 = vmul.f32 %v2927, %v3077
    %v3084 = vmul.f32 %v2928, %v3078
    %v3085 = vld [vmem:[%s9] sm:$0xff]
    %v3086 = vld [vmem:[%s9 + $0x8] sm:$0xff]
    %v3087 = vld [vmem:[%s9 + $0x10] sm:$0xff]
    %v3088 = vld [vmem:[%s9 + $0x18] sm:$0xff]
    %v3089 = vld [vmem:[%s9 + $0x20] sm:$0xff]
    %v3090 = vld [vmem:[%s9 + $0x28] sm:$0xff]
    %v3091 = vld [vmem:[%s9 + $0x30] sm:$0xff]
    %v3092 = vld [vmem:[%s9 + $0x38] sm:$0xff]
    %v3093 = vld [vmem:[%s10] sm:$0x1]
    %v3095 = vlaneseq
    %v3096 = vshrl.u32 %v3095, 7
    %v3097 = vsub.s32 0, %v3096
    %v3098 = vrot.slane %v3093, %v3097
    %v3101 = vsel %vm68, %v3079, 0
    %v3104 = vsel %vm68, %v3080, 0
    %v3107 = vsel %vm68, %v3081, 0
    %v3110 = vsel %vm68, %v3082, 0
    %v3113 = vsel %vm68, %v3083, 0
    %v3116 = vsel %vm68, %v3084, 0
    %3118 = vmatprep.subr.mxu0 0.0
    %3119 = vmatpush1.msra.mxu0 %v3085
    %3120 = vmatprep.subr.mxu0 0.0
    %3121 = vmatpush1.msra.mxu0 %v3086
    %3122 = vmatprep.subr.mxu0 0.0
    %3123 = vmatpush1.msra.mxu0 %v3087
    %3124 = vmatprep.subr.mxu0 0.0
    %3125 = vmatpush1.msra.mxu0 %v3088
    %3126 = vmatprep.subr.mxu0 0.0
    %3127 = vmatpush1.msra.mxu0 %v3089
    %3128 = vmatprep.subr.mxu0 0.0
    %3129 = vmatpush1.msra.mxu0 %v3090
    %3130 = vmatprep.subr.mxu0 0.0
    %3131 = vmatpush1.msra.mxu0 %v3091
    %3132 = vmatprep.subr.mxu0 0.0
    %3133 = vmatpush1.msra.mxu0 %v3092
    %3134 = vmatprep.subr.mxu0 0.0
    %3135 = vmatpush1.msra.mxu0 0.0
    %3136 = vmatprep.subr.mxu0 0.0
    %3137 = vmatpush1.msra.mxu0 0.0
    %3138 = vmatprep.subr.mxu0 0.0
    %3139 = vmatpush1.msra.mxu0 0.0
    %3140 = vmatprep.subr.mxu0 0.0
    %3141 = vmatpush1.msra.mxu0 0.0
    %3142 = vmatprep.subr.mxu0 0.0
    %3143 = vmatpush1.msra.mxu0 0.0
    %3144 = vmatprep.subr.mxu0 0.0
    %3145 = vmatpush1.msra.mxu0 0.0
    %3146 = vmatprep.subr.mxu0 0.0
    %3147 = vmatpush1.msra.mxu0 0.0
    %3148 = vmatprep.subr.mxu0 0.0
    %3149 = vmatpush1.msra.mxu0 0.0
    %3150 = vmatprep.subr.mxu0 0.0
    %3151 = vmatpush1.msra.mxu0 0.0
    %3152 = vmatprep.subr.mxu0 0.0
    %3153 = vmatpush1.msra.mxu0 0.0
    %3154 = vmatprep.subr.mxu0 0.0
    %3155 = vmatpush1.msra.mxu0 0.0
    %3156 = vmatprep.subr.mxu0 0.0
    %3157 = vmatpush1.msra.mxu0 0.0
    %3158 = vmatprep.subr.mxu0 0.0
    %3159 = vmatpush1.msra.mxu0 0.0
    %3160 = vmatprep.subr.mxu0 0.0
    %3161 = vmatpush1.msra.mxu0 0.0
    %3162 = vmatprep.subr.mxu0 0.0
    %3163 = vmatpush1.msra.mxu0 0.0
    %3164 = vmatprep.subr.mxu0 0.0
    %3165 = vmatpush1.msra.mxu0 0.0
    %3166 = vmatprep.subr.mxu0 0.0
    %3167 = vmatpush1.msra.mxu0 0.0
    %3168 = vmatprep.subr.mxu0 0.0
    %3169 = vmatpush1.msra.mxu0 0.0
    %3170 = vmatprep.subr.mxu0 0.0
    %3171 = vmatpush1.msra.mxu0 0.0
    %3172 = vmatprep.subr.mxu0 0.0
    %3173 = vmatpush1.msra.mxu0 0.0
    %3174 = vmatprep.subr.mxu0 0.0
    %3175 = vmatpush1.msra.mxu0 0.0
    %3176 = vmatprep.subr.mxu0 0.0
    %3177 = vmatpush1.msra.mxu0 0.0
    %3178 = vmatprep.subr.mxu0 0.0
    %3179 = vmatpush1.msra.mxu0 0.0
    %3180 = vmatprep.subr.mxu0 0.0
    %3181 = vmatpush1.msra.mxu0 0.0
    %3182 = vmatprep.mubr.f32.mxu0 0.0
    %3183 = vmatmul.mubr.f32.gmra.mrb[0].mxu0 %v3101
    %v3184 = vpop.f32.mrb[0].mxu0
    %v3185 = vadd.f32 %v3098, %v3184
    %v3186 = vpop.f32.mrb[0].mxu0
    %3187 = vmatprep.mubr.f32.mxu0 0.0
    %3188 = vmatmul.mubr.f32.gmra.mrb[0].mxu0 %v3104
    %v3189 = vpop.f32.mrb[0].mxu0
    %v3190 = vadd.f32 %v3098, %v3189
    %v3191 = vpop.f32.mrb[0].mxu0
    %3192 = vmatprep.mubr.f32.mxu0 0.0
    %3193 = vmatmul.mubr.f32.gmra.mrb[0].mxu0 %v3107
    %v3194 = vpop.f32.mrb[0].mxu0
    %v3195 = vadd.f32 %v3098, %v3194
    %v3196 = vpop.f32.mrb[0].mxu0
    %3197 = vmatprep.mubr.f32.mxu0 0.0
    %3198 = vmatmul.mubr.f32.gmra.mrb[0].mxu0 %v3110
    %v3199 = vpop.f32.mrb[0].mxu0
    %v3200 = vadd.f32 %v3098, %v3199
    %v3201 = vpop.f32.mrb[0].mxu0
    %3202 = vmatprep.mubr.f32.mxu0 0.0
    %3203 = vmatmul.mubr.f32.gmra.mrb[0].mxu0 %v3113
    %v3204 = vpop.f32.mrb[0].mxu0
    %v3205 = vadd.f32 %v3098, %v3204
    %v3206 = vpop.f32.mrb[0].mxu0
    %3207 = vmatprep.mubr.f32.mxu0 0.0
    %3208 = vmatmul.mubr.f32.gmra.mrb[0].mxu0 %v3116
    %v3209 = vpop.f32.mrb[0].mxu0
    %v3210 = vadd.f32 %v3098, %v3209
    %v3211 = vpop.f32.mrb[0].mxu0
    %3212 = vdwg.mxu0
    %v3213 = vadd.f32 %v2703, %v3185
    %v3214 = vadd.f32 %v2704, %v3190
    %v3215 = vadd.f32 %v2705, %v3195
    %v3216 = vadd.f32 %v2706, %v3200
    %v3217 = vadd.f32 %v2707, %v3205
    %v3218 = vadd.f32 %v2708, %v3210
    %s3219 = scalar_lea.vmem %s4, 4
    %v3220 = vld [vmem:[%s3219] sm:$0xf]
    %s3221 = scalar_lea.vmem %s5, 32
    %v3222 = vld [vmem:[%s3221] sm:$0xff]
    %v3223 = vld [vmem:[%s3221 + $0x8] sm:$0xff]
    %v3224 = vld [vmem:[%s3221 + $0x10] sm:$0xff]
    %v3225 = vld [vmem:[%s3221 + $0x18] sm:$0xff]
    %s3226 = scalar_lea.vmem %s6, 1
    %v3227 = vld [vmem:[%s3226] sm:$0x1]
    %v3228 = vsel %vm189, %v3213, 0.0
    %3229 = vadd.xlane.f32.xlu0 %v3228
    %v3230 = vpop.xlane.xlu0 %3229
    %v3231 = vsel %vm189, %v3214, 0.0
    %3232 = vadd.xlane.f32.xlu0 %v3231
    %v3233 = vpop.xlane.xlu0 %3232
    %v3234 = vsel %vm189, %v3215, 0.0
    %3235 = vadd.xlane.f32.xlu0 %v3234
    %v3236 = vpop.xlane.xlu0 %3235
    %v3237 = vsel %vm189, %v3216, 0.0
    %3238 = vadd.xlane.f32.xlu0 %v3237
    %v3239 = vpop.xlane.xlu0 %3238
    %v3240 = vsel %vm189, %v3217, 0.0
    %3241 = vadd.xlane.f32.xlu0 %v3240
    %v3242 = vpop.xlane.xlu0 %3241
    %v3243 = vsel %vm189, %v3218, 0.0
    %3244 = vadd.xlane.f32.xlu0 %v3243
    %v3245 = vpop.xlane.xlu0 %3244
    %v3246 = vmul.f32 %v3230, %v208
    %v3247 = vmul.f32 %v3233, %v208
    %v3248 = vmul.f32 %v3236, %v208
    %v3249 = vmul.f32 %v3239, %v208
    %v3250 = vmul.f32 %v3242, %v208
    %v3251 = vmul.f32 %v3245, %v208
    %v3252 = vsub.f32 %v3213, %v3246
    %v3253 = vsub.f32 %v3214, %v3247
    %v3254 = vsub.f32 %v3215, %v3248
    %v3255 = vsub.f32 %v3216, %v3249
    %v3256 = vsub.f32 %v3217, %v3250
    %v3257 = vsub.f32 %v3218, %v3251
    %v3258 = vmul.f32 %v3252, %v3252
    %v3259 = vmul.f32 %v3253, %v3253
    %v3260 = vmul.f32 %v3254, %v3254
    %v3261 = vmul.f32 %v3255, %v3255
    %v3262 = vmul.f32 %v3256, %v3256
    %v3263 = vmul.f32 %v3257, %v3257
    %v3264 = vsel %vm189, %v3258, 0.0
    %3265 = vadd.xlane.f32.xlu0 %v3264
    %v3266 = vpop.xlane.xlu0 %3265
    %v3267 = vsel %vm189, %v3259, 0.0
    %3268 = vadd.xlane.f32.xlu0 %v3267
    %v3269 = vpop.xlane.xlu0 %3268
    %v3270 = vsel %vm189, %v3260, 0.0
    %3271 = vadd.xlane.f32.xlu0 %v3270
    %v3272 = vpop.xlane.xlu0 %3271
    %v3273 = vsel %vm189, %v3261, 0.0
    %3274 = vadd.xlane.f32.xlu0 %v3273
    %v3275 = vpop.xlane.xlu0 %3274
    %v3276 = vsel %vm189, %v3262, 0.0
    %3277 = vadd.xlane.f32.xlu0 %v3276
    %v3278 = vpop.xlane.xlu0 %3277
    %v3279 = vsel %vm189, %v3263, 0.0
    %3280 = vadd.xlane.f32.xlu0 %v3279
    %v3281 = vpop.xlane.xlu0 %3280
    %v3282 = vmul.f32 %v3266, %v208
    %v3283 = vmul.f32 %v3269, %v208
    %v3284 = vmul.f32 %v3272, %v208
    %v3285 = vmul.f32 %v3275, %v208
    %v3286 = vmul.f32 %v3278, %v208
    %v3287 = vmul.f32 %v3281, %v208
    %v3288 = vadd.f32 %v3282, 1e-05
    %v3289 = vadd.f32 %v3283, 1e-05
    %v3290 = vadd.f32 %v3284, 1e-05
    %v3291 = vadd.f32 %v3285, 1e-05
    %v3292 = vadd.f32 %v3286, 1e-05
    %v3293 = vadd.f32 %v3287, 1e-05
    %v3294 = vrsqrt.pop %v3288
    %v3295 = vrsqrt.pop %v3289
    %v3296 = vrsqrt.pop %v3290
    %v3297 = vrsqrt.pop %v3291
    %v3298 = vrsqrt.pop %v3292
    %v3299 = vrsqrt.pop %v3293
    %v3300 = vmul.f32 %v3252, %v3294
    %v3301 = vmul.f32 %v3253, %v3295
    %v3302 = vmul.f32 %v3254, %v3296
    %v3303 = vmul.f32 %v3255, %v3297
    %v3304 = vmul.f32 %v3256, %v3298
    %v3305 = vmul.f32 %v3257, %v3299
    %v3306 = vlaneseq
    %v3307 = vshrl.u32 %v3306, 7
    %v3308 = vsub.s32 0, %v3307
    %v3309 = vrot.slane %v3220, %v3308
    %v3310 = vmul.f32 %v3300, %v3309
    %v3311 = vmul.f32 %v3301, %v3309
    %v3312 = vmul.f32 %v3302, %v3309
    %v3313 = vmul.f32 %v3303, %v3309
    %v3314 = vmul.f32 %v3304, %v3309
    %v3315 = vmul.f32 %v3305, %v3309
    %v3316 = vlaneseq
    %v3317 = vshrl.u32 %v3316, 7
    %v3318 = vsub.s32 1, %v3317
    %v3319 = vrot.slane %v3220, %v3318
    %v3320 = vadd.f32 %v3310, %v3319
    %v3321 = vadd.f32 %v3311, %v3319
    %v3322 = vadd.f32 %v3312, %v3319
    %v3323 = vadd.f32 %v3313, %v3319
    %v3324 = vadd.f32 %v3314, %v3319
    %v3325 = vadd.f32 %v3315, %v3319
    %v3326 = vlaneseq
    %v3327 = vshrl.u32 %v3326, 7
    %v3328 = vsub.s32 2, %v3327
    %v3329 = vrot.slane %v3220, %v3328
    %v3330 = vmul.f32 %v3300, %v3329
    %v3331 = vmul.f32 %v3301, %v3329
    %v3332 = vmul.f32 %v3302, %v3329
    %v3333 = vmul.f32 %v3303, %v3329
    %v3334 = vmul.f32 %v3304, %v3329
    %v3335 = vmul.f32 %v3305, %v3329
    %v3336 = vlaneseq
    %v3337 = vshrl.u32 %v3336, 7
    %v3338 = vsub.s32 3, %v3337
    %v3339 = vrot.slane %v3220, %v3338
    %v3340 = vadd.f32 %v3330, %v3339
    %v3341 = vadd.f32 %v3331, %v3339
    %v3342 = vadd.f32 %v3332, %v3339
    %v3343 = vadd.f32 %v3333, %v3339
    %v3344 = vadd.f32 %v3334, %v3339
    %v3345 = vadd.f32 %v3335, %v3339
    %v3347 = vlaneseq
    %v3348 = vshrl.u32 %v3347, 7
    %v3349 = vsub.s32 0, %v3348
    %v3350 = vrot.slane %v3227, %v3349
    %v3353 = vsel %vm189, %v3320, 0
    %v3356 = vsel %vm189, %v3321, 0
    %v3359 = vsel %vm189, %v3322, 0
    %v3362 = vsel %vm189, %v3323, 0
    %v3365 = vsel %vm189, %v3324, 0
    %v3368 = vsel %vm189, %v3325, 0
    %3370 = vmatprep.subr.mxu0 0.0
    %3371 = vmatpush1.msra.mxu0 %v3222
    %3372 = vmatprep.subr.mxu0 0.0
    %3373 = vmatpush1.msra.mxu0 %v3223
    %3374 = vmatprep.subr.mxu0 0.0
    %3375 = vmatpush1.msra.mxu0 %v3224
    %3376 = vmatprep.subr.mxu0 0.0
    %3377 = vmatpush1.msra.mxu0 %v3225
    %3378 = vmatprep.subr.mxu0 0.0
    %3379 = vmatpush1.msra.mxu0 0.0
    %3380 = vmatprep.subr.mxu0 0.0
    %3381 = vmatpush1.msra.mxu0 0.0
    %3382 = vmatprep.subr.mxu0 0.0
    %3383 = vmatpush1.msra.mxu0 0.0
    %3384 = vmatprep.subr.mxu0 0.0
    %3385 = vmatpush1.msra.mxu0 0.0
    %3386 = vmatprep.subr.mxu0 0.0
    %3387 = vmatpush1.msra.mxu0 0.0
    %3388 = vmatprep.subr.mxu0 0.0
    %3389 = vmatpush1.msra.mxu0 0.0
    %3390 = vmatprep.subr.mxu0 0.0
    %3391 = vmatpush1.msra.mxu0 0.0
    %3392 = vmatprep.subr.mxu0 0.0
    %3393 = vmatpush1.msra.mxu0 0.0
    %3394 = vmatprep.subr.mxu0 0.0
    %3395 = vmatpush1.msra.mxu0 0.0
    %3396 = vmatprep.subr.mxu0 0.0
    %3397 = vmatpush1.msra.mxu0 0.0
    %3398 = vmatprep.subr.mxu0 0.0
    %3399 = vmatpush1.msra.mxu0 0.0
    %3400 = vmatprep.subr.mxu0 0.0
    %3401 = vmatpush1.msra.mxu0 0.0
    %3402 = vmatprep.subr.mxu0 0.0
    %3403 = vmatpush1.msra.mxu0 0.0
    %3404 = vmatprep.subr.mxu0 0.0
    %3405 = vmatpush1.msra.mxu0 0.0
    %3406 = vmatprep.subr.mxu0 0.0
    %3407 = vmatpush1.msra.mxu0 0.0
    %3408 = vmatprep.subr.mxu0 0.0
    %3409 = vmatpush1.msra.mxu0 0.0
    %3410 = vmatprep.subr.mxu0 0.0
    %3411 = vmatpush1.msra.mxu0 0.0
    %3412 = vmatprep.subr.mxu0 0.0
    %3413 = vmatpush1.msra.mxu0 0.0
    %3414 = vmatprep.subr.mxu0 0.0
    %3415 = vmatpush1.msra.mxu0 0.0
    %3416 = vmatprep.subr.mxu0 0.0
    %3417 = vmatpush1.msra.mxu0 0.0
    %3418 = vmatprep.subr.mxu0 0.0
    %3419 = vmatpush1.msra.mxu0 0.0
    %3420 = vmatprep.subr.mxu0 0.0
    %3421 = vmatpush1.msra.mxu0 0.0
    %3422 = vmatprep.subr.mxu0 0.0
    %3423 = vmatpush1.msra.mxu0 0.0
    %3424 = vmatprep.subr.mxu0 0.0
    %3425 = vmatpush1.msra.mxu0 0.0
    %3426 = vmatprep.subr.mxu0 0.0
    %3427 = vmatpush1.msra.mxu0 0.0
    %3428 = vmatprep.subr.mxu0 0.0
    %3429 = vmatpush1.msra.mxu0 0.0
    %3430 = vmatprep.subr.mxu0 0.0
    %3431 = vmatpush1.msra.mxu0 0.0
    %3432 = vmatprep.subr.mxu0 0.0
    %3433 = vmatpush1.msra.mxu0 0.0
    %3434 = vmatprep.mubr.f32.mxu0 0.0
    %3435 = vmatmul.mubr.f32.gmra.mrb[0].mxu0 %v3353
    %v3436 = vpop.f32.mrb[0].mxu0
    %v3437 = vadd.f32 %v3350, %v3436
    %v3438 = vpop.f32.mrb[0].mxu0
    %3439 = vmatprep.mubr.f32.mxu0 0.0
    %3440 = vmatmul.mubr.f32.gmra.mrb[0].mxu0 %v3356
    %v3441 = vpop.f32.mrb[0].mxu0
    %v3442 = vadd.f32 %v3350, %v3441
    %v3443 = vpop.f32.mrb[0].mxu0
    %3444 = vmatprep.mubr.f32.mxu0 0.0
    %3445 = vmatmul.mubr.f32.gmra.mrb[0].mxu0 %v3359
    %v3446 = vpop.f32.mrb[0].mxu0
    %v3447 = vadd.f32 %v3350, %v3446
    %v3448 = vpop.f32.mrb[0].mxu0
    %3449 = vmatprep.mubr.f32.mxu0 0.0
    %3450 = vmatmul.mubr.f32.gmra.mrb[0].mxu0 %v3362
    %v3451 = vpop.f32.mrb[0].mxu0
    %v3452 = vadd.f32 %v3350, %v3451
    %v3453 = vpop.f32.mrb[0].mxu0
    %3454 = vmatprep.mubr.f32.mxu0 0.0
    %3455 = vmatmul.mubr.f32.gmra.mrb[0].mxu0 %v3365
    %v3456 = vpop.f32.mrb[0].mxu0
    %v3457 = vadd.f32 %v3350, %v3456
    %v3458 = vpop.f32.mrb[0].mxu0
    %3459 = vmatprep.mubr.f32.mxu0 0.0
    %3460 = vmatmul.mubr.f32.gmra.mrb[0].mxu0 %v3368
    %v3461 = vpop.f32.mrb[0].mxu0
    %v3462 = vadd.f32 %v3350, %v3461
    %v3463 = vpop.f32.mrb[0].mxu0
    %3464 = vdwg.mxu0
    %3469 = vrot.lane.b32.xlu0 %v3222, 64
    %v3470 = vpop.permute.xlu0 %3469
    %3471 = vrot.lane.b32.xlu0 %v3223, 64
    %v3472 = vpop.permute.xlu0 %3471
    %3473 = vrot.lane.b32.xlu0 %v3224, 64
    %v3474 = vpop.permute.xlu0 %3473
    %3475 = vrot.lane.b32.xlu0 %v3225, 64
    %v3476 = vpop.permute.xlu0 %3475
    %3481 = vrot.lane.b32.xlu0 %v3350, 64
    %v3482 = vpop.permute.xlu0 %3481
    %v3485 = vsel %vm189, %v3340, 0
    %v3488 = vsel %vm189, %v3341, 0
    %v3491 = vsel %vm189, %v3342, 0
    %v3494 = vsel %vm189, %v3343, 0
    %v3497 = vsel %vm189, %v3344, 0
    %v3500 = vsel %vm189, %v3345, 0
    %3502 = vmatprep.subr.mxu0 0.0
    %3503 = vmatpush1.msra.mxu0 %v3470
    %3504 = vmatprep.subr.mxu0 0.0
    %3505 = vmatpush1.msra.mxu0 %v3472
    %3506 = vmatprep.subr.mxu0 0.0
    %3507 = vmatpush1.msra.mxu0 %v3474
    %3508 = vmatprep.subr.mxu0 0.0
    %3509 = vmatpush1.msra.mxu0 %v3476
    %3510 = vmatprep.subr.mxu0 0.0
    %3511 = vmatpush1.msra.mxu0 0.0
    %3512 = vmatprep.subr.mxu0 0.0
    %3513 = vmatpush1.msra.mxu0 0.0
    %3514 = vmatprep.subr.mxu0 0.0
    %3515 = vmatpush1.msra.mxu0 0.0
    %3516 = vmatprep.subr.mxu0 0.0
    %3517 = vmatpush1.msra.mxu0 0.0
    %3518 = vmatprep.subr.mxu0 0.0
    %3519 = vmatpush1.msra.mxu0 0.0
    %3520 = vmatprep.subr.mxu0 0.0
    %3521 = vmatpush1.msra.mxu0 0.0
    %3522 = vmatprep.subr.mxu0 0.0
    %3523 = vmatpush1.msra.mxu0 0.0
    %3524 = vmatprep.subr.mxu0 0.0
    %3525 = vmatpush1.msra.mxu0 0.0
    %3526 = vmatprep.subr.mxu0 0.0
    %3527 = vmatpush1.msra.mxu0 0.0
    %3528 = vmatprep.subr.mxu0 0.0
    %3529 = vmatpush1.msra.mxu0 0.0
    %3530 = vmatprep.subr.mxu0 0.0
    %3531 = vmatpush1.msra.mxu0 0.0
    %3532 = vmatprep.subr.mxu0 0.0
    %3533 = vmatpush1.msra.mxu0 0.0
    %3534 = vmatprep.subr.mxu0 0.0
    %3535 = vmatpush1.msra.mxu0 0.0
    %3536 = vmatprep.subr.mxu0 0.0
    %3537 = vmatpush1.msra.mxu0 0.0
    %3538 = vmatprep.subr.mxu0 0.0
    %3539 = vmatpush1.msra.mxu0 0.0
    %3540 = vmatprep.subr.mxu0 0.0
    %3541 = vmatpush1.msra.mxu0 0.0
    %3542 = vmatprep.subr.mxu0 0.0
    %3543 = vmatpush1.msra.mxu0 0.0
    %3544 = vmatprep.subr.mxu0 0.0
    %3545 = vmatpush1.msra.mxu0 0.0
    %3546 = vmatprep.subr.mxu0 0.0
    %3547 = vmatpush1.msra.mxu0 0.0
    %3548 = vmatprep.subr.mxu0 0.0
    %3549 = vmatpush1.msra.mxu0 0.0
    %3550 = vmatprep.subr.mxu0 0.0
    %3551 = vmatpush1.msra.mxu0 0.0
    %3552 = vmatprep.subr.mxu0 0.0
    %3553 = vmatpush1.msra.mxu0 0.0
    %3554 = vmatprep.subr.mxu0 0.0
    %3555 = vmatpush1.msra.mxu0 0.0
    %3556 = vmatprep.subr.mxu0 0.0
    %3557 = vmatpush1.msra.mxu0 0.0
    %3558 = vmatprep.subr.mxu0 0.0
    %3559 = vmatpush1.msra.mxu0 0.0
    %3560 = vmatprep.subr.mxu0 0.0
    %3561 = vmatpush1.msra.mxu0 0.0
    %3562 = vmatprep.subr.mxu0 0.0
    %3563 = vmatpush1.msra.mxu0 0.0
    %3564 = vmatprep.subr.mxu0 0.0
    %3565 = vmatpush1.msra.mxu0 0.0
    %3566 = vmatprep.mubr.f32.mxu0 0.0
    %3567 = vmatmul.mubr.f32.gmra.mrb[0].mxu0 %v3485
    %v3568 = vpop.f32.mrb[0].mxu0
    %v3569 = vadd.f32 %v3482, %v3568
    %v3570 = vpop.f32.mrb[0].mxu0
    %3571 = vmatprep.mubr.f32.mxu0 0.0
    %3572 = vmatmul.mubr.f32.gmra.mrb[0].mxu0 %v3488
    %v3573 = vpop.f32.mrb[0].mxu0
    %v3574 = vadd.f32 %v3482, %v3573
    %v3575 = vpop.f32.mrb[0].mxu0
    %3576 = vmatprep.mubr.f32.mxu0 0.0
    %3577 = vmatmul.mubr.f32.gmra.mrb[0].mxu0 %v3491
    %v3578 = vpop.f32.mrb[0].mxu0
    %v3579 = vadd.f32 %v3482, %v3578
    %v3580 = vpop.f32.mrb[0].mxu0
    %3581 = vmatprep.mubr.f32.mxu0 0.0
    %3582 = vmatmul.mubr.f32.gmra.mrb[0].mxu0 %v3494
    %v3583 = vpop.f32.mrb[0].mxu0
    %v3584 = vadd.f32 %v3482, %v3583
    %v3585 = vpop.f32.mrb[0].mxu0
    %3586 = vmatprep.mubr.f32.mxu0 0.0
    %3587 = vmatmul.mubr.f32.gmra.mrb[0].mxu0 %v3497
    %v3588 = vpop.f32.mrb[0].mxu0
    %v3589 = vadd.f32 %v3482, %v3588
    %v3590 = vpop.f32.mrb[0].mxu0
    %3591 = vmatprep.mubr.f32.mxu0 0.0
    %3592 = vmatmul.mubr.f32.gmra.mrb[0].mxu0 %v3500
    %v3593 = vpop.f32.mrb[0].mxu0
    %v3594 = vadd.f32 %v3482, %v3593
    %v3595 = vpop.f32.mrb[0].mxu0
    %3596 = vdwg.mxu0
    %v3598 = vsel %vm560, %v3437, 0
    %v3601 = vsel %vm560, %v3442, 0
    %v3604 = vsel %vm560, %v3447, 0
    %v3607 = vsel %vm560, %v3569, 0
    %v3610 = vsel %vm560, %v3574, 0
    %v3613 = vsel %vm560, %v3579, 0
    %3615 = vmatprep.subr.mxu0 0.0
    %3616 = vmatpush1.xpose.msra.mxu0 %v3607
    %3617 = vmatprep.subr.mxu0 0.0
    %3618 = vmatpush1.xpose.msra.mxu0 %v3610
    %3619 = vmatprep.subr.mxu0 0.0
    %3620 = vmatpush1.xpose.msra.mxu0 %v3613
    %3621 = vmatprep.subr.mxu0 0.0
    %3622 = vmatpush1.xpose.msra.mxu0 0.0
    %3623 = vmatprep.subr.mxu0 0.0
    %3624 = vmatpush1.xpose.msra.mxu0 0.0
    %3625 = vmatprep.subr.mxu0 0.0
    %3626 = vmatpush1.xpose.msra.mxu0 0.0
    %3627 = vmatprep.subr.mxu0 0.0
    %3628 = vmatpush1.xpose.msra.mxu0 0.0
    %3629 = vmatprep.subr.mxu0 0.0
    %3630 = vmatpush1.xpose.msra.mxu0 0.0
    %3631 = vmatprep.subr.mxu0 0.0
    %3632 = vmatpush1.xpose.msra.mxu0 0.0
    %3633 = vmatprep.subr.mxu0 0.0
    %3634 = vmatpush1.xpose.msra.mxu0 0.0
    %3635 = vmatprep.subr.mxu0 0.0
    %3636 = vmatpush1.xpose.msra.mxu0 0.0
    %3637 = vmatprep.subr.mxu0 0.0
    %3638 = vmatpush1.xpose.msra.mxu0 0.0
    %3639 = vmatprep.subr.mxu0 0.0
    %3640 = vmatpush1.xpose.msra.mxu0 0.0
    %3641 = vmatprep.subr.mxu0 0.0
    %3642 = vmatpush1.xpose.msra.mxu0 0.0
    %3643 = vmatprep.subr.mxu0 0.0
    %3644 = vmatpush1.xpose.msra.mxu0 0.0
    %3645 = vmatprep.subr.mxu0 0.0
    %3646 = vmatpush1.xpose.msra.mxu0 0.0
    %3647 = vmatprep.subr.mxu0 0.0
    %3648 = vmatpush1.xpose.msra.mxu0 0.0
    %3649 = vmatprep.subr.mxu0 0.0
    %3650 = vmatpush1.xpose.msra.mxu0 0.0
    %3651 = vmatprep.subr.mxu0 0.0
    %3652 = vmatpush1.xpose.msra.mxu0 0.0
    %3653 = vmatprep.subr.mxu0 0.0
    %3654 = vmatpush1.xpose.msra.mxu0 0.0
    %3655 = vmatprep.subr.mxu0 0.0
    %3656 = vmatpush1.xpose.msra.mxu0 0.0
    %3657 = vmatprep.subr.mxu0 0.0
    %3658 = vmatpush1.xpose.msra.mxu0 0.0
    %3659 = vmatprep.subr.mxu0 0.0
    %3660 = vmatpush1.xpose.msra.mxu0 0.0
    %3661 = vmatprep.subr.mxu0 0.0
    %3662 = vmatpush1.xpose.msra.mxu0 0.0
    %3663 = vmatprep.subr.mxu0 0.0
    %3664 = vmatpush1.xpose.msra.mxu0 0.0
    %3665 = vmatprep.subr.mxu0 0.0
    %3666 = vmatpush1.xpose.msra.mxu0 0.0
    %3667 = vmatprep.subr.mxu0 0.0
    %3668 = vmatpush1.xpose.msra.mxu0 0.0
    %3669 = vmatprep.subr.mxu0 0.0
    %3670 = vmatpush1.xpose.msra.mxu0 0.0
    %3671 = vmatprep.subr.mxu0 0.0
    %3672 = vmatpush1.xpose.msra.mxu0 0.0
    %3673 = vmatprep.subr.mxu0 0.0
    %3674 = vmatpush1.xpose.msra.mxu0 0.0
    %3675 = vmatprep.subr.mxu0 0.0
    %3676 = vmatpush1.xpose.msra.mxu0 0.0
    %3677 = vmatprep.subr.mxu0 0.0
    %3678 = vmatpush1.xpose.msra.mxu0 0.0
    %3679 = vmatprep.mubr.f32.mxu0 0.0
    %3680 = vmatmul.mubr.f32.gmra.mrb[0].mxu0 %v3598
    %v3681 = vpop.f32.mrb[0].mxu0
    %v3682 = vadd.f32 0.0, %v3681
    %v3683 = vpop.f32.mrb[0].mxu0
    %3684 = vmatprep.mubr.f32.mxu0 0.0
    %3685 = vmatmul.mubr.f32.gmra.mrb[0].mxu0 %v3601
    %v3686 = vpop.f32.mrb[0].mxu0
    %v3687 = vadd.f32 0.0, %v3686
    %v3688 = vpop.f32.mrb[0].mxu0
    %3689 = vmatprep.mubr.f32.mxu0 0.0
    %3690 = vmatmul.mubr.f32.gmra.mrb[0].mxu0 %v3604
    %v3691 = vpop.f32.mrb[0].mxu0
    %v3692 = vadd.f32 0.0, %v3691
    %v3693 = vpop.f32.mrb[0].mxu0
    %3694 = vdwg.mxu0
    %v3696 = vsel %vm560, %v3452, 0
    %v3699 = vsel %vm560, %v3457, 0
    %v3702 = vsel %vm560, %v3462, 0
    %v3705 = vsel %vm560, %v3584, 0
    %v3708 = vsel %vm560, %v3589, 0
    %v3711 = vsel %vm560, %v3594, 0
    %3713 = vmatprep.subr.mxu0 0.0
    %3714 = vmatpush1.xpose.msra.mxu0 %v3705
    %3715 = vmatprep.subr.mxu0 0.0
    %3716 = vmatpush1.xpose.msra.mxu0 %v3708
    %3717 = vmatprep.subr.mxu0 0.0
    %3718 = vmatpush1.xpose.msra.mxu0 %v3711
    %3719 = vmatprep.subr.mxu0 0.0
    %3720 = vmatpush1.xpose.msra.mxu0 0.0
    %3721 = vmatprep.subr.mxu0 0.0
    %3722 = vmatpush1.xpose.msra.mxu0 0.0
    %3723 = vmatprep.subr.mxu0 0.0
    %3724 = vmatpush1.xpose.msra.mxu0 0.0
    %3725 = vmatprep.subr.mxu0 0.0
    %3726 = vmatpush1.xpose.msra.mxu0 0.0
    %3727 = vmatprep.subr.mxu0 0.0
    %3728 = vmatpush1.xpose.msra.mxu0 0.0
    %3729 = vmatprep.subr.mxu0 0.0
    %3730 = vmatpush1.xpose.msra.mxu0 0.0
    %3731 = vmatprep.subr.mxu0 0.0
    %3732 = vmatpush1.xpose.msra.mxu0 0.0
    %3733 = vmatprep.subr.mxu0 0.0
    %3734 = vmatpush1.xpose.msra.mxu0 0.0
    %3735 = vmatprep.subr.mxu0 0.0
    %3736 = vmatpush1.xpose.msra.mxu0 0.0
    %3737 = vmatprep.subr.mxu0 0.0
    %3738 = vmatpush1.xpose.msra.mxu0 0.0
    %3739 = vmatprep.subr.mxu0 0.0
    %3740 = vmatpush1.xpose.msra.mxu0 0.0
    %3741 = vmatprep.subr.mxu0 0.0
    %3742 = vmatpush1.xpose.msra.mxu0 0.0
    %3743 = vmatprep.subr.mxu0 0.0
    %3744 = vmatpush1.xpose.msra.mxu0 0.0
    %3745 = vmatprep.subr.mxu0 0.0
    %3746 = vmatpush1.xpose.msra.mxu0 0.0
    %3747 = vmatprep.subr.mxu0 0.0
    %3748 = vmatpush1.xpose.msra.mxu0 0.0
    %3749 = vmatprep.subr.mxu0 0.0
    %3750 = vmatpush1.xpose.msra.mxu0 0.0
    %3751 = vmatprep.subr.mxu0 0.0
    %3752 = vmatpush1.xpose.msra.mxu0 0.0
    %3753 = vmatprep.subr.mxu0 0.0
    %3754 = vmatpush1.xpose.msra.mxu0 0.0
    %3755 = vmatprep.subr.mxu0 0.0
    %3756 = vmatpush1.xpose.msra.mxu0 0.0
    %3757 = vmatprep.subr.mxu0 0.0
    %3758 = vmatpush1.xpose.msra.mxu0 0.0
    %3759 = vmatprep.subr.mxu0 0.0
    %3760 = vmatpush1.xpose.msra.mxu0 0.0
    %3761 = vmatprep.subr.mxu0 0.0
    %3762 = vmatpush1.xpose.msra.mxu0 0.0
    %3763 = vmatprep.subr.mxu0 0.0
    %3764 = vmatpush1.xpose.msra.mxu0 0.0
    %3765 = vmatprep.subr.mxu0 0.0
    %3766 = vmatpush1.xpose.msra.mxu0 0.0
    %3767 = vmatprep.subr.mxu0 0.0
    %3768 = vmatpush1.xpose.msra.mxu0 0.0
    %3769 = vmatprep.subr.mxu0 0.0
    %3770 = vmatpush1.xpose.msra.mxu0 0.0
    %3771 = vmatprep.subr.mxu0 0.0
    %3772 = vmatpush1.xpose.msra.mxu0 0.0
    %3773 = vmatprep.subr.mxu0 0.0
    %3774 = vmatpush1.xpose.msra.mxu0 0.0
    %3775 = vmatprep.subr.mxu0 0.0
    %3776 = vmatpush1.xpose.msra.mxu0 0.0
    %3777 = vmatprep.mubr.f32.mxu0 0.0
    %3778 = vmatmul.mubr.f32.gmra.mrb[0].mxu0 %v3696
    %v3779 = vpop.f32.mrb[0].mxu0
    %v3780 = vadd.f32 0.0, %v3779
    %v3781 = vpop.f32.mrb[0].mxu0
    %3782 = vmatprep.mubr.f32.mxu0 0.0
    %3783 = vmatmul.mubr.f32.gmra.mrb[0].mxu0 %v3699
    %v3784 = vpop.f32.mrb[0].mxu0
    %v3785 = vadd.f32 0.0, %v3784
    %v3786 = vpop.f32.mrb[0].mxu0
    %3787 = vmatprep.mubr.f32.mxu0 0.0
    %3788 = vmatmul.mubr.f32.gmra.mrb[0].mxu0 %v3702
    %v3789 = vpop.f32.mrb[0].mxu0
    %v3790 = vadd.f32 0.0, %v3789
    %v3791 = vpop.f32.mrb[0].mxu0
    %3792 = vdwg.mxu0
    %v3793 = vmul.f32 %v3682, 0.35355338
    %v3794 = vmul.f32 %v3687, 0.35355338
    %v3795 = vmul.f32 %v3692, 0.35355338
    %v3796 = vmul.f32 %v3780, 0.35355338
    %v3797 = vmul.f32 %v3785, 0.35355338
    %v3798 = vmul.f32 %v3790, 0.35355338
    %v3799 = vadd.f32 %v3793, %v767
    %v3800 = vadd.f32 %v3794, %v767
    %v3801 = vadd.f32 %v3795, %v767
    %v3802 = vadd.f32 %v3796, %v767
    %v3803 = vadd.f32 %v3797, %v767
    %v3804 = vadd.f32 %v3798, %v767
    %v3805 = vsel %vm775, %v3799, -inf
    %3806 = vmax.xlane.f32.xlu0 %v3805
    %v3807 = vpop.xlane.xlu0 %3806
    %v3808 = vsel %vm775, %v3800, -inf
    %3809 = vmax.xlane.f32.xlu0 %v3808
    %v3810 = vpop.xlane.xlu0 %3809
    %v3811 = vsel %vm775, %v3801, -inf
    %3812 = vmax.xlane.f32.xlu0 %v3811
    %v3813 = vpop.xlane.xlu0 %3812
    %v3814 = vsel %vm775, %v3802, -inf
    %3815 = vmax.xlane.f32.xlu0 %v3814
    %v3816 = vpop.xlane.xlu0 %3815
    %v3817 = vsel %vm775, %v3803, -inf
    %3818 = vmax.xlane.f32.xlu0 %v3817
    %v3819 = vpop.xlane.xlu0 %3818
    %v3820 = vsel %vm775, %v3804, -inf
    %3821 = vmax.xlane.f32.xlu0 %v3820
    %v3822 = vpop.xlane.xlu0 %3821
    %v3823 = vsub.f32 %v3799, %v3807
    %v3824 = vsub.f32 %v3800, %v3810
    %v3825 = vsub.f32 %v3801, %v3813
    %v3826 = vsub.f32 %v3802, %v3816
    %v3827 = vsub.f32 %v3803, %v3819
    %v3828 = vsub.f32 %v3804, %v3822
    %v3829 = vmul.f32 %v3823, 1.442695
    %v3830 = vpow.pop %v3829
    %v3831 = vmul.f32 %v3824, 1.442695
    %v3832 = vpow.pop %v3831
    %v3833 = vmul.f32 %v3825, 1.442695
    %v3834 = vpow.pop %v3833
    %v3835 = vmul.f32 %v3826, 1.442695
    %v3836 = vpow.pop %v3835
    %v3837 = vmul.f32 %v3827, 1.442695
    %v3838 = vpow.pop %v3837
    %v3839 = vmul.f32 %v3828, 1.442695
    %v3840 = vpow.pop %v3839
    %v3841 = vsel %vm775, %v3830, 0.0
    %3842 = vadd.xlane.f32.xlu0 %v3841
    %v3843 = vpop.xlane.xlu0 %3842
    %v3844 = vsel %vm775, %v3832, 0.0
    %3845 = vadd.xlane.f32.xlu0 %v3844
    %v3846 = vpop.xlane.xlu0 %3845
    %v3847 = vsel %vm775, %v3834, 0.0
    %3848 = vadd.xlane.f32.xlu0 %v3847
    %v3849 = vpop.xlane.xlu0 %3848
    %v3850 = vsel %vm775, %v3836, 0.0
    %3851 = vadd.xlane.f32.xlu0 %v3850
    %v3852 = vpop.xlane.xlu0 %3851
    %v3853 = vsel %vm775, %v3838, 0.0
    %3854 = vadd.xlane.f32.xlu0 %v3853
    %v3855 = vpop.xlane.xlu0 %3854
    %v3856 = vsel %vm775, %v3840, 0.0
    %3857 = vadd.xlane.f32.xlu0 %v3856
    %v3858 = vpop.xlane.xlu0 %3857
    %v3859 = vrcp.pop %v3843
    %v3860 = vrcp.pop %v3846
    %v3861 = vrcp.pop %v3849
    %v3862 = vrcp.pop %v3852
    %v3863 = vrcp.pop %v3855
    %v3864 = vrcp.pop %v3858
    %v3865 = vmul.f32 %v3830, %v3859
    %v3866 = vmul.f32 %v3832, %v3860
    %v3867 = vmul.f32 %v3834, %v3861
    %v3868 = vmul.f32 %v3836, %v3862
    %v3869 = vmul.f32 %v3838, %v3863
    %v3870 = vmul.f32 %v3840, %v3864
    %3871 = vrot.lane.b32.xlu0 %v3437, 96
    %v3872 = vpop.permute.xlu0 %3871
    %3873 = vrot.lane.b32.xlu0 %v3442, 96
    %v3874 = vpop.permute.xlu0 %3873
    %3875 = vrot.lane.b32.xlu0 %v3447, 96
    %v3876 = vpop.permute.xlu0 %3875
    %v3881 = vsel %vm775, %v3865, 0
    %v3884 = vsel %vm775, %v3866, 0
    %v3887 = vsel %vm775, %v3867, 0
    %3889 = vmatprep.subr.mxu0 0.0
    %3890 = vmatpush1.msra.mxu0 %v3872
    %3891 = vmatprep.subr.mxu0 0.0
    %3892 = vmatpush1.msra.mxu0 %v3874
    %3893 = vmatprep.subr.mxu0 0.0
    %3894 = vmatpush1.msra.mxu0 %v3876
    %3895 = vmatprep.subr.mxu0 0.0
    %3896 = vmatpush1.msra.mxu0 0.0
    %3897 = vmatprep.subr.mxu0 0.0
    %3898 = vmatpush1.msra.mxu0 0.0
    %3899 = vmatprep.subr.mxu0 0.0
    %3900 = vmatpush1.msra.mxu0 0.0
    %3901 = vmatprep.subr.mxu0 0.0
    %3902 = vmatpush1.msra.mxu0 0.0
    %3903 = vmatprep.subr.mxu0 0.0
    %3904 = vmatpush1.msra.mxu0 0.0
    %3905 = vmatprep.subr.mxu0 0.0
    %3906 = vmatpush1.msra.mxu0 0.0
    %3907 = vmatprep.subr.mxu0 0.0
    %3908 = vmatpush1.msra.mxu0 0.0
    %3909 = vmatprep.subr.mxu0 0.0
    %3910 = vmatpush1.msra.mxu0 0.0
    %3911 = vmatprep.subr.mxu0 0.0
    %3912 = vmatpush1.msra.mxu0 0.0
    %3913 = vmatprep.subr.mxu0 0.0
    %3914 = vmatpush1.msra.mxu0 0.0
    %3915 = vmatprep.subr.mxu0 0.0
    %3916 = vmatpush1.msra.mxu0 0.0
    %3917 = vmatprep.subr.mxu0 0.0
    %3918 = vmatpush1.msra.mxu0 0.0
    %3919 = vmatprep.subr.mxu0 0.0
    %3920 = vmatpush1.msra.mxu0 0.0
    %3921 = vmatprep.subr.mxu0 0.0
    %3922 = vmatpush1.msra.mxu0 0.0
    %3923 = vmatprep.subr.mxu0 0.0
    %3924 = vmatpush1.msra.mxu0 0.0
    %3925 = vmatprep.subr.mxu0 0.0
    %3926 = vmatpush1.msra.mxu0 0.0
    %3927 = vmatprep.subr.mxu0 0.0
    %3928 = vmatpush1.msra.mxu0 0.0
    %3929 = vmatprep.subr.mxu0 0.0
    %3930 = vmatpush1.msra.mxu0 0.0
    %3931 = vmatprep.subr.mxu0 0.0
    %3932 = vmatpush1.msra.mxu0 0.0
    %3933 = vmatprep.subr.mxu0 0.0
    %3934 = vmatpush1.msra.mxu0 0.0
    %3935 = vmatprep.subr.mxu0 0.0
    %3936 = vmatpush1.msra.mxu0 0.0
    %3937 = vmatprep.subr.mxu0 0.0
    %3938 = vmatpush1.msra.mxu0 0.0
    %3939 = vmatprep.subr.mxu0 0.0
    %3940 = vmatpush1.msra.mxu0 0.0
    %3941 = vmatprep.subr.mxu0 0.0
    %3942 = vmatpush1.msra.mxu0 0.0
    %3943 = vmatprep.subr.mxu0 0.0
    %3944 = vmatpush1.msra.mxu0 0.0
    %3945 = vmatprep.subr.mxu0 0.0
    %3946 = vmatpush1.msra.mxu0 0.0
    %3947 = vmatprep.subr.mxu0 0.0
    %3948 = vmatpush1.msra.mxu0 0.0
    %3949 = vmatprep.subr.mxu0 0.0
    %3950 = vmatpush1.msra.mxu0 0.0
    %3951 = vmatprep.subr.mxu0 0.0
    %3952 = vmatpush1.msra.mxu0 0.0
    %3953 = vmatprep.mubr.f32.mxu0 0.0
    %3954 = vmatmul.mubr.f32.gmra.mrb[0].mxu0 %v3881
    %v3955 = vpop.f32.mrb[0].mxu0
    %v3956 = vadd.f32 0.0, %v3955
    %v3957 = vpop.f32.mrb[0].mxu0
    %3958 = vmatprep.mubr.f32.mxu0 0.0
    %3959 = vmatmul.mubr.f32.gmra.mrb[0].mxu0 %v3884
    %v3960 = vpop.f32.mrb[0].mxu0
    %v3961 = vadd.f32 0.0, %v3960
    %v3962 = vpop.f32.mrb[0].mxu0
    %3963 = vmatprep.mubr.f32.mxu0 0.0
    %3964 = vmatmul.mubr.f32.gmra.mrb[0].mxu0 %v3887
    %v3965 = vpop.f32.mrb[0].mxu0
    %v3966 = vadd.f32 0.0, %v3965
    %v3967 = vpop.f32.mrb[0].mxu0
    %3968 = vdwg.mxu0
    %3969 = vrot.lane.b32.xlu0 %v3452, 96
    %v3970 = vpop.permute.xlu0 %3969
    %3971 = vrot.lane.b32.xlu0 %v3457, 96
    %v3972 = vpop.permute.xlu0 %3971
    %3973 = vrot.lane.b32.xlu0 %v3462, 96
    %v3974 = vpop.permute.xlu0 %3973
    %v3979 = vsel %vm775, %v3868, 0
    %v3982 = vsel %vm775, %v3869, 0
    %v3985 = vsel %vm775, %v3870, 0
    %3987 = vmatprep.subr.mxu0 0.0
    %3988 = vmatpush1.msra.mxu0 %v3970
    %3989 = vmatprep.subr.mxu0 0.0
    %3990 = vmatpush1.msra.mxu0 %v3972
    %3991 = vmatprep.subr.mxu0 0.0
    %3992 = vmatpush1.msra.mxu0 %v3974
    %3993 = vmatprep.subr.mxu0 0.0
    %3994 = vmatpush1.msra.mxu0 0.0
    %3995 = vmatprep.subr.mxu0 0.0
    %3996 = vmatpush1.msra.mxu0 0.0
    %3997 = vmatprep.subr.mxu0 0.0
    %3998 = vmatpush1.msra.mxu0 0.0
    %3999 = vmatprep.subr.mxu0 0.0
    %4000 = vmatpush1.msra.mxu0 0.0
    %4001 = vmatprep.subr.mxu0 0.0
    %4002 = vmatpush1.msra.mxu0 0.0
    %4003 = vmatprep.subr.mxu0 0.0
    %4004 = vmatpush1.msra.mxu0 0.0
    %4005 = vmatprep.subr.mxu0 0.0
    %4006 = vmatpush1.msra.mxu0 0.0
    %4007 = vmatprep.subr.mxu0 0.0
    %4008 = vmatpush1.msra.mxu0 0.0
    %4009 = vmatprep.subr.mxu0 0.0
    %4010 = vmatpush1.msra.mxu0 0.0
    %4011 = vmatprep.subr.mxu0 0.0
    %4012 = vmatpush1.msra.mxu0 0.0
    %4013 = vmatprep.subr.mxu0 0.0
    %4014 = vmatpush1.msra.mxu0 0.0
    %4015 = vmatprep.subr.mxu0 0.0
    %4016 = vmatpush1.msra.mxu0 0.0
    %4017 = vmatprep.subr.mxu0 0.0
    %4018 = vmatpush1.msra.mxu0 0.0
    %4019 = vmatprep.subr.mxu0 0.0
    %4020 = vmatpush1.msra.mxu0 0.0
    %4021 = vmatprep.subr.mxu0 0.0
    %4022 = vmatpush1.msra.mxu0 0.0
    %4023 = vmatprep.subr.mxu0 0.0
    %4024 = vmatpush1.msra.mxu0 0.0
    %4025 = vmatprep.subr.mxu0 0.0
    %4026 = vmatpush1.msra.mxu0 0.0
    %4027 = vmatprep.subr.mxu0 0.0
    %4028 = vmatpush1.msra.mxu0 0.0
    %4029 = vmatprep.subr.mxu0 0.0
    %4030 = vmatpush1.msra.mxu0 0.0
    %4031 = vmatprep.subr.mxu0 0.0
    %4032 = vmatpush1.msra.mxu0 0.0
    %4033 = vmatprep.subr.mxu0 0.0
    %4034 = vmatpush1.msra.mxu0 0.0
    %4035 = vmatprep.subr.mxu0 0.0
    %4036 = vmatpush1.msra.mxu0 0.0
    %4037 = vmatprep.subr.mxu0 0.0
    %4038 = vmatpush1.msra.mxu0 0.0
    %4039 = vmatprep.subr.mxu0 0.0
    %4040 = vmatpush1.msra.mxu0 0.0
    %4041 = vmatprep.subr.mxu0 0.0
    %4042 = vmatpush1.msra.mxu0 0.0
    %4043 = vmatprep.subr.mxu0 0.0
    %4044 = vmatpush1.msra.mxu0 0.0
    %4045 = vmatprep.subr.mxu0 0.0
    %4046 = vmatpush1.msra.mxu0 0.0
    %4047 = vmatprep.subr.mxu0 0.0
    %4048 = vmatpush1.msra.mxu0 0.0
    %4049 = vmatprep.subr.mxu0 0.0
    %4050 = vmatpush1.msra.mxu0 0.0
    %4051 = vmatprep.mubr.f32.mxu0 0.0
    %4052 = vmatmul.mubr.f32.gmra.mrb[0].mxu0 %v3979
    %v4053 = vpop.f32.mrb[0].mxu0
    %v4054 = vadd.f32 0.0, %v4053
    %v4055 = vpop.f32.mrb[0].mxu0
    %4056 = vmatprep.mubr.f32.mxu0 0.0
    %4057 = vmatmul.mubr.f32.gmra.mrb[0].mxu0 %v3982
    %v4058 = vpop.f32.mrb[0].mxu0
    %v4059 = vadd.f32 0.0, %v4058
    %v4060 = vpop.f32.mrb[0].mxu0
    %4061 = vmatprep.mubr.f32.mxu0 0.0
    %4062 = vmatmul.mubr.f32.gmra.mrb[0].mxu0 %v3985
    %v4063 = vpop.f32.mrb[0].mxu0
    %v4064 = vadd.f32 0.0, %v4063
    %v4065 = vpop.f32.mrb[0].mxu0
    %4066 = vdwg.mxu0
    %4067 = vrot.lane.b32.xlu0 %v3437, 120
    %v4068 = vpop.permute.xlu0 %4067
    %4069 = vrot.lane.b32.xlu0 %v3442, 120
    %v4070 = vpop.permute.xlu0 %4069
    %4071 = vrot.lane.b32.xlu0 %v3447, 120
    %v4072 = vpop.permute.xlu0 %4071
    %4073 = vrot.lane.b32.xlu0 %v3569, 120
    %v4074 = vpop.permute.xlu0 %4073
    %4075 = vrot.lane.b32.xlu0 %v3574, 120
    %v4076 = vpop.permute.xlu0 %4075
    %4077 = vrot.lane.b32.xlu0 %v3579, 120
    %v4078 = vpop.permute.xlu0 %4077
    %v4079 = vsel %vm560, %v4068, 0
    %v4081 = vsel %vm560, %v4070, 0
    %v4083 = vsel %vm560, %v4072, 0
    %v4085 = vsel %vm560, %v4074, 0
    %v4087 = vsel %vm560, %v4076, 0
    %v4089 = vsel %vm560, %v4078, 0
    %4091 = vmatprep.subr.mxu0 0.0
    %4092 = vmatpush1.xpose.msra.mxu0 %v4085
    %4093 = vmatprep.subr.mxu0 0.0
    %4094 = vmatpush1.xpose.msra.mxu0 %v4087
    %4095 = vmatprep.subr.mxu0 0.0
    %4096 = vmatpush1.xpose.msra.mxu0 %v4089
    %4097 = vmatprep.subr.mxu0 0.0
    %4098 = vmatpush1.xpose.msra.mxu0 0.0
    %4099 = vmatprep.subr.mxu0 0.0
    %4100 = vmatpush1.xpose.msra.mxu0 0.0
    %4101 = vmatprep.subr.mxu0 0.0
    %4102 = vmatpush1.xpose.msra.mxu0 0.0
    %4103 = vmatprep.subr.mxu0 0.0
    %4104 = vmatpush1.xpose.msra.mxu0 0.0
    %4105 = vmatprep.subr.mxu0 0.0
    %4106 = vmatpush1.xpose.msra.mxu0 0.0
    %4107 = vmatprep.subr.mxu0 0.0
    %4108 = vmatpush1.xpose.msra.mxu0 0.0
    %4109 = vmatprep.subr.mxu0 0.0
    %4110 = vmatpush1.xpose.msra.mxu0 0.0
    %4111 = vmatprep.subr.mxu0 0.0
    %4112 = vmatpush1.xpose.msra.mxu0 0.0
    %4113 = vmatprep.subr.mxu0 0.0
    %4114 = vmatpush1.xpose.msra.mxu0 0.0
    %4115 = vmatprep.subr.mxu0 0.0
    %4116 = vmatpush1.xpose.msra.mxu0 0.0
    %4117 = vmatprep.subr.mxu0 0.0
    %4118 = vmatpush1.xpose.msra.mxu0 0.0
    %4119 = vmatprep.subr.mxu0 0.0
    %4120 = vmatpush1.xpose.msra.mxu0 0.0
    %4121 = vmatprep.subr.mxu0 0.0
    %4122 = vmatpush1.xpose.msra.mxu0 0.0
    %4123 = vmatprep.subr.mxu0 0.0
    %4124 = vmatpush1.xpose.msra.mxu0 0.0
    %4125 = vmatprep.subr.mxu0 0.0
    %4126 = vmatpush1.xpose.msra.mxu0 0.0
    %4127 = vmatprep.subr.mxu0 0.0
    %4128 = vmatpush1.xpose.msra.mxu0 0.0
    %4129 = vmatprep.subr.mxu0 0.0
    %4130 = vmatpush1.xpose.msra.mxu0 0.0
    %4131 = vmatprep.subr.mxu0 0.0
    %4132 = vmatpush1.xpose.msra.mxu0 0.0
    %4133 = vmatprep.subr.mxu0 0.0
    %4134 = vmatpush1.xpose.msra.mxu0 0.0
    %4135 = vmatprep.subr.mxu0 0.0
    %4136 = vmatpush1.xpose.msra.mxu0 0.0
    %4137 = vmatprep.subr.mxu0 0.0
    %4138 = vmatpush1.xpose.msra.mxu0 0.0
    %4139 = vmatprep.subr.mxu0 0.0
    %4140 = vmatpush1.xpose.msra.mxu0 0.0
    %4141 = vmatprep.subr.mxu0 0.0
    %4142 = vmatpush1.xpose.msra.mxu0 0.0
    %4143 = vmatprep.subr.mxu0 0.0
    %4144 = vmatpush1.xpose.msra.mxu0 0.0
    %4145 = vmatprep.subr.mxu0 0.0
    %4146 = vmatpush1.xpose.msra.mxu0 0.0
    %4147 = vmatprep.subr.mxu0 0.0
    %4148 = vmatpush1.xpose.msra.mxu0 0.0
    %4149 = vmatprep.subr.mxu0 0.0
    %4150 = vmatpush1.xpose.msra.mxu0 0.0
    %4151 = vmatprep.subr.mxu0 0.0
    %4152 = vmatpush1.xpose.msra.mxu0 0.0
    %4153 = vmatprep.subr.mxu0 0.0
    %4154 = vmatpush1.xpose.msra.mxu0 0.0
    %4155 = vmatprep.mubr.f32.mxu0 0.0
    %4156 = vmatmul.mubr.f32.gmra.mrb[0].mxu0 %v4079
    %v4157 = vpop.f32.mrb[0].mxu0
    %v4158 = vadd.f32 0.0, %v4157
    %v4159 = vpop.f32.mrb[0].mxu0
    %4160 = vmatprep.mubr.f32.mxu0 0.0
    %4161 = vmatmul.mubr.f32.gmra.mrb[0].mxu0 %v4081
    %v4162 = vpop.f32.mrb[0].mxu0
    %v4163 = vadd.f32 0.0, %v4162
    %v4164 = vpop.f32.mrb[0].mxu0
    %4165 = vmatprep.mubr.f32.mxu0 0.0
    %4166 = vmatmul.mubr.f32.gmra.mrb[0].mxu0 %v4083
    %v4167 = vpop.f32.mrb[0].mxu0
    %v4168 = vadd.f32 0.0, %v4167
    %v4169 = vpop.f32.mrb[0].mxu0
    %4170 = vdwg.mxu0
    %4171 = vrot.lane.b32.xlu0 %v3452, 120
    %v4172 = vpop.permute.xlu0 %4171
    %4173 = vrot.lane.b32.xlu0 %v3457, 120
    %v4174 = vpop.permute.xlu0 %4173
    %4175 = vrot.lane.b32.xlu0 %v3462, 120
    %v4176 = vpop.permute.xlu0 %4175
    %4177 = vrot.lane.b32.xlu0 %v3584, 120
    %v4178 = vpop.permute.xlu0 %4177
    %4179 = vrot.lane.b32.xlu0 %v3589, 120
    %v4180 = vpop.permute.xlu0 %4179
    %4181 = vrot.lane.b32.xlu0 %v3594, 120
    %v4182 = vpop.permute.xlu0 %4181
    %v4183 = vsel %vm560, %v4172, 0
    %v4185 = vsel %vm560, %v4174, 0
    %v4187 = vsel %vm560, %v4176, 0
    %v4189 = vsel %vm560, %v4178, 0
    %v4191 = vsel %vm560, %v4180, 0
    %v4193 = vsel %vm560, %v4182, 0
    %4195 = vmatprep.subr.mxu0 0.0
    %4196 = vmatpush1.xpose.msra.mxu0 %v4189
    %4197 = vmatprep.subr.mxu0 0.0
    %4198 = vmatpush1.xpose.msra.mxu0 %v4191
    %4199 = vmatprep.subr.mxu0 0.0
    %4200 = vmatpush1.xpose.msra.mxu0 %v4193
    %4201 = vmatprep.subr.mxu0 0.0
    %4202 = vmatpush1.xpose.msra.mxu0 0.0
    %4203 = vmatprep.subr.mxu0 0.0
    %4204 = vmatpush1.xpose.msra.mxu0 0.0
    %4205 = vmatprep.subr.mxu0 0.0
    %4206 = vmatpush1.xpose.msra.mxu0 0.0
    %4207 = vmatprep.subr.mxu0 0.0
    %4208 = vmatpush1.xpose.msra.mxu0 0.0
    %4209 = vmatprep.subr.mxu0 0.0
    %4210 = vmatpush1.xpose.msra.mxu0 0.0
    %4211 = vmatprep.subr.mxu0 0.0
    %4212 = vmatpush1.xpose.msra.mxu0 0.0
    %4213 = vmatprep.subr.mxu0 0.0
    %4214 = vmatpush1.xpose.msra.mxu0 0.0
    %4215 = vmatprep.subr.mxu0 0.0
    %4216 = vmatpush1.xpose.msra.mxu0 0.0
    %4217 = vmatprep.subr.mxu0 0.0
    %4218 = vmatpush1.xpose.msra.mxu0 0.0
    %4219 = vmatprep.subr.mxu0 0.0
    %4220 = vmatpush1.xpose.msra.mxu0 0.0
    %4221 = vmatprep.subr.mxu0 0.0
    %4222 = vmatpush1.xpose.msra.mxu0 0.0
    %4223 = vmatprep.subr.mxu0 0.0
    %4224 = vmatpush1.xpose.msra.mxu0 0.0
    %4225 = vmatprep.subr.mxu0 0.0
    %4226 = vmatpush1.xpose.msra.mxu0 0.0
    %4227 = vmatprep.subr.mxu0 0.0
    %4228 = vmatpush1.xpose.msra.mxu0 0.0
    %4229 = vmatprep.subr.mxu0 0.0
    %4230 = vmatpush1.xpose.msra.mxu0 0.0
    %4231 = vmatprep.subr.mxu0 0.0
    %4232 = vmatpush1.xpose.msra.mxu0 0.0
    %4233 = vmatprep.subr.mxu0 0.0
    %4234 = vmatpush1.xpose.msra.mxu0 0.0
    %4235 = vmatprep.subr.mxu0 0.0
    %4236 = vmatpush1.xpose.msra.mxu0 0.0
    %4237 = vmatprep.subr.mxu0 0.0
    %4238 = vmatpush1.xpose.msra.mxu0 0.0
    %4239 = vmatprep.subr.mxu0 0.0
    %4240 = vmatpush1.xpose.msra.mxu0 0.0
    %4241 = vmatprep.subr.mxu0 0.0
    %4242 = vmatpush1.xpose.msra.mxu0 0.0
    %4243 = vmatprep.subr.mxu0 0.0
    %4244 = vmatpush1.xpose.msra.mxu0 0.0
    %4245 = vmatprep.subr.mxu0 0.0
    %4246 = vmatpush1.xpose.msra.mxu0 0.0
    %4247 = vmatprep.subr.mxu0 0.0
    %4248 = vmatpush1.xpose.msra.mxu0 0.0
    %4249 = vmatprep.subr.mxu0 0.0
    %4250 = vmatpush1.xpose.msra.mxu0 0.0
    %4251 = vmatprep.subr.mxu0 0.0
    %4252 = vmatpush1.xpose.msra.mxu0 0.0
    %4253 = vmatprep.subr.mxu0 0.0
    %4254 = vmatpush1.xpose.msra.mxu0 0.0
    %4255 = vmatprep.subr.mxu0 0.0
    %4256 = vmatpush1.xpose.msra.mxu0 0.0
    %4257 = vmatprep.subr.mxu0 0.0
    %4258 = vmatpush1.xpose.msra.mxu0 0.0
    %4259 = vmatprep.mubr.f32.mxu0 0.0
    %4260 = vmatmul.mubr.f32.gmra.mrb[0].mxu0 %v4183
    %v4261 = vpop.f32.mrb[0].mxu0
    %v4262 = vadd.f32 0.0, %v4261
    %v4263 = vpop.f32.mrb[0].mxu0
    %4264 = vmatprep.mubr.f32.mxu0 0.0
    %4265 = vmatmul.mubr.f32.gmra.mrb[0].mxu0 %v4185
    %v4266 = vpop.f32.mrb[0].mxu0
    %v4267 = vadd.f32 0.0, %v4266
    %v4268 = vpop.f32.mrb[0].mxu0
    %4269 = vmatprep.mubr.f32.mxu0 0.0
    %4270 = vmatmul.mubr.f32.gmra.mrb[0].mxu0 %v4187
    %v4271 = vpop.f32.mrb[0].mxu0
    %v4272 = vadd.f32 0.0, %v4271
    %v4273 = vpop.f32.mrb[0].mxu0
    %4274 = vdwg.mxu0
    %v4275 = vmul.f32 %v4158, 0.35355338
    %v4276 = vmul.f32 %v4163, 0.35355338
    %v4277 = vmul.f32 %v4168, 0.35355338
    %v4278 = vmul.f32 %v4262, 0.35355338
    %v4279 = vmul.f32 %v4267, 0.35355338
    %v4280 = vmul.f32 %v4272, 0.35355338
    %v4281 = vadd.f32 %v4275, %v767
    %v4282 = vadd.f32 %v4276, %v767
    %v4283 = vadd.f32 %v4277, %v767
    %v4284 = vadd.f32 %v4278, %v767
    %v4285 = vadd.f32 %v4279, %v767
    %v4286 = vadd.f32 %v4280, %v767
    %v4287 = vsel %vm775, %v4281, -inf
    %4288 = vmax.xlane.f32.xlu0 %v4287
    %v4289 = vpop.xlane.xlu0 %4288
    %v4290 = vsel %vm775, %v4282, -inf
    %4291 = vmax.xlane.f32.xlu0 %v4290
    %v4292 = vpop.xlane.xlu0 %4291
    %v4293 = vsel %vm775, %v4283, -inf
    %4294 = vmax.xlane.f32.xlu0 %v4293
    %v4295 = vpop.xlane.xlu0 %4294
    %v4296 = vsel %vm775, %v4284, -inf
    %4297 = vmax.xlane.f32.xlu0 %v4296
    %v4298 = vpop.xlane.xlu0 %4297
    %v4299 = vsel %vm775, %v4285, -inf
    %4300 = vmax.xlane.f32.xlu0 %v4299
    %v4301 = vpop.xlane.xlu0 %4300
    %v4302 = vsel %vm775, %v4286, -inf
    %4303 = vmax.xlane.f32.xlu0 %v4302
    %v4304 = vpop.xlane.xlu0 %4303
    %v4305 = vsub.f32 %v4281, %v4289
    %v4306 = vsub.f32 %v4282, %v4292
    %v4307 = vsub.f32 %v4283, %v4295
    %v4308 = vsub.f32 %v4284, %v4298
    %v4309 = vsub.f32 %v4285, %v4301
    %v4310 = vsub.f32 %v4286, %v4304
    %v4311 = vmul.f32 %v4305, 1.442695
    %v4312 = vpow.pop %v4311
    %v4313 = vmul.f32 %v4306, 1.442695
    %v4314 = vpow.pop %v4313
    %v4315 = vmul.f32 %v4307, 1.442695
    %v4316 = vpow.pop %v4315
    %v4317 = vmul.f32 %v4308, 1.442695
    %v4318 = vpow.pop %v4317
    %v4319 = vmul.f32 %v4309, 1.442695
    %v4320 = vpow.pop %v4319
    %v4321 = vmul.f32 %v4310, 1.442695
    %v4322 = vpow.pop %v4321
    %v4323 = vsel %vm775, %v4312, 0.0
    %4324 = vadd.xlane.f32.xlu0 %v4323
    %v4325 = vpop.xlane.xlu0 %4324
    %v4326 = vsel %vm775, %v4314, 0.0
    %4327 = vadd.xlane.f32.xlu0 %v4326
    %v4328 = vpop.xlane.xlu0 %4327
    %v4329 = vsel %vm775, %v4316, 0.0
    %4330 = vadd.xlane.f32.xlu0 %v4329
    %v4331 = vpop.xlane.xlu0 %4330
    %v4332 = vsel %vm775, %v4318, 0.0
    %4333 = vadd.xlane.f32.xlu0 %v4332
    %v4334 = vpop.xlane.xlu0 %4333
    %v4335 = vsel %vm775, %v4320, 0.0
    %4336 = vadd.xlane.f32.xlu0 %v4335
    %v4337 = vpop.xlane.xlu0 %4336
    %v4338 = vsel %vm775, %v4322, 0.0
    %4339 = vadd.xlane.f32.xlu0 %v4338
    %v4340 = vpop.xlane.xlu0 %4339
    %v4341 = vrcp.pop %v4325
    %v4342 = vrcp.pop %v4328
    %v4343 = vrcp.pop %v4331
    %v4344 = vrcp.pop %v4334
    %v4345 = vrcp.pop %v4337
    %v4346 = vrcp.pop %v4340
    %v4347 = vmul.f32 %v4312, %v4341
    %v4348 = vmul.f32 %v4314, %v4342
    %v4349 = vmul.f32 %v4316, %v4343
    %v4350 = vmul.f32 %v4318, %v4344
    %v4351 = vmul.f32 %v4320, %v4345
    %v4352 = vmul.f32 %v4322, %v4346
    %4353 = vrot.lane.b32.xlu0 %v3437, 88
    %v4354 = vpop.permute.xlu0 %4353
    %4355 = vrot.lane.b32.xlu0 %v3442, 88
    %v4356 = vpop.permute.xlu0 %4355
    %4357 = vrot.lane.b32.xlu0 %v3447, 88
    %v4358 = vpop.permute.xlu0 %4357
    %v4363 = vsel %vm775, %v4347, 0
    %v4366 = vsel %vm775, %v4348, 0
    %v4369 = vsel %vm775, %v4349, 0
    %4371 = vmatprep.subr.mxu0 0.0
    %4372 = vmatpush1.msra.mxu0 %v4354
    %4373 = vmatprep.subr.mxu0 0.0
    %4374 = vmatpush1.msra.mxu0 %v4356
    %4375 = vmatprep.subr.mxu0 0.0
    %4376 = vmatpush1.msra.mxu0 %v4358
    %4377 = vmatprep.subr.mxu0 0.0
    %4378 = vmatpush1.msra.mxu0 0.0
    %4379 = vmatprep.subr.mxu0 0.0
    %4380 = vmatpush1.msra.mxu0 0.0
    %4381 = vmatprep.subr.mxu0 0.0
    %4382 = vmatpush1.msra.mxu0 0.0
    %4383 = vmatprep.subr.mxu0 0.0
    %4384 = vmatpush1.msra.mxu0 0.0
    %4385 = vmatprep.subr.mxu0 0.0
    %4386 = vmatpush1.msra.mxu0 0.0
    %4387 = vmatprep.subr.mxu0 0.0
    %4388 = vmatpush1.msra.mxu0 0.0
    %4389 = vmatprep.subr.mxu0 0.0
    %4390 = vmatpush1.msra.mxu0 0.0
    %4391 = vmatprep.subr.mxu0 0.0
    %4392 = vmatpush1.msra.mxu0 0.0
    %4393 = vmatprep.subr.mxu0 0.0
    %4394 = vmatpush1.msra.mxu0 0.0
    %4395 = vmatprep.subr.mxu0 0.0
    %4396 = vmatpush1.msra.mxu0 0.0
    %4397 = vmatprep.subr.mxu0 0.0
    %4398 = vmatpush1.msra.mxu0 0.0
    %4399 = vmatprep.subr.mxu0 0.0
    %4400 = vmatpush1.msra.mxu0 0.0
    %4401 = vmatprep.subr.mxu0 0.0
    %4402 = vmatpush1.msra.mxu0 0.0
    %4403 = vmatprep.subr.mxu0 0.0
    %4404 = vmatpush1.msra.mxu0 0.0
    %4405 = vmatprep.subr.mxu0 0.0
    %4406 = vmatpush1.msra.mxu0 0.0
    %4407 = vmatprep.subr.mxu0 0.0
    %4408 = vmatpush1.msra.mxu0 0.0
    %4409 = vmatprep.subr.mxu0 0.0
    %4410 = vmatpush1.msra.mxu0 0.0
    %4411 = vmatprep.subr.mxu0 0.0
    %4412 = vmatpush1.msra.mxu0 0.0
    %4413 = vmatprep.subr.mxu0 0.0
    %4414 = vmatpush1.msra.mxu0 0.0
    %4415 = vmatprep.subr.mxu0 0.0
    %4416 = vmatpush1.msra.mxu0 0.0
    %4417 = vmatprep.subr.mxu0 0.0
    %4418 = vmatpush1.msra.mxu0 0.0
    %4419 = vmatprep.subr.mxu0 0.0
    %4420 = vmatpush1.msra.mxu0 0.0
    %4421 = vmatprep.subr.mxu0 0.0
    %4422 = vmatpush1.msra.mxu0 0.0
    %4423 = vmatprep.subr.mxu0 0.0
    %4424 = vmatpush1.msra.mxu0 0.0
    %4425 = vmatprep.subr.mxu0 0.0
    %4426 = vmatpush1.msra.mxu0 0.0
    %4427 = vmatprep.subr.mxu0 0.0
    %4428 = vmatpush1.msra.mxu0 0.0
    %4429 = vmatprep.subr.mxu0 0.0
    %4430 = vmatpush1.msra.mxu0 0.0
    %4431 = vmatprep.subr.mxu0 0.0
    %4432 = vmatpush1.msra.mxu0 0.0
    %4433 = vmatprep.subr.mxu0 0.0
    %4434 = vmatpush1.msra.mxu0 0.0
    %4435 = vmatprep.mubr.f32.mxu0 0.0
    %4436 = vmatmul.mubr.f32.gmra.mrb[0].mxu0 %v4363
    %v4437 = vpop.f32.mrb[0].mxu0
    %v4438 = vadd.f32 0.0, %v4437
    %v4439 = vpop.f32.mrb[0].mxu0
    %4440 = vmatprep.mubr.f32.mxu0 0.0
    %4441 = vmatmul.mubr.f32.gmra.mrb[0].mxu0 %v4366
    %v4442 = vpop.f32.mrb[0].mxu0
    %v4443 = vadd.f32 0.0, %v4442
    %v4444 = vpop.f32.mrb[0].mxu0
    %4445 = vmatprep.mubr.f32.mxu0 0.0
    %4446 = vmatmul.mubr.f32.gmra.mrb[0].mxu0 %v4369
    %v4447 = vpop.f32.mrb[0].mxu0
    %v4448 = vadd.f32 0.0, %v4447
    %v4449 = vpop.f32.mrb[0].mxu0
    %4450 = vdwg.mxu0
    %4451 = vrot.lane.b32.xlu0 %v3452, 88
    %v4452 = vpop.permute.xlu0 %4451
    %4453 = vrot.lane.b32.xlu0 %v3457, 88
    %v4454 = vpop.permute.xlu0 %4453
    %4455 = vrot.lane.b32.xlu0 %v3462, 88
    %v4456 = vpop.permute.xlu0 %4455
    %v4461 = vsel %vm775, %v4350, 0
    %v4464 = vsel %vm775, %v4351, 0
    %v4467 = vsel %vm775, %v4352, 0
    %4469 = vmatprep.subr.mxu0 0.0
    %4470 = vmatpush1.msra.mxu0 %v4452
    %4471 = vmatprep.subr.mxu0 0.0
    %4472 = vmatpush1.msra.mxu0 %v4454
    %4473 = vmatprep.subr.mxu0 0.0
    %4474 = vmatpush1.msra.mxu0 %v4456
    %4475 = vmatprep.subr.mxu0 0.0
    %4476 = vmatpush1.msra.mxu0 0.0
    %4477 = vmatprep.subr.mxu0 0.0
    %4478 = vmatpush1.msra.mxu0 0.0
    %4479 = vmatprep.subr.mxu0 0.0
    %4480 = vmatpush1.msra.mxu0 0.0
    %4481 = vmatprep.subr.mxu0 0.0
    %4482 = vmatpush1.msra.mxu0 0.0
    %4483 = vmatprep.subr.mxu0 0.0
    %4484 = vmatpush1.msra.mxu0 0.0
    %4485 = vmatprep.subr.mxu0 0.0
    %4486 = vmatpush1.msra.mxu0 0.0
    %4487 = vmatprep.subr.mxu0 0.0
    %4488 = vmatpush1.msra.mxu0 0.0
    %4489 = vmatprep.subr.mxu0 0.0
    %4490 = vmatpush1.msra.mxu0 0.0
    %4491 = vmatprep.subr.mxu0 0.0
    %4492 = vmatpush1.msra.mxu0 0.0
    %4493 = vmatprep.subr.mxu0 0.0
    %4494 = vmatpush1.msra.mxu0 0.0
    %4495 = vmatprep.subr.mxu0 0.0
    %4496 = vmatpush1.msra.mxu0 0.0
    %4497 = vmatprep.subr.mxu0 0.0
    %4498 = vmatpush1.msra.mxu0 0.0
    %4499 = vmatprep.subr.mxu0 0.0
    %4500 = vmatpush1.msra.mxu0 0.0
    %4501 = vmatprep.subr.mxu0 0.0
    %4502 = vmatpush1.msra.mxu0 0.0
    %4503 = vmatprep.subr.mxu0 0.0
    %4504 = vmatpush1.msra.mxu0 0.0
    %4505 = vmatprep.subr.mxu0 0.0
    %4506 = vmatpush1.msra.mxu0 0.0
    %4507 = vmatprep.subr.mxu0 0.0
    %4508 = vmatpush1.msra.mxu0 0.0
    %4509 = vmatprep.subr.mxu0 0.0
    %4510 = vmatpush1.msra.mxu0 0.0
    %4511 = vmatprep.subr.mxu0 0.0
    %4512 = vmatpush1.msra.mxu0 0.0
    %4513 = vmatprep.subr.mxu0 0.0
    %4514 = vmatpush1.msra.mxu0 0.0
    %4515 = vmatprep.subr.mxu0 0.0
    %4516 = vmatpush1.msra.mxu0 0.0
    %4517 = vmatprep.subr.mxu0 0.0
    %4518 = vmatpush1.msra.mxu0 0.0
    %4519 = vmatprep.subr.mxu0 0.0
    %4520 = vmatpush1.msra.mxu0 0.0
    %4521 = vmatprep.subr.mxu0 0.0
    %4522 = vmatpush1.msra.mxu0 0.0
    %4523 = vmatprep.subr.mxu0 0.0
    %4524 = vmatpush1.msra.mxu0 0.0
    %4525 = vmatprep.subr.mxu0 0.0
    %4526 = vmatpush1.msra.mxu0 0.0
    %4527 = vmatprep.subr.mxu0 0.0
    %4528 = vmatpush1.msra.mxu0 0.0
    %4529 = vmatprep.subr.mxu0 0.0
    %4530 = vmatpush1.msra.mxu0 0.0
    %4531 = vmatprep.subr.mxu0 0.0
    %4532 = vmatpush1.msra.mxu0 0.0
    %4533 = vmatprep.mubr.f32.mxu0 0.0
    %4534 = vmatmul.mubr.f32.gmra.mrb[0].mxu0 %v4461
    %v4535 = vpop.f32.mrb[0].mxu0
    %v4536 = vadd.f32 0.0, %v4535
    %v4537 = vpop.f32.mrb[0].mxu0
    %4538 = vmatprep.mubr.f32.mxu0 0.0
    %4539 = vmatmul.mubr.f32.gmra.mrb[0].mxu0 %v4464
    %v4540 = vpop.f32.mrb[0].mxu0
    %v4541 = vadd.f32 0.0, %v4540
    %v4542 = vpop.f32.mrb[0].mxu0
    %4543 = vmatprep.mubr.f32.mxu0 0.0
    %4544 = vmatmul.mubr.f32.gmra.mrb[0].mxu0 %v4467
    %v4545 = vpop.f32.mrb[0].mxu0
    %v4546 = vadd.f32 0.0, %v4545
    %v4547 = vpop.f32.mrb[0].mxu0
    %4548 = vdwg.mxu0
    %4549 = vrot.lane.b32.xlu0 %v3437, 112
    %v4550 = vpop.permute.xlu0 %4549
    %4551 = vrot.lane.b32.xlu0 %v3442, 112
    %v4552 = vpop.permute.xlu0 %4551
    %4553 = vrot.lane.b32.xlu0 %v3447, 112
    %v4554 = vpop.permute.xlu0 %4553
    %4555 = vrot.lane.b32.xlu0 %v3569, 112
    %v4556 = vpop.permute.xlu0 %4555
    %4557 = vrot.lane.b32.xlu0 %v3574, 112
    %v4558 = vpop.permute.xlu0 %4557
    %4559 = vrot.lane.b32.xlu0 %v3579, 112
    %v4560 = vpop.permute.xlu0 %4559
    %v4561 = vsel %vm560, %v4550, 0
    %v4563 = vsel %vm560, %v4552, 0
    %v4565 = vsel %vm560, %v4554, 0
    %v4567 = vsel %vm560, %v4556, 0
    %v4569 = vsel %vm560, %v4558, 0
    %v4571 = vsel %vm560, %v4560, 0
    %4573 = vmatprep.subr.mxu0 0.0
    %4574 = vmatpush1.xpose.msra.mxu0 %v4567
    %4575 = vmatprep.subr.mxu0 0.0
    %4576 = vmatpush1.xpose.msra.mxu0 %v4569
    %4577 = vmatprep.subr.mxu0 0.0
    %4578 = vmatpush1.xpose.msra.mxu0 %v4571
    %4579 = vmatprep.subr.mxu0 0.0
    %4580 = vmatpush1.xpose.msra.mxu0 0.0
    %4581 = vmatprep.subr.mxu0 0.0
    %4582 = vmatpush1.xpose.msra.mxu0 0.0
    %4583 = vmatprep.subr.mxu0 0.0
    %4584 = vmatpush1.xpose.msra.mxu0 0.0
    %4585 = vmatprep.subr.mxu0 0.0
    %4586 = vmatpush1.xpose.msra.mxu0 0.0
    %4587 = vmatprep.subr.mxu0 0.0
    %4588 = vmatpush1.xpose.msra.mxu0 0.0
    %4589 = vmatprep.subr.mxu0 0.0
    %4590 = vmatpush1.xpose.msra.mxu0 0.0
    %4591 = vmatprep.subr.mxu0 0.0
    %4592 = vmatpush1.xpose.msra.mxu0 0.0
    %4593 = vmatprep.subr.mxu0 0.0
    %4594 = vmatpush1.xpose.msra.mxu0 0.0
    %4595 = vmatprep.subr.mxu0 0.0
    %4596 = vmatpush1.xpose.msra.mxu0 0.0
    %4597 = vmatprep.subr.mxu0 0.0
    %4598 = vmatpush1.xpose.msra.mxu0 0.0
    %4599 = vmatprep.subr.mxu0 0.0
    %4600 = vmatpush1.xpose.msra.mxu0 0.0
    %4601 = vmatprep.subr.mxu0 0.0
    %4602 = vmatpush1.xpose.msra.mxu0 0.0
    %4603 = vmatprep.subr.mxu0 0.0
    %4604 = vmatpush1.xpose.msra.mxu0 0.0
    %4605 = vmatprep.subr.mxu0 0.0
    %4606 = vmatpush1.xpose.msra.mxu0 0.0
    %4607 = vmatprep.subr.mxu0 0.0
    %4608 = vmatpush1.xpose.msra.mxu0 0.0
    %4609 = vmatprep.subr.mxu0 0.0
    %4610 = vmatpush1.xpose.msra.mxu0 0.0
    %4611 = vmatprep.subr.mxu0 0.0
    %4612 = vmatpush1.xpose.msra.mxu0 0.0
    %4613 = vmatprep.subr.mxu0 0.0
    %4614 = vmatpush1.xpose.msra.mxu0 0.0
    %4615 = vmatprep.subr.mxu0 0.0
    %4616 = vmatpush1.xpose.msra.mxu0 0.0
    %4617 = vmatprep.subr.mxu0 0.0
    %4618 = vmatpush1.xpose.msra.mxu0 0.0
    %4619 = vmatprep.subr.mxu0 0.0
    %4620 = vmatpush1.xpose.msra.mxu0 0.0
    %4621 = vmatprep.subr.mxu0 0.0
    %4622 = vmatpush1.xpose.msra.mxu0 0.0
    %4623 = vmatprep.subr.mxu0 0.0
    %4624 = vmatpush1.xpose.msra.mxu0 0.0
    %4625 = vmatprep.subr.mxu0 0.0
    %4626 = vmatpush1.xpose.msra.mxu0 0.0
    %4627 = vmatprep.subr.mxu0 0.0
    %4628 = vmatpush1.xpose.msra.mxu0 0.0
    %4629 = vmatprep.subr.mxu0 0.0
    %4630 = vmatpush1.xpose.msra.mxu0 0.0
    %4631 = vmatprep.subr.mxu0 0.0
    %4632 = vmatpush1.xpose.msra.mxu0 0.0
    %4633 = vmatprep.subr.mxu0 0.0
    %4634 = vmatpush1.xpose.msra.mxu0 0.0
    %4635 = vmatprep.subr.mxu0 0.0
    %4636 = vmatpush1.xpose.msra.mxu0 0.0
    %4637 = vmatprep.mubr.f32.mxu0 0.0
    %4638 = vmatmul.mubr.f32.gmra.mrb[0].mxu0 %v4561
    %v4639 = vpop.f32.mrb[0].mxu0
    %v4640 = vadd.f32 0.0, %v4639
    %v4641 = vpop.f32.mrb[0].mxu0
    %4642 = vmatprep.mubr.f32.mxu0 0.0
    %4643 = vmatmul.mubr.f32.gmra.mrb[0].mxu0 %v4563
    %v4644 = vpop.f32.mrb[0].mxu0
    %v4645 = vadd.f32 0.0, %v4644
    %v4646 = vpop.f32.mrb[0].mxu0
    %4647 = vmatprep.mubr.f32.mxu0 0.0
    %4648 = vmatmul.mubr.f32.gmra.mrb[0].mxu0 %v4565
    %v4649 = vpop.f32.mrb[0].mxu0
    %v4650 = vadd.f32 0.0, %v4649
    %v4651 = vpop.f32.mrb[0].mxu0
    %4652 = vdwg.mxu0
    %4653 = vrot.lane.b32.xlu0 %v3452, 112
    %v4654 = vpop.permute.xlu0 %4653
    %4655 = vrot.lane.b32.xlu0 %v3457, 112
    %v4656 = vpop.permute.xlu0 %4655
    %4657 = vrot.lane.b32.xlu0 %v3462, 112
    %v4658 = vpop.permute.xlu0 %4657
    %4659 = vrot.lane.b32.xlu0 %v3584, 112
    %v4660 = vpop.permute.xlu0 %4659
    %4661 = vrot.lane.b32.xlu0 %v3589, 112
    %v4662 = vpop.permute.xlu0 %4661
    %4663 = vrot.lane.b32.xlu0 %v3594, 112
    %v4664 = vpop.permute.xlu0 %4663
    %v4665 = vsel %vm560, %v4654, 0
    %v4667 = vsel %vm560, %v4656, 0
    %v4669 = vsel %vm560, %v4658, 0
    %v4671 = vsel %vm560, %v4660, 0
    %v4673 = vsel %vm560, %v4662, 0
    %v4675 = vsel %vm560, %v4664, 0
    %4677 = vmatprep.subr.mxu0 0.0
    %4678 = vmatpush1.xpose.msra.mxu0 %v4671
    %4679 = vmatprep.subr.mxu0 0.0
    %4680 = vmatpush1.xpose.msra.mxu0 %v4673
    %4681 = vmatprep.subr.mxu0 0.0
    %4682 = vmatpush1.xpose.msra.mxu0 %v4675
    %4683 = vmatprep.subr.mxu0 0.0
    %4684 = vmatpush1.xpose.msra.mxu0 0.0
    %4685 = vmatprep.subr.mxu0 0.0
    %4686 = vmatpush1.xpose.msra.mxu0 0.0
    %4687 = vmatprep.subr.mxu0 0.0
    %4688 = vmatpush1.xpose.msra.mxu0 0.0
    %4689 = vmatprep.subr.mxu0 0.0
    %4690 = vmatpush1.xpose.msra.mxu0 0.0
    %4691 = vmatprep.subr.mxu0 0.0
    %4692 = vmatpush1.xpose.msra.mxu0 0.0
    %4693 = vmatprep.subr.mxu0 0.0
    %4694 = vmatpush1.xpose.msra.mxu0 0.0
    %4695 = vmatprep.subr.mxu0 0.0
    %4696 = vmatpush1.xpose.msra.mxu0 0.0
    %4697 = vmatprep.subr.mxu0 0.0
    %4698 = vmatpush1.xpose.msra.mxu0 0.0
    %4699 = vmatprep.subr.mxu0 0.0
    %4700 = vmatpush1.xpose.msra.mxu0 0.0
    %4701 = vmatprep.subr.mxu0 0.0
    %4702 = vmatpush1.xpose.msra.mxu0 0.0
    %4703 = vmatprep.subr.mxu0 0.0
    %4704 = vmatpush1.xpose.msra.mxu0 0.0
    %4705 = vmatprep.subr.mxu0 0.0
    %4706 = vmatpush1.xpose.msra.mxu0 0.0
    %4707 = vmatprep.subr.mxu0 0.0
    %4708 = vmatpush1.xpose.msra.mxu0 0.0
    %4709 = vmatprep.subr.mxu0 0.0
    %4710 = vmatpush1.xpose.msra.mxu0 0.0
    %4711 = vmatprep.subr.mxu0 0.0
    %4712 = vmatpush1.xpose.msra.mxu0 0.0
    %4713 = vmatprep.subr.mxu0 0.0
    %4714 = vmatpush1.xpose.msra.mxu0 0.0
    %4715 = vmatprep.subr.mxu0 0.0
    %4716 = vmatpush1.xpose.msra.mxu0 0.0
    %4717 = vmatprep.subr.mxu0 0.0
    %4718 = vmatpush1.xpose.msra.mxu0 0.0
    %4719 = vmatprep.subr.mxu0 0.0
    %4720 = vmatpush1.xpose.msra.mxu0 0.0
    %4721 = vmatprep.subr.mxu0 0.0
    %4722 = vmatpush1.xpose.msra.mxu0 0.0
    %4723 = vmatprep.subr.mxu0 0.0
    %4724 = vmatpush1.xpose.msra.mxu0 0.0
    %4725 = vmatprep.subr.mxu0 0.0
    %4726 = vmatpush1.xpose.msra.mxu0 0.0
    %4727 = vmatprep.subr.mxu0 0.0
    %4728 = vmatpush1.xpose.msra.mxu0 0.0
    %4729 = vmatprep.subr.mxu0 0.0
    %4730 = vmatpush1.xpose.msra.mxu0 0.0
    %4731 = vmatprep.subr.mxu0 0.0
    %4732 = vmatpush1.xpose.msra.mxu0 0.0
    %4733 = vmatprep.subr.mxu0 0.0
    %4734 = vmatpush1.xpose.msra.mxu0 0.0
    %4735 = vmatprep.subr.mxu0 0.0
    %4736 = vmatpush1.xpose.msra.mxu0 0.0
    %4737 = vmatprep.subr.mxu0 0.0
    %4738 = vmatpush1.xpose.msra.mxu0 0.0
    %4739 = vmatprep.subr.mxu0 0.0
    %4740 = vmatpush1.xpose.msra.mxu0 0.0
    %4741 = vmatprep.mubr.f32.mxu0 0.0
    %4742 = vmatmul.mubr.f32.gmra.mrb[0].mxu0 %v4665
    %v4743 = vpop.f32.mrb[0].mxu0
    %v4744 = vadd.f32 0.0, %v4743
    %v4745 = vpop.f32.mrb[0].mxu0
    %4746 = vmatprep.mubr.f32.mxu0 0.0
    %4747 = vmatmul.mubr.f32.gmra.mrb[0].mxu0 %v4667
    %v4748 = vpop.f32.mrb[0].mxu0
    %v4749 = vadd.f32 0.0, %v4748
    %v4750 = vpop.f32.mrb[0].mxu0
    %4751 = vmatprep.mubr.f32.mxu0 0.0
    %4752 = vmatmul.mubr.f32.gmra.mrb[0].mxu0 %v4669
    %v4753 = vpop.f32.mrb[0].mxu0
    %v4754 = vadd.f32 0.0, %v4753
    %v4755 = vpop.f32.mrb[0].mxu0
    %4756 = vdwg.mxu0
    %v4757 = vmul.f32 %v4640, 0.35355338
    %v4758 = vmul.f32 %v4645, 0.35355338
    %v4759 = vmul.f32 %v4650, 0.35355338
    %v4760 = vmul.f32 %v4744, 0.35355338
    %v4761 = vmul.f32 %v4749, 0.35355338
    %v4762 = vmul.f32 %v4754, 0.35355338
    %v4763 = vadd.f32 %v4757, %v767
    %v4764 = vadd.f32 %v4758, %v767
    %v4765 = vadd.f32 %v4759, %v767
    %v4766 = vadd.f32 %v4760, %v767
    %v4767 = vadd.f32 %v4761, %v767
    %v4768 = vadd.f32 %v4762, %v767
    %v4769 = vsel %vm775, %v4763, -inf
    %4770 = vmax.xlane.f32.xlu0 %v4769
    %v4771 = vpop.xlane.xlu0 %4770
    %v4772 = vsel %vm775, %v4764, -inf
    %4773 = vmax.xlane.f32.xlu0 %v4772
    %v4774 = vpop.xlane.xlu0 %4773
    %v4775 = vsel %vm775, %v4765, -inf
    %4776 = vmax.xlane.f32.xlu0 %v4775
    %v4777 = vpop.xlane.xlu0 %4776
    %v4778 = vsel %vm775, %v4766, -inf
    %4779 = vmax.xlane.f32.xlu0 %v4778
    %v4780 = vpop.xlane.xlu0 %4779
    %v4781 = vsel %vm775, %v4767, -inf
    %4782 = vmax.xlane.f32.xlu0 %v4781
    %v4783 = vpop.xlane.xlu0 %4782
    %v4784 = vsel %vm775, %v4768, -inf
    %4785 = vmax.xlane.f32.xlu0 %v4784
    %v4786 = vpop.xlane.xlu0 %4785
    %v4787 = vsub.f32 %v4763, %v4771
    %v4788 = vsub.f32 %v4764, %v4774
    %v4789 = vsub.f32 %v4765, %v4777
    %v4790 = vsub.f32 %v4766, %v4780
    %v4791 = vsub.f32 %v4767, %v4783
    %v4792 = vsub.f32 %v4768, %v4786
    %v4793 = vmul.f32 %v4787, 1.442695
    %v4794 = vpow.pop %v4793
    %v4795 = vmul.f32 %v4788, 1.442695
    %v4796 = vpow.pop %v4795
    %v4797 = vmul.f32 %v4789, 1.442695
    %v4798 = vpow.pop %v4797
    %v4799 = vmul.f32 %v4790, 1.442695
    %v4800 = vpow.pop %v4799
    %v4801 = vmul.f32 %v4791, 1.442695
    %v4802 = vpow.pop %v4801
    %v4803 = vmul.f32 %v4792, 1.442695
    %v4804 = vpow.pop %v4803
    %v4805 = vsel %vm775, %v4794, 0.0
    %4806 = vadd.xlane.f32.xlu0 %v4805
    %v4807 = vpop.xlane.xlu0 %4806
    %v4808 = vsel %vm775, %v4796, 0.0
    %4809 = vadd.xlane.f32.xlu0 %v4808
    %v4810 = vpop.xlane.xlu0 %4809
    %v4811 = vsel %vm775, %v4798, 0.0
    %4812 = vadd.xlane.f32.xlu0 %v4811
    %v4813 = vpop.xlane.xlu0 %4812
    %v4814 = vsel %vm775, %v4800, 0.0
    %4815 = vadd.xlane.f32.xlu0 %v4814
    %v4816 = vpop.xlane.xlu0 %4815
    %v4817 = vsel %vm775, %v4802, 0.0
    %4818 = vadd.xlane.f32.xlu0 %v4817
    %v4819 = vpop.xlane.xlu0 %4818
    %v4820 = vsel %vm775, %v4804, 0.0
    %4821 = vadd.xlane.f32.xlu0 %v4820
    %v4822 = vpop.xlane.xlu0 %4821
    %v4823 = vrcp.pop %v4807
    %v4824 = vrcp.pop %v4810
    %v4825 = vrcp.pop %v4813
    %v4826 = vrcp.pop %v4816
    %v4827 = vrcp.pop %v4819
    %v4828 = vrcp.pop %v4822
    %v4829 = vmul.f32 %v4794, %v4823
    %v4830 = vmul.f32 %v4796, %v4824
    %v4831 = vmul.f32 %v4798, %v4825
    %v4832 = vmul.f32 %v4800, %v4826
    %v4833 = vmul.f32 %v4802, %v4827
    %v4834 = vmul.f32 %v4804, %v4828
    %4835 = vrot.lane.b32.xlu0 %v3437, 80
    %v4836 = vpop.permute.xlu0 %4835
    %4837 = vrot.lane.b32.xlu0 %v3442, 80
    %v4838 = vpop.permute.xlu0 %4837
    %4839 = vrot.lane.b32.xlu0 %v3447, 80
    %v4840 = vpop.permute.xlu0 %4839
    %v4845 = vsel %vm775, %v4829, 0
    %v4848 = vsel %vm775, %v4830, 0
    %v4851 = vsel %vm775, %v4831, 0
    %4853 = vmatprep.subr.mxu0 0.0
    %4854 = vmatpush1.msra.mxu0 %v4836
    %4855 = vmatprep.subr.mxu0 0.0
    %4856 = vmatpush1.msra.mxu0 %v4838
    %4857 = vmatprep.subr.mxu0 0.0
    %4858 = vmatpush1.msra.mxu0 %v4840
    %4859 = vmatprep.subr.mxu0 0.0
    %4860 = vmatpush1.msra.mxu0 0.0
    %4861 = vmatprep.subr.mxu0 0.0
    %4862 = vmatpush1.msra.mxu0 0.0
    %4863 = vmatprep.subr.mxu0 0.0
    %4864 = vmatpush1.msra.mxu0 0.0
    %4865 = vmatprep.subr.mxu0 0.0
    %4866 = vmatpush1.msra.mxu0 0.0
    %4867 = vmatprep.subr.mxu0 0.0
    %4868 = vmatpush1.msra.mxu0 0.0
    %4869 = vmatprep.subr.mxu0 0.0
    %4870 = vmatpush1.msra.mxu0 0.0
    %4871 = vmatprep.subr.mxu0 0.0
    %4872 = vmatpush1.msra.mxu0 0.0
    %4873 = vmatprep.subr.mxu0 0.0
    %4874 = vmatpush1.msra.mxu0 0.0
    %4875 = vmatprep.subr.mxu0 0.0
    %4876 = vmatpush1.msra.mxu0 0.0
    %4877 = vmatprep.subr.mxu0 0.0
    %4878 = vmatpush1.msra.mxu0 0.0
    %4879 = vmatprep.subr.mxu0 0.0
    %4880 = vmatpush1.msra.mxu0 0.0
    %4881 = vmatprep.subr.mxu0 0.0
    %4882 = vmatpush1.msra.mxu0 0.0
    %4883 = vmatprep.subr.mxu0 0.0
    %4884 = vmatpush1.msra.mxu0 0.0
    %4885 = vmatprep.subr.mxu0 0.0
    %4886 = vmatpush1.msra.mxu0 0.0
    %4887 = vmatprep.subr.mxu0 0.0
    %4888 = vmatpush1.msra.mxu0 0.0
    %4889 = vmatprep.subr.mxu0 0.0
    %4890 = vmatpush1.msra.mxu0 0.0
    %4891 = vmatprep.subr.mxu0 0.0
    %4892 = vmatpush1.msra.mxu0 0.0
    %4893 = vmatprep.subr.mxu0 0.0
    %4894 = vmatpush1.msra.mxu0 0.0
    %4895 = vmatprep.subr.mxu0 0.0
    %4896 = vmatpush1.msra.mxu0 0.0
    %4897 = vmatprep.subr.mxu0 0.0
    %4898 = vmatpush1.msra.mxu0 0.0
    %4899 = vmatprep.subr.mxu0 0.0
    %4900 = vmatpush1.msra.mxu0 0.0
    %4901 = vmatprep.subr.mxu0 0.0
    %4902 = vmatpush1.msra.mxu0 0.0
    %4903 = vmatprep.subr.mxu0 0.0
    %4904 = vmatpush1.msra.mxu0 0.0
    %4905 = vmatprep.subr.mxu0 0.0
    %4906 = vmatpush1.msra.mxu0 0.0
    %4907 = vmatprep.subr.mxu0 0.0
    %4908 = vmatpush1.msra.mxu0 0.0
    %4909 = vmatprep.subr.mxu0 0.0
    %4910 = vmatpush1.msra.mxu0 0.0
    %4911 = vmatprep.subr.mxu0 0.0
    %4912 = vmatpush1.msra.mxu0 0.0
    %4913 = vmatprep.subr.mxu0 0.0
    %4914 = vmatpush1.msra.mxu0 0.0
    %4915 = vmatprep.subr.mxu0 0.0
    %4916 = vmatpush1.msra.mxu0 0.0
    %4917 = vmatprep.mubr.f32.mxu0 0.0
    %4918 = vmatmul.mubr.f32.gmra.mrb[0].mxu0 %v4845
    %v4919 = vpop.f32.mrb[0].mxu0
    %v4920 = vadd.f32 0.0, %v4919
    %v4921 = vpop.f32.mrb[0].mxu0
    %4922 = vmatprep.mubr.f32.mxu0 0.0
    %4923 = vmatmul.mubr.f32.gmra.mrb[0].mxu0 %v4848
    %v4924 = vpop.f32.mrb[0].mxu0
    %v4925 = vadd.f32 0.0, %v4924
    %v4926 = vpop.f32.mrb[0].mxu0
    %4927 = vmatprep.mubr.f32.mxu0 0.0
    %4928 = vmatmul.mubr.f32.gmra.mrb[0].mxu0 %v4851
    %v4929 = vpop.f32.mrb[0].mxu0
    %v4930 = vadd.f32 0.0, %v4929
    %v4931 = vpop.f32.mrb[0].mxu0
    %4932 = vdwg.mxu0
    %4933 = vrot.lane.b32.xlu0 %v3452, 80
    %v4934 = vpop.permute.xlu0 %4933
    %4935 = vrot.lane.b32.xlu0 %v3457, 80
    %v4936 = vpop.permute.xlu0 %4935
    %4937 = vrot.lane.b32.xlu0 %v3462, 80
    %v4938 = vpop.permute.xlu0 %4937
    %v4943 = vsel %vm775, %v4832, 0
    %v4946 = vsel %vm775, %v4833, 0
    %v4949 = vsel %vm775, %v4834, 0
    %4951 = vmatprep.subr.mxu0 0.0
    %4952 = vmatpush1.msra.mxu0 %v4934
    %4953 = vmatprep.subr.mxu0 0.0
    %4954 = vmatpush1.msra.mxu0 %v4936
    %4955 = vmatprep.subr.mxu0 0.0
    %4956 = vmatpush1.msra.mxu0 %v4938
    %4957 = vmatprep.subr.mxu0 0.0
    %4958 = vmatpush1.msra.mxu0 0.0
    %4959 = vmatprep.subr.mxu0 0.0
    %4960 = vmatpush1.msra.mxu0 0.0
    %4961 = vmatprep.subr.mxu0 0.0
    %4962 = vmatpush1.msra.mxu0 0.0
    %4963 = vmatprep.subr.mxu0 0.0
    %4964 = vmatpush1.msra.mxu0 0.0
    %4965 = vmatprep.subr.mxu0 0.0
    %4966 = vmatpush1.msra.mxu0 0.0
    %4967 = vmatprep.subr.mxu0 0.0
    %4968 = vmatpush1.msra.mxu0 0.0
    %4969 = vmatprep.subr.mxu0 0.0
    %4970 = vmatpush1.msra.mxu0 0.0
    %4971 = vmatprep.subr.mxu0 0.0
    %4972 = vmatpush1.msra.mxu0 0.0
    %4973 = vmatprep.subr.mxu0 0.0
    %4974 = vmatpush1.msra.mxu0 0.0
    %4975 = vmatprep.subr.mxu0 0.0
    %4976 = vmatpush1.msra.mxu0 0.0
    %4977 = vmatprep.subr.mxu0 0.0
    %4978 = vmatpush1.msra.mxu0 0.0
    %4979 = vmatprep.subr.mxu0 0.0
    %4980 = vmatpush1.msra.mxu0 0.0
    %4981 = vmatprep.subr.mxu0 0.0
    %4982 = vmatpush1.msra.mxu0 0.0
    %4983 = vmatprep.subr.mxu0 0.0
    %4984 = vmatpush1.msra.mxu0 0.0
    %4985 = vmatprep.subr.mxu0 0.0
    %4986 = vmatpush1.msra.mxu0 0.0
    %4987 = vmatprep.subr.mxu0 0.0
    %4988 = vmatpush1.msra.mxu0 0.0
    %4989 = vmatprep.subr.mxu0 0.0
    %4990 = vmatpush1.msra.mxu0 0.0
    %4991 = vmatprep.subr.mxu0 0.0
    %4992 = vmatpush1.msra.mxu0 0.0
    %4993 = vmatprep.subr.mxu0 0.0
    %4994 = vmatpush1.msra.mxu0 0.0
    %4995 = vmatprep.subr.mxu0 0.0
    %4996 = vmatpush1.msra.mxu0 0.0
    %4997 = vmatprep.subr.mxu0 0.0
    %4998 = vmatpush1.msra.mxu0 0.0
    %4999 = vmatprep.subr.mxu0 0.0
    %5000 = vmatpush1.msra.mxu0 0.0
    %5001 = vmatprep.subr.mxu0 0.0
    %5002 = vmatpush1.msra.mxu0 0.0
    %5003 = vmatprep.subr.mxu0 0.0
    %5004 = vmatpush1.msra.mxu0 0.0
    %5005 = vmatprep.subr.mxu0 0.0
    %5006 = vmatpush1.msra.mxu0 0.0
    %5007 = vmatprep.subr.mxu0 0.0
    %5008 = vmatpush1.msra.mxu0 0.0
    %5009 = vmatprep.subr.mxu0 0.0
    %5010 = vmatpush1.msra.mxu0 0.0
    %5011 = vmatprep.subr.mxu0 0.0
    %5012 = vmatpush1.msra.mxu0 0.0
    %5013 = vmatprep.subr.mxu0 0.0
    %5014 = vmatpush1.msra.mxu0 0.0
    %5015 = vmatprep.mubr.f32.mxu0 0.0
    %5016 = vmatmul.mubr.f32.gmra.mrb[0].mxu0 %v4943
    %v5017 = vpop.f32.mrb[0].mxu0
    %v5018 = vadd.f32 0.0, %v5017
    %v5019 = vpop.f32.mrb[0].mxu0
    %5020 = vmatprep.mubr.f32.mxu0 0.0
    %5021 = vmatmul.mubr.f32.gmra.mrb[0].mxu0 %v4946
    %v5022 = vpop.f32.mrb[0].mxu0
    %v5023 = vadd.f32 0.0, %v5022
    %v5024 = vpop.f32.mrb[0].mxu0
    %5025 = vmatprep.mubr.f32.mxu0 0.0
    %5026 = vmatmul.mubr.f32.gmra.mrb[0].mxu0 %v4949
    %v5027 = vpop.f32.mrb[0].mxu0
    %v5028 = vadd.f32 0.0, %v5027
    %v5029 = vpop.f32.mrb[0].mxu0
    %5030 = vdwg.mxu0
    %5031 = vrot.lane.b32.xlu0 %v3437, 104
    %v5032 = vpop.permute.xlu0 %5031
    %5033 = vrot.lane.b32.xlu0 %v3442, 104
    %v5034 = vpop.permute.xlu0 %5033
    %5035 = vrot.lane.b32.xlu0 %v3447, 104
    %v5036 = vpop.permute.xlu0 %5035
    %5037 = vrot.lane.b32.xlu0 %v3569, 104
    %v5038 = vpop.permute.xlu0 %5037
    %5039 = vrot.lane.b32.xlu0 %v3574, 104
    %v5040 = vpop.permute.xlu0 %5039
    %5041 = vrot.lane.b32.xlu0 %v3579, 104
    %v5042 = vpop.permute.xlu0 %5041
    %v5043 = vsel %vm560, %v5032, 0
    %v5045 = vsel %vm560, %v5034, 0
    %v5047 = vsel %vm560, %v5036, 0
    %v5049 = vsel %vm560, %v5038, 0
    %v5051 = vsel %vm560, %v5040, 0
    %v5053 = vsel %vm560, %v5042, 0
    %5055 = vmatprep.subr.mxu0 0.0
    %5056 = vmatpush1.xpose.msra.mxu0 %v5049
    %5057 = vmatprep.subr.mxu0 0.0
    %5058 = vmatpush1.xpose.msra.mxu0 %v5051
    %5059 = vmatprep.subr.mxu0 0.0
    %5060 = vmatpush1.xpose.msra.mxu0 %v5053
    %5061 = vmatprep.subr.mxu0 0.0
    %5062 = vmatpush1.xpose.msra.mxu0 0.0
    %5063 = vmatprep.subr.mxu0 0.0
    %5064 = vmatpush1.xpose.msra.mxu0 0.0
    %5065 = vmatprep.subr.mxu0 0.0
    %5066 = vmatpush1.xpose.msra.mxu0 0.0
    %5067 = vmatprep.subr.mxu0 0.0
    %5068 = vmatpush1.xpose.msra.mxu0 0.0
    %5069 = vmatprep.subr.mxu0 0.0
    %5070 = vmatpush1.xpose.msra.mxu0 0.0
    %5071 = vmatprep.subr.mxu0 0.0
    %5072 = vmatpush1.xpose.msra.mxu0 0.0
    %5073 = vmatprep.subr.mxu0 0.0
    %5074 = vmatpush1.xpose.msra.mxu0 0.0
    %5075 = vmatprep.subr.mxu0 0.0
    %5076 = vmatpush1.xpose.msra.mxu0 0.0
    %5077 = vmatprep.subr.mxu0 0.0
    %5078 = vmatpush1.xpose.msra.mxu0 0.0
    %5079 = vmatprep.subr.mxu0 0.0
    %5080 = vmatpush1.xpose.msra.mxu0 0.0
    %5081 = vmatprep.subr.mxu0 0.0
    %5082 = vmatpush1.xpose.msra.mxu0 0.0
    %5083 = vmatprep.subr.mxu0 0.0
    %5084 = vmatpush1.xpose.msra.mxu0 0.0
    %5085 = vmatprep.subr.mxu0 0.0
    %5086 = vmatpush1.xpose.msra.mxu0 0.0
    %5087 = vmatprep.subr.mxu0 0.0
    %5088 = vmatpush1.xpose.msra.mxu0 0.0
    %5089 = vmatprep.subr.mxu0 0.0
    %5090 = vmatpush1.xpose.msra.mxu0 0.0
    %5091 = vmatprep.subr.mxu0 0.0
    %5092 = vmatpush1.xpose.msra.mxu0 0.0
    %5093 = vmatprep.subr.mxu0 0.0
    %5094 = vmatpush1.xpose.msra.mxu0 0.0
    %5095 = vmatprep.subr.mxu0 0.0
    %5096 = vmatpush1.xpose.msra.mxu0 0.0
    %5097 = vmatprep.subr.mxu0 0.0
    %5098 = vmatpush1.xpose.msra.mxu0 0.0
    %5099 = vmatprep.subr.mxu0 0.0
    %5100 = vmatpush1.xpose.msra.mxu0 0.0
    %5101 = vmatprep.subr.mxu0 0.0
    %5102 = vmatpush1.xpose.msra.mxu0 0.0
    %5103 = vmatprep.subr.mxu0 0.0
    %5104 = vmatpush1.xpose.msra.mxu0 0.0
    %5105 = vmatprep.subr.mxu0 0.0
    %5106 = vmatpush1.xpose.msra.mxu0 0.0
    %5107 = vmatprep.subr.mxu0 0.0
    %5108 = vmatpush1.xpose.msra.mxu0 0.0
    %5109 = vmatprep.subr.mxu0 0.0
    %5110 = vmatpush1.xpose.msra.mxu0 0.0
    %5111 = vmatprep.subr.mxu0 0.0
    %5112 = vmatpush1.xpose.msra.mxu0 0.0
    %5113 = vmatprep.subr.mxu0 0.0
    %5114 = vmatpush1.xpose.msra.mxu0 0.0
    %5115 = vmatprep.subr.mxu0 0.0
    %5116 = vmatpush1.xpose.msra.mxu0 0.0
    %5117 = vmatprep.subr.mxu0 0.0
    %5118 = vmatpush1.xpose.msra.mxu0 0.0
    %5119 = vmatprep.mubr.f32.mxu0 0.0
    %5120 = vmatmul.mubr.f32.gmra.mrb[0].mxu0 %v5043
    %v5121 = vpop.f32.mrb[0].mxu0
    %v5122 = vadd.f32 0.0, %v5121
    %v5123 = vpop.f32.mrb[0].mxu0
    %5124 = vmatprep.mubr.f32.mxu0 0.0
    %5125 = vmatmul.mubr.f32.gmra.mrb[0].mxu0 %v5045
    %v5126 = vpop.f32.mrb[0].mxu0
    %v5127 = vadd.f32 0.0, %v5126
    %v5128 = vpop.f32.mrb[0].mxu0
    %5129 = vmatprep.mubr.f32.mxu0 0.0
    %5130 = vmatmul.mubr.f32.gmra.mrb[0].mxu0 %v5047
    %v5131 = vpop.f32.mrb[0].mxu0
    %v5132 = vadd.f32 0.0, %v5131
    %v5133 = vpop.f32.mrb[0].mxu0
    %5134 = vdwg.mxu0
    %5135 = vrot.lane.b32.xlu0 %v3452, 104
    %v5136 = vpop.permute.xlu0 %5135
    %5137 = vrot.lane.b32.xlu0 %v3457, 104
    %v5138 = vpop.permute.xlu0 %5137
    %5139 = vrot.lane.b32.xlu0 %v3462, 104
    %v5140 = vpop.permute.xlu0 %5139
    %5141 = vrot.lane.b32.xlu0 %v3584, 104
    %v5142 = vpop.permute.xlu0 %5141
    %5143 = vrot.lane.b32.xlu0 %v3589, 104
    %v5144 = vpop.permute.xlu0 %5143
    %5145 = vrot.lane.b32.xlu0 %v3594, 104
    %v5146 = vpop.permute.xlu0 %5145
    %v5147 = vsel %vm560, %v5136, 0
    %v5149 = vsel %vm560, %v5138, 0
    %v5151 = vsel %vm560, %v5140, 0
    %v5153 = vsel %vm560, %v5142, 0
    %v5155 = vsel %vm560, %v5144, 0
    %v5157 = vsel %vm560, %v5146, 0
    %5159 = vmatprep.subr.mxu0 0.0
    %5160 = vmatpush1.xpose.msra.mxu0 %v5153
    %5161 = vmatprep.subr.mxu0 0.0
    %5162 = vmatpush1.xpose.msra.mxu0 %v5155
    %5163 = vmatprep.subr.mxu0 0.0
    %5164 = vmatpush1.xpose.msra.mxu0 %v5157
    %5165 = vmatprep.subr.mxu0 0.0
    %5166 = vmatpush1.xpose.msra.mxu0 0.0
    %5167 = vmatprep.subr.mxu0 0.0
    %5168 = vmatpush1.xpose.msra.mxu0 0.0
    %5169 = vmatprep.subr.mxu0 0.0
    %5170 = vmatpush1.xpose.msra.mxu0 0.0
    %5171 = vmatprep.subr.mxu0 0.0
    %5172 = vmatpush1.xpose.msra.mxu0 0.0
    %5173 = vmatprep.subr.mxu0 0.0
    %5174 = vmatpush1.xpose.msra.mxu0 0.0
    %5175 = vmatprep.subr.mxu0 0.0
    %5176 = vmatpush1.xpose.msra.mxu0 0.0
    %5177 = vmatprep.subr.mxu0 0.0
    %5178 = vmatpush1.xpose.msra.mxu0 0.0
    %5179 = vmatprep.subr.mxu0 0.0
    %5180 = vmatpush1.xpose.msra.mxu0 0.0
    %5181 = vmatprep.subr.mxu0 0.0
    %5182 = vmatpush1.xpose.msra.mxu0 0.0
    %5183 = vmatprep.subr.mxu0 0.0
    %5184 = vmatpush1.xpose.msra.mxu0 0.0
    %5185 = vmatprep.subr.mxu0 0.0
    %5186 = vmatpush1.xpose.msra.mxu0 0.0
    %5187 = vmatprep.subr.mxu0 0.0
    %5188 = vmatpush1.xpose.msra.mxu0 0.0
    %5189 = vmatprep.subr.mxu0 0.0
    %5190 = vmatpush1.xpose.msra.mxu0 0.0
    %5191 = vmatprep.subr.mxu0 0.0
    %5192 = vmatpush1.xpose.msra.mxu0 0.0
    %5193 = vmatprep.subr.mxu0 0.0
    %5194 = vmatpush1.xpose.msra.mxu0 0.0
    %5195 = vmatprep.subr.mxu0 0.0
    %5196 = vmatpush1.xpose.msra.mxu0 0.0
    %5197 = vmatprep.subr.mxu0 0.0
    %5198 = vmatpush1.xpose.msra.mxu0 0.0
    %5199 = vmatprep.subr.mxu0 0.0
    %5200 = vmatpush1.xpose.msra.mxu0 0.0
    %5201 = vmatprep.subr.mxu0 0.0
    %5202 = vmatpush1.xpose.msra.mxu0 0.0
    %5203 = vmatprep.subr.mxu0 0.0
    %5204 = vmatpush1.xpose.msra.mxu0 0.0
    %5205 = vmatprep.subr.mxu0 0.0
    %5206 = vmatpush1.xpose.msra.mxu0 0.0
    %5207 = vmatprep.subr.mxu0 0.0
    %5208 = vmatpush1.xpose.msra.mxu0 0.0
    %5209 = vmatprep.subr.mxu0 0.0
    %5210 = vmatpush1.xpose.msra.mxu0 0.0
    %5211 = vmatprep.subr.mxu0 0.0
    %5212 = vmatpush1.xpose.msra.mxu0 0.0
    %5213 = vmatprep.subr.mxu0 0.0
    %5214 = vmatpush1.xpose.msra.mxu0 0.0
    %5215 = vmatprep.subr.mxu0 0.0
    %5216 = vmatpush1.xpose.msra.mxu0 0.0
    %5217 = vmatprep.subr.mxu0 0.0
    %5218 = vmatpush1.xpose.msra.mxu0 0.0
    %5219 = vmatprep.subr.mxu0 0.0
    %5220 = vmatpush1.xpose.msra.mxu0 0.0
    %5221 = vmatprep.subr.mxu0 0.0
    %5222 = vmatpush1.xpose.msra.mxu0 0.0
    %5223 = vmatprep.mubr.f32.mxu0 0.0
    %5224 = vmatmul.mubr.f32.gmra.mrb[0].mxu0 %v5147
    %v5225 = vpop.f32.mrb[0].mxu0
    %v5226 = vadd.f32 0.0, %v5225
    %v5227 = vpop.f32.mrb[0].mxu0
    %5228 = vmatprep.mubr.f32.mxu0 0.0
    %5229 = vmatmul.mubr.f32.gmra.mrb[0].mxu0 %v5149
    %v5230 = vpop.f32.mrb[0].mxu0
    %v5231 = vadd.f32 0.0, %v5230
    %v5232 = vpop.f32.mrb[0].mxu0
    %5233 = vmatprep.mubr.f32.mxu0 0.0
    %5234 = vmatmul.mubr.f32.gmra.mrb[0].mxu0 %v5151
    %v5235 = vpop.f32.mrb[0].mxu0
    %v5236 = vadd.f32 0.0, %v5235
    %v5237 = vpop.f32.mrb[0].mxu0
    %5238 = vdwg.mxu0
    %v5239 = vmul.f32 %v5122, 0.35355338
    %v5240 = vmul.f32 %v5127, 0.35355338
    %v5241 = vmul.f32 %v5132, 0.35355338
    %v5242 = vmul.f32 %v5226, 0.35355338
    %v5243 = vmul.f32 %v5231, 0.35355338
    %v5244 = vmul.f32 %v5236, 0.35355338
    %v5245 = vadd.f32 %v5239, %v767
    %v5246 = vadd.f32 %v5240, %v767
    %v5247 = vadd.f32 %v5241, %v767
    %v5248 = vadd.f32 %v5242, %v767
    %v5249 = vadd.f32 %v5243, %v767
    %v5250 = vadd.f32 %v5244, %v767
    %v5251 = vsel %vm775, %v5245, -inf
    %5252 = vmax.xlane.f32.xlu0 %v5251
    %v5253 = vpop.xlane.xlu0 %5252
    %v5254 = vsel %vm775, %v5246, -inf
    %5255 = vmax.xlane.f32.xlu0 %v5254
    %v5256 = vpop.xlane.xlu0 %5255
    %v5257 = vsel %vm775, %v5247, -inf
    %5258 = vmax.xlane.f32.xlu0 %v5257
    %v5259 = vpop.xlane.xlu0 %5258
    %v5260 = vsel %vm775, %v5248, -inf
    %5261 = vmax.xlane.f32.xlu0 %v5260
    %v5262 = vpop.xlane.xlu0 %5261
    %v5263 = vsel %vm775, %v5249, -inf
    %5264 = vmax.xlane.f32.xlu0 %v5263
    %v5265 = vpop.xlane.xlu0 %5264
    %v5266 = vsel %vm775, %v5250, -inf
    %5267 = vmax.xlane.f32.xlu0 %v5266
    %v5268 = vpop.xlane.xlu0 %5267
    %v5269 = vsub.f32 %v5245, %v5253
    %v5270 = vsub.f32 %v5246, %v5256
    %v5271 = vsub.f32 %v5247, %v5259
    %v5272 = vsub.f32 %v5248, %v5262
    %v5273 = vsub.f32 %v5249, %v5265
    %v5274 = vsub.f32 %v5250, %v5268
    %v5275 = vmul.f32 %v5269, 1.442695
    %v5276 = vpow.pop %v5275
    %v5277 = vmul.f32 %v5270, 1.442695
    %v5278 = vpow.pop %v5277
    %v5279 = vmul.f32 %v5271, 1.442695
    %v5280 = vpow.pop %v5279
    %v5281 = vmul.f32 %v5272, 1.442695
    %v5282 = vpow.pop %v5281
    %v5283 = vmul.f32 %v5273, 1.442695
    %v5284 = vpow.pop %v5283
    %v5285 = vmul.f32 %v5274, 1.442695
    %v5286 = vpow.pop %v5285
    %v5287 = vsel %vm775, %v5276, 0.0
    %5288 = vadd.xlane.f32.xlu0 %v5287
    %v5289 = vpop.xlane.xlu0 %5288
    %v5290 = vsel %vm775, %v5278, 0.0
    %5291 = vadd.xlane.f32.xlu0 %v5290
    %v5292 = vpop.xlane.xlu0 %5291
    %v5293 = vsel %vm775, %v5280, 0.0
    %5294 = vadd.xlane.f32.xlu0 %v5293
    %v5295 = vpop.xlane.xlu0 %5294
    %v5296 = vsel %vm775, %v5282, 0.0
    %5297 = vadd.xlane.f32.xlu0 %v5296
    %v5298 = vpop.xlane.xlu0 %5297
    %v5299 = vsel %vm775, %v5284, 0.0
    %5300 = vadd.xlane.f32.xlu0 %v5299
    %v5301 = vpop.xlane.xlu0 %5300
    %v5302 = vsel %vm775, %v5286, 0.0
    %5303 = vadd.xlane.f32.xlu0 %v5302
    %v5304 = vpop.xlane.xlu0 %5303
    %v5305 = vrcp.pop %v5289
    %v5306 = vrcp.pop %v5292
    %v5307 = vrcp.pop %v5295
    %v5308 = vrcp.pop %v5298
    %v5309 = vrcp.pop %v5301
    %v5310 = vrcp.pop %v5304
    %v5311 = vmul.f32 %v5276, %v5305
    %v5312 = vmul.f32 %v5278, %v5306
    %v5313 = vmul.f32 %v5280, %v5307
    %v5314 = vmul.f32 %v5282, %v5308
    %v5315 = vmul.f32 %v5284, %v5309
    %v5316 = vmul.f32 %v5286, %v5310
    %5317 = vrot.lane.b32.xlu0 %v3437, 72
    %v5318 = vpop.permute.xlu0 %5317
    %5319 = vrot.lane.b32.xlu0 %v3442, 72
    %v5320 = vpop.permute.xlu0 %5319
    %5321 = vrot.lane.b32.xlu0 %v3447, 72
    %v5322 = vpop.permute.xlu0 %5321
    %v5327 = vsel %vm775, %v5311, 0
    %v5330 = vsel %vm775, %v5312, 0
    %v5333 = vsel %vm775, %v5313, 0
    %5335 = vmatprep.subr.mxu0 0.0
    %5336 = vmatpush1.msra.mxu0 %v5318
    %5337 = vmatprep.subr.mxu0 0.0
    %5338 = vmatpush1.msra.mxu0 %v5320
    %5339 = vmatprep.subr.mxu0 0.0
    %5340 = vmatpush1.msra.mxu0 %v5322
    %5341 = vmatprep.subr.mxu0 0.0
    %5342 = vmatpush1.msra.mxu0 0.0
    %5343 = vmatprep.subr.mxu0 0.0
    %5344 = vmatpush1.msra.mxu0 0.0
    %5345 = vmatprep.subr.mxu0 0.0
    %5346 = vmatpush1.msra.mxu0 0.0
    %5347 = vmatprep.subr.mxu0 0.0
    %5348 = vmatpush1.msra.mxu0 0.0
    %5349 = vmatprep.subr.mxu0 0.0
    %5350 = vmatpush1.msra.mxu0 0.0
    %5351 = vmatprep.subr.mxu0 0.0
    %5352 = vmatpush1.msra.mxu0 0.0
    %5353 = vmatprep.subr.mxu0 0.0
    %5354 = vmatpush1.msra.mxu0 0.0
    %5355 = vmatprep.subr.mxu0 0.0
    %5356 = vmatpush1.msra.mxu0 0.0
    %5357 = vmatprep.subr.mxu0 0.0
    %5358 = vmatpush1.msra.mxu0 0.0
    %5359 = vmatprep.subr.mxu0 0.0
    %5360 = vmatpush1.msra.mxu0 0.0
    %5361 = vmatprep.subr.mxu0 0.0
    %5362 = vmatpush1.msra.mxu0 0.0
    %5363 = vmatprep.subr.mxu0 0.0
    %5364 = vmatpush1.msra.mxu0 0.0
    %5365 = vmatprep.subr.mxu0 0.0
    %5366 = vmatpush1.msra.mxu0 0.0
    %5367 = vmatprep.subr.mxu0 0.0
    %5368 = vmatpush1.msra.mxu0 0.0
    %5369 = vmatprep.subr.mxu0 0.0
    %5370 = vmatpush1.msra.mxu0 0.0
    %5371 = vmatprep.subr.mxu0 0.0
    %5372 = vmatpush1.msra.mxu0 0.0
    %5373 = vmatprep.subr.mxu0 0.0
    %5374 = vmatpush1.msra.mxu0 0.0
    %5375 = vmatprep.subr.mxu0 0.0
    %5376 = vmatpush1.msra.mxu0 0.0
    %5377 = vmatprep.subr.mxu0 0.0
    %5378 = vmatpush1.msra.mxu0 0.0
    %5379 = vmatprep.subr.mxu0 0.0
    %5380 = vmatpush1.msra.mxu0 0.0
    %5381 = vmatprep.subr.mxu0 0.0
    %5382 = vmatpush1.msra.mxu0 0.0
    %5383 = vmatprep.subr.mxu0 0.0
    %5384 = vmatpush1.msra.mxu0 0.0
    %5385 = vmatprep.subr.mxu0 0.0
    %5386 = vmatpush1.msra.mxu0 0.0
    %5387 = vmatprep.subr.mxu0 0.0
    %5388 = vmatpush1.msra.mxu0 0.0
    %5389 = vmatprep.subr.mxu0 0.0
    %5390 = vmatpush1.msra.mxu0 0.0
    %5391 = vmatprep.subr.mxu0 0.0
    %5392 = vmatpush1.msra.mxu0 0.0
    %5393 = vmatprep.subr.mxu0 0.0
    %5394 = vmatpush1.msra.mxu0 0.0
    %5395 = vmatprep.subr.mxu0 0.0
    %5396 = vmatpush1.msra.mxu0 0.0
    %5397 = vmatprep.subr.mxu0 0.0
    %5398 = vmatpush1.msra.mxu0 0.0
    %5399 = vmatprep.mubr.f32.mxu0 0.0
    %5400 = vmatmul.mubr.f32.gmra.mrb[0].mxu0 %v5327
    %v5401 = vpop.f32.mrb[0].mxu0
    %v5402 = vadd.f32 0.0, %v5401
    %v5403 = vpop.f32.mrb[0].mxu0
    %5404 = vmatprep.mubr.f32.mxu0 0.0
    %5405 = vmatmul.mubr.f32.gmra.mrb[0].mxu0 %v5330
    %v5406 = vpop.f32.mrb[0].mxu0
    %v5407 = vadd.f32 0.0, %v5406
    %v5408 = vpop.f32.mrb[0].mxu0
    %5409 = vmatprep.mubr.f32.mxu0 0.0
    %5410 = vmatmul.mubr.f32.gmra.mrb[0].mxu0 %v5333
    %v5411 = vpop.f32.mrb[0].mxu0
    %v5412 = vadd.f32 0.0, %v5411
    %v5413 = vpop.f32.mrb[0].mxu0
    %5414 = vdwg.mxu0
    %5415 = vrot.lane.b32.xlu0 %v3452, 72
    %v5416 = vpop.permute.xlu0 %5415
    %5417 = vrot.lane.b32.xlu0 %v3457, 72
    %v5418 = vpop.permute.xlu0 %5417
    %5419 = vrot.lane.b32.xlu0 %v3462, 72
    %v5420 = vpop.permute.xlu0 %5419
    %v5425 = vsel %vm775, %v5314, 0
    %v5428 = vsel %vm775, %v5315, 0
    %v5431 = vsel %vm775, %v5316, 0
    %5433 = vmatprep.subr.mxu0 0.0
    %5434 = vmatpush1.msra.mxu0 %v5416
    %5435 = vmatprep.subr.mxu0 0.0
    %5436 = vmatpush1.msra.mxu0 %v5418
    %5437 = vmatprep.subr.mxu0 0.0
    %5438 = vmatpush1.msra.mxu0 %v5420
    %5439 = vmatprep.subr.mxu0 0.0
    %5440 = vmatpush1.msra.mxu0 0.0
    %5441 = vmatprep.subr.mxu0 0.0
    %5442 = vmatpush1.msra.mxu0 0.0
    %5443 = vmatprep.subr.mxu0 0.0
    %5444 = vmatpush1.msra.mxu0 0.0
    %5445 = vmatprep.subr.mxu0 0.0
    %5446 = vmatpush1.msra.mxu0 0.0
    %5447 = vmatprep.subr.mxu0 0.0
    %5448 = vmatpush1.msra.mxu0 0.0
    %5449 = vmatprep.subr.mxu0 0.0
    %5450 = vmatpush1.msra.mxu0 0.0
    %5451 = vmatprep.subr.mxu0 0.0
    %5452 = vmatpush1.msra.mxu0 0.0
    %5453 = vmatprep.subr.mxu0 0.0
    %5454 = vmatpush1.msra.mxu0 0.0
    %5455 = vmatprep.subr.mxu0 0.0
    %5456 = vmatpush1.msra.mxu0 0.0
    %5457 = vmatprep.subr.mxu0 0.0
    %5458 = vmatpush1.msra.mxu0 0.0
    %5459 = vmatprep.subr.mxu0 0.0
    %5460 = vmatpush1.msra.mxu0 0.0
    %5461 = vmatprep.subr.mxu0 0.0
    %5462 = vmatpush1.msra.mxu0 0.0
    %5463 = vmatprep.subr.mxu0 0.0
    %5464 = vmatpush1.msra.mxu0 0.0
    %5465 = vmatprep.subr.mxu0 0.0
    %5466 = vmatpush1.msra.mxu0 0.0
    %5467 = vmatprep.subr.mxu0 0.0
    %5468 = vmatpush1.msra.mxu0 0.0
    %5469 = vmatprep.subr.mxu0 0.0
    %5470 = vmatpush1.msra.mxu0 0.0
    %5471 = vmatprep.subr.mxu0 0.0
    %5472 = vmatpush1.msra.mxu0 0.0
    %5473 = vmatprep.subr.mxu0 0.0
    %5474 = vmatpush1.msra.mxu0 0.0
    %5475 = vmatprep.subr.mxu0 0.0
    %5476 = vmatpush1.msra.mxu0 0.0
    %5477 = vmatprep.subr.mxu0 0.0
    %5478 = vmatpush1.msra.mxu0 0.0
    %5479 = vmatprep.subr.mxu0 0.0
    %5480 = vmatpush1.msra.mxu0 0.0
    %5481 = vmatprep.subr.mxu0 0.0
    %5482 = vmatpush1.msra.mxu0 0.0
    %5483 = vmatprep.subr.mxu0 0.0
    %5484 = vmatpush1.msra.mxu0 0.0
    %5485 = vmatprep.subr.mxu0 0.0
    %5486 = vmatpush1.msra.mxu0 0.0
    %5487 = vmatprep.subr.mxu0 0.0
    %5488 = vmatpush1.msra.mxu0 0.0
    %5489 = vmatprep.subr.mxu0 0.0
    %5490 = vmatpush1.msra.mxu0 0.0
    %5491 = vmatprep.subr.mxu0 0.0
    %5492 = vmatpush1.msra.mxu0 0.0
    %5493 = vmatprep.subr.mxu0 0.0
    %5494 = vmatpush1.msra.mxu0 0.0
    %5495 = vmatprep.subr.mxu0 0.0
    %5496 = vmatpush1.msra.mxu0 0.0
    %5497 = vmatprep.mubr.f32.mxu0 0.0
    %5498 = vmatmul.mubr.f32.gmra.mrb[0].mxu0 %v5425
    %v5499 = vpop.f32.mrb[0].mxu0
    %v5500 = vadd.f32 0.0, %v5499
    %v5501 = vpop.f32.mrb[0].mxu0
    %5502 = vmatprep.mubr.f32.mxu0 0.0
    %5503 = vmatmul.mubr.f32.gmra.mrb[0].mxu0 %v5428
    %v5504 = vpop.f32.mrb[0].mxu0
    %v5505 = vadd.f32 0.0, %v5504
    %v5506 = vpop.f32.mrb[0].mxu0
    %5507 = vmatprep.mubr.f32.mxu0 0.0
    %5508 = vmatmul.mubr.f32.gmra.mrb[0].mxu0 %v5431
    %v5509 = vpop.f32.mrb[0].mxu0
    %v5510 = vadd.f32 0.0, %v5509
    %v5511 = vpop.f32.mrb[0].mxu0
    %5512 = vdwg.mxu0
    %5519 = vrot.lane.b32.xlu0 %v4438, 8
    %v5520 = vpop.permute.xlu0 %5519
    %5521 = vrot.lane.b32.xlu0 %v4443, 8
    %v5522 = vpop.permute.xlu0 %5521
    %5523 = vrot.lane.b32.xlu0 %v4448, 8
    %v5524 = vpop.permute.xlu0 %5523
    %5525 = vrot.lane.b32.xlu0 %v4536, 8
    %v5526 = vpop.permute.xlu0 %5525
    %5527 = vrot.lane.b32.xlu0 %v4541, 8
    %v5528 = vpop.permute.xlu0 %5527
    %5529 = vrot.lane.b32.xlu0 %v4546, 8
    %v5530 = vpop.permute.xlu0 %5529
    %5543 = vrot.lane.b32.xlu0 %v4920, 16
    %v5544 = vpop.permute.xlu0 %5543
    %5545 = vrot.lane.b32.xlu0 %v4925, 16
    %v5546 = vpop.permute.xlu0 %5545
    %5547 = vrot.lane.b32.xlu0 %v4930, 16
    %v5548 = vpop.permute.xlu0 %5547
    %5549 = vrot.lane.b32.xlu0 %v5018, 16
    %v5550 = vpop.permute.xlu0 %5549
    %5551 = vrot.lane.b32.xlu0 %v5023, 16
    %v5552 = vpop.permute.xlu0 %5551
    %5553 = vrot.lane.b32.xlu0 %v5028, 16
    %v5554 = vpop.permute.xlu0 %5553
    %5567 = vrot.lane.b32.xlu0 %v5402, 24
    %v5568 = vpop.permute.xlu0 %5567
    %5569 = vrot.lane.b32.xlu0 %v5407, 24
    %v5570 = vpop.permute.xlu0 %5569
    %5571 = vrot.lane.b32.xlu0 %v5412, 24
    %v5572 = vpop.permute.xlu0 %5571
    %5573 = vrot.lane.b32.xlu0 %v5500, 24
    %v5574 = vpop.permute.xlu0 %5573
    %5575 = vrot.lane.b32.xlu0 %v5505, 24
    %v5576 = vpop.permute.xlu0 %5575
    %5577 = vrot.lane.b32.xlu0 %v5510, 24
    %v5578 = vpop.permute.xlu0 %5577
    %v5585 = vsel %vm560, %v3956, %v5520
    %v5586 = vsel %vm560, %v3961, %v5522
    %v5587 = vsel %vm560, %v3966, %v5524
    %v5588 = vsel %vm560, %v4054, %v5526
    %v5589 = vsel %vm560, %v4059, %v5528
    %v5590 = vsel %vm560, %v4064, %v5530
    %v5591 = vsel %vm2562, %v5585, %v5544
    %v5592 = vsel %vm2562, %v5586, %v5546
    %v5593 = vsel %vm2562, %v5587, %v5548
    %v5594 = vsel %vm2562, %v5588, %v5550
    %v5595 = vsel %vm2562, %v5589, %v5552
    %v5596 = vsel %vm2562, %v5590, %v5554
    %v5597 = vsel %vm775, %v5591, %v5568
    %v5598 = vsel %vm775, %v5592, %v5570
    %v5599 = vsel %vm775, %v5593, %v5572
    %v5600 = vsel %vm775, %v5594, %v5574
    %v5601 = vsel %vm775, %v5595, %v5576
    %v5602 = vsel %vm775, %v5596, %v5578
    %5603 = vrot.lane.b32.xlu0 %v3222, 32
    %v5604 = vpop.permute.xlu0 %5603
    %5605 = vrot.lane.b32.xlu0 %v3223, 32
    %v5606 = vpop.permute.xlu0 %5605
    %5607 = vrot.lane.b32.xlu0 %v3224, 32
    %v5608 = vpop.permute.xlu0 %5607
    %5609 = vrot.lane.b32.xlu0 %v3225, 32
    %v5610 = vpop.permute.xlu0 %5609
    %5615 = vrot.lane.b32.xlu0 %v3350, 32
    %v5616 = vpop.permute.xlu0 %5615
    %v5619 = vsel %vm189, %v5597, 0
    %v5622 = vsel %vm189, %v5598, 0
    %v5625 = vsel %vm189, %v5599, 0
    %v5628 = vsel %vm189, %v5600, 0
    %v5631 = vsel %vm189, %v5601, 0
    %v5634 = vsel %vm189, %v5602, 0
    %5636 = vmatprep.subr.mxu0 0.0
    %5637 = vmatpush1.msra.mxu0 %v5604
    %5638 = vmatprep.subr.mxu0 0.0
    %5639 = vmatpush1.msra.mxu0 %v5606
    %5640 = vmatprep.subr.mxu0 0.0
    %5641 = vmatpush1.msra.mxu0 %v5608
    %5642 = vmatprep.subr.mxu0 0.0
    %5643 = vmatpush1.msra.mxu0 %v5610
    %5644 = vmatprep.subr.mxu0 0.0
    %5645 = vmatpush1.msra.mxu0 0.0
    %5646 = vmatprep.subr.mxu0 0.0
    %5647 = vmatpush1.msra.mxu0 0.0
    %5648 = vmatprep.subr.mxu0 0.0
    %5649 = vmatpush1.msra.mxu0 0.0
    %5650 = vmatprep.subr.mxu0 0.0
    %5651 = vmatpush1.msra.mxu0 0.0
    %5652 = vmatprep.subr.mxu0 0.0
    %5653 = vmatpush1.msra.mxu0 0.0
    %5654 = vmatprep.subr.mxu0 0.0
    %5655 = vmatpush1.msra.mxu0 0.0
    %5656 = vmatprep.subr.mxu0 0.0
    %5657 = vmatpush1.msra.mxu0 0.0
    %5658 = vmatprep.subr.mxu0 0.0
    %5659 = vmatpush1.msra.mxu0 0.0
    %5660 = vmatprep.subr.mxu0 0.0
    %5661 = vmatpush1.msra.mxu0 0.0
    %5662 = vmatprep.subr.mxu0 0.0
    %5663 = vmatpush1.msra.mxu0 0.0
    %5664 = vmatprep.subr.mxu0 0.0
    %5665 = vmatpush1.msra.mxu0 0.0
    %5666 = vmatprep.subr.mxu0 0.0
    %5667 = vmatpush1.msra.mxu0 0.0
    %5668 = vmatprep.subr.mxu0 0.0
    %5669 = vmatpush1.msra.mxu0 0.0
    %5670 = vmatprep.subr.mxu0 0.0
    %5671 = vmatpush1.msra.mxu0 0.0
    %5672 = vmatprep.subr.mxu0 0.0
    %5673 = vmatpush1.msra.mxu0 0.0
    %5674 = vmatprep.subr.mxu0 0.0
    %5675 = vmatpush1.msra.mxu0 0.0
    %5676 = vmatprep.subr.mxu0 0.0
    %5677 = vmatpush1.msra.mxu0 0.0
    %5678 = vmatprep.subr.mxu0 0.0
    %5679 = vmatpush1.msra.mxu0 0.0
    %5680 = vmatprep.subr.mxu0 0.0
    %5681 = vmatpush1.msra.mxu0 0.0
    %5682 = vmatprep.subr.mxu0 0.0
    %5683 = vmatpush1.msra.mxu0 0.0
    %5684 = vmatprep.subr.mxu0 0.0
    %5685 = vmatpush1.msra.mxu0 0.0
    %5686 = vmatprep.subr.mxu0 0.0
    %5687 = vmatpush1.msra.mxu0 0.0
    %5688 = vmatprep.subr.mxu0 0.0
    %5689 = vmatpush1.msra.mxu0 0.0
    %5690 = vmatprep.subr.mxu0 0.0
    %5691 = vmatpush1.msra.mxu0 0.0
    %5692 = vmatprep.subr.mxu0 0.0
    %5693 = vmatpush1.msra.mxu0 0.0
    %5694 = vmatprep.subr.mxu0 0.0
    %5695 = vmatpush1.msra.mxu0 0.0
    %5696 = vmatprep.subr.mxu0 0.0
    %5697 = vmatpush1.msra.mxu0 0.0
    %5698 = vmatprep.subr.mxu0 0.0
    %5699 = vmatpush1.msra.mxu0 0.0
    %5700 = vmatprep.mubr.f32.mxu0 0.0
    %5701 = vmatmul.mubr.f32.gmra.mrb[0].mxu0 %v5619
    %v5702 = vpop.f32.mrb[0].mxu0
    %v5703 = vadd.f32 %v5616, %v5702
    %v5704 = vpop.f32.mrb[0].mxu0
    %5705 = vmatprep.mubr.f32.mxu0 0.0
    %5706 = vmatmul.mubr.f32.gmra.mrb[0].mxu0 %v5622
    %v5707 = vpop.f32.mrb[0].mxu0
    %v5708 = vadd.f32 %v5616, %v5707
    %v5709 = vpop.f32.mrb[0].mxu0
    %5710 = vmatprep.mubr.f32.mxu0 0.0
    %5711 = vmatmul.mubr.f32.gmra.mrb[0].mxu0 %v5625
    %v5712 = vpop.f32.mrb[0].mxu0
    %v5713 = vadd.f32 %v5616, %v5712
    %v5714 = vpop.f32.mrb[0].mxu0
    %5715 = vmatprep.mubr.f32.mxu0 0.0
    %5716 = vmatmul.mubr.f32.gmra.mrb[0].mxu0 %v5628
    %v5717 = vpop.f32.mrb[0].mxu0
    %v5718 = vadd.f32 %v5616, %v5717
    %v5719 = vpop.f32.mrb[0].mxu0
    %5720 = vmatprep.mubr.f32.mxu0 0.0
    %5721 = vmatmul.mubr.f32.gmra.mrb[0].mxu0 %v5631
    %v5722 = vpop.f32.mrb[0].mxu0
    %v5723 = vadd.f32 %v5616, %v5722
    %v5724 = vpop.f32.mrb[0].mxu0
    %5725 = vmatprep.mubr.f32.mxu0 0.0
    %5726 = vmatmul.mubr.f32.gmra.mrb[0].mxu0 %v5634
    %v5727 = vpop.f32.mrb[0].mxu0
    %v5728 = vadd.f32 %v5616, %v5727
    %v5729 = vpop.f32.mrb[0].mxu0
    %5730 = vdwg.mxu0
    %v5731 = vadd.f32 %v3213, %v5703
    %v5732 = vadd.f32 %v3214, %v5708
    %v5733 = vadd.f32 %v3215, %v5713
    %v5734 = vadd.f32 %v3216, %v5718
    %v5735 = vadd.f32 %v3217, %v5723
    %v5736 = vadd.f32 %v3218, %v5728
    %v5737 = vsel %vm189, %v5731, 0.0
    %5738 = vadd.xlane.f32.xlu0 %v5737
    %v5739 = vpop.xlane.xlu0 %5738
    %v5740 = vsel %vm189, %v5732, 0.0
    %5741 = vadd.xlane.f32.xlu0 %v5740
    %v5742 = vpop.xlane.xlu0 %5741
    %v5743 = vsel %vm189, %v5733, 0.0
    %5744 = vadd.xlane.f32.xlu0 %v5743
    %v5745 = vpop.xlane.xlu0 %5744
    %v5746 = vsel %vm189, %v5734, 0.0
    %5747 = vadd.xlane.f32.xlu0 %v5746
    %v5748 = vpop.xlane.xlu0 %5747
    %v5749 = vsel %vm189, %v5735, 0.0
    %5750 = vadd.xlane.f32.xlu0 %v5749
    %v5751 = vpop.xlane.xlu0 %5750
    %v5752 = vsel %vm189, %v5736, 0.0
    %5753 = vadd.xlane.f32.xlu0 %v5752
    %v5754 = vpop.xlane.xlu0 %5753
    %v5755 = vmul.f32 %v5739, %v208
    %v5756 = vmul.f32 %v5742, %v208
    %v5757 = vmul.f32 %v5745, %v208
    %v5758 = vmul.f32 %v5748, %v208
    %v5759 = vmul.f32 %v5751, %v208
    %v5760 = vmul.f32 %v5754, %v208
    %v5761 = vsub.f32 %v5731, %v5755
    %v5762 = vsub.f32 %v5732, %v5756
    %v5763 = vsub.f32 %v5733, %v5757
    %v5764 = vsub.f32 %v5734, %v5758
    %v5765 = vsub.f32 %v5735, %v5759
    %v5766 = vsub.f32 %v5736, %v5760
    %v5767 = vmul.f32 %v5761, %v5761
    %v5768 = vmul.f32 %v5762, %v5762
    %v5769 = vmul.f32 %v5763, %v5763
    %v5770 = vmul.f32 %v5764, %v5764
    %v5771 = vmul.f32 %v5765, %v5765
    %v5772 = vmul.f32 %v5766, %v5766
    %v5773 = vsel %vm189, %v5767, 0.0
    %5774 = vadd.xlane.f32.xlu0 %v5773
    %v5775 = vpop.xlane.xlu0 %5774
    %v5776 = vsel %vm189, %v5768, 0.0
    %5777 = vadd.xlane.f32.xlu0 %v5776
    %v5778 = vpop.xlane.xlu0 %5777
    %v5779 = vsel %vm189, %v5769, 0.0
    %5780 = vadd.xlane.f32.xlu0 %v5779
    %v5781 = vpop.xlane.xlu0 %5780
    %v5782 = vsel %vm189, %v5770, 0.0
    %5783 = vadd.xlane.f32.xlu0 %v5782
    %v5784 = vpop.xlane.xlu0 %5783
    %v5785 = vsel %vm189, %v5771, 0.0
    %5786 = vadd.xlane.f32.xlu0 %v5785
    %v5787 = vpop.xlane.xlu0 %5786
    %v5788 = vsel %vm189, %v5772, 0.0
    %5789 = vadd.xlane.f32.xlu0 %v5788
    %v5790 = vpop.xlane.xlu0 %5789
    %v5791 = vmul.f32 %v5775, %v208
    %v5792 = vmul.f32 %v5778, %v208
    %v5793 = vmul.f32 %v5781, %v208
    %v5794 = vmul.f32 %v5784, %v208
    %v5795 = vmul.f32 %v5787, %v208
    %v5796 = vmul.f32 %v5790, %v208
    %v5797 = vadd.f32 %v5791, 1e-05
    %v5798 = vadd.f32 %v5792, 1e-05
    %v5799 = vadd.f32 %v5793, 1e-05
    %v5800 = vadd.f32 %v5794, 1e-05
    %v5801 = vadd.f32 %v5795, 1e-05
    %v5802 = vadd.f32 %v5796, 1e-05
    %v5803 = vrsqrt.pop %v5797
    %v5804 = vrsqrt.pop %v5798
    %v5805 = vrsqrt.pop %v5799
    %v5806 = vrsqrt.pop %v5800
    %v5807 = vrsqrt.pop %v5801
    %v5808 = vrsqrt.pop %v5802
    %v5809 = vmul.f32 %v5761, %v5803
    %v5810 = vmul.f32 %v5762, %v5804
    %v5811 = vmul.f32 %v5763, %v5805
    %v5812 = vmul.f32 %v5764, %v5806
    %v5813 = vmul.f32 %v5765, %v5807
    %v5814 = vmul.f32 %v5766, %v5808
    %v5815 = vmul.f32 %v5809, %v3329
    %v5816 = vmul.f32 %v5810, %v3329
    %v5817 = vmul.f32 %v5811, %v3329
    %v5818 = vmul.f32 %v5812, %v3329
    %v5819 = vmul.f32 %v5813, %v3329
    %v5820 = vmul.f32 %v5814, %v3329
    %v5821 = vadd.f32 %v5815, %v3339
    %v5822 = vadd.f32 %v5816, %v3339
    %v5823 = vadd.f32 %v5817, %v3339
    %v5824 = vadd.f32 %v5818, %v3339
    %v5825 = vadd.f32 %v5819, %v3339
    %v5826 = vadd.f32 %v5820, %v3339
    %s5827 = scalar_lea.vmem %s7, 32
    %v5828 = vld [vmem:[%s5827] sm:$0xff]
    %v5829 = vld [vmem:[%s5827 + $0x8] sm:$0xff]
    %v5830 = vld [vmem:[%s5827 + $0x10] sm:$0xff]
    %v5831 = vld [vmem:[%s5827 + $0x18] sm:$0xff]
    %s5832 = scalar_lea.vmem %s8, 1
    %v5833 = vld [vmem:[%s5832] sm:$0x1]
    %v5835 = vlaneseq
    %v5836 = vshrl.u32 %v5835, 7
    %v5837 = vsub.s32 0, %v5836
    %v5838 = vrot.slane %v5833, %v5837
    %v5841 = vsel %vm189, %v5821, 0
    %v5844 = vsel %vm189, %v5822, 0
    %v5847 = vsel %vm189, %v5823, 0
    %v5850 = vsel %vm189, %v5824, 0
    %v5853 = vsel %vm189, %v5825, 0
    %v5856 = vsel %vm189, %v5826, 0
    %5858 = vmatprep.subr.mxu0 0.0
    %5859 = vmatpush1.msra.mxu0 %v5828
    %5860 = vmatprep.subr.mxu0 0.0
    %5861 = vmatpush1.msra.mxu0 %v5829
    %5862 = vmatprep.subr.mxu0 0.0
    %5863 = vmatpush1.msra.mxu0 %v5830
    %5864 = vmatprep.subr.mxu0 0.0
    %5865 = vmatpush1.msra.mxu0 %v5831
    %5866 = vmatprep.subr.mxu0 0.0
    %5867 = vmatpush1.msra.mxu0 0.0
    %5868 = vmatprep.subr.mxu0 0.0
    %5869 = vmatpush1.msra.mxu0 0.0
    %5870 = vmatprep.subr.mxu0 0.0
    %5871 = vmatpush1.msra.mxu0 0.0
    %5872 = vmatprep.subr.mxu0 0.0
    %5873 = vmatpush1.msra.mxu0 0.0
    %5874 = vmatprep.subr.mxu0 0.0
    %5875 = vmatpush1.msra.mxu0 0.0
    %5876 = vmatprep.subr.mxu0 0.0
    %5877 = vmatpush1.msra.mxu0 0.0
    %5878 = vmatprep.subr.mxu0 0.0
    %5879 = vmatpush1.msra.mxu0 0.0
    %5880 = vmatprep.subr.mxu0 0.0
    %5881 = vmatpush1.msra.mxu0 0.0
    %5882 = vmatprep.subr.mxu0 0.0
    %5883 = vmatpush1.msra.mxu0 0.0
    %5884 = vmatprep.subr.mxu0 0.0
    %5885 = vmatpush1.msra.mxu0 0.0
    %5886 = vmatprep.subr.mxu0 0.0
    %5887 = vmatpush1.msra.mxu0 0.0
    %5888 = vmatprep.subr.mxu0 0.0
    %5889 = vmatpush1.msra.mxu0 0.0
    %5890 = vmatprep.subr.mxu0 0.0
    %5891 = vmatpush1.msra.mxu0 0.0
    %5892 = vmatprep.subr.mxu0 0.0
    %5893 = vmatpush1.msra.mxu0 0.0
    %5894 = vmatprep.subr.mxu0 0.0
    %5895 = vmatpush1.msra.mxu0 0.0
    %5896 = vmatprep.subr.mxu0 0.0
    %5897 = vmatpush1.msra.mxu0 0.0
    %5898 = vmatprep.subr.mxu0 0.0
    %5899 = vmatpush1.msra.mxu0 0.0
    %5900 = vmatprep.subr.mxu0 0.0
    %5901 = vmatpush1.msra.mxu0 0.0
    %5902 = vmatprep.subr.mxu0 0.0
    %5903 = vmatpush1.msra.mxu0 0.0
    %5904 = vmatprep.subr.mxu0 0.0
    %5905 = vmatpush1.msra.mxu0 0.0
    %5906 = vmatprep.subr.mxu0 0.0
    %5907 = vmatpush1.msra.mxu0 0.0
    %5908 = vmatprep.subr.mxu0 0.0
    %5909 = vmatpush1.msra.mxu0 0.0
    %5910 = vmatprep.subr.mxu0 0.0
    %5911 = vmatpush1.msra.mxu0 0.0
    %5912 = vmatprep.subr.mxu0 0.0
    %5913 = vmatpush1.msra.mxu0 0.0
    %5914 = vmatprep.subr.mxu0 0.0
    %5915 = vmatpush1.msra.mxu0 0.0
    %5916 = vmatprep.subr.mxu0 0.0
    %5917 = vmatpush1.msra.mxu0 0.0
    %5918 = vmatprep.subr.mxu0 0.0
    %5919 = vmatpush1.msra.mxu0 0.0
    %5920 = vmatprep.subr.mxu0 0.0
    %5921 = vmatpush1.msra.mxu0 0.0
    %5922 = vmatprep.mubr.f32.mxu0 0.0
    %5923 = vmatmul.mubr.f32.gmra.mrb[0].mxu0 %v5841
    %v5924 = vpop.f32.mrb[0].mxu0
    %v5925 = vadd.f32 %v5838, %v5924
    %v5926 = vpop.f32.mrb[0].mxu0
    %5927 = vmatprep.mubr.f32.mxu0 0.0
    %5928 = vmatmul.mubr.f32.gmra.mrb[0].mxu0 %v5844
    %v5929 = vpop.f32.mrb[0].mxu0
    %v5930 = vadd.f32 %v5838, %v5929
    %v5931 = vpop.f32.mrb[0].mxu0
    %5932 = vmatprep.mubr.f32.mxu0 0.0
    %5933 = vmatmul.mubr.f32.gmra.mrb[0].mxu0 %v5847
    %v5934 = vpop.f32.mrb[0].mxu0
    %v5935 = vadd.f32 %v5838, %v5934
    %v5936 = vpop.f32.mrb[0].mxu0
    %5937 = vmatprep.mubr.f32.mxu0 0.0
    %5938 = vmatmul.mubr.f32.gmra.mrb[0].mxu0 %v5850
    %v5939 = vpop.f32.mrb[0].mxu0
    %v5940 = vadd.f32 %v5838, %v5939
    %v5941 = vpop.f32.mrb[0].mxu0
    %5942 = vmatprep.mubr.f32.mxu0 0.0
    %5943 = vmatmul.mubr.f32.gmra.mrb[0].mxu0 %v5853
    %v5944 = vpop.f32.mrb[0].mxu0
    %v5945 = vadd.f32 %v5838, %v5944
    %v5946 = vpop.f32.mrb[0].mxu0
    %5947 = vmatprep.mubr.f32.mxu0 0.0
    %5948 = vmatmul.mubr.f32.gmra.mrb[0].mxu0 %v5856
    %v5949 = vpop.f32.mrb[0].mxu0
    %v5950 = vadd.f32 %v5838, %v5949
    %v5951 = vpop.f32.mrb[0].mxu0
    %5952 = vdwg.mxu0
    %v5953 = vmul.f32 %v5925, 0.5
    %v5954 = vmul.f32 %v5930, 0.5
    %v5955 = vmul.f32 %v5935, 0.5
    %v5956 = vmul.f32 %v5940, 0.5
    %v5957 = vmul.f32 %v5945, 0.5
    %v5958 = vmul.f32 %v5950, 0.5
    %v5959 = vmul.f32 %v5925, 0.70710677
    %v5960 = vmul.f32 %v5930, 0.70710677
    %v5961 = vmul.f32 %v5935, 0.70710677
    %v5962 = vmul.f32 %v5940, 0.70710677
    %v5963 = vmul.f32 %v5945, 0.70710677
    %v5964 = vmul.f32 %v5950, 0.70710677
    %v5965 = vand.u32 2147483647, %v5959
    %v5966 = vand.u32 2147483647, %v5960
    %v5967 = vand.u32 2147483647, %v5961
    %v5968 = vand.u32 2147483647, %v5962
    %v5969 = vand.u32 2147483647, %v5963
    %v5970 = vand.u32 2147483647, %v5964
    %v5971 = vmul.f32 %v5965, 0.3275911
    %v5972 = vmul.f32 %v5966, 0.3275911
    %v5973 = vmul.f32 %v5967, 0.3275911
    %v5974 = vmul.f32 %v5968, 0.3275911
    %v5975 = vmul.f32 %v5969, 0.3275911
    %v5976 = vmul.f32 %v5970, 0.3275911
    %v5977 = vadd.f32 %v5971, 1.0
    %v5978 = vadd.f32 %v5972, 1.0
    %v5979 = vadd.f32 %v5973, 1.0
    %v5980 = vadd.f32 %v5974, 1.0
    %v5981 = vadd.f32 %v5975, 1.0
    %v5982 = vadd.f32 %v5976, 1.0
    %v5983 = vrcp.pop %v5977
    %v5984 = vmul.f32 1.0, %v5983
    %v5985 = vrcp.pop %v5978
    %v5986 = vmul.f32 1.0, %v5985
    %v5987 = vrcp.pop %v5979
    %v5988 = vmul.f32 1.0, %v5987
    %v5989 = vrcp.pop %v5980
    %v5990 = vmul.f32 1.0, %v5989
    %v5991 = vrcp.pop %v5981
    %v5992 = vmul.f32 1.0, %v5991
    %v5993 = vrcp.pop %v5982
    %v5994 = vmul.f32 1.0, %v5993
    %v5995 = vmul.f32 %v5984, 1.0614054
    %v5996 = vmul.f32 %v5986, 1.0614054
    %v5997 = vmul.f32 %v5988, 1.0614054
    %v5998 = vmul.f32 %v5990, 1.0614054
    %v5999 = vmul.f32 %v5992, 1.0614054
    %v6000 = vmul.f32 %v5994, 1.0614054
    %v6001 = vadd.f32 %v5995, -1.4531521
    %v6002 = vadd.f32 %v5996, -1.4531521
    %v6003 = vadd.f32 %v5997, -1.4531521
    %v6004 = vadd.f32 %v5998, -1.4531521
    %v6005 = vadd.f32 %v5999, -1.4531521
    %v6006 = vadd.f32 %v6000, -1.4531521
    %v6007 = vmul.f32 %v5984, %v6001
    %v6008 = vmul.f32 %v5986, %v6002
    %v6009 = vmul.f32 %v5988, %v6003
    %v6010 = vmul.f32 %v5990, %v6004
    %v6011 = vmul.f32 %v5992, %v6005
    %v6012 = vmul.f32 %v5994, %v6006
    %v6013 = vadd.f32 %v6007, 1.4214138
    %v6014 = vadd.f32 %v6008, 1.4214138
    %v6015 = vadd.f32 %v6009, 1.4214138
    %v6016 = vadd.f32 %v6010, 1.4214138
    %v6017 = vadd.f32 %v6011, 1.4214138
    %v6018 = vadd.f32 %v6012, 1.4214138
    %v6019 = vmul.f32 %v5984, %v6013
    %v6020 = vmul.f32 %v5986, %v6014
    %v6021 = vmul.f32 %v5988, %v6015
    %v6022 = vmul.f32 %v5990, %v6016
    %v6023 = vmul.f32 %v5992, %v6017
    %v6024 = vmul.f32 %v5994, %v6018
    %v6025 = vadd.f32 %v6019, -0.28449672
    %v6026 = vadd.f32 %v6020, -0.28449672
    %v6027 = vadd.f32 %v6021, -0.28449672
    %v6028 = vadd.f32 %v6022, -0.28449672
    %v6029 = vadd.f32 %v6023, -0.28449672
    %v6030 = vadd.f32 %v6024, -0.28449672
    %v6031 = vmul.f32 %v5984, %v6025
    %v6032 = vmul.f32 %v5986, %v6026
    %v6033 = vmul.f32 %v5988, %v6027
    %v6034 = vmul.f32 %v5990, %v6028
    %v6035 = vmul.f32 %v5992, %v6029
    %v6036 = vmul.f32 %v5994, %v6030
    %v6037 = vadd.f32 %v6031, 0.2548296
    %v6038 = vadd.f32 %v6032, 0.2548296
    %v6039 = vadd.f32 %v6033, 0.2548296
    %v6040 = vadd.f32 %v6034, 0.2548296
    %v6041 = vadd.f32 %v6035, 0.2548296
    %v6042 = vadd.f32 %v6036, 0.2548296
    %v6043 = vmul.f32 %v5984, %v6037
    %v6044 = vmul.f32 %v5986, %v6038
    %v6045 = vmul.f32 %v5988, %v6039
    %v6046 = vmul.f32 %v5990, %v6040
    %v6047 = vmul.f32 %v5992, %v6041
    %v6048 = vmul.f32 %v5994, %v6042
    %v6049 = vsub.f32 0.0, %v5965
    %v6050 = vsub.f32 0.0, %v5966
    %v6051 = vsub.f32 0.0, %v5967
    %v6052 = vsub.f32 0.0, %v5968
    %v6053 = vsub.f32 0.0, %v5969
    %v6054 = vsub.f32 0.0, %v5970
    %v6055 = vmul.f32 %v6049, %v5965
    %v6056 = vmul.f32 %v6050, %v5966
    %v6057 = vmul.f32 %v6051, %v5967
    %v6058 = vmul.f32 %v6052, %v5968
    %v6059 = vmul.f32 %v6053, %v5969
    %v6060 = vmul.f32 %v6054, %v5970
    %v6061 = vmul.f32 %v6055, 1.442695
    %v6062 = vpow.pop %v6061
    %v6063 = vmul.f32 %v6056, 1.442695
    %v6064 = vpow.pop %v6063
    %v6065 = vmul.f32 %v6057, 1.442695
    %v6066 = vpow.pop %v6065
    %v6067 = vmul.f32 %v6058, 1.442695
    %v6068 = vpow.pop %v6067
    %v6069 = vmul.f32 %v6059, 1.442695
    %v6070 = vpow.pop %v6069
    %v6071 = vmul.f32 %v6060, 1.442695
    %v6072 = vpow.pop %v6071
    %v6073 = vmul.f32 %v6043, %v6062
    %v6074 = vmul.f32 %v6044, %v6064
    %v6075 = vmul.f32 %v6045, %v6066
    %v6076 = vmul.f32 %v6046, %v6068
    %v6077 = vmul.f32 %v6047, %v6070
    %v6078 = vmul.f32 %v6048, %v6072
    %v6079 = vsub.f32 1.0, %v6073
    %v6080 = vsub.f32 1.0, %v6074
    %v6081 = vsub.f32 1.0, %v6075
    %v6082 = vsub.f32 1.0, %v6076
    %v6083 = vsub.f32 1.0, %v6077
    %v6084 = vsub.f32 1.0, %v6078
    %vm6085 = vcmp.lt.f32.partialorder %v5959, 0.0
    %vm6086 = vcmp.lt.f32.partialorder %v5960, 0.0
    %vm6087 = vcmp.lt.f32.partialorder %v5961, 0.0
    %vm6088 = vcmp.lt.f32.partialorder %v5962, 0.0
    %vm6089 = vcmp.lt.f32.partialorder %v5963, 0.0
    %vm6090 = vcmp.lt.f32.partialorder %v5964, 0.0
    %v6091 = vsub.f32 0.0, %v6079
    %v6092 = vsub.f32 0.0, %v6080
    %v6093 = vsub.f32 0.0, %v6081
    %v6094 = vsub.f32 0.0, %v6082
    %v6095 = vsub.f32 0.0, %v6083
    %v6096 = vsub.f32 0.0, %v6084
    %v6097 = vsel %vm6085, %v6091, %v6079
    %v6098 = vsel %vm6086, %v6092, %v6080
    %v6099 = vsel %vm6087, %v6093, %v6081
    %v6100 = vsel %vm6088, %v6094, %v6082
    %v6101 = vsel %vm6089, %v6095, %v6083
    %v6102 = vsel %vm6090, %v6096, %v6084
    %v6103 = vadd.f32 %v6097, 1.0
    %v6104 = vadd.f32 %v6098, 1.0
    %v6105 = vadd.f32 %v6099, 1.0
    %v6106 = vadd.f32 %v6100, 1.0
    %v6107 = vadd.f32 %v6101, 1.0
    %v6108 = vadd.f32 %v6102, 1.0
    %v6109 = vmul.f32 %v5953, %v6103
    %v6110 = vmul.f32 %v5954, %v6104
    %v6111 = vmul.f32 %v5955, %v6105
    %v6112 = vmul.f32 %v5956, %v6106
    %v6113 = vmul.f32 %v5957, %v6107
    %v6114 = vmul.f32 %v5958, %v6108
    %s6115 = scalar_lea.vmem %s9, 64
    %v6116 = vld [vmem:[%s6115] sm:$0xff]
    %v6117 = vld [vmem:[%s6115 + $0x8] sm:$0xff]
    %v6118 = vld [vmem:[%s6115 + $0x10] sm:$0xff]
    %v6119 = vld [vmem:[%s6115 + $0x18] sm:$0xff]
    %v6120 = vld [vmem:[%s6115 + $0x20] sm:$0xff]
    %v6121 = vld [vmem:[%s6115 + $0x28] sm:$0xff]
    %v6122 = vld [vmem:[%s6115 + $0x30] sm:$0xff]
    %v6123 = vld [vmem:[%s6115 + $0x38] sm:$0xff]
    %s6124 = scalar_lea.vmem %s10, 1
    %v6125 = vld [vmem:[%s6124] sm:$0x1]
    %v6127 = vlaneseq
    %v6128 = vshrl.u32 %v6127, 7
    %v6129 = vsub.s32 0, %v6128
    %v6130 = vrot.slane %v6125, %v6129
    %v6133 = vsel %vm68, %v6109, 0
    %v6136 = vsel %vm68, %v6110, 0
    %v6139 = vsel %vm68, %v6111, 0
    %v6142 = vsel %vm68, %v6112, 0
    %v6145 = vsel %vm68, %v6113, 0
    %v6148 = vsel %vm68, %v6114, 0
    %6150 = vmatprep.subr.mxu0 0.0
    %6151 = vmatpush1.msra.mxu0 %v6116
    %6152 = vmatprep.subr.mxu0 0.0
    %6153 = vmatpush1.msra.mxu0 %v6117
    %6154 = vmatprep.subr.mxu0 0.0
    %6155 = vmatpush1.msra.mxu0 %v6118
    %6156 = vmatprep.subr.mxu0 0.0
    %6157 = vmatpush1.msra.mxu0 %v6119
    %6158 = vmatprep.subr.mxu0 0.0
    %6159 = vmatpush1.msra.mxu0 %v6120
    %6160 = vmatprep.subr.mxu0 0.0
    %6161 = vmatpush1.msra.mxu0 %v6121
    %6162 = vmatprep.subr.mxu0 0.0
    %6163 = vmatpush1.msra.mxu0 %v6122
    %6164 = vmatprep.subr.mxu0 0.0
    %6165 = vmatpush1.msra.mxu0 %v6123
    %6166 = vmatprep.subr.mxu0 0.0
    %6167 = vmatpush1.msra.mxu0 0.0
    %6168 = vmatprep.subr.mxu0 0.0
    %6169 = vmatpush1.msra.mxu0 0.0
    %6170 = vmatprep.subr.mxu0 0.0
    %6171 = vmatpush1.msra.mxu0 0.0
    %6172 = vmatprep.subr.mxu0 0.0
    %6173 = vmatpush1.msra.mxu0 0.0
    %6174 = vmatprep.subr.mxu0 0.0
    %6175 = vmatpush1.msra.mxu0 0.0
    %6176 = vmatprep.subr.mxu0 0.0
    %6177 = vmatpush1.msra.mxu0 0.0
    %6178 = vmatprep.subr.mxu0 0.0
    %6179 = vmatpush1.msra.mxu0 0.0
    %6180 = vmatprep.subr.mxu0 0.0
    %6181 = vmatpush1.msra.mxu0 0.0
    %6182 = vmatprep.subr.mxu0 0.0
    %6183 = vmatpush1.msra.mxu0 0.0
    %6184 = vmatprep.subr.mxu0 0.0
    %6185 = vmatpush1.msra.mxu0 0.0
    %6186 = vmatprep.subr.mxu0 0.0
    %6187 = vmatpush1.msra.mxu0 0.0
    %6188 = vmatprep.subr.mxu0 0.0
    %6189 = vmatpush1.msra.mxu0 0.0
    %6190 = vmatprep.subr.mxu0 0.0
    %6191 = vmatpush1.msra.mxu0 0.0
    %6192 = vmatprep.subr.mxu0 0.0
    %6193 = vmatpush1.msra.mxu0 0.0
    %6194 = vmatprep.subr.mxu0 0.0
    %6195 = vmatpush1.msra.mxu0 0.0
    %6196 = vmatprep.subr.mxu0 0.0
    %6197 = vmatpush1.msra.mxu0 0.0
    %6198 = vmatprep.subr.mxu0 0.0
    %6199 = vmatpush1.msra.mxu0 0.0
    %6200 = vmatprep.subr.mxu0 0.0
    %6201 = vmatpush1.msra.mxu0 0.0
    %6202 = vmatprep.subr.mxu0 0.0
    %6203 = vmatpush1.msra.mxu0 0.0
    %6204 = vmatprep.subr.mxu0 0.0
    %6205 = vmatpush1.msra.mxu0 0.0
    %6206 = vmatprep.subr.mxu0 0.0
    %6207 = vmatpush1.msra.mxu0 0.0
    %6208 = vmatprep.subr.mxu0 0.0
    %6209 = vmatpush1.msra.mxu0 0.0
    %6210 = vmatprep.subr.mxu0 0.0
    %6211 = vmatpush1.msra.mxu0 0.0
    %6212 = vmatprep.subr.mxu0 0.0
    %6213 = vmatpush1.msra.mxu0 0.0
    %6214 = vmatprep.mubr.f32.mxu0 0.0
    %6215 = vmatmul.mubr.f32.gmra.mrb[0].mxu0 %v6133
    %v6216 = vpop.f32.mrb[0].mxu0
    %v6217 = vadd.f32 %v6130, %v6216
    %v6218 = vpop.f32.mrb[0].mxu0
    %6219 = vmatprep.mubr.f32.mxu0 0.0
    %6220 = vmatmul.mubr.f32.gmra.mrb[0].mxu0 %v6136
    %v6221 = vpop.f32.mrb[0].mxu0
    %v6222 = vpop.f32.mrb[0].mxu0
    %6223 = vmatprep.mubr.f32.mxu0 0.0
    %6224 = vmatmul.mubr.f32.gmra.mrb[0].mxu0 %v6139
    %v6225 = vpop.f32.mrb[0].mxu0
    %v6226 = vpop.f32.mrb[0].mxu0
    %6227 = vmatprep.mubr.f32.mxu0 0.0
    %6228 = vmatmul.mubr.f32.gmra.mrb[0].mxu0 %v6142
    %v6229 = vpop.f32.mrb[0].mxu0
    %v6230 = vadd.f32 %v6130, %v6229
    %v6231 = vpop.f32.mrb[0].mxu0
    %6232 = vmatprep.mubr.f32.mxu0 0.0
    %6233 = vmatmul.mubr.f32.gmra.mrb[0].mxu0 %v6145
    %v6234 = vpop.f32.mrb[0].mxu0
    %v6235 = vpop.f32.mrb[0].mxu0
    %6236 = vmatprep.mubr.f32.mxu0 0.0
    %6237 = vmatmul.mubr.f32.gmra.mrb[0].mxu0 %v6148
    %v6238 = vpop.f32.mrb[0].mxu0
    %v6239 = vpop.f32.mrb[0].mxu0
    %6240 = vdwg.mxu0
    %v6241 = vadd.f32 %v5731, %v6217
    %v6242 = vadd.f32 %v5734, %v6230
    %v6243 = vld [vmem:[%s11] sm:$0x3]
    %v6246 = vrot.slane %v6242, 7
    %vm6247 = vcmask 1041409
    %v6248 = vsel %vm6247, %v6246, %v6241
    %vm6250 = vcmask 254976
    %v6251 = vsel %vm6250, %v6248, 0.0
    %6252 = vadd.xlane.f32.xlu0 %v6251
    %v6253 = vpop.xlane.xlu0 %6252
    %v6254 = vmul.f32 %v6253, %v208
    %v6256 = vrot.slane %v6254, 1
    %v6259 = vsub.f32 %v6241, %v6254
    %v6260 = vsub.f32 %v6242, %v6256
    %v6261 = vmul.f32 %v6259, %v6259
    %v6262 = vmul.f32 %v6260, %v6260
    %v6265 = vrot.slane %v6262, 7
    %v6266 = vsel %vm6247, %v6265, %v6261
    %v6268 = vsel %vm6250, %v6266, 0.0
    %6269 = vadd.xlane.f32.xlu0 %v6268
    %v6270 = vpop.xlane.xlu0 %6269
    %v6271 = vmul.f32 %v6270, %v208
    %v6272 = vadd.f32 %v6271, 1e-05
    %v6273 = vrsqrt.pop %v6272
    %v6275 = vrot.slane %v6273, 1
    %v6278 = vmul.f32 %v6259, %v6273
    %v6279 = vmul.f32 %v6260, %v6275
    %v6280 = vlaneseq
    %v6281 = vshrl.u32 %v6280, 7
    %v6282 = vsub.s32 0, %v6281
    %v6283 = vrot.slane %v6243, %v6282
    %v6284 = vmul.f32 %v6278, %v6283
    %v6285 = vmul.f32 %v6279, %v6283
    %v6286 = vlaneseq
    %v6287 = vshrl.u32 %v6286, 7
    %v6288 = vsub.s32 1, %v6287
    %v6289 = vrot.slane %v6243, %v6288
    %v6290 = vadd.f32 %v6284, %v6289
    %v6291 = vadd.f32 %v6285, %v6289
    %v6292 = vld [vmem:[%s12] sm:$0xff]
    %v6293 = vld [vmem:[%s12 + $0x8] sm:$0xff]
    %v6294 = vld [vmem:[%s12 + $0x10] sm:$0xff]
    %v6295 = vld [vmem:[%s12 + $0x18] sm:$0xff]
    %v6296 = vld [vmem:[%s13] sm:$0x1]
    %v6298 = vlaneseq
    %v6299 = vshrl.u32 %v6298, 7
    %v6300 = vsub.s32 0, %v6299
    %v6301 = vrot.slane %v6296, %v6300
    %v6305 = vrot.slane %v6291, 7
    %v6306 = vsel %vm6247, %v6305, %v6290
    %v6307 = vsel %vm189, %v6306, 0
    %6309 = vmatprep.subr.mxu0 0.0
    %6310 = vmatpush1.msra.mxu0 %v6292
    %6311 = vmatprep.subr.mxu0 0.0
    %6312 = vmatpush1.msra.mxu0 %v6293
    %6313 = vmatprep.subr.mxu0 0.0
    %6314 = vmatpush1.msra.mxu0 %v6294
    %6315 = vmatprep.subr.mxu0 0.0
    %6316 = vmatpush1.msra.mxu0 %v6295
    %6317 = vmatprep.subr.mxu0 0.0
    %6318 = vmatpush1.msra.mxu0 0.0
    %6319 = vmatprep.subr.mxu0 0.0
    %6320 = vmatpush1.msra.mxu0 0.0
    %6321 = vmatprep.subr.mxu0 0.0
    %6322 = vmatpush1.msra.mxu0 0.0
    %6323 = vmatprep.subr.mxu0 0.0
    %6324 = vmatpush1.msra.mxu0 0.0
    %6325 = vmatprep.subr.mxu0 0.0
    %6326 = vmatpush1.msra.mxu0 0.0
    %6327 = vmatprep.subr.mxu0 0.0
    %6328 = vmatpush1.msra.mxu0 0.0
    %6329 = vmatprep.subr.mxu0 0.0
    %6330 = vmatpush1.msra.mxu0 0.0
    %6331 = vmatprep.subr.mxu0 0.0
    %6332 = vmatpush1.msra.mxu0 0.0
    %6333 = vmatprep.subr.mxu0 0.0
    %6334 = vmatpush1.msra.mxu0 0.0
    %6335 = vmatprep.subr.mxu0 0.0
    %6336 = vmatpush1.msra.mxu0 0.0
    %6337 = vmatprep.subr.mxu0 0.0
    %6338 = vmatpush1.msra.mxu0 0.0
    %6339 = vmatprep.subr.mxu0 0.0
    %6340 = vmatpush1.msra.mxu0 0.0
    %6341 = vmatprep.subr.mxu0 0.0
    %6342 = vmatpush1.msra.mxu0 0.0
    %6343 = vmatprep.subr.mxu0 0.0
    %6344 = vmatpush1.msra.mxu0 0.0
    %6345 = vmatprep.subr.mxu0 0.0
    %6346 = vmatpush1.msra.mxu0 0.0
    %6347 = vmatprep.subr.mxu0 0.0
    %6348 = vmatpush1.msra.mxu0 0.0
    %6349 = vmatprep.subr.mxu0 0.0
    %6350 = vmatpush1.msra.mxu0 0.0
    %6351 = vmatprep.subr.mxu0 0.0
    %6352 = vmatpush1.msra.mxu0 0.0
    %6353 = vmatprep.subr.mxu0 0.0
    %6354 = vmatpush1.msra.mxu0 0.0
    %6355 = vmatprep.subr.mxu0 0.0
    %6356 = vmatpush1.msra.mxu0 0.0
    %6357 = vmatprep.subr.mxu0 0.0
    %6358 = vmatpush1.msra.mxu0 0.0
    %6359 = vmatprep.subr.mxu0 0.0
    %6360 = vmatpush1.msra.mxu0 0.0
    %6361 = vmatprep.subr.mxu0 0.0
    %6362 = vmatpush1.msra.mxu0 0.0
    %6363 = vmatprep.subr.mxu0 0.0
    %6364 = vmatpush1.msra.mxu0 0.0
    %6365 = vmatprep.subr.mxu0 0.0
    %6366 = vmatpush1.msra.mxu0 0.0
    %6367 = vmatprep.subr.mxu0 0.0
    %6368 = vmatpush1.msra.mxu0 0.0
    %6369 = vmatprep.subr.mxu0 0.0
    %6370 = vmatpush1.msra.mxu0 0.0
    %6371 = vmatprep.subr.mxu0 0.0
    %6372 = vmatpush1.msra.mxu0 0.0
    %6373 = vmatprep.mubr.f32.mxu0 0.0
    %6374 = vmatmul.mubr.f32.gmra.mrb[0].mxu0 %v6307
    %v6375 = vpop.f32.mrb[0].mxu0
    %v6376 = vadd.f32 %v6301, %v6375
    %v6377 = vpop.f32.mrb[0].mxu0
    %6378 = vdwg.mxu0
    %6379 = vst [vmem:[#allocation2] sm:$0x3] %v6376
    // Predicated region
    $region58: #{vit_forward.1} parent=1 // pred_check
      _
    $region59: #{vit_forward.1} parent=1 // pred_check_branch
      %6381 = sbr.rel (0) target = $region61
    $region60: #{vit_forward.1} parent=1 // pred_region
      %s6383 = ssub.s32 32, 32
      %6384 = vsyncadd [#allocation3], %s6383
      %s6386 = sshll.u32 [#allocation2], 4
      %s6387 = int_to_ptr.vmem [resolvable:$true] %s6386
      %6389 = dma.vmem_to_hbm [thread:$0]  %s6387, 32, %s14, [#allocation3]
    $region61: #{vit_forward.1} parent=1 // pred_fallthru
      _
    // Predicated region
    $region62: #{vit_forward.1} parent=1 // pred_check
      _
    $region63: #{vit_forward.1} parent=1 // pred_check_branch
      %6391 = sbr.rel (0) target = $region65
    $region64: #{vit_forward.1} parent=1 // pred_region
      %6392 = dma.done [#allocation3], 32
    $region65: #{vit_forward.1} parent=1 // pred_fallthru
      _
    %6393 = vsyncpa [#allocation3], 1

</llo_original>
